<compile_context>
chip_gen: v7x
topology: tpu7x:2x2x1
jax: 0.10.0
libtpu: 0.0.40
codegen_flags: <defaults>
</compile_context>

<pallas_src>
import functools

import jax
import jax.numpy as jnp
from jax.experimental import pallas as pl
from jax.experimental.pallas import tpu as pltpu

EMB = 4096               # llama2 embedding dim (Linear(4096, 1024))
HID = 1024
FC2 = 256
NSPLIT = 5               # input_l is split into 5 chunks along dim 1
NSTREAM = NSPLIT + 1     # 5 compress Linears + fc1's mean-embedding block (w1[49:])
NFEAT = NSPLIT + 2       # 5 compressed chunks + padded bert + padded roberta
NFEAT_PAD = 8            # feature count padded to a sublane multiple (extra row all-zero)
PDIM = NFEAT * NFEAT     # 49 (flattened 7x7 co-occurrence matrix) -> fc1 rows [0:49)
NCOL = 2                 # output-column split of the weight stream (4 MiB bf16 blocks)


# -------- kernel 1: weight stream (5 compress Linears + fc1 mean-embedding block) --------
def _stream_kernel(nsplit, x_ref, w_ref, b_ref, o_ref):
    # x_ref: (B, 5, 4096) f32 (block index constant over the grid -> fetched once)
    # w_ref: (1, 4096, HID//NCOL) bf16    b_ref: (1, 1, HID//NCOL) f32
    # o_ref: (1, B, HID//NCOL) f32
    i = pl.program_id(0)                     # 0..4: compress Linear i, 5: fc1 w1a block
    xi = None
    for s in range(nsplit):
        # split s gets weight 1 when i == s, weight 1/5 when i == 5 (mean(input_l)).
        coef = ((i == s).astype(jnp.float32)
                + (i == nsplit).astype(jnp.float32) * (1.0 / nsplit))
        term = coef * x_ref[:, s, :]                                    # (B, 4096)
        xi = term if xi is None else xi + term
    y = jnp.dot(xi.astype(jnp.bfloat16), w_ref[0],
                preferred_element_type=jnp.float32) + b_ref[0]          # (B, hc)
    # ReLU only for the 5 compress Linears; the fc1 row is a partial pre-activation
    # (the head adds the co-occurrence term before fc1's ReLU).  Dropout == identity.
    o_ref[0] = jnp.where(i < nsplit, jnp.maximum(y, 0.0), y)


def stream(input_l, wc6, bc6):
    # input_l: (B, 5, 4096) f32   wc6: (6, 4096, 1024) bf16   bc6: (6, 1, 1024) f32
    # returns (6, B, 1024) f32: rows 0..4 = ReLU(compress_i(x_i)), row 5 = mean(l)@w1a + b1
    B = input_l.shape[0]
    hc = HID // NCOL
    return pl.pallas_call(
        functools.partial(_stream_kernel, NSPLIT),
        out_shape=jax.ShapeDtypeStruct((NSTREAM, B, HID), jnp.float32),
        grid_spec=pltpu.PrefetchScalarGridSpec(
            num_scalar_prefetch=0,
            grid=(NSTREAM, NCOL),
            in_specs=[
                pl.BlockSpec((B, NSPLIT, EMB), lambda i, j: (0, 0, 0)),
                pl.BlockSpec((1, EMB, hc), lambda i, j: (i, 0, j)),
                pl.BlockSpec((1, 1, hc), lambda i, j: (i, 0, j)),
            ],
            out_specs=pl.BlockSpec((1, B, hc), lambda i, j: (i, 0, j)),
        ),
        compiler_params=pltpu.CompilerParams(
            # the 6 weight rows are independent -> 3+3 split across v7x's two TensorCores.
            # TODO(synk): if profiling shows "parallel" does not shard across v7x cores,
            #             switch the leading axis to pltpu.CORE_PARALLEL.
            dimension_semantics=("parallel", "parallel"),
            # ~8.3 MiB live (4 MiB weight block + activations, double-buffered) + headroom.
            vmem_limit_bytes=24 * 1024 * 1024,
        ),
    )(input_l, wc6, bc6)


# ------ kernel 2 (small fused head): pad/assemble + gram + tanh + fc1 + fc2 + fc3 + softmax
def _head_kernel(sigma, db, dr, comp_ref, b_ref, r_ref, w1p_ref, w2_ref, b2_ref,
                 w3_ref, b3_ref, o_ref, feat_s):
    # comp_ref: (6, B, 1024) f32     b_ref: (B, db) f32      r_ref: (B, dr) f32
    # w1p_ref:  (64, 1024) f32 (zero-padded 7x7 -> 8x8 co-occurrence rows of fc1)
    # w2_ref: (1024, 256) bf16   b2_ref: (1, 256) f32   w3_ref: (256, C) f32   b3: (1, C)
    # o_ref: (B, C) f32          feat_s: VMEM (B, 8, 1024) f32 scratch
    #
    # 1) assemble the padded feature stack: 5 compressed chunks, bert, roberta, zero row.
    feat_s[...] = jnp.zeros_like(feat_s)
    for i in range(NSPLIT):
        feat_s[:, i, :] = comp_ref[i]
    feat_s[:, NSPLIT, 0:db] = b_ref[...]          # F.pad(input_b, (0, 1024 - db))
    feat_s[:, NSPLIT + 1, 0:dr] = r_ref[...]      # F.pad(input_r, (0, 1024 - dr))
    feat = feat_s[...]                            # (B, 8, 1024)

    # 2) co-occurrence pooling: batched gram on the MXU, then
    #    2*sigmoid(SIGMA*g) - 1 == tanh(0.5*SIGMA*g)  (exact identity, one EUP op).
    #    Padded row/col entries are tanh(0) = 0 and hit zero w1p rows -> no contribution.
    gram = jnp.einsum("bij,bkj->bik", feat, feat,
                      preferred_element_type=jnp.float32)                  # (B, 8, 8)
    p = jnp.tanh((0.5 * sigma) * gram)
    p_flat = jnp.concatenate([p[:, i, :] for i in range(NFEAT_PAD)], axis=-1)   # (B, 64)

    # 3) fc1 (mean-embedding part + bias already computed by the stream kernel) -> fc2 -> fc3.
    acc = comp_ref[NSPLIT]                        # (B, 1024) = mean(input_l) @ w1a + b1
    h1 = jnp.maximum(acc + jnp.dot(p_flat, w1p_ref[...],
                                   preferred_element_type=jnp.float32), 0.0)
    h2 = jnp.maximum(jnp.dot(h1.astype(jnp.bfloat16), w2_ref[...],
                             preferred_element_type=jnp.float32) + b2_ref[...], 0.0)
    logits = jnp.dot(h2, w3_ref[...],
                     preferred_element_type=jnp.float32) + b3_ref[...]
    e = jnp.exp(logits - jnp.max(logits, axis=-1, keepdims=True))
    o_ref[...] = (e / jnp.sum(e, axis=-1, keepdims=True)).astype(o_ref.dtype)


def head(comp, input_b, input_r, prep, sigma):
    _, B, _ = comp.shape
    db, dr = input_b.shape[1], input_r.shape[1]
    C = prep["w3"].shape[-1]
    return pl.pallas_call(
        functools.partial(_head_kernel, sigma, db, dr),
        out_shape=jax.ShapeDtypeStruct((B, C), jnp.float32),
        grid_spec=pltpu.PrefetchScalarGridSpec(
            num_scalar_prefetch=0,
            grid=(1,),
            in_specs=[
                pl.BlockSpec((NSTREAM, B, HID), lambda i: (0, 0, 0)),
                pl.BlockSpec((B, db), lambda i: (0, 0)),
                pl.BlockSpec((B, dr), lambda i: (0, 0)),
                pl.BlockSpec((NFEAT_PAD * NFEAT_PAD, HID), lambda i: (0, 0)),
                pl.BlockSpec((HID, FC2), lambda i: (0, 0)),
                pl.BlockSpec((1, FC2), lambda i: (0, 0)),
                pl.BlockSpec((FC2, C), lambda i: (0, 0)),
                pl.BlockSpec((1, C), lambda i: (0, 0)),
            ],
            out_specs=pl.BlockSpec((B, C), lambda i: (0, 0)),
            scratch_shapes=[pltpu.VMEM((B, NFEAT_PAD, HID), jnp.float32)],
        ),
        compiler_params=pltpu.CompilerParams(
            dimension_semantics=("arbitrary",),
        ),
    )(comp, input_b, input_r, prep["w1p"], prep["w2"], prep["b2"],
      prep["w3"], prep["b3"])


# ----------------------------------- glue / wrapper -----------------------------------
def downstream_forward(prep, input_l, input_b, input_r, sigma):
    # No XLA-side layout glue: both kernels consume the inputs in their native layouts.
    # TODO(synk): for large batch, tile the B axis of both kernels (block input_l / comp /
    #             feat / out over B) instead of whole-array blocks; at B=2 this is optimal.
    assert input_b.shape[1] <= HID and input_r.shape[1] <= HID, \
        "bert/roberta feature dim must be <= 1024"
    comp = stream(input_l, prep["wc6"], prep["bc6"])       # (6, B, 1024)
    return head(comp, input_b, input_r, prep, sigma)       # (B, C)


def init_params(key, class_num):
    # torch-equivalent f32 parameters: every Linear is x @ W + b, with W stored (in, out).
    ks = jax.random.split(key, 8)
    return {
        "wc": 0.02 * jax.random.normal(ks[0], (NSPLIT, EMB, HID), jnp.float32),
        "bc": 0.01 * jax.random.normal(ks[1], (NSPLIT, HID), jnp.float32),
        "w1": 0.02 * jax.random.normal(ks[2], (PDIM + EMB, HID), jnp.float32),
        "b1": 0.01 * jax.random.normal(ks[3], (HID,), jnp.float32),
        "w2": 0.05 * jax.random.normal(ks[4], (HID, FC2), jnp.float32),
        "b2": 0.01 * jax.random.normal(ks[5], (FC2,), jnp.float32),
        "w3": 0.05 * jax.random.normal(ks[6], (FC2, class_num), jnp.float32),
        "b3": 0.01 * jax.random.normal(ks[7], (class_num,), jnp.float32),
    }


def prepare_params(params):
    # One-time, per-model weight preparation (hoisted out of the per-call path):
    #   * the 5 compress weights and fc1's 4096 mean-embedding rows are stacked into one
    #     (6, 4096, 1024) bf16 weight stream (f32 accumulation in-kernel), with the
    #     matching bias stack (bc rows 0..4, b1 as row 5),
    #   * fc1's 49 co-occurrence rows are zero-padded 7x7 -> 8x8 and flattened to (64, 1024).
    # TODO(synk): numerics permitting, quantize wc6 to int8 (v5e/v6e) / fp8 (v7x) with
    #             per-channel scales for a further ~2x reduction of the weight stream.
    class_num = params["w3"].shape[-1]
    wc6 = jnp.concatenate([params["wc"], params["w1"][PDIM:][None]],
                          axis=0).astype(jnp.bfloat16)                 # (6, 4096, 1024)
    bc6 = jnp.concatenate([params["bc"], params["b1"][None]],
                          axis=0).reshape(NSTREAM, 1, HID)             # (6, 1, 1024) f32
    w1p = jnp.zeros((NFEAT_PAD, NFEAT_PAD, HID), jnp.float32)
    w1p = w1p.at[:NFEAT, :NFEAT, :].set(params["w1"][:PDIM].reshape(NFEAT, NFEAT, HID))
    return {
        "wc6": wc6,
        "bc6": bc6,
        "w1p": w1p.reshape(NFEAT_PAD * NFEAT_PAD, HID),                # (64, 1024) f32
        "w2": params["w2"].astype(jnp.bfloat16),                       # (1024, 256) bf16
        "b2": params["b2"].reshape(1, FC2),
        "w3": params["w3"],                                            # (256, C) f32
        "b3": params["b3"].reshape(1, class_num),
    }


def downstream_reference(prep, input_l, input_b, input_r, sigma):
    # Pure-JAX reference mirroring the torch forward (dropout = identity) with the same
    # bf16-weight precision choices as the kernels.
    B = input_l.shape[0]
    comp = []
    for i in range(NSPLIT):
        h = jnp.dot(input_l[:, i, :].astype(jnp.bfloat16), prep["wc6"][i],
                    preferred_element_type=jnp.float32) + prep["bc6"][i]
        comp.append(jnp.maximum(h, 0.0))
    b_pad = jnp.pad(input_b, ((0, 0), (0, HID - input_b.shape[1])))
    r_pad = jnp.pad(input_r, ((0, 0), (0, HID - input_r.shape[1])))
    feat = jnp.stack(comp + [b_pad, r_pad], axis=1)                    # (B, 7, 1024)
    gram = jnp.einsum("bij,bkj->bik", feat, feat)                      # (B, 7, 7)
    p = (2.0 * jax.nn.sigmoid(sigma * gram) - 1.0).reshape(B, PDIM)
    a = jnp.mean(input_l, axis=1)                                      # (B, 4096)
    w1p_49 = prep["w1p"].reshape(NFEAT_PAD, NFEAT_PAD, HID)[:NFEAT, :NFEAT]
    w1p_49 = w1p_49.reshape(PDIM, HID)
    h1 = (jnp.dot(p, w1p_49)
          + jnp.dot(a.astype(jnp.bfloat16), prep["wc6"][NSPLIT],
                    preferred_element_type=jnp.float32)
          + prep["bc6"][NSPLIT])
    h1 = jnp.maximum(h1, 0.0)
    h2 = jnp.maximum(jnp.dot(h1.astype(jnp.bfloat16), prep["w2"],
                             preferred_element_type=jnp.float32) + prep["b2"], 0.0)
    logits = jnp.dot(h2, prep["w3"]) + prep["b3"]
    return jax.nn.softmax(logits, axis=1)


if __name__ == "__main__":
    class_num = 8
    sigma = 0.05
    batch = 2

    key = jax.random.PRNGKey(0)
    kp, kl, kb, kr = jax.random.split(key, 4)
    params = init_params(kp, class_num)
    prep = prepare_params(params)   # one-time weight prep (bf16 cast, stream stack, w1p pad)

    input_l = jax.random.normal(kl, (batch, NSPLIT, EMB), jnp.float32)   # llama embeds
    input_b = jax.random.normal(kb, (batch, 768), jnp.float32)           # bert (pad -> 1024)
    input_r = jax.random.normal(kr, (batch, 1024), jnp.float32)          # roberta

    fwd = jax.jit(functools.partial(downstream_forward, sigma=sigma))
    out = jax.block_until_ready(fwd(prep, input_l, input_b, input_r))

    ref = downstream_reference(prep, input_l, input_b, input_r, sigma)
    assert out.shape == (batch, class_num)
    assert bool(jnp.allclose(jnp.sum(out, axis=1), 1.0, atol=2e-3))
    assert bool(jnp.allclose(out, ref, atol=1e-2, rtol=1e-2))
    print("KERNEL_OK")
</pallas_src>

<mosaic_0001>
module attributes {stable_mosaic.version = 11 : i64} {
  func.func @_head_kernel(%arg0: i32, %arg1: memref<6x2x1024xf32, #tpu.memory_space<vmem>>, %arg2: memref<2x768xf32, #tpu.memory_space<vmem>>, %arg3: memref<2x1024xf32, #tpu.memory_space<vmem>>, %arg4: memref<64x1024xf32, #tpu.memory_space<vmem>>, %arg5: memref<1024x256xbf16, #tpu.memory_space<vmem>>, %arg6: memref<1x256xf32, #tpu.memory_space<vmem>>, %arg7: memref<256x8xf32, #tpu.memory_space<vmem>>, %arg8: memref<1x8xf32, #tpu.memory_space<vmem>>, %arg9: memref<2x8xf32, #tpu.memory_space<vmem>>, %arg10: memref<2x8x1024xf32, #tpu.memory_space<vmem>>) attributes {dimension_semantics = [#tpu.dimension_semantics<arbitrary>], iteration_bounds = array<i64: 1>, scalar_prefetch = 0 : i64, scratch_operands = 1 : i64, tpu.core_type = #tpu.core_type<tc>, window_params = [{pipeline_mode = #tpu.pipeline_mode<synchronous>, transform_indices = @transform_0, window_bounds = array<i64: 6, 2, 1024>}, {pipeline_mode = #tpu.pipeline_mode<synchronous>, transform_indices = @transform_1, window_bounds = array<i64: 2, 768>}, {pipeline_mode = #tpu.pipeline_mode<synchronous>, transform_indices = @transform_2, window_bounds = array<i64: 2, 1024>}, {pipeline_mode = #tpu.pipeline_mode<synchronous>, transform_indices = @transform_3, window_bounds = array<i64: 64, 1024>}, {pipeline_mode = #tpu.pipeline_mode<synchronous>, transform_indices = @transform_4, window_bounds = array<i64: 1024, 256>}, {pipeline_mode = #tpu.pipeline_mode<synchronous>, transform_indices = @transform_5, window_bounds = array<i64: 1, 256>}, {pipeline_mode = #tpu.pipeline_mode<synchronous>, transform_indices = @transform_6, window_bounds = array<i64: 256, 8>}, {pipeline_mode = #tpu.pipeline_mode<synchronous>, transform_indices = @transform_7, window_bounds = array<i64: 1, 8>}, {pipeline_mode = #tpu.pipeline_mode<synchronous>, transform_indices = @transform_8, window_bounds = array<i64: 2, 8>}]} {
    %cst = arith.constant 0.000000e+00 : f32
    %0 = vector.broadcast %cst : f32 to vector<2x8x1024xf32>
    %c0 = arith.constant 0 : index
    %c0_0 = arith.constant 0 : index
    %c0_1 = arith.constant 0 : index
    %1 = vector.load %arg10[%c0, %c0_0, %c0_1] : memref<2x8x1024xf32, #tpu.memory_space<vmem>>, vector<2x8x1024xf32>
    tpu.vector_store %arg10[%c0, %c0_0, %c0_1], %0 {strides = array<i32>} : memref<2x8x1024xf32, #tpu.memory_space<vmem>>, vector<2x8x1024xf32>,
    %c0_2 = arith.constant 0 : index
    %c0_3 = arith.constant 0 : index
    %c0_4 = arith.constant 0 : index
    %2 = vector.load %arg1[%c0_2, %c0_3, %c0_4] : memref<6x2x1024xf32, #tpu.memory_space<vmem>>, vector<1x2x1024xf32>
    %3 = vector.shape_cast %2 : vector<1x2x1024xf32> to vector<2x1024xf32>
    %c0_5 = arith.constant 0 : index
    %c0_6 = arith.constant 0 : index
    %c0_7 = arith.constant 0 : index
    %4 = vector.load %arg10[%c0_5, %c0_6, %c0_7] : memref<2x8x1024xf32, #tpu.memory_space<vmem>>, vector<2x1x1024xf32>
    %5 = vector.shape_cast %4 : vector<2x1x1024xf32> to vector<2x1024xf32>
    %6 = vector.shape_cast %3 : vector<2x1024xf32> to vector<2x1x1024xf32>
    tpu.vector_store %arg10[%c0_5, %c0_6, %c0_7], %6 {strides = array<i32>} : memref<2x8x1024xf32, #tpu.memory_space<vmem>>, vector<2x1x1024xf32>,
    %c1 = arith.constant 1 : index
    %c0_8 = arith.constant 0 : index
    %c0_9 = arith.constant 0 : index
    %7 = vector.load %arg1[%c1, %c0_8, %c0_9] : memref<6x2x1024xf32, #tpu.memory_space<vmem>>, vector<1x2x1024xf32>
    %8 = vector.shape_cast %7 : vector<1x2x1024xf32> to vector<2x1024xf32>
    %c0_10 = arith.constant 0 : index
    %c1_11 = arith.constant 1 : index
    %c0_12 = arith.constant 0 : index
    %9 = vector.load %arg10[%c0_10, %c1_11, %c0_12] : memref<2x8x1024xf32, #tpu.memory_space<vmem>>, vector<2x1x1024xf32>
    %10 = vector.shape_cast %9 : vector<2x1x1024xf32> to vector<2x1024xf32>
    %11 = vector.shape_cast %8 : vector<2x1024xf32> to vector<2x1x1024xf32>
    tpu.vector_store %arg10[%c0_10, %c1_11, %c0_12], %11 {strides = array<i32>} : memref<2x8x1024xf32, #tpu.memory_space<vmem>>, vector<2x1x1024xf32>,
    %c2 = arith.constant 2 : index
    %c0_13 = arith.constant 0 : index
    %c0_14 = arith.constant 0 : index
    %12 = vector.load %arg1[%c2, %c0_13, %c0_14] : memref<6x2x1024xf32, #tpu.memory_space<vmem>>, vector<1x2x1024xf32>
    %13 = vector.shape_cast %12 : vector<1x2x1024xf32> to vector<2x1024xf32>
    %c0_15 = arith.constant 0 : index
    %c2_16 = arith.constant 2 : index
    %c0_17 = arith.constant 0 : index
    %14 = vector.load %arg10[%c0_15, %c2_16, %c0_17] : memref<2x8x1024xf32, #tpu.memory_space<vmem>>, vector<2x1x1024xf32>
    %15 = vector.shape_cast %14 : vector<2x1x1024xf32> to vector<2x1024xf32>
    %16 = vector.shape_cast %13 : vector<2x1024xf32> to vector<2x1x1024xf32>
    tpu.vector_store %arg10[%c0_15, %c2_16, %c0_17], %16 {strides = array<i32>} : memref<2x8x1024xf32, #tpu.memory_space<vmem>>, vector<2x1x1024xf32>,
    %c3 = arith.constant 3 : index
    %c0_18 = arith.constant 0 : index
    %c0_19 = arith.constant 0 : index
    %17 = vector.load %arg1[%c3, %c0_18, %c0_19] : memref<6x2x1024xf32, #tpu.memory_space<vmem>>, vector<1x2x1024xf32>
    %18 = vector.shape_cast %17 : vector<1x2x1024xf32> to vector<2x1024xf32>
    %c0_20 = arith.constant 0 : index
    %c3_21 = arith.constant 3 : index
    %c0_22 = arith.constant 0 : index
    %19 = vector.load %arg10[%c0_20, %c3_21, %c0_22] : memref<2x8x1024xf32, #tpu.memory_space<vmem>>, vector<2x1x1024xf32>
    %20 = vector.shape_cast %19 : vector<2x1x1024xf32> to vector<2x1024xf32>
    %21 = vector.shape_cast %18 : vector<2x1024xf32> to vector<2x1x1024xf32>
    tpu.vector_store %arg10[%c0_20, %c3_21, %c0_22], %21 {strides = array<i32>} : memref<2x8x1024xf32, #tpu.memory_space<vmem>>, vector<2x1x1024xf32>,
    %c4 = arith.constant 4 : index
    %c0_23 = arith.constant 0 : index
    %c0_24 = arith.constant 0 : index
    %22 = vector.load %arg1[%c4, %c0_23, %c0_24] : memref<6x2x1024xf32, #tpu.memory_space<vmem>>, vector<1x2x1024xf32>
    %23 = vector.shape_cast %22 : vector<1x2x1024xf32> to vector<2x1024xf32>
    %c0_25 = arith.constant 0 : index
    %c4_26 = arith.constant 4 : index
    %c0_27 = arith.constant 0 : index
    %24 = vector.load %arg10[%c0_25, %c4_26, %c0_27] : memref<2x8x1024xf32, #tpu.memory_space<vmem>>, vector<2x1x1024xf32>
    %25 = vector.shape_cast %24 : vector<2x1x1024xf32> to vector<2x1024xf32>
    %26 = vector.shape_cast %23 : vector<2x1024xf32> to vector<2x1x1024xf32>
    tpu.vector_store %arg10[%c0_25, %c4_26, %c0_27], %26 {strides = array<i32>} : memref<2x8x1024xf32, #tpu.memory_space<vmem>>, vector<2x1x1024xf32>,
    %c0_28 = arith.constant 0 : index
    %c0_29 = arith.constant 0 : index
    %27 = vector.load %arg2[%c0_28, %c0_29] : memref<2x768xf32, #tpu.memory_space<vmem>>, vector<2x768xf32>
    %c0_30 = arith.constant 0 : index
    %c5 = arith.constant 5 : index
    %c0_31 = arith.constant 0 : index
    %28 = vector.load %arg10[%c0_30, %c5, %c0_31] : memref<2x8x1024xf32, #tpu.memory_space<vmem>>, vector<2x1x768xf32>
    %29 = vector.shape_cast %28 : vector<2x1x768xf32> to vector<2x768xf32>
    %30 = vector.shape_cast %27 : vector<2x768xf32> to vector<2x1x768xf32>
    tpu.vector_store %arg10[%c0_30, %c5, %c0_31], %30 {strides = array<i32>} : memref<2x8x1024xf32, #tpu.memory_space<vmem>>, vector<2x1x768xf32>,
    %c0_32 = arith.constant 0 : index
    %c0_33 = arith.constant 0 : index
    %31 = vector.load %arg3[%c0_32, %c0_33] : memref<2x1024xf32, #tpu.memory_space<vmem>>, vector<2x1024xf32>
    %c0_34 = arith.constant 0 : index
    %c6 = arith.constant 6 : index
    %c0_35 = arith.constant 0 : index
    %32 = vector.load %arg10[%c0_34, %c6, %c0_35] : memref<2x8x1024xf32, #tpu.memory_space<vmem>>, vector<2x1x1024xf32>
    %33 = vector.shape_cast %32 : vector<2x1x1024xf32> to vector<2x1024xf32>
    %34 = vector.shape_cast %31 : vector<2x1024xf32> to vector<2x1x1024xf32>
    tpu.vector_store %arg10[%c0_34, %c6, %c0_35], %34 {strides = array<i32>} : memref<2x8x1024xf32, #tpu.memory_space<vmem>>, vector<2x1x1024xf32>,
    %c0_36 = arith.constant 0 : index
    %c0_37 = arith.constant 0 : index
    %c0_38 = arith.constant 0 : index
    %35 = vector.load %arg10[%c0_36, %c0_37, %c0_38] : memref<2x8x1024xf32, #tpu.memory_space<vmem>>, vector<2x8x1024xf32>
    "tpu.trace_start"() <{level = 10 : i32, message = "bij,bkj->bik"}> : () -> ()
    %cst_39 = arith.constant dense<0.000000e+00> : vector<2x8x8xf32>
    %36 = tpu.matmul %35, %35, %cst_39 {dimension_numbers = #tpu.dot_dimension_numbers<[2], [2], [1], [1], [0, 0, 0, 1, 1, 1], [0], [0]>} : vector<2x8x1024xf32>, vector<2x8x1024xf32>, vector<2x8x8xf32> -> vector<2x8x8xf32>
    "tpu.trace_stop"() : () -> ()
    %cst_40 = arith.constant 2.500000e-02 : f32
    %37 = vector.broadcast %cst_40 : f32 to vector<2x8x8xf32>
    %38 = arith.mulf %37, %36 : vector<2x8x8xf32>
    %39 = math.tanh %38 : vector<2x8x8xf32>
    %40 = vector.extract_strided_slice %39 {offsets = [0, 0, 0], sizes = [2, 1, 8], strides = [1, 1, 1]} : vector<2x8x8xf32> to vector<2x1x8xf32>
    %41 = vector.shape_cast %40 : vector<2x1x8xf32> to vector<2x8xf32>
    %42 = vector.extract_strided_slice %39 {offsets = [0, 1, 0], sizes = [2, 1, 8], strides = [1, 1, 1]} : vector<2x8x8xf32> to vector<2x1x8xf32>
    %43 = vector.shape_cast %42 : vector<2x1x8xf32> to vector<2x8xf32>
    %44 = vector.extract_strided_slice %39 {offsets = [0, 2, 0], sizes = [2, 1, 8], strides = [1, 1, 1]} : vector<2x8x8xf32> to vector<2x1x8xf32>
    %45 = vector.shape_cast %44 : vector<2x1x8xf32> to vector<2x8xf32>
    %46 = vector.extract_strided_slice %39 {offsets = [0, 3, 0], sizes = [2, 1, 8], strides = [1, 1, 1]} : vector<2x8x8xf32> to vector<2x1x8xf32>
    %47 = vector.shape_cast %46 : vector<2x1x8xf32> to vector<2x8xf32>
    %48 = vector.extract_strided_slice %39 {offsets = [0, 4, 0], sizes = [2, 1, 8], strides = [1, 1, 1]} : vector<2x8x8xf32> to vector<2x1x8xf32>
    %49 = vector.shape_cast %48 : vector<2x1x8xf32> to vector<2x8xf32>
    %50 = vector.extract_strided_slice %39 {offsets = [0, 5, 0], sizes = [2, 1, 8], strides = [1, 1, 1]} : vector<2x8x8xf32> to vector<2x1x8xf32>
    %51 = vector.shape_cast %50 : vector<2x1x8xf32> to vector<2x8xf32>
    %52 = vector.extract_strided_slice %39 {offsets = [0, 6, 0], sizes = [2, 1, 8], strides = [1, 1, 1]} : vector<2x8x8xf32> to vector<2x1x8xf32>
    %53 = vector.shape_cast %52 : vector<2x1x8xf32> to vector<2x8xf32>
    %54 = vector.extract_strided_slice %39 {offsets = [0, 7, 0], sizes = [2, 1, 8], strides = [1, 1, 1]} : vector<2x8x8xf32> to vector<2x1x8xf32>
    %55 = vector.shape_cast %54 : vector<2x1x8xf32> to vector<2x8xf32>
    %56 = tpu.concatenate %41, %43, %45, %47, %49, %51, %53, %55 in 1 : vector<2x8xf32>, vector<2x8xf32>, vector<2x8xf32>, vector<2x8xf32>, vector<2x8xf32>, vector<2x8xf32>, vector<2x8xf32>, vector<2x8xf32> -> vector<2x64xf32>
    %c5_41 = arith.constant 5 : index
    %c0_42 = arith.constant 0 : index
    %c0_43 = arith.constant 0 : index
    %57 = vector.load %arg1[%c5_41, %c0_42, %c0_43] : memref<6x2x1024xf32, #tpu.memory_space<vmem>>, vector<1x2x1024xf32>
    %58 = vector.shape_cast %57 : vector<1x2x1024xf32> to vector<2x1024xf32>
    %c0_44 = arith.constant 0 : index
    %c0_45 = arith.constant 0 : index
    %59 = vector.load %arg4[%c0_44, %c0_45] : memref<64x1024xf32, #tpu.memory_space<vmem>>, vector<64x1024xf32>
    %cst_46 = arith.constant dense<0.000000e+00> : vector<2x1024xf32>
    %60 = tpu.matmul %56, %59, %cst_46 {dimension_numbers = #tpu.dot_dimension_numbers<[1], [0], [0], [1], [0, 0, 1, 1], [], []>} : vector<2x64xf32>, vector<64x1024xf32>, vector<2x1024xf32> -> vector<2x1024xf32>
    %61 = arith.addf %58, %60 : vector<2x1024xf32>
    %cst_47 = arith.constant 0.000000e+00 : f32
    %62 = vector.broadcast %cst_47 : f32 to vector<2x1024xf32>
    %63 = arith.maximumf %61, %62 : vector<2x1024xf32>
    %64 = arith.truncf %63 : vector<2x1024xf32> to vector<2x1024xbf16>
    %c0_48 = arith.constant 0 : index
    %c0_49 = arith.constant 0 : index
    %65 = vector.load %arg5[%c0_48, %c0_49] : memref<1024x256xbf16, #tpu.memory_space<vmem>>, vector<1024x256xbf16>
    %cst_50 = arith.constant dense<0.000000e+00> : vector<2x256xf32>
    %66 = tpu.matmul %64, %65, %cst_50 {dimension_numbers = #tpu.dot_dimension_numbers<[1], [0], [0], [1], [0, 0, 1, 1], [], []>} : vector<2x1024xbf16>, vector<1024x256xbf16>, vector<2x256xf32> -> vector<2x256xf32>
    %c0_51 = arith.constant 0 : index
    %c0_52 = arith.constant 0 : index
    %67 = vector.load %arg6[%c0_51, %c0_52] : memref<1x256xf32, #tpu.memory_space<vmem>>, vector<1x256xf32>
    %68 = vector.broadcast %67 : vector<1x256xf32> to vector<2x256xf32>
    %69 = arith.addf %66, %68 : vector<2x256xf32>
    %cst_53 = arith.constant 0.000000e+00 : f32
    %70 = vector.broadcast %cst_53 : f32 to vector<2x256xf32>
    %71 = arith.maximumf %69, %70 : vector<2x256xf32>
    %c0_54 = arith.constant 0 : index
    %c0_55 = arith.constant 0 : index
    %72 = vector.load %arg7[%c0_54, %c0_55] : memref<256x8xf32, #tpu.memory_space<vmem>>, vector<256x8xf32>
    %cst_56 = arith.constant dense<0.000000e+00> : vector<2x8xf32>
    %73 = tpu.matmul %71, %72, %cst_56 {dimension_numbers = #tpu.dot_dimension_numbers<[1], [0], [0], [1], [0, 0, 1, 1], [], []>} : vector<2x256xf32>, vector<256x8xf32>, vector<2x8xf32> -> vector<2x8xf32>
    %c0_57 = arith.constant 0 : index
    %c0_58 = arith.constant 0 : index
    %74 = vector.load %arg8[%c0_57, %c0_58] : memref<1x8xf32, #tpu.memory_space<vmem>>, vector<1x8xf32>
    %75 = vector.broadcast %74 : vector<1x8xf32> to vector<2x8xf32>
    %76 = arith.addf %73, %75 : vector<2x8xf32>
    %cst_59 = arith.constant dense<0xFF800000> : vector<2xf32>
    %77 = vector.multi_reduction <maximumf>, %76, %cst_59 [1] : vector<2x8xf32> to vector<2xf32>
    %78 = vector.shape_cast %77 : vector<2xf32> to vector<2x1xf32>
    %79 = vector.broadcast %78 : vector<2x1xf32> to vector<2x8xf32>
    %80 = arith.subf %76, %79 : vector<2x8xf32>
    %81 = math.exp %80 : vector<2x8xf32>
    %cst_60 = arith.constant dense<0.000000e+00> : vector<2xf32>
    %82 = vector.multi_reduction <add>, %81, %cst_60 [1] : vector<2x8xf32> to vector<2xf32>
    %83 = vector.shape_cast %82 : vector<2xf32> to vector<2x1xf32>
    %84 = vector.broadcast %83 : vector<2x1xf32> to vector<2x8xf32>
    %85 = arith.divf %81, %84 : vector<2x8xf32>
    %c0_61 = arith.constant 0 : index
    %c0_62 = arith.constant 0 : index
    %86 = vector.load %arg9[%c0_61, %c0_62] : memref<2x8xf32, #tpu.memory_space<vmem>>, vector<2x8xf32>
    tpu.vector_store %arg9[%c0_61, %c0_62], %85 {strides = array<i32>} : memref<2x8xf32, #tpu.memory_space<vmem>>, vector<2x8xf32>,
    return
  }
  func.func @transform_0(%arg0: i32) -> (i32, i32, i32) {
    %c0_i32 = arith.constant 0 : i32
    %c0_i32_0 = arith.constant 0 : i32
    %c0_i32_1 = arith.constant 0 : i32
    %c0_i32_2 = arith.constant 0 : i32
    return %c0_i32, %c0_i32_0, %c0_i32_1 : i32, i32, i32
  }
  func.func @transform_1(%arg0: i32) -> (i32, i32) {
    %c0_i32 = arith.constant 0 : i32
    %c0_i32_0 = arith.constant 0 : i32
    %c0_i32_1 = arith.constant 0 : i32
    return %c0_i32, %c0_i32_0 : i32, i32
  }
  func.func @transform_2(%arg0: i32) -> (i32, i32) {
    %c0_i32 = arith.constant 0 : i32
    %c0_i32_0 = arith.constant 0 : i32
    %c0_i32_1 = arith.constant 0 : i32
    return %c0_i32, %c0_i32_0 : i32, i32
  }
  func.func @transform_3(%arg0: i32) -> (i32, i32) {
    %c0_i32 = arith.constant 0 : i32
    %c0_i32_0 = arith.constant 0 : i32
    %c0_i32_1 = arith.constant 0 : i32
    return %c0_i32, %c0_i32_0 : i32, i32
  }
  func.func @transform_4(%arg0: i32) -> (i32, i32) {
    %c0_i32 = arith.constant 0 : i32
    %c0_i32_0 = arith.constant 0 : i32
    %c0_i32_1 = arith.constant 0 : i32
    return %c0_i32, %c0_i32_0 : i32, i32
  }
  func.func @transform_5(%arg0: i32) -> (i32, i32) {
    %c0_i32 = arith.constant 0 : i32
    %c0_i32_0 = arith.constant 0 : i32
    %c0_i32_1 = arith.constant 0 : i32
    return %c0_i32, %c0_i32_0 : i32, i32
  }
  func.func @transform_6(%arg0: i32) -> (i32, i32) {
    %c0_i32 = arith.constant 0 : i32
    %c0_i32_0 = arith.constant 0 : i32
    %c0_i32_1 = arith.constant 0 : i32
    return %c0_i32, %c0_i32_0 : i32, i32
  }
  func.func @transform_7(%arg0: i32) -> (i32, i32) {
    %c0_i32 = arith.constant 0 : i32
    %c0_i32_0 = arith.constant 0 : i32
    %c0_i32_1 = arith.constant 0 : i32
    return %c0_i32, %c0_i32_0 : i32, i32
  }
  func.func @transform_8(%arg0: i32) -> (i32, i32) {
    %c0_i32 = arith.constant 0 : i32
    %c0_i32_0 = arith.constant 0 : i32
    %c0_i32_1 = arith.constant 0 : i32
    return %c0_i32, %c0_i32_0 : i32, i32
  }
}

module attributes {stable_mosaic.version = 11 : i64} {
  func.func @_stream_kernel(%arg0: i32, %arg1: i32, %arg2: memref<2x5x4096xf32, #tpu.memory_space<vmem>>, %arg3: memref<1x4096x512xbf16, #tpu.memory_space<vmem>>, %arg4: memref<1x1x512xf32, #tpu.memory_space<vmem>>, %arg5: memref<1x2x512xf32, #tpu.memory_space<vmem>>) attributes {dimension_semantics = [#tpu.dimension_semantics<parallel>, #tpu.dimension_semantics<parallel>], iteration_bounds = array<i64: 6, 2>, scalar_prefetch = 0 : i64, scratch_operands = 0 : i64, tpu.core_type = #tpu.core_type<tc>, window_params = [{pipeline_mode = #tpu.pipeline_mode<synchronous>, transform_indices = @transform_0, window_bounds = array<i64: 2, 5, 4096>}, {transform_indices = @transform_1, window_bounds = array<i64: 1, 4096, 512>}, {transform_indices = @transform_2, window_bounds = array<i64: 1, 1, 512>}, {transform_indices = @transform_3, window_bounds = array<i64: 1, 2, 512>}]} {
    %c0_i32 = arith.constant 0 : i32
    %0 = arith.cmpi eq, %arg0, %c0_i32 : i32
    %1 = arith.extui %0 : i1 to i32
    %2 = arith.sitofp %1 : i32 to f32
    %c5_i32 = arith.constant 5 : i32
    %3 = arith.cmpi eq, %arg0, %c5_i32 : i32
    %4 = arith.extui %3 : i1 to i32
    %5 = arith.sitofp %4 : i32 to f32
    %cst = arith.constant 2.000000e-01 : f32
    %6 = arith.mulf %5, %cst : f32
    %7 = arith.addf %2, %6 : f32
    %c0 = arith.constant 0 : index
    %c0_0 = arith.constant 0 : index
    %c0_1 = arith.constant 0 : index
    %8 = vector.load %arg2[%c0, %c0_0, %c0_1] : memref<2x5x4096xf32, #tpu.memory_space<vmem>>, vector<2x1x4096xf32>
    %9 = vector.shape_cast %8 : vector<2x1x4096xf32> to vector<2x4096xf32>
    %10 = vector.broadcast %7 : f32 to vector<2x4096xf32>
    %11 = arith.mulf %10, %9 : vector<2x4096xf32>
    %c1_i32 = arith.constant 1 : i32
    %12 = arith.cmpi eq, %arg0, %c1_i32 : i32
    %13 = arith.extui %12 : i1 to i32
    %14 = arith.sitofp %13 : i32 to f32
    %c5_i32_2 = arith.constant 5 : i32
    %15 = arith.cmpi eq, %arg0, %c5_i32_2 : i32
    %16 = arith.extui %15 : i1 to i32
    %17 = arith.sitofp %16 : i32 to f32
    %cst_3 = arith.constant 2.000000e-01 : f32
    %18 = arith.mulf %17, %cst_3 : f32
    %19 = arith.addf %14, %18 : f32
    %c0_4 = arith.constant 0 : index
    %c1 = arith.constant 1 : index
    %c0_5 = arith.constant 0 : index
    %20 = vector.load %arg2[%c0_4, %c1, %c0_5] : memref<2x5x4096xf32, #tpu.memory_space<vmem>>, vector<2x1x4096xf32>
    %21 = vector.shape_cast %20 : vector<2x1x4096xf32> to vector<2x4096xf32>
    %22 = vector.broadcast %19 : f32 to vector<2x4096xf32>
    %23 = arith.mulf %22, %21 : vector<2x4096xf32>
    %24 = arith.addf %11, %23 : vector<2x4096xf32>
    %c2_i32 = arith.constant 2 : i32
    %25 = arith.cmpi eq, %arg0, %c2_i32 : i32
    %26 = arith.extui %25 : i1 to i32
    %27 = arith.sitofp %26 : i32 to f32
    %c5_i32_6 = arith.constant 5 : i32
    %28 = arith.cmpi eq, %arg0, %c5_i32_6 : i32
    %29 = arith.extui %28 : i1 to i32
    %30 = arith.sitofp %29 : i32 to f32
    %cst_7 = arith.constant 2.000000e-01 : f32
    %31 = arith.mulf %30, %cst_7 : f32
    %32 = arith.addf %27, %31 : f32
    %c0_8 = arith.constant 0 : index
    %c2 = arith.constant 2 : index
    %c0_9 = arith.constant 0 : index
    %33 = vector.load %arg2[%c0_8, %c2, %c0_9] : memref<2x5x4096xf32, #tpu.memory_space<vmem>>, vector<2x1x4096xf32>
    %34 = vector.shape_cast %33 : vector<2x1x4096xf32> to vector<2x4096xf32>
    %35 = vector.broadcast %32 : f32 to vector<2x4096xf32>
    %36 = arith.mulf %35, %34 : vector<2x4096xf32>
    %37 = arith.addf %24, %36 : vector<2x4096xf32>
    %c3_i32 = arith.constant 3 : i32
    %38 = arith.cmpi eq, %arg0, %c3_i32 : i32
    %39 = arith.extui %38 : i1 to i32
    %40 = arith.sitofp %39 : i32 to f32
    %c5_i32_10 = arith.constant 5 : i32
    %41 = arith.cmpi eq, %arg0, %c5_i32_10 : i32
    %42 = arith.extui %41 : i1 to i32
    %43 = arith.sitofp %42 : i32 to f32
    %cst_11 = arith.constant 2.000000e-01 : f32
    %44 = arith.mulf %43, %cst_11 : f32
    %45 = arith.addf %40, %44 : f32
    %c0_12 = arith.constant 0 : index
    %c3 = arith.constant 3 : index
    %c0_13 = arith.constant 0 : index
    %46 = vector.load %arg2[%c0_12, %c3, %c0_13] : memref<2x5x4096xf32, #tpu.memory_space<vmem>>, vector<2x1x4096xf32>
    %47 = vector.shape_cast %46 : vector<2x1x4096xf32> to vector<2x4096xf32>
    %48 = vector.broadcast %45 : f32 to vector<2x4096xf32>
    %49 = arith.mulf %48, %47 : vector<2x4096xf32>
    %50 = arith.addf %37, %49 : vector<2x4096xf32>
    %c4_i32 = arith.constant 4 : i32
    %51 = arith.cmpi eq, %arg0, %c4_i32 : i32
    %52 = arith.extui %51 : i1 to i32
    %53 = arith.sitofp %52 : i32 to f32
    %c5_i32_14 = arith.constant 5 : i32
    %54 = arith.cmpi eq, %arg0, %c5_i32_14 : i32
    %55 = arith.extui %54 : i1 to i32
    %56 = arith.sitofp %55 : i32 to f32
    %cst_15 = arith.constant 2.000000e-01 : f32
    %57 = arith.mulf %56, %cst_15 : f32
    %58 = arith.addf %53, %57 : f32
    %c0_16 = arith.constant 0 : index
    %c4 = arith.constant 4 : index
    %c0_17 = arith.constant 0 : index
    %59 = vector.load %arg2[%c0_16, %c4, %c0_17] : memref<2x5x4096xf32, #tpu.memory_space<vmem>>, vector<2x1x4096xf32>
    %60 = vector.shape_cast %59 : vector<2x1x4096xf32> to vector<2x4096xf32>
    %61 = vector.broadcast %58 : f32 to vector<2x4096xf32>
    %62 = arith.mulf %61, %60 : vector<2x4096xf32>
    %63 = arith.addf %50, %62 : vector<2x4096xf32>
    %64 = arith.truncf %63 : vector<2x4096xf32> to vector<2x4096xbf16>
    %c0_18 = arith.constant 0 : index
    %c0_19 = arith.constant 0 : index
    %c0_20 = arith.constant 0 : index
    %65 = vector.load %arg3[%c0_18, %c0_19, %c0_20] : memref<1x4096x512xbf16, #tpu.memory_space<vmem>>, vector<1x4096x512xbf16>
    %66 = vector.shape_cast %65 : vector<1x4096x512xbf16> to vector<4096x512xbf16>
    %cst_21 = arith.constant dense<0.000000e+00> : vector<2x512xf32>
    %67 = tpu.matmul %64, %66, %cst_21 {dimension_numbers = #tpu.dot_dimension_numbers<[1], [0], [0], [1], [0, 0, 1, 1], [], []>} : vector<2x4096xbf16>, vector<4096x512xbf16>, vector<2x512xf32> -> vector<2x512xf32>
    %c0_22 = arith.constant 0 : index
    %c0_23 = arith.constant 0 : index
    %c0_24 = arith.constant 0 : index
    %68 = vector.load %arg4[%c0_22, %c0_23, %c0_24] : memref<1x1x512xf32, #tpu.memory_space<vmem>>, vector<1x1x512xf32>
    %69 = vector.shape_cast %68 : vector<1x1x512xf32> to vector<1x512xf32>
    %70 = vector.broadcast %69 : vector<1x512xf32> to vector<2x512xf32>
    %71 = arith.addf %67, %70 : vector<2x512xf32>
    %c5_i32_25 = arith.constant 5 : i32
    %72 = arith.cmpi slt, %arg0, %c5_i32_25 : i32
    %cst_26 = arith.constant 0.000000e+00 : f32
    %73 = vector.broadcast %cst_26 : f32 to vector<2x512xf32>
    %74 = arith.maximumf %71, %73 : vector<2x512xf32>
    %75 = arith.select %72, %74, %71 : vector<2x512xf32>
    %c0_27 = arith.constant 0 : index
    %c0_28 = arith.constant 0 : index
    %c0_29 = arith.constant 0 : index
    %76 = vector.load %arg5[%c0_27, %c0_28, %c0_29] : memref<1x2x512xf32, #tpu.memory_space<vmem>>, vector<1x2x512xf32>
    %77 = vector.shape_cast %76 : vector<1x2x512xf32> to vector<2x512xf32>
    %78 = vector.shape_cast %75 : vector<2x512xf32> to vector<1x2x512xf32>
    tpu.vector_store %arg5[%c0_27, %c0_28, %c0_29], %78 {strides = array<i32>} : memref<1x2x512xf32, #tpu.memory_space<vmem>>, vector<1x2x512xf32>,
    return
  }
  func.func @transform_0(%arg0: i32, %arg1: i32) -> (i32, i32, i32) {
    %c0_i32 = arith.constant 0 : i32
    %c0_i32_0 = arith.constant 0 : i32
    %c0_i32_1 = arith.constant 0 : i32
    %c0_i32_2 = arith.constant 0 : i32
    return %c0_i32, %c0_i32_0, %c0_i32_1 : i32, i32, i32
  }
  func.func @transform_1(%arg0: i32, %arg1: i32) -> (i32, i32, i32) {
    %c0_i32 = arith.constant 0 : i32
    %c0_i32_0 = arith.constant 0 : i32
    return %arg0, %c0_i32, %arg1 : i32, i32, i32
  }
  func.func @transform_2(%arg0: i32, %arg1: i32) -> (i32, i32, i32) {
    %c0_i32 = arith.constant 0 : i32
    %c0_i32_0 = arith.constant 0 : i32
    return %arg0, %c0_i32, %arg1 : i32, i32, i32
  }
  func.func @transform_3(%arg0: i32, %arg1: i32) -> (i32, i32, i32) {
    %c0_i32 = arith.constant 0 : i32
    %c0_i32_0 = arith.constant 0 : i32
    return %arg0, %c0_i32, %arg1 : i32, i32, i32
  }
}

</mosaic_0001>

<llo_original>
// kernel: downstream_forward.3
$region0: #{downstream_forward.3}
  #allocation0 [shape = 'u32[]', space=smem, size = 0x4, offset = 0x4, fixed_abs, tag = 'smem constant byte address 0x4 - core index']
  #allocation1 [shape = 'u32[144,128]{1,0:T(1,128)}', space=vmem, size = 0x12000, scoped, tag = 'internal scratch']
  #allocation2 [shape = 'f32[2,8,1024]{2,1,0:T(8,128)}', space=vmem, size = 0x10000, scoped, tag = 'scratch operand']
  %s0 = inlined_call_operand.vmem [shape: f32[6,2,1024], index: 0, kind: input, shape index: {}]
  %s1 = inlined_call_operand.vmem [shape: f32[2,768], index: 1, kind: input, shape index: {}]
  %s2 = inlined_call_operand.vmem [shape: f32[2,1024], index: 2, kind: input, shape index: {}]
  %s3 = inlined_call_operand.vmem [shape: f32[64,1024], index: 3, kind: input, shape index: {}]
  %s4 = inlined_call_operand.vmem [shape: bf16[1024,256], index: 4, kind: input, shape index: {}]
  %s5 = inlined_call_operand.vmem [shape: f32[1,256], index: 5, kind: input, shape index: {}]
  %s6 = inlined_call_operand.vmem [shape: f32[256,8], index: 6, kind: input, shape index: {}]
  %s7 = inlined_call_operand.vmem [shape: f32[1,8], index: 7, kind: input, shape index: {}]
  %s8 = inlined_call_operand.hbm [shape: f32[2,8], index: 8, kind: output, shape index: {}]
  %s9 = sld [smem:[#allocation0]]
  $region42: #{downstream_forward.3} parent=0
    _
  %s11 = ssub.s32 1, %s9
  %s12 = scalar_select 0, %s11, %s9
  $region1: #{downstream_forward.3} parent=0
    #allocation3 [shape = 'u8[1024]{0}', space=vmem, size = 0x400, scoped, tag = 'output window, operand 0, single buffered']
    #allocation4 [shape = 's32[1]{0}', space=sflag, size = 0x4, scoped, tag = 'scoped memory for downstream_forward.3']
    %13 = vsyncpa [#allocation4], 0
    // Predicated region
    $region2: #{downstream_forward.3} parent=1 // pred_check
      _
    $region3: #{downstream_forward.3} parent=1 // pred_check_branch
      %15 = sbr.rel (0) target = $region5
    $region4: #{downstream_forward.3} parent=1 // pred_region
      _
    $region5: #{downstream_forward.3} parent=1 // pred_fallthru
      _
    // Predicated region
    $region6: #{downstream_forward.3} parent=1 // pred_check
      _
    $region7: #{downstream_forward.3} parent=1 // pred_check_branch
      %17 = sbr.rel (0) target = $region9
    $region8: #{downstream_forward.3} parent=1 // pred_region
      _
    $region9: #{downstream_forward.3} parent=1 // pred_fallthru
      _
    // Predicated region
    $region10: #{downstream_forward.3} parent=1 // pred_check
      _
    $region11: #{downstream_forward.3} parent=1 // pred_check_branch
      %19 = sbr.rel (0) target = $region13
    $region12: #{downstream_forward.3} parent=1 // pred_region
      _
    $region13: #{downstream_forward.3} parent=1 // pred_fallthru
      _
    // Predicated region
    $region14: #{downstream_forward.3} parent=1 // pred_check
      _
    $region15: #{downstream_forward.3} parent=1 // pred_check_branch
      %21 = sbr.rel (0) target = $region17
    $region16: #{downstream_forward.3} parent=1 // pred_region
      _
    $region17: #{downstream_forward.3} parent=1 // pred_fallthru
      _
    // Predicated region
    $region18: #{downstream_forward.3} parent=1 // pred_check
      _
    $region19: #{downstream_forward.3} parent=1 // pred_check_branch
      %23 = sbr.rel (0) target = $region21
    $region20: #{downstream_forward.3} parent=1 // pred_region
      _
    $region21: #{downstream_forward.3} parent=1 // pred_fallthru
      _
    // Predicated region
    $region22: #{downstream_forward.3} parent=1 // pred_check
      _
    $region23: #{downstream_forward.3} parent=1 // pred_check_branch
      %25 = sbr.rel (0) target = $region25
    $region24: #{downstream_forward.3} parent=1 // pred_region
      _
    $region25: #{downstream_forward.3} parent=1 // pred_fallthru
      _
    // Predicated region
    $region26: #{downstream_forward.3} parent=1 // pred_check
      _
    $region27: #{downstream_forward.3} parent=1 // pred_check_branch
      %27 = sbr.rel (0) target = $region29
    $region28: #{downstream_forward.3} parent=1 // pred_region
      _
    $region29: #{downstream_forward.3} parent=1 // pred_fallthru
      _
    // Predicated region
    $region30: #{downstream_forward.3} parent=1 // pred_check
      _
    $region31: #{downstream_forward.3} parent=1 // pred_check_branch
      %29 = sbr.rel (0) target = $region33
    $region32: #{downstream_forward.3} parent=1 // pred_region
      _
    $region33: #{downstream_forward.3} parent=1 // pred_fallthru
      _
    %30 = vst [vmem:[#allocation2] sm:$0xff] 0.0
    %31 = vst [vmem:[#allocation2 + $0x8] sm:$0xff] 0.0
    %32 = vst [vmem:[#allocation2 + $0x10] sm:$0xff] 0.0
    %33 = vst [vmem:[#allocation2 + $0x18] sm:$0xff] 0.0
    %34 = vst [vmem:[#allocation2 + $0x20] sm:$0xff] 0.0
    %35 = vst [vmem:[#allocation2 + $0x28] sm:$0xff] 0.0
    %36 = vst [vmem:[#allocation2 + $0x30] sm:$0xff] 0.0
    %37 = vst [vmem:[#allocation2 + $0x38] sm:$0xff] 0.0
    %38 = vst [vmem:[#allocation2 + $0x40] sm:$0xff] 0.0
    %39 = vst [vmem:[#allocation2 + $0x48] sm:$0xff] 0.0
    %40 = vst [vmem:[#allocation2 + $0x50] sm:$0xff] 0.0
    %41 = vst [vmem:[#allocation2 + $0x58] sm:$0xff] 0.0
    %42 = vst [vmem:[#allocation2 + $0x60] sm:$0xff] 0.0
    %43 = vst [vmem:[#allocation2 + $0x68] sm:$0xff] 0.0
    %44 = vst [vmem:[#allocation2 + $0x70] sm:$0xff] 0.0
    %45 = vst [vmem:[#allocation2 + $0x78] sm:$0xff] 0.0
    %v46 = vld [vmem:[%s0] sm:$0xff]
    %v47 = vld [vmem:[%s0 + $0x8] sm:$0xff]
    %v51 = vunpack.c.l.s4 1966171168
    %v52 = vunpack.c.0.s8 %v51
    %v53 = vlaneseq
    %v54 = vshrl.u32 %v53, 7
    %v55 = vsub.s32 %v52, %v54
    %v56 = vrot.slane %v46, %v55
    %v58 = vunpack.c.l.s4 1966171168
    %v59 = vunpack.c.0.s8 %v58
    %v60 = vlaneseq
    %v61 = vshrl.u32 %v60, 7
    %v62 = vsub.s32 %v59, %v61
    %v63 = vrot.slane %v47, %v62
    %v64 = vcombine.low %v56, %v63
    %v65 = vcombine.high %v56, %v63
    %68 = vst [vmem:[#allocation2] ss:$8 sm:$0xf] %v64
    %69 = vst [vmem:[#allocation2] ss:$8 sm:$0xf0] %v64
    %s70 = scalar_lea.vmem [#allocation2], 64
    %71 = vst [vmem:[%s70] ss:$8 sm:$0xf] %v65
    %72 = vst [vmem:[%s70] ss:$8 sm:$0xf0] %v65
    %s73 = scalar_lea.vmem %s0, 16
    %v74 = vld [vmem:[%s73] sm:$0xff]
    %v75 = vld [vmem:[%s73 + $0x8] sm:$0xff]
    %v79 = vunpack.c.l.s4 1966171168
    %v80 = vunpack.c.0.s8 %v79
    %v81 = vlaneseq
    %v82 = vshrl.u32 %v81, 7
    %v83 = vsub.s32 %v80, %v82
    %v84 = vrot.slane %v74, %v83
    %v86 = vunpack.c.l.s4 1966171168
    %v87 = vunpack.c.0.s8 %v86
    %v88 = vlaneseq
    %v89 = vshrl.u32 %v88, 7
    %v90 = vsub.s32 %v87, %v89
    %v91 = vrot.slane %v75, %v90
    %v92 = vcombine.low %v84, %v91
    %v93 = vcombine.high %v84, %v91
    %s96 = scalar_lea.vmem [#allocation2], 1
    %97 = vst [vmem:[%s96] ss:$8 sm:$0xf] %v92
    %98 = vst [vmem:[%s96] ss:$8 sm:$0xf0] %v92
    %s99 = scalar_lea.vmem [#allocation2], 65
    %100 = vst [vmem:[%s99] ss:$8 sm:$0xf] %v93
    %101 = vst [vmem:[%s99] ss:$8 sm:$0xf0] %v93
    %s102 = scalar_lea.vmem %s0, 32
    %v103 = vld [vmem:[%s102] sm:$0xff]
    %v104 = vld [vmem:[%s102 + $0x8] sm:$0xff]
    %v108 = vunpack.c.l.s4 1966171168
    %v109 = vunpack.c.0.s8 %v108
    %v110 = vlaneseq
    %v111 = vshrl.u32 %v110, 7
    %v112 = vsub.s32 %v109, %v111
    %v113 = vrot.slane %v103, %v112
    %v115 = vunpack.c.l.s4 1966171168
    %v116 = vunpack.c.0.s8 %v115
    %v117 = vlaneseq
    %v118 = vshrl.u32 %v117, 7
    %v119 = vsub.s32 %v116, %v118
    %v120 = vrot.slane %v104, %v119
    %v121 = vcombine.low %v113, %v120
    %v122 = vcombine.high %v113, %v120
    %s125 = scalar_lea.vmem [#allocation2], 2
    %126 = vst [vmem:[%s125] ss:$8 sm:$0xf] %v121
    %127 = vst [vmem:[%s125] ss:$8 sm:$0xf0] %v121
    %s128 = scalar_lea.vmem [#allocation2], 66
    %129 = vst [vmem:[%s128] ss:$8 sm:$0xf] %v122
    %130 = vst [vmem:[%s128] ss:$8 sm:$0xf0] %v122
    %s131 = scalar_lea.vmem %s0, 48
    %v132 = vld [vmem:[%s131] sm:$0xff]
    %v133 = vld [vmem:[%s131 + $0x8] sm:$0xff]
    %v137 = vunpack.c.l.s4 1966171168
    %v138 = vunpack.c.0.s8 %v137
    %v139 = vlaneseq
    %v140 = vshrl.u32 %v139, 7
    %v141 = vsub.s32 %v138, %v140
    %v142 = vrot.slane %v132, %v141
    %v144 = vunpack.c.l.s4 1966171168
    %v145 = vunpack.c.0.s8 %v144
    %v146 = vlaneseq
    %v147 = vshrl.u32 %v146, 7
    %v148 = vsub.s32 %v145, %v147
    %v149 = vrot.slane %v133, %v148
    %v150 = vcombine.low %v142, %v149
    %v151 = vcombine.high %v142, %v149
    %s154 = scalar_lea.vmem [#allocation2], 3
    %155 = vst [vmem:[%s154] ss:$8 sm:$0xf] %v150
    %156 = vst [vmem:[%s154] ss:$8 sm:$0xf0] %v150
    %s157 = scalar_lea.vmem [#allocation2], 67
    %158 = vst [vmem:[%s157] ss:$8 sm:$0xf] %v151
    %159 = vst [vmem:[%s157] ss:$8 sm:$0xf0] %v151
    %s160 = scalar_lea.vmem %s0, 64
    %v161 = vld [vmem:[%s160] sm:$0xff]
    %v162 = vld [vmem:[%s160 + $0x8] sm:$0xff]
    %v166 = vunpack.c.l.s4 1966171168
    %v167 = vunpack.c.0.s8 %v166
    %v168 = vlaneseq
    %v169 = vshrl.u32 %v168, 7
    %v170 = vsub.s32 %v167, %v169
    %v171 = vrot.slane %v161, %v170
    %v173 = vunpack.c.l.s4 1966171168
    %v174 = vunpack.c.0.s8 %v173
    %v175 = vlaneseq
    %v176 = vshrl.u32 %v175, 7
    %v177 = vsub.s32 %v174, %v176
    %v178 = vrot.slane %v162, %v177
    %v179 = vcombine.low %v171, %v178
    %v180 = vcombine.high %v171, %v178
    %s183 = scalar_lea.vmem [#allocation2], 4
    %184 = vst [vmem:[%s183] ss:$8 sm:$0xf] %v179
    %185 = vst [vmem:[%s183] ss:$8 sm:$0xf0] %v179
    %s186 = scalar_lea.vmem [#allocation2], 68
    %187 = vst [vmem:[%s186] ss:$8 sm:$0xf] %v180
    %188 = vst [vmem:[%s186] ss:$8 sm:$0xf0] %v180
    %v189 = vld [vmem:[%s1] sm:$0xff]
    %v190 = vld [vmem:[%s1 + $0x8] sm:$0xf]
    %v194 = vunpack.c.l.s4 1966171168
    %v195 = vunpack.c.0.s8 %v194
    %v196 = vlaneseq
    %v197 = vshrl.u32 %v196, 7
    %v198 = vsub.s32 %v195, %v197
    %v199 = vrot.slane %v189, %v198
    %v201 = vunpack.c.l.s4 1966171168
    %v202 = vunpack.c.0.s8 %v201
    %v203 = vlaneseq
    %v204 = vshrl.u32 %v203, 7
    %v205 = vsub.s32 %v202, %v204
    %v206 = vrot.slane %v190, %v205
    %v207 = vcombine.low %v199, %v206
    %v208 = vcombine.high %v199, %v206
    %v211 = vlaneseq
    %vm212 = vcmp.ge.s32.totalorder %v211, 0
    %vm213 = vcmp.lt.s32.totalorder %v211, 768
    %vm214 = vmand %vm212, %vm213
    %s215 = scalar_lea.vmem [#allocation2], 5
    %216 = vst.msk [vmem:[%s215] ss:$8 sm:$0xf] %vm214, %v207
    %217 = vst.msk [vmem:[%s215] ss:$8 sm:$0x30] %vm214, %v207
    %s218 = scalar_lea.vmem [#allocation2], 69
    %219 = vst.msk [vmem:[%s218] ss:$8 sm:$0xf] %vm214, %v208
    %220 = vst.msk [vmem:[%s218] ss:$8 sm:$0x30] %vm214, %v208
    %v221 = vld [vmem:[%s2] sm:$0xff]
    %v222 = vld [vmem:[%s2 + $0x8] sm:$0xff]
    %v226 = vunpack.c.l.s4 1966171168
    %v227 = vunpack.c.0.s8 %v226
    %v228 = vlaneseq
    %v229 = vshrl.u32 %v228, 7
    %v230 = vsub.s32 %v227, %v229
    %v231 = vrot.slane %v221, %v230
    %v233 = vunpack.c.l.s4 1966171168
    %v234 = vunpack.c.0.s8 %v233
    %v235 = vlaneseq
    %v236 = vshrl.u32 %v235, 7
    %v237 = vsub.s32 %v234, %v236
    %v238 = vrot.slane %v222, %v237
    %v239 = vcombine.low %v231, %v238
    %v240 = vcombine.high %v231, %v238
    %s243 = scalar_lea.vmem [#allocation2], 6
    %244 = vst [vmem:[%s243] ss:$8 sm:$0xf] %v239
    %245 = vst [vmem:[%s243] ss:$8 sm:$0xf0] %v239
    %s246 = scalar_lea.vmem [#allocation2], 70
    %247 = vst [vmem:[%s246] ss:$8 sm:$0xf] %v240
    %248 = vst [vmem:[%s246] ss:$8 sm:$0xf0] %v240
    %v249 = vld [vmem:[#allocation2] sm:$0xff]
    %v250 = vld [vmem:[#allocation2 + $0x8] sm:$0xff]
    %v251 = vld [vmem:[#allocation2 + $0x10] sm:$0xff]
    %v252 = vld [vmem:[#allocation2 + $0x18] sm:$0xff]
    %v253 = vld [vmem:[#allocation2 + $0x20] sm:$0xff]
    %v254 = vld [vmem:[#allocation2 + $0x28] sm:$0xff]
    %v255 = vld [vmem:[#allocation2 + $0x30] sm:$0xff]
    %v256 = vld [vmem:[#allocation2 + $0x38] sm:$0xff]
    %v257 = vld [vmem:[#allocation2 + $0x40] sm:$0xff]
    %v258 = vld [vmem:[#allocation2 + $0x48] sm:$0xff]
    %v259 = vld [vmem:[#allocation2 + $0x50] sm:$0xff]
    %v260 = vld [vmem:[#allocation2 + $0x58] sm:$0xff]
    %v261 = vld [vmem:[#allocation2 + $0x60] sm:$0xff]
    %v262 = vld [vmem:[#allocation2 + $0x68] sm:$0xff]
    %v263 = vld [vmem:[#allocation2 + $0x70] sm:$0xff]
    %v264 = vld [vmem:[#allocation2 + $0x78] sm:$0xff]
    %265 = vmatprep.subr.mxu0 %v250
    %266 = vmatpush1.xpose.msra.mxu0 %v249
    %267 = vmatprep.subr.mxu0 0.0
    %268 = vmatpush1.xpose.msra.mxu0 0.0
    %269 = vmatprep.subr.mxu0 0.0
    %270 = vmatpush1.xpose.msra.mxu0 0.0
    %271 = vmatprep.subr.mxu0 0.0
    %272 = vmatpush1.xpose.msra.mxu0 0.0
    %273 = vmatprep.subr.mxu0 0.0
    %274 = vmatpush1.xpose.msra.mxu0 0.0
    %275 = vmatprep.subr.mxu0 0.0
    %276 = vmatpush1.xpose.msra.mxu0 0.0
    %277 = vmatprep.subr.mxu0 0.0
    %278 = vmatpush1.xpose.msra.mxu0 0.0
    %279 = vmatprep.subr.mxu0 0.0
    %280 = vmatpush1.xpose.msra.mxu0 0.0
    %281 = vmatprep.subr.mxu0 0.0
    %282 = vmatpush1.xpose.msra.mxu0 0.0
    %283 = vmatprep.subr.mxu0 0.0
    %284 = vmatpush1.xpose.msra.mxu0 0.0
    %285 = vmatprep.subr.mxu0 0.0
    %286 = vmatpush1.xpose.msra.mxu0 0.0
    %287 = vmatprep.subr.mxu0 0.0
    %288 = vmatpush1.xpose.msra.mxu0 0.0
    %289 = vmatprep.subr.mxu0 0.0
    %290 = vmatpush1.xpose.msra.mxu0 0.0
    %291 = vmatprep.subr.mxu0 0.0
    %292 = vmatpush1.xpose.msra.mxu0 0.0
    %293 = vmatprep.subr.mxu0 0.0
    %294 = vmatpush1.xpose.msra.mxu0 0.0
    %295 = vmatprep.subr.mxu0 0.0
    %296 = vmatpush1.xpose.msra.mxu0 0.0
    %297 = vmatprep.subr.mxu0 0.0
    %298 = vmatpush1.xpose.msra.mxu0 0.0
    %299 = vmatprep.subr.mxu0 0.0
    %300 = vmatpush1.xpose.msra.mxu0 0.0
    %301 = vmatprep.subr.mxu0 0.0
    %302 = vmatpush1.xpose.msra.mxu0 0.0
    %303 = vmatprep.subr.mxu0 0.0
    %304 = vmatpush1.xpose.msra.mxu0 0.0
    %305 = vmatprep.subr.mxu0 0.0
    %306 = vmatpush1.xpose.msra.mxu0 0.0
    %307 = vmatprep.subr.mxu0 0.0
    %308 = vmatpush1.xpose.msra.mxu0 0.0
    %309 = vmatprep.subr.mxu0 0.0
    %310 = vmatpush1.xpose.msra.mxu0 0.0
    %311 = vmatprep.subr.mxu0 0.0
    %312 = vmatpush1.xpose.msra.mxu0 0.0
    %313 = vmatprep.subr.mxu0 0.0
    %314 = vmatpush1.xpose.msra.mxu0 0.0
    %315 = vmatprep.subr.mxu0 0.0
    %316 = vmatpush1.xpose.msra.mxu0 0.0
    %317 = vmatprep.subr.mxu0 0.0
    %318 = vmatpush1.xpose.msra.mxu0 0.0
    %319 = vmatprep.subr.mxu0 0.0
    %320 = vmatpush1.xpose.msra.mxu0 0.0
    %321 = vmatprep.subr.mxu0 0.0
    %322 = vmatpush1.xpose.msra.mxu0 0.0
    %323 = vmatprep.subr.mxu0 0.0
    %324 = vmatpush1.xpose.msra.mxu0 0.0
    %325 = vmatprep.subr.mxu0 0.0
    %326 = vmatpush1.xpose.msra.mxu0 0.0
    %327 = vmatprep.subr.mxu0 0.0
    %328 = vmatpush1.xpose.msra.mxu0 0.0
    %329 = vmatprep.mubr.f32.mxu0 %v250
    %330 = vmatmul.mubr.f32.gmra.mrb[0].mxu0 %v249
    %v331 = vpop.f32.mrb[0].mxu0
    %v332 = vadd.f32 0.0, %v331
    %v333 = vpop.f32.mrb[0].mxu0
    %334 = vdwg.mxu0
    %335 = vmatprep.subr.mxu0 %v252
    %336 = vmatpush1.xpose.msra.mxu0 %v251
    %337 = vmatprep.subr.mxu0 0.0
    %338 = vmatpush1.xpose.msra.mxu0 0.0
    %339 = vmatprep.subr.mxu0 0.0
    %340 = vmatpush1.xpose.msra.mxu0 0.0
    %341 = vmatprep.subr.mxu0 0.0
    %342 = vmatpush1.xpose.msra.mxu0 0.0
    %343 = vmatprep.subr.mxu0 0.0
    %344 = vmatpush1.xpose.msra.mxu0 0.0
    %345 = vmatprep.subr.mxu0 0.0
    %346 = vmatpush1.xpose.msra.mxu0 0.0
    %347 = vmatprep.subr.mxu0 0.0
    %348 = vmatpush1.xpose.msra.mxu0 0.0
    %349 = vmatprep.subr.mxu0 0.0
    %350 = vmatpush1.xpose.msra.mxu0 0.0
    %351 = vmatprep.subr.mxu0 0.0
    %352 = vmatpush1.xpose.msra.mxu0 0.0
    %353 = vmatprep.subr.mxu0 0.0
    %354 = vmatpush1.xpose.msra.mxu0 0.0
    %355 = vmatprep.subr.mxu0 0.0
    %356 = vmatpush1.xpose.msra.mxu0 0.0
    %357 = vmatprep.subr.mxu0 0.0
    %358 = vmatpush1.xpose.msra.mxu0 0.0
    %359 = vmatprep.subr.mxu0 0.0
    %360 = vmatpush1.xpose.msra.mxu0 0.0
    %361 = vmatprep.subr.mxu0 0.0
    %362 = vmatpush1.xpose.msra.mxu0 0.0
    %363 = vmatprep.subr.mxu0 0.0
    %364 = vmatpush1.xpose.msra.mxu0 0.0
    %365 = vmatprep.subr.mxu0 0.0
    %366 = vmatpush1.xpose.msra.mxu0 0.0
    %367 = vmatprep.subr.mxu0 0.0
    %368 = vmatpush1.xpose.msra.mxu0 0.0
    %369 = vmatprep.subr.mxu0 0.0
    %370 = vmatpush1.xpose.msra.mxu0 0.0
    %371 = vmatprep.subr.mxu0 0.0
    %372 = vmatpush1.xpose.msra.mxu0 0.0
    %373 = vmatprep.subr.mxu0 0.0
    %374 = vmatpush1.xpose.msra.mxu0 0.0
    %375 = vmatprep.subr.mxu0 0.0
    %376 = vmatpush1.xpose.msra.mxu0 0.0
    %377 = vmatprep.subr.mxu0 0.0
    %378 = vmatpush1.xpose.msra.mxu0 0.0
    %379 = vmatprep.subr.mxu0 0.0
    %380 = vmatpush1.xpose.msra.mxu0 0.0
    %381 = vmatprep.subr.mxu0 0.0
    %382 = vmatpush1.xpose.msra.mxu0 0.0
    %383 = vmatprep.subr.mxu0 0.0
    %384 = vmatpush1.xpose.msra.mxu0 0.0
    %385 = vmatprep.subr.mxu0 0.0
    %386 = vmatpush1.xpose.msra.mxu0 0.0
    %387 = vmatprep.subr.mxu0 0.0
    %388 = vmatpush1.xpose.msra.mxu0 0.0
    %389 = vmatprep.subr.mxu0 0.0
    %390 = vmatpush1.xpose.msra.mxu0 0.0
    %391 = vmatprep.subr.mxu0 0.0
    %392 = vmatpush1.xpose.msra.mxu0 0.0
    %393 = vmatprep.subr.mxu0 0.0
    %394 = vmatpush1.xpose.msra.mxu0 0.0
    %395 = vmatprep.subr.mxu0 0.0
    %396 = vmatpush1.xpose.msra.mxu0 0.0
    %397 = vmatprep.subr.mxu0 0.0
    %398 = vmatpush1.xpose.msra.mxu0 0.0
    %399 = vmatprep.mubr.f32.mxu0 %v252
    %400 = vmatmul.mubr.f32.gmra.mrb[0].mxu0 %v251
    %v401 = vpop.f32.mrb[0].mxu0
    %v402 = vadd.f32 %v332, %v401
    %v403 = vpop.f32.mrb[0].mxu0
    %404 = vdwg.mxu0
    %405 = vmatprep.subr.mxu0 %v254
    %406 = vmatpush1.xpose.msra.mxu0 %v253
    %407 = vmatprep.subr.mxu0 0.0
    %408 = vmatpush1.xpose.msra.mxu0 0.0
    %409 = vmatprep.subr.mxu0 0.0
    %410 = vmatpush1.xpose.msra.mxu0 0.0
    %411 = vmatprep.subr.mxu0 0.0
    %412 = vmatpush1.xpose.msra.mxu0 0.0
    %413 = vmatprep.subr.mxu0 0.0
    %414 = vmatpush1.xpose.msra.mxu0 0.0
    %415 = vmatprep.subr.mxu0 0.0
    %416 = vmatpush1.xpose.msra.mxu0 0.0
    %417 = vmatprep.subr.mxu0 0.0
    %418 = vmatpush1.xpose.msra.mxu0 0.0
    %419 = vmatprep.subr.mxu0 0.0
    %420 = vmatpush1.xpose.msra.mxu0 0.0
    %421 = vmatprep.subr.mxu0 0.0
    %422 = vmatpush1.xpose.msra.mxu0 0.0
    %423 = vmatprep.subr.mxu0 0.0
    %424 = vmatpush1.xpose.msra.mxu0 0.0
    %425 = vmatprep.subr.mxu0 0.0
    %426 = vmatpush1.xpose.msra.mxu0 0.0
    %427 = vmatprep.subr.mxu0 0.0
    %428 = vmatpush1.xpose.msra.mxu0 0.0
    %429 = vmatprep.subr.mxu0 0.0
    %430 = vmatpush1.xpose.msra.mxu0 0.0
    %431 = vmatprep.subr.mxu0 0.0
    %432 = vmatpush1.xpose.msra.mxu0 0.0
    %433 = vmatprep.subr.mxu0 0.0
    %434 = vmatpush1.xpose.msra.mxu0 0.0
    %435 = vmatprep.subr.mxu0 0.0
    %436 = vmatpush1.xpose.msra.mxu0 0.0
    %437 = vmatprep.subr.mxu0 0.0
    %438 = vmatpush1.xpose.msra.mxu0 0.0
    %439 = vmatprep.subr.mxu0 0.0
    %440 = vmatpush1.xpose.msra.mxu0 0.0
    %441 = vmatprep.subr.mxu0 0.0
    %442 = vmatpush1.xpose.msra.mxu0 0.0
    %443 = vmatprep.subr.mxu0 0.0
    %444 = vmatpush1.xpose.msra.mxu0 0.0
    %445 = vmatprep.subr.mxu0 0.0
    %446 = vmatpush1.xpose.msra.mxu0 0.0
    %447 = vmatprep.subr.mxu0 0.0
    %448 = vmatpush1.xpose.msra.mxu0 0.0
    %449 = vmatprep.subr.mxu0 0.0
    %450 = vmatpush1.xpose.msra.mxu0 0.0
    %451 = vmatprep.subr.mxu0 0.0
    %452 = vmatpush1.xpose.msra.mxu0 0.0
    %453 = vmatprep.subr.mxu0 0.0
    %454 = vmatpush1.xpose.msra.mxu0 0.0
    %455 = vmatprep.subr.mxu0 0.0
    %456 = vmatpush1.xpose.msra.mxu0 0.0
    %457 = vmatprep.subr.mxu0 0.0
    %458 = vmatpush1.xpose.msra.mxu0 0.0
    %459 = vmatprep.subr.mxu0 0.0
    %460 = vmatpush1.xpose.msra.mxu0 0.0
    %461 = vmatprep.subr.mxu0 0.0
    %462 = vmatpush1.xpose.msra.mxu0 0.0
    %463 = vmatprep.subr.mxu0 0.0
    %464 = vmatpush1.xpose.msra.mxu0 0.0
    %465 = vmatprep.subr.mxu0 0.0
    %466 = vmatpush1.xpose.msra.mxu0 0.0
    %467 = vmatprep.subr.mxu0 0.0
    %468 = vmatpush1.xpose.msra.mxu0 0.0
    %469 = vmatprep.mubr.f32.mxu0 %v254
    %470 = vmatmul.mubr.f32.gmra.mrb[0].mxu0 %v253
    %v471 = vpop.f32.mrb[0].mxu0
    %v472 = vadd.f32 %v402, %v471
    %v473 = vpop.f32.mrb[0].mxu0
    %474 = vdwg.mxu0
    %475 = vmatprep.subr.mxu0 %v256
    %476 = vmatpush1.xpose.msra.mxu0 %v255
    %477 = vmatprep.subr.mxu0 0.0
    %478 = vmatpush1.xpose.msra.mxu0 0.0
    %479 = vmatprep.subr.mxu0 0.0
    %480 = vmatpush1.xpose.msra.mxu0 0.0
    %481 = vmatprep.subr.mxu0 0.0
    %482 = vmatpush1.xpose.msra.mxu0 0.0
    %483 = vmatprep.subr.mxu0 0.0
    %484 = vmatpush1.xpose.msra.mxu0 0.0
    %485 = vmatprep.subr.mxu0 0.0
    %486 = vmatpush1.xpose.msra.mxu0 0.0
    %487 = vmatprep.subr.mxu0 0.0
    %488 = vmatpush1.xpose.msra.mxu0 0.0
    %489 = vmatprep.subr.mxu0 0.0
    %490 = vmatpush1.xpose.msra.mxu0 0.0
    %491 = vmatprep.subr.mxu0 0.0
    %492 = vmatpush1.xpose.msra.mxu0 0.0
    %493 = vmatprep.subr.mxu0 0.0
    %494 = vmatpush1.xpose.msra.mxu0 0.0
    %495 = vmatprep.subr.mxu0 0.0
    %496 = vmatpush1.xpose.msra.mxu0 0.0
    %497 = vmatprep.subr.mxu0 0.0
    %498 = vmatpush1.xpose.msra.mxu0 0.0
    %499 = vmatprep.subr.mxu0 0.0
    %500 = vmatpush1.xpose.msra.mxu0 0.0
    %501 = vmatprep.subr.mxu0 0.0
    %502 = vmatpush1.xpose.msra.mxu0 0.0
    %503 = vmatprep.subr.mxu0 0.0
    %504 = vmatpush1.xpose.msra.mxu0 0.0
    %505 = vmatprep.subr.mxu0 0.0
    %506 = vmatpush1.xpose.msra.mxu0 0.0
    %507 = vmatprep.subr.mxu0 0.0
    %508 = vmatpush1.xpose.msra.mxu0 0.0
    %509 = vmatprep.subr.mxu0 0.0
    %510 = vmatpush1.xpose.msra.mxu0 0.0
    %511 = vmatprep.subr.mxu0 0.0
    %512 = vmatpush1.xpose.msra.mxu0 0.0
    %513 = vmatprep.subr.mxu0 0.0
    %514 = vmatpush1.xpose.msra.mxu0 0.0
    %515 = vmatprep.subr.mxu0 0.0
    %516 = vmatpush1.xpose.msra.mxu0 0.0
    %517 = vmatprep.subr.mxu0 0.0
    %518 = vmatpush1.xpose.msra.mxu0 0.0
    %519 = vmatprep.subr.mxu0 0.0
    %520 = vmatpush1.xpose.msra.mxu0 0.0
    %521 = vmatprep.subr.mxu0 0.0
    %522 = vmatpush1.xpose.msra.mxu0 0.0
    %523 = vmatprep.subr.mxu0 0.0
    %524 = vmatpush1.xpose.msra.mxu0 0.0
    %525 = vmatprep.subr.mxu0 0.0
    %526 = vmatpush1.xpose.msra.mxu0 0.0
    %527 = vmatprep.subr.mxu0 0.0
    %528 = vmatpush1.xpose.msra.mxu0 0.0
    %529 = vmatprep.subr.mxu0 0.0
    %530 = vmatpush1.xpose.msra.mxu0 0.0
    %531 = vmatprep.subr.mxu0 0.0
    %532 = vmatpush1.xpose.msra.mxu0 0.0
    %533 = vmatprep.subr.mxu0 0.0
    %534 = vmatpush1.xpose.msra.mxu0 0.0
    %535 = vmatprep.subr.mxu0 0.0
    %536 = vmatpush1.xpose.msra.mxu0 0.0
    %537 = vmatprep.subr.mxu0 0.0
    %538 = vmatpush1.xpose.msra.mxu0 0.0
    %539 = vmatprep.mubr.f32.mxu0 %v256
    %540 = vmatmul.mubr.f32.gmra.mrb[0].mxu0 %v255
    %v541 = vpop.f32.mrb[0].mxu0
    %v542 = vadd.f32 %v472, %v541
    %v543 = vpop.f32.mrb[0].mxu0
    %544 = vdwg.mxu0
    %545 = vmatprep.subr.mxu0 %v258
    %546 = vmatpush1.xpose.msra.mxu0 %v257
    %547 = vmatprep.subr.mxu0 0.0
    %548 = vmatpush1.xpose.msra.mxu0 0.0
    %549 = vmatprep.subr.mxu0 0.0
    %550 = vmatpush1.xpose.msra.mxu0 0.0
    %551 = vmatprep.subr.mxu0 0.0
    %552 = vmatpush1.xpose.msra.mxu0 0.0
    %553 = vmatprep.subr.mxu0 0.0
    %554 = vmatpush1.xpose.msra.mxu0 0.0
    %555 = vmatprep.subr.mxu0 0.0
    %556 = vmatpush1.xpose.msra.mxu0 0.0
    %557 = vmatprep.subr.mxu0 0.0
    %558 = vmatpush1.xpose.msra.mxu0 0.0
    %559 = vmatprep.subr.mxu0 0.0
    %560 = vmatpush1.xpose.msra.mxu0 0.0
    %561 = vmatprep.subr.mxu0 0.0
    %562 = vmatpush1.xpose.msra.mxu0 0.0
    %563 = vmatprep.subr.mxu0 0.0
    %564 = vmatpush1.xpose.msra.mxu0 0.0
    %565 = vmatprep.subr.mxu0 0.0
    %566 = vmatpush1.xpose.msra.mxu0 0.0
    %567 = vmatprep.subr.mxu0 0.0
    %568 = vmatpush1.xpose.msra.mxu0 0.0
    %569 = vmatprep.subr.mxu0 0.0
    %570 = vmatpush1.xpose.msra.mxu0 0.0
    %571 = vmatprep.subr.mxu0 0.0
    %572 = vmatpush1.xpose.msra.mxu0 0.0
    %573 = vmatprep.subr.mxu0 0.0
    %574 = vmatpush1.xpose.msra.mxu0 0.0
    %575 = vmatprep.subr.mxu0 0.0
    %576 = vmatpush1.xpose.msra.mxu0 0.0
    %577 = vmatprep.subr.mxu0 0.0
    %578 = vmatpush1.xpose.msra.mxu0 0.0
    %579 = vmatprep.subr.mxu0 0.0
    %580 = vmatpush1.xpose.msra.mxu0 0.0
    %581 = vmatprep.subr.mxu0 0.0
    %582 = vmatpush1.xpose.msra.mxu0 0.0
    %583 = vmatprep.subr.mxu0 0.0
    %584 = vmatpush1.xpose.msra.mxu0 0.0
    %585 = vmatprep.subr.mxu0 0.0
    %586 = vmatpush1.xpose.msra.mxu0 0.0
    %587 = vmatprep.subr.mxu0 0.0
    %588 = vmatpush1.xpose.msra.mxu0 0.0
    %589 = vmatprep.subr.mxu0 0.0
    %590 = vmatpush1.xpose.msra.mxu0 0.0
    %591 = vmatprep.subr.mxu0 0.0
    %592 = vmatpush1.xpose.msra.mxu0 0.0
    %593 = vmatprep.subr.mxu0 0.0
    %594 = vmatpush1.xpose.msra.mxu0 0.0
    %595 = vmatprep.subr.mxu0 0.0
    %596 = vmatpush1.xpose.msra.mxu0 0.0
    %597 = vmatprep.subr.mxu0 0.0
    %598 = vmatpush1.xpose.msra.mxu0 0.0
    %599 = vmatprep.subr.mxu0 0.0
    %600 = vmatpush1.xpose.msra.mxu0 0.0
    %601 = vmatprep.subr.mxu0 0.0
    %602 = vmatpush1.xpose.msra.mxu0 0.0
    %603 = vmatprep.subr.mxu0 0.0
    %604 = vmatpush1.xpose.msra.mxu0 0.0
    %605 = vmatprep.subr.mxu0 0.0
    %606 = vmatpush1.xpose.msra.mxu0 0.0
    %607 = vmatprep.subr.mxu0 0.0
    %608 = vmatpush1.xpose.msra.mxu0 0.0
    %609 = vmatprep.mubr.f32.mxu0 %v258
    %610 = vmatmul.mubr.f32.gmra.mrb[0].mxu0 %v257
    %v611 = vpop.f32.mrb[0].mxu0
    %v612 = vadd.f32 0.0, %v611
    %v613 = vpop.f32.mrb[0].mxu0
    %614 = vdwg.mxu0
    %615 = vmatprep.subr.mxu0 %v260
    %616 = vmatpush1.xpose.msra.mxu0 %v259
    %617 = vmatprep.subr.mxu0 0.0
    %618 = vmatpush1.xpose.msra.mxu0 0.0
    %619 = vmatprep.subr.mxu0 0.0
    %620 = vmatpush1.xpose.msra.mxu0 0.0
    %621 = vmatprep.subr.mxu0 0.0
    %622 = vmatpush1.xpose.msra.mxu0 0.0
    %623 = vmatprep.subr.mxu0 0.0
    %624 = vmatpush1.xpose.msra.mxu0 0.0
    %625 = vmatprep.subr.mxu0 0.0
    %626 = vmatpush1.xpose.msra.mxu0 0.0
    %627 = vmatprep.subr.mxu0 0.0
    %628 = vmatpush1.xpose.msra.mxu0 0.0
    %629 = vmatprep.subr.mxu0 0.0
    %630 = vmatpush1.xpose.msra.mxu0 0.0
    %631 = vmatprep.subr.mxu0 0.0
    %632 = vmatpush1.xpose.msra.mxu0 0.0
    %633 = vmatprep.subr.mxu0 0.0
    %634 = vmatpush1.xpose.msra.mxu0 0.0
    %635 = vmatprep.subr.mxu0 0.0
    %636 = vmatpush1.xpose.msra.mxu0 0.0
    %637 = vmatprep.subr.mxu0 0.0
    %638 = vmatpush1.xpose.msra.mxu0 0.0
    %639 = vmatprep.subr.mxu0 0.0
    %640 = vmatpush1.xpose.msra.mxu0 0.0
    %641 = vmatprep.subr.mxu0 0.0
    %642 = vmatpush1.xpose.msra.mxu0 0.0
    %643 = vmatprep.subr.mxu0 0.0
    %644 = vmatpush1.xpose.msra.mxu0 0.0
    %645 = vmatprep.subr.mxu0 0.0
    %646 = vmatpush1.xpose.msra.mxu0 0.0
    %647 = vmatprep.subr.mxu0 0.0
    %648 = vmatpush1.xpose.msra.mxu0 0.0
    %649 = vmatprep.subr.mxu0 0.0
    %650 = vmatpush1.xpose.msra.mxu0 0.0
    %651 = vmatprep.subr.mxu0 0.0
    %652 = vmatpush1.xpose.msra.mxu0 0.0
    %653 = vmatprep.subr.mxu0 0.0
    %654 = vmatpush1.xpose.msra.mxu0 0.0
    %655 = vmatprep.subr.mxu0 0.0
    %656 = vmatpush1.xpose.msra.mxu0 0.0
    %657 = vmatprep.subr.mxu0 0.0
    %658 = vmatpush1.xpose.msra.mxu0 0.0
    %659 = vmatprep.subr.mxu0 0.0
    %660 = vmatpush1.xpose.msra.mxu0 0.0
    %661 = vmatprep.subr.mxu0 0.0
    %662 = vmatpush1.xpose.msra.mxu0 0.0
    %663 = vmatprep.subr.mxu0 0.0
    %664 = vmatpush1.xpose.msra.mxu0 0.0
    %665 = vmatprep.subr.mxu0 0.0
    %666 = vmatpush1.xpose.msra.mxu0 0.0
    %667 = vmatprep.subr.mxu0 0.0
    %668 = vmatpush1.xpose.msra.mxu0 0.0
    %669 = vmatprep.subr.mxu0 0.0
    %670 = vmatpush1.xpose.msra.mxu0 0.0
    %671 = vmatprep.subr.mxu0 0.0
    %672 = vmatpush1.xpose.msra.mxu0 0.0
    %673 = vmatprep.subr.mxu0 0.0
    %674 = vmatpush1.xpose.msra.mxu0 0.0
    %675 = vmatprep.subr.mxu0 0.0
    %676 = vmatpush1.xpose.msra.mxu0 0.0
    %677 = vmatprep.subr.mxu0 0.0
    %678 = vmatpush1.xpose.msra.mxu0 0.0
    %679 = vmatprep.mubr.f32.mxu0 %v260
    %680 = vmatmul.mubr.f32.gmra.mrb[0].mxu0 %v259
    %v681 = vpop.f32.mrb[0].mxu0
    %v682 = vadd.f32 %v612, %v681
    %v683 = vpop.f32.mrb[0].mxu0
    %684 = vdwg.mxu0
    %685 = vmatprep.subr.mxu0 %v262
    %686 = vmatpush1.xpose.msra.mxu0 %v261
    %687 = vmatprep.subr.mxu0 0.0
    %688 = vmatpush1.xpose.msra.mxu0 0.0
    %689 = vmatprep.subr.mxu0 0.0
    %690 = vmatpush1.xpose.msra.mxu0 0.0
    %691 = vmatprep.subr.mxu0 0.0
    %692 = vmatpush1.xpose.msra.mxu0 0.0
    %693 = vmatprep.subr.mxu0 0.0
    %694 = vmatpush1.xpose.msra.mxu0 0.0
    %695 = vmatprep.subr.mxu0 0.0
    %696 = vmatpush1.xpose.msra.mxu0 0.0
    %697 = vmatprep.subr.mxu0 0.0
    %698 = vmatpush1.xpose.msra.mxu0 0.0
    %699 = vmatprep.subr.mxu0 0.0
    %700 = vmatpush1.xpose.msra.mxu0 0.0
    %701 = vmatprep.subr.mxu0 0.0
    %702 = vmatpush1.xpose.msra.mxu0 0.0
    %703 = vmatprep.subr.mxu0 0.0
    %704 = vmatpush1.xpose.msra.mxu0 0.0
    %705 = vmatprep.subr.mxu0 0.0
    %706 = vmatpush1.xpose.msra.mxu0 0.0
    %707 = vmatprep.subr.mxu0 0.0
    %708 = vmatpush1.xpose.msra.mxu0 0.0
    %709 = vmatprep.subr.mxu0 0.0
    %710 = vmatpush1.xpose.msra.mxu0 0.0
    %711 = vmatprep.subr.mxu0 0.0
    %712 = vmatpush1.xpose.msra.mxu0 0.0
    %713 = vmatprep.subr.mxu0 0.0
    %714 = vmatpush1.xpose.msra.mxu0 0.0
    %715 = vmatprep.subr.mxu0 0.0
    %716 = vmatpush1.xpose.msra.mxu0 0.0
    %717 = vmatprep.subr.mxu0 0.0
    %718 = vmatpush1.xpose.msra.mxu0 0.0
    %719 = vmatprep.subr.mxu0 0.0
    %720 = vmatpush1.xpose.msra.mxu0 0.0
    %721 = vmatprep.subr.mxu0 0.0
    %722 = vmatpush1.xpose.msra.mxu0 0.0
    %723 = vmatprep.subr.mxu0 0.0
    %724 = vmatpush1.xpose.msra.mxu0 0.0
    %725 = vmatprep.subr.mxu0 0.0
    %726 = vmatpush1.xpose.msra.mxu0 0.0
    %727 = vmatprep.subr.mxu0 0.0
    %728 = vmatpush1.xpose.msra.mxu0 0.0
    %729 = vmatprep.subr.mxu0 0.0
    %730 = vmatpush1.xpose.msra.mxu0 0.0
    %731 = vmatprep.subr.mxu0 0.0
    %732 = vmatpush1.xpose.msra.mxu0 0.0
    %733 = vmatprep.subr.mxu0 0.0
    %734 = vmatpush1.xpose.msra.mxu0 0.0
    %735 = vmatprep.subr.mxu0 0.0
    %736 = vmatpush1.xpose.msra.mxu0 0.0
    %737 = vmatprep.subr.mxu0 0.0
    %738 = vmatpush1.xpose.msra.mxu0 0.0
    %739 = vmatprep.subr.mxu0 0.0
    %740 = vmatpush1.xpose.msra.mxu0 0.0
    %741 = vmatprep.subr.mxu0 0.0
    %742 = vmatpush1.xpose.msra.mxu0 0.0
    %743 = vmatprep.subr.mxu0 0.0
    %744 = vmatpush1.xpose.msra.mxu0 0.0
    %745 = vmatprep.subr.mxu0 0.0
    %746 = vmatpush1.xpose.msra.mxu0 0.0
    %747 = vmatprep.subr.mxu0 0.0
    %748 = vmatpush1.xpose.msra.mxu0 0.0
    %749 = vmatprep.mubr.f32.mxu0 %v262
    %750 = vmatmul.mubr.f32.gmra.mrb[0].mxu0 %v261
    %v751 = vpop.f32.mrb[0].mxu0
    %v752 = vadd.f32 %v682, %v751
    %v753 = vpop.f32.mrb[0].mxu0
    %754 = vdwg.mxu0
    %755 = vmatprep.subr.mxu0 %v264
    %756 = vmatpush1.xpose.msra.mxu0 %v263
    %757 = vmatprep.subr.mxu0 0.0
    %758 = vmatpush1.xpose.msra.mxu0 0.0
    %759 = vmatprep.subr.mxu0 0.0
    %760 = vmatpush1.xpose.msra.mxu0 0.0
    %761 = vmatprep.subr.mxu0 0.0
    %762 = vmatpush1.xpose.msra.mxu0 0.0
    %763 = vmatprep.subr.mxu0 0.0
    %764 = vmatpush1.xpose.msra.mxu0 0.0
    %765 = vmatprep.subr.mxu0 0.0
    %766 = vmatpush1.xpose.msra.mxu0 0.0
    %767 = vmatprep.subr.mxu0 0.0
    %768 = vmatpush1.xpose.msra.mxu0 0.0
    %769 = vmatprep.subr.mxu0 0.0
    %770 = vmatpush1.xpose.msra.mxu0 0.0
    %771 = vmatprep.subr.mxu0 0.0
    %772 = vmatpush1.xpose.msra.mxu0 0.0
    %773 = vmatprep.subr.mxu0 0.0
    %774 = vmatpush1.xpose.msra.mxu0 0.0
    %775 = vmatprep.subr.mxu0 0.0
    %776 = vmatpush1.xpose.msra.mxu0 0.0
    %777 = vmatprep.subr.mxu0 0.0
    %778 = vmatpush1.xpose.msra.mxu0 0.0
    %779 = vmatprep.subr.mxu0 0.0
    %780 = vmatpush1.xpose.msra.mxu0 0.0
    %781 = vmatprep.subr.mxu0 0.0
    %782 = vmatpush1.xpose.msra.mxu0 0.0
    %783 = vmatprep.subr.mxu0 0.0
    %784 = vmatpush1.xpose.msra.mxu0 0.0
    %785 = vmatprep.subr.mxu0 0.0
    %786 = vmatpush1.xpose.msra.mxu0 0.0
    %787 = vmatprep.subr.mxu0 0.0
    %788 = vmatpush1.xpose.msra.mxu0 0.0
    %789 = vmatprep.subr.mxu0 0.0
    %790 = vmatpush1.xpose.msra.mxu0 0.0
    %791 = vmatprep.subr.mxu0 0.0
    %792 = vmatpush1.xpose.msra.mxu0 0.0
    %793 = vmatprep.subr.mxu0 0.0
    %794 = vmatpush1.xpose.msra.mxu0 0.0
    %795 = vmatprep.subr.mxu0 0.0
    %796 = vmatpush1.xpose.msra.mxu0 0.0
    %797 = vmatprep.subr.mxu0 0.0
    %798 = vmatpush1.xpose.msra.mxu0 0.0
    %799 = vmatprep.subr.mxu0 0.0
    %800 = vmatpush1.xpose.msra.mxu0 0.0
    %801 = vmatprep.subr.mxu0 0.0
    %802 = vmatpush1.xpose.msra.mxu0 0.0
    %803 = vmatprep.subr.mxu0 0.0
    %804 = vmatpush1.xpose.msra.mxu0 0.0
    %805 = vmatprep.subr.mxu0 0.0
    %806 = vmatpush1.xpose.msra.mxu0 0.0
    %807 = vmatprep.subr.mxu0 0.0
    %808 = vmatpush1.xpose.msra.mxu0 0.0
    %809 = vmatprep.subr.mxu0 0.0
    %810 = vmatpush1.xpose.msra.mxu0 0.0
    %811 = vmatprep.subr.mxu0 0.0
    %812 = vmatpush1.xpose.msra.mxu0 0.0
    %813 = vmatprep.subr.mxu0 0.0
    %814 = vmatpush1.xpose.msra.mxu0 0.0
    %815 = vmatprep.subr.mxu0 0.0
    %816 = vmatpush1.xpose.msra.mxu0 0.0
    %817 = vmatprep.subr.mxu0 0.0
    %818 = vmatpush1.xpose.msra.mxu0 0.0
    %819 = vmatprep.mubr.f32.mxu0 %v264
    %820 = vmatmul.mubr.f32.gmra.mrb[0].mxu0 %v263
    %v821 = vpop.f32.mrb[0].mxu0
    %v822 = vadd.f32 %v752, %v821
    %v823 = vpop.f32.mrb[0].mxu0
    %824 = vdwg.mxu0
    %v825 = vmul.f32 %v542, 0.025
    %v826 = vmul.f32 %v822, 0.025
    %v827 = vtanh.pop %v825
    %v828 = vtanh.pop %v826
    %v831 = vrot.slane %v828, 7
    %vm832 = vcmask 1041409
    %v833 = vsel %vm832, %v831, %v827
    %v835 = vrot.slane %v827, 1
    %v836 = vsel %vm832, %v828, %v835
    %837 = vrot.lane.b32.xlu0 %v836, 8
    %v838 = vpop.permute.xlu0 %837
    %v840 = vrot.slane %v827, 2
    %v841 = vrot.slane %v828, 1
    %v842 = vsel %vm832, %v841, %v840
    %843 = vrot.lane.b32.xlu0 %v842, 16
    %v844 = vpop.permute.xlu0 %843
    %v846 = vrot.slane %v827, 3
    %v847 = vrot.slane %v828, 2
    %v848 = vsel %vm832, %v847, %v846
    %849 = vrot.lane.b32.xlu0 %v848, 24
    %v850 = vpop.permute.xlu0 %849
    %v852 = vrot.slane %v827, 4
    %v853 = vrot.slane %v828, 3
    %v854 = vsel %vm832, %v853, %v852
    %855 = vrot.lane.b32.xlu0 %v854, 32
    %v856 = vpop.permute.xlu0 %855
    %v858 = vrot.slane %v827, 5
    %v859 = vrot.slane %v828, 4
    %v860 = vsel %vm832, %v859, %v858
    %861 = vrot.lane.b32.xlu0 %v860, 40
    %v862 = vpop.permute.xlu0 %861
    %v864 = vrot.slane %v827, 6
    %v865 = vrot.slane %v828, 5
    %v866 = vsel %vm832, %v865, %v864
    %867 = vrot.lane.b32.xlu0 %v866, 48
    %v868 = vpop.permute.xlu0 %867
    %v870 = vrot.slane %v827, 7
    %v871 = vrot.slane %v828, 6
    %v872 = vsel %vm832, %v871, %v870
    %873 = vrot.lane.b32.xlu0 %v872, 56
    %v874 = vpop.permute.xlu0 %873
    %vm876 = vcmask 64512
    %v877 = vsel %vm876, %v833, %v838
    %vm878 = vcmask 130048
    %v879 = vsel %vm878, %v877, %v844
    %vm880 = vcmask 195584
    %v881 = vsel %vm880, %v879, %v850
    %vm882 = vcmask 261120
    %v883 = vsel %vm882, %v881, %v856
    %vm884 = vcmask 326656
    %v885 = vsel %vm884, %v883, %v862
    %vm886 = vcmask 392192
    %v887 = vsel %vm886, %v885, %v868
    %vm888 = vcmask 457728
    %v889 = vsel %vm888, %v887, %v874
    %s890 = scalar_lea.vmem %s0, 80
    %v891 = vld [vmem:[%s890] sm:$0xff]
    %v892 = vld [vmem:[%s890 + $0x8] sm:$0xff]
    %v893 = vld [vmem:[%s3] sm:$0xff]
    %v894 = vld [vmem:[%s3 + $0x8] sm:$0xff]
    %v895 = vld [vmem:[%s3 + $0x10] sm:$0xff]
    %v896 = vld [vmem:[%s3 + $0x18] sm:$0xff]
    %v897 = vld [vmem:[%s3 + $0x20] sm:$0xff]
    %v898 = vld [vmem:[%s3 + $0x28] sm:$0xff]
    %v899 = vld [vmem:[%s3 + $0x30] sm:$0xff]
    %v900 = vld [vmem:[%s3 + $0x38] sm:$0xff]
    %v901 = vld [vmem:[%s3 + $0x40] sm:$0xff]
    %v902 = vld [vmem:[%s3 + $0x48] sm:$0xff]
    %v903 = vld [vmem:[%s3 + $0x50] sm:$0xff]
    %v904 = vld [vmem:[%s3 + $0x58] sm:$0xff]
    %v905 = vld [vmem:[%s3 + $0x60] sm:$0xff]
    %v906 = vld [vmem:[%s3 + $0x68] sm:$0xff]
    %v907 = vld [vmem:[%s3 + $0x70] sm:$0xff]
    %v908 = vld [vmem:[%s3 + $0x78] sm:$0xff]
    %v909 = vld [vmem:[%s3 + $0x80] sm:$0xff]
    %v910 = vld [vmem:[%s3 + $0x88] sm:$0xff]
    %v911 = vld [vmem:[%s3 + $0x90] sm:$0xff]
    %v912 = vld [vmem:[%s3 + $0x98] sm:$0xff]
    %v913 = vld [vmem:[%s3 + $0xa0] sm:$0xff]
    %v914 = vld [vmem:[%s3 + $0xa8] sm:$0xff]
    %v915 = vld [vmem:[%s3 + $0xb0] sm:$0xff]
    %v916 = vld [vmem:[%s3 + $0xb8] sm:$0xff]
    %v917 = vld [vmem:[%s3 + $0xc0] sm:$0xff]
    %v918 = vld [vmem:[%s3 + $0xc8] sm:$0xff]
    %v919 = vld [vmem:[%s3 + $0xd0] sm:$0xff]
    %v920 = vld [vmem:[%s3 + $0xd8] sm:$0xff]
    %v921 = vld [vmem:[%s3 + $0xe0] sm:$0xff]
    %v922 = vld [vmem:[%s3 + $0xe8] sm:$0xff]
    %v923 = vld [vmem:[%s3 + $0xf0] sm:$0xff]
    %v924 = vld [vmem:[%s3 + $0xf8] sm:$0xff]
    %v925 = vld [vmem:[%s3 + $0x100] sm:$0xff]
    %v926 = vld [vmem:[%s3 + $0x108] sm:$0xff]
    %v927 = vld [vmem:[%s3 + $0x110] sm:$0xff]
    %v928 = vld [vmem:[%s3 + $0x118] sm:$0xff]
    %v929 = vld [vmem:[%s3 + $0x120] sm:$0xff]
    %v930 = vld [vmem:[%s3 + $0x128] sm:$0xff]
    %v931 = vld [vmem:[%s3 + $0x130] sm:$0xff]
    %v932 = vld [vmem:[%s3 + $0x138] sm:$0xff]
    %v933 = vld [vmem:[%s3 + $0x140] sm:$0xff]
    %v934 = vld [vmem:[%s3 + $0x148] sm:$0xff]
    %v935 = vld [vmem:[%s3 + $0x150] sm:$0xff]
    %v936 = vld [vmem:[%s3 + $0x158] sm:$0xff]
    %v937 = vld [vmem:[%s3 + $0x160] sm:$0xff]
    %v938 = vld [vmem:[%s3 + $0x168] sm:$0xff]
    %v939 = vld [vmem:[%s3 + $0x170] sm:$0xff]
    %v940 = vld [vmem:[%s3 + $0x178] sm:$0xff]
    %v941 = vld [vmem:[%s3 + $0x180] sm:$0xff]
    %v942 = vld [vmem:[%s3 + $0x188] sm:$0xff]
    %v943 = vld [vmem:[%s3 + $0x190] sm:$0xff]
    %v944 = vld [vmem:[%s3 + $0x198] sm:$0xff]
    %v945 = vld [vmem:[%s3 + $0x1a0] sm:$0xff]
    %v946 = vld [vmem:[%s3 + $0x1a8] sm:$0xff]
    %v947 = vld [vmem:[%s3 + $0x1b0] sm:$0xff]
    %v948 = vld [vmem:[%s3 + $0x1b8] sm:$0xff]
    %v949 = vld [vmem:[%s3 + $0x1c0] sm:$0xff]
    %v950 = vld [vmem:[%s3 + $0x1c8] sm:$0xff]
    %v951 = vld [vmem:[%s3 + $0x1d0] sm:$0xff]
    %v952 = vld [vmem:[%s3 + $0x1d8] sm:$0xff]
    %v953 = vld [vmem:[%s3 + $0x1e0] sm:$0xff]
    %v954 = vld [vmem:[%s3 + $0x1e8] sm:$0xff]
    %v955 = vld [vmem:[%s3 + $0x1f0] sm:$0xff]
    %v956 = vld [vmem:[%s3 + $0x1f8] sm:$0xff]
    %vm957 = vcmask 523264
    %v959 = vsel %vm957, %v889, 0
    %961 = vmatprep.subr.mxu0 %v894
    %962 = vmatpush1.msra.mxu0 %v893
    %963 = vmatprep.subr.mxu0 %v902
    %964 = vmatpush1.msra.mxu0 %v901
    %965 = vmatprep.subr.mxu0 %v910
    %966 = vmatpush1.msra.mxu0 %v909
    %967 = vmatprep.subr.mxu0 %v918
    %968 = vmatpush1.msra.mxu0 %v917
    %969 = vmatprep.subr.mxu0 %v926
    %970 = vmatpush1.msra.mxu0 %v925
    %971 = vmatprep.subr.mxu0 %v934
    %972 = vmatpush1.msra.mxu0 %v933
    %973 = vmatprep.subr.mxu0 %v942
    %974 = vmatpush1.msra.mxu0 %v941
    %975 = vmatprep.subr.mxu0 %v950
    %976 = vmatpush1.msra.mxu0 %v949
    %977 = vmatprep.subr.mxu0 0.0
    %978 = vmatpush1.msra.mxu0 0.0
    %979 = vmatprep.subr.mxu0 0.0
    %980 = vmatpush1.msra.mxu0 0.0
    %981 = vmatprep.subr.mxu0 0.0
    %982 = vmatpush1.msra.mxu0 0.0
    %983 = vmatprep.subr.mxu0 0.0
    %984 = vmatpush1.msra.mxu0 0.0
    %985 = vmatprep.subr.mxu0 0.0
    %986 = vmatpush1.msra.mxu0 0.0
    %987 = vmatprep.subr.mxu0 0.0
    %988 = vmatpush1.msra.mxu0 0.0
    %989 = vmatprep.subr.mxu0 0.0
    %990 = vmatpush1.msra.mxu0 0.0
    %991 = vmatprep.subr.mxu0 0.0
    %992 = vmatpush1.msra.mxu0 0.0
    %993 = vmatprep.subr.mxu0 0.0
    %994 = vmatpush1.msra.mxu0 0.0
    %995 = vmatprep.subr.mxu0 0.0
    %996 = vmatpush1.msra.mxu0 0.0
    %997 = vmatprep.subr.mxu0 0.0
    %998 = vmatpush1.msra.mxu0 0.0
    %999 = vmatprep.subr.mxu0 0.0
    %1000 = vmatpush1.msra.mxu0 0.0
    %1001 = vmatprep.subr.mxu0 0.0
    %1002 = vmatpush1.msra.mxu0 0.0
    %1003 = vmatprep.subr.mxu0 0.0
    %1004 = vmatpush1.msra.mxu0 0.0
    %1005 = vmatprep.subr.mxu0 0.0
    %1006 = vmatpush1.msra.mxu0 0.0
    %1007 = vmatprep.subr.mxu0 0.0
    %1008 = vmatpush1.msra.mxu0 0.0
    %1009 = vmatprep.subr.mxu0 0.0
    %1010 = vmatpush1.msra.mxu0 0.0
    %1011 = vmatprep.subr.mxu0 0.0
    %1012 = vmatpush1.msra.mxu0 0.0
    %1013 = vmatprep.subr.mxu0 0.0
    %1014 = vmatpush1.msra.mxu0 0.0
    %1015 = vmatprep.subr.mxu0 0.0
    %1016 = vmatpush1.msra.mxu0 0.0
    %1017 = vmatprep.subr.mxu0 0.0
    %1018 = vmatpush1.msra.mxu0 0.0
    %1019 = vmatprep.subr.mxu0 0.0
    %1020 = vmatpush1.msra.mxu0 0.0
    %1021 = vmatprep.subr.mxu0 0.0
    %1022 = vmatpush1.msra.mxu0 0.0
    %1023 = vmatprep.subr.mxu0 0.0
    %1024 = vmatpush1.msra.mxu0 0.0
    %1025 = vmatprep.mubr.f32.mxu0 0.0
    %1026 = vmatmul.mubr.f32.gmra.mrb[0].mxu0 %v959
    %v1027 = vpop.f32.mrb[0].mxu0
    %v1028 = vadd.f32 0.0, %v1027
    %v1029 = vpop.f32.mrb[0].mxu0
    %v1030 = vadd.f32 0.0, %v1029
    %1031 = vdwg.mxu0
    %1032 = vmatprep.subr.mxu0 %v896
    %1033 = vmatpush1.msra.mxu0 %v895
    %1034 = vmatprep.subr.mxu0 %v904
    %1035 = vmatpush1.msra.mxu0 %v903
    %1036 = vmatprep.subr.mxu0 %v912
    %1037 = vmatpush1.msra.mxu0 %v911
    %1038 = vmatprep.subr.mxu0 %v920
    %1039 = vmatpush1.msra.mxu0 %v919
    %1040 = vmatprep.subr.mxu0 %v928
    %1041 = vmatpush1.msra.mxu0 %v927
    %1042 = vmatprep.subr.mxu0 %v936
    %1043 = vmatpush1.msra.mxu0 %v935
    %1044 = vmatprep.subr.mxu0 %v944
    %1045 = vmatpush1.msra.mxu0 %v943
    %1046 = vmatprep.subr.mxu0 %v952
    %1047 = vmatpush1.msra.mxu0 %v951
    %1048 = vmatprep.subr.mxu0 0.0
    %1049 = vmatpush1.msra.mxu0 0.0
    %1050 = vmatprep.subr.mxu0 0.0
    %1051 = vmatpush1.msra.mxu0 0.0
    %1052 = vmatprep.subr.mxu0 0.0
    %1053 = vmatpush1.msra.mxu0 0.0
    %1054 = vmatprep.subr.mxu0 0.0
    %1055 = vmatpush1.msra.mxu0 0.0
    %1056 = vmatprep.subr.mxu0 0.0
    %1057 = vmatpush1.msra.mxu0 0.0
    %1058 = vmatprep.subr.mxu0 0.0
    %1059 = vmatpush1.msra.mxu0 0.0
    %1060 = vmatprep.subr.mxu0 0.0
    %1061 = vmatpush1.msra.mxu0 0.0
    %1062 = vmatprep.subr.mxu0 0.0
    %1063 = vmatpush1.msra.mxu0 0.0
    %1064 = vmatprep.subr.mxu0 0.0
    %1065 = vmatpush1.msra.mxu0 0.0
    %1066 = vmatprep.subr.mxu0 0.0
    %1067 = vmatpush1.msra.mxu0 0.0
    %1068 = vmatprep.subr.mxu0 0.0
    %1069 = vmatpush1.msra.mxu0 0.0
    %1070 = vmatprep.subr.mxu0 0.0
    %1071 = vmatpush1.msra.mxu0 0.0
    %1072 = vmatprep.subr.mxu0 0.0
    %1073 = vmatpush1.msra.mxu0 0.0
    %1074 = vmatprep.subr.mxu0 0.0
    %1075 = vmatpush1.msra.mxu0 0.0
    %1076 = vmatprep.subr.mxu0 0.0
    %1077 = vmatpush1.msra.mxu0 0.0
    %1078 = vmatprep.subr.mxu0 0.0
    %1079 = vmatpush1.msra.mxu0 0.0
    %1080 = vmatprep.subr.mxu0 0.0
    %1081 = vmatpush1.msra.mxu0 0.0
    %1082 = vmatprep.subr.mxu0 0.0
    %1083 = vmatpush1.msra.mxu0 0.0
    %1084 = vmatprep.subr.mxu0 0.0
    %1085 = vmatpush1.msra.mxu0 0.0
    %1086 = vmatprep.subr.mxu0 0.0
    %1087 = vmatpush1.msra.mxu0 0.0
    %1088 = vmatprep.subr.mxu0 0.0
    %1089 = vmatpush1.msra.mxu0 0.0
    %1090 = vmatprep.subr.mxu0 0.0
    %1091 = vmatpush1.msra.mxu0 0.0
    %1092 = vmatprep.subr.mxu0 0.0
    %1093 = vmatpush1.msra.mxu0 0.0
    %1094 = vmatprep.subr.mxu0 0.0
    %1095 = vmatpush1.msra.mxu0 0.0
    %1096 = vmatprep.mubr.f32.mxu0 0.0
    %1097 = vmatmul.mubr.f32.gmra.mrb[0].mxu0 %v959
    %v1098 = vpop.f32.mrb[0].mxu0
    %v1099 = vadd.f32 0.0, %v1098
    %v1100 = vpop.f32.mrb[0].mxu0
    %v1101 = vadd.f32 0.0, %v1100
    %1102 = vdwg.mxu0
    %1103 = vmatprep.subr.mxu0 %v898
    %1104 = vmatpush1.msra.mxu0 %v897
    %1105 = vmatprep.subr.mxu0 %v906
    %1106 = vmatpush1.msra.mxu0 %v905
    %1107 = vmatprep.subr.mxu0 %v914
    %1108 = vmatpush1.msra.mxu0 %v913
    %1109 = vmatprep.subr.mxu0 %v922
    %1110 = vmatpush1.msra.mxu0 %v921
    %1111 = vmatprep.subr.mxu0 %v930
    %1112 = vmatpush1.msra.mxu0 %v929
    %1113 = vmatprep.subr.mxu0 %v938
    %1114 = vmatpush1.msra.mxu0 %v937
    %1115 = vmatprep.subr.mxu0 %v946
    %1116 = vmatpush1.msra.mxu0 %v945
    %1117 = vmatprep.subr.mxu0 %v954
    %1118 = vmatpush1.msra.mxu0 %v953
    %1119 = vmatprep.subr.mxu0 0.0
    %1120 = vmatpush1.msra.mxu0 0.0
    %1121 = vmatprep.subr.mxu0 0.0
    %1122 = vmatpush1.msra.mxu0 0.0
    %1123 = vmatprep.subr.mxu0 0.0
    %1124 = vmatpush1.msra.mxu0 0.0
    %1125 = vmatprep.subr.mxu0 0.0
    %1126 = vmatpush1.msra.mxu0 0.0
    %1127 = vmatprep.subr.mxu0 0.0
    %1128 = vmatpush1.msra.mxu0 0.0
    %1129 = vmatprep.subr.mxu0 0.0
    %1130 = vmatpush1.msra.mxu0 0.0
    %1131 = vmatprep.subr.mxu0 0.0
    %1132 = vmatpush1.msra.mxu0 0.0
    %1133 = vmatprep.subr.mxu0 0.0
    %1134 = vmatpush1.msra.mxu0 0.0
    %1135 = vmatprep.subr.mxu0 0.0
    %1136 = vmatpush1.msra.mxu0 0.0
    %1137 = vmatprep.subr.mxu0 0.0
    %1138 = vmatpush1.msra.mxu0 0.0
    %1139 = vmatprep.subr.mxu0 0.0
    %1140 = vmatpush1.msra.mxu0 0.0
    %1141 = vmatprep.subr.mxu0 0.0
    %1142 = vmatpush1.msra.mxu0 0.0
    %1143 = vmatprep.subr.mxu0 0.0
    %1144 = vmatpush1.msra.mxu0 0.0
    %1145 = vmatprep.subr.mxu0 0.0
    %1146 = vmatpush1.msra.mxu0 0.0
    %1147 = vmatprep.subr.mxu0 0.0
    %1148 = vmatpush1.msra.mxu0 0.0
    %1149 = vmatprep.subr.mxu0 0.0
    %1150 = vmatpush1.msra.mxu0 0.0
    %1151 = vmatprep.subr.mxu0 0.0
    %1152 = vmatpush1.msra.mxu0 0.0
    %1153 = vmatprep.subr.mxu0 0.0
    %1154 = vmatpush1.msra.mxu0 0.0
    %1155 = vmatprep.subr.mxu0 0.0
    %1156 = vmatpush1.msra.mxu0 0.0
    %1157 = vmatprep.subr.mxu0 0.0
    %1158 = vmatpush1.msra.mxu0 0.0
    %1159 = vmatprep.subr.mxu0 0.0
    %1160 = vmatpush1.msra.mxu0 0.0
    %1161 = vmatprep.subr.mxu0 0.0
    %1162 = vmatpush1.msra.mxu0 0.0
    %1163 = vmatprep.subr.mxu0 0.0
    %1164 = vmatpush1.msra.mxu0 0.0
    %1165 = vmatprep.subr.mxu0 0.0
    %1166 = vmatpush1.msra.mxu0 0.0
    %1167 = vmatprep.mubr.f32.mxu0 0.0
    %1168 = vmatmul.mubr.f32.gmra.mrb[0].mxu0 %v959
    %v1169 = vpop.f32.mrb[0].mxu0
    %v1170 = vadd.f32 0.0, %v1169
    %v1171 = vpop.f32.mrb[0].mxu0
    %v1172 = vadd.f32 0.0, %v1171
    %1173 = vdwg.mxu0
    %1174 = vmatprep.subr.mxu0 %v900
    %1175 = vmatpush1.msra.mxu0 %v899
    %1176 = vmatprep.subr.mxu0 %v908
    %1177 = vmatpush1.msra.mxu0 %v907
    %1178 = vmatprep.subr.mxu0 %v916
    %1179 = vmatpush1.msra.mxu0 %v915
    %1180 = vmatprep.subr.mxu0 %v924
    %1181 = vmatpush1.msra.mxu0 %v923
    %1182 = vmatprep.subr.mxu0 %v932
    %1183 = vmatpush1.msra.mxu0 %v931
    %1184 = vmatprep.subr.mxu0 %v940
    %1185 = vmatpush1.msra.mxu0 %v939
    %1186 = vmatprep.subr.mxu0 %v948
    %1187 = vmatpush1.msra.mxu0 %v947
    %1188 = vmatprep.subr.mxu0 %v956
    %1189 = vmatpush1.msra.mxu0 %v955
    %1190 = vmatprep.subr.mxu0 0.0
    %1191 = vmatpush1.msra.mxu0 0.0
    %1192 = vmatprep.subr.mxu0 0.0
    %1193 = vmatpush1.msra.mxu0 0.0
    %1194 = vmatprep.subr.mxu0 0.0
    %1195 = vmatpush1.msra.mxu0 0.0
    %1196 = vmatprep.subr.mxu0 0.0
    %1197 = vmatpush1.msra.mxu0 0.0
    %1198 = vmatprep.subr.mxu0 0.0
    %1199 = vmatpush1.msra.mxu0 0.0
    %1200 = vmatprep.subr.mxu0 0.0
    %1201 = vmatpush1.msra.mxu0 0.0
    %1202 = vmatprep.subr.mxu0 0.0
    %1203 = vmatpush1.msra.mxu0 0.0
    %1204 = vmatprep.subr.mxu0 0.0
    %1205 = vmatpush1.msra.mxu0 0.0
    %1206 = vmatprep.subr.mxu0 0.0
    %1207 = vmatpush1.msra.mxu0 0.0
    %1208 = vmatprep.subr.mxu0 0.0
    %1209 = vmatpush1.msra.mxu0 0.0
    %1210 = vmatprep.subr.mxu0 0.0
    %1211 = vmatpush1.msra.mxu0 0.0
    %1212 = vmatprep.subr.mxu0 0.0
    %1213 = vmatpush1.msra.mxu0 0.0
    %1214 = vmatprep.subr.mxu0 0.0
    %1215 = vmatpush1.msra.mxu0 0.0
    %1216 = vmatprep.subr.mxu0 0.0
    %1217 = vmatpush1.msra.mxu0 0.0
    %1218 = vmatprep.subr.mxu0 0.0
    %1219 = vmatpush1.msra.mxu0 0.0
    %1220 = vmatprep.subr.mxu0 0.0
    %1221 = vmatpush1.msra.mxu0 0.0
    %1222 = vmatprep.subr.mxu0 0.0
    %1223 = vmatpush1.msra.mxu0 0.0
    %1224 = vmatprep.subr.mxu0 0.0
    %1225 = vmatpush1.msra.mxu0 0.0
    %1226 = vmatprep.subr.mxu0 0.0
    %1227 = vmatpush1.msra.mxu0 0.0
    %1228 = vmatprep.subr.mxu0 0.0
    %1229 = vmatpush1.msra.mxu0 0.0
    %1230 = vmatprep.subr.mxu0 0.0
    %1231 = vmatpush1.msra.mxu0 0.0
    %1232 = vmatprep.subr.mxu0 0.0
    %1233 = vmatpush1.msra.mxu0 0.0
    %1234 = vmatprep.subr.mxu0 0.0
    %1235 = vmatpush1.msra.mxu0 0.0
    %1236 = vmatprep.subr.mxu0 0.0
    %1237 = vmatpush1.msra.mxu0 0.0
    %1238 = vmatprep.mubr.f32.mxu0 0.0
    %1239 = vmatmul.mubr.f32.gmra.mrb[0].mxu0 %v959
    %v1240 = vpop.f32.mrb[0].mxu0
    %v1241 = vadd.f32 0.0, %v1240
    %v1242 = vpop.f32.mrb[0].mxu0
    %v1243 = vadd.f32 0.0, %v1242
    %1244 = vdwg.mxu0
    %v1253 = vcombine.low %v1028, %v1030
    %v1254 = vcombine.low %v1099, %v1101
    %v1256 = vunpack.c.l.s4 1983009808
    %v1257 = vunpack.c.0.s8 %v1256
    %v1258 = vlaneseq
    %v1259 = vshrl.u32 %v1258, 7
    %v1260 = vsub.s32 %v1257, %v1259
    %v1261 = vrot.slane %v1253, %v1260
    %v1263 = vunpack.c.l.s4 1983009808
    %v1264 = vunpack.c.0.s8 %v1263
    %v1265 = vlaneseq
    %v1266 = vshrl.u32 %v1265, 7
    %v1267 = vsub.s32 %v1264, %v1266
    %v1268 = vrot.slane %v1254, %v1267
    %v1269 = vcombine.low %v1261, %v1268
    %v1270 = vcombine.low %v1170, %v1172
    %v1271 = vcombine.low %v1241, %v1243
    %v1273 = vunpack.c.l.s4 1983009808
    %v1274 = vunpack.c.0.s8 %v1273
    %v1275 = vlaneseq
    %v1276 = vshrl.u32 %v1275, 7
    %v1277 = vsub.s32 %v1274, %v1276
    %v1278 = vrot.slane %v1270, %v1277
    %v1280 = vunpack.c.l.s4 1983009808
    %v1281 = vunpack.c.0.s8 %v1280
    %v1282 = vlaneseq
    %v1283 = vshrl.u32 %v1282, 7
    %v1284 = vsub.s32 %v1281, %v1283
    %v1285 = vrot.slane %v1271, %v1284
    %v1286 = vcombine.low %v1278, %v1285
    %v1289 = vadd.f32 %v891, %v1269
    %v1290 = vadd.f32 %v892, %v1286
    %v1291 = vmax.f32 %v1289, 0.0
    %v1292 = vmax.f32 %v1290, 0.0
    %v1295 = vcombine.high %v1291, %v1291
    %v1297 = vunpack.c.l.s4 1983009808
    %v1298 = vunpack.c.0.s8 %v1297
    %v1299 = vlaneseq
    %v1300 = vshrl.u32 %v1299, 7
    %v1301 = vsub.s32 %v1298, %v1300
    %v1302 = vrot.slane %v1291, %v1301
    %v1304 = vunpack.c.l.s4 1983009808
    %v1305 = vunpack.c.0.s8 %v1304
    %v1306 = vlaneseq
    %v1307 = vshrl.u32 %v1306, 7
    %v1308 = vsub.s32 %v1305, %v1307
    %v1309 = vrot.slane %v1295, %v1308
    %v1310 = vcombine.high %v1302, %v1302
    %v1311 = vcombine.high %v1309, %v1309
    %v1312 = vcombine.high %v1292, %v1292
    %v1314 = vunpack.c.l.s4 1983009808
    %v1315 = vunpack.c.0.s8 %v1314
    %v1316 = vlaneseq
    %v1317 = vshrl.u32 %v1316, 7
    %v1318 = vsub.s32 %v1315, %v1317
    %v1319 = vrot.slane %v1292, %v1318
    %v1321 = vunpack.c.l.s4 1983009808
    %v1322 = vunpack.c.0.s8 %v1321
    %v1323 = vlaneseq
    %v1324 = vshrl.u32 %v1323, 7
    %v1325 = vsub.s32 %v1322, %v1324
    %v1326 = vrot.slane %v1312, %v1325
    %v1327 = vcombine.high %v1319, %v1319
    %v1328 = vcombine.high %v1326, %v1326
    %v1337 = vpack.c.bf16 %v1302, %v1302
    %v1338 = vpack.c.bf16 %v1310, %v1310
    %v1339 = vpack.c.bf16 %v1309, %v1309
    %v1340 = vpack.c.bf16 %v1311, %v1311
    %v1341 = vpack.c.bf16 %v1319, %v1319
    %v1342 = vpack.c.bf16 %v1327, %v1327
    %v1343 = vpack.c.bf16 %v1326, %v1326
    %v1344 = vpack.c.bf16 %v1328, %v1328
    %v1345 = vld [vmem:[%s4] sm:$0xff]
    %v1346 = vld [vmem:[%s4 + $0x8] sm:$0xff]
    %v1347 = vld [vmem:[%s4 + $0x10] sm:$0xff]
    %v1348 = vld [vmem:[%s4 + $0x18] sm:$0xff]
    %v1349 = vld [vmem:[%s4 + $0x20] sm:$0xff]
    %v1350 = vld [vmem:[%s4 + $0x28] sm:$0xff]
    %v1351 = vld [vmem:[%s4 + $0x30] sm:$0xff]
    %v1352 = vld [vmem:[%s4 + $0x38] sm:$0xff]
    %v1353 = vld [vmem:[%s4 + $0x40] sm:$0xff]
    %v1354 = vld [vmem:[%s4 + $0x48] sm:$0xff]
    %v1355 = vld [vmem:[%s4 + $0x50] sm:$0xff]
    %v1356 = vld [vmem:[%s4 + $0x58] sm:$0xff]
    %v1357 = vld [vmem:[%s4 + $0x60] sm:$0xff]
    %v1358 = vld [vmem:[%s4 + $0x68] sm:$0xff]
    %v1359 = vld [vmem:[%s4 + $0x70] sm:$0xff]
    %v1360 = vld [vmem:[%s4 + $0x78] sm:$0xff]
    %v1361 = vld [vmem:[%s4 + $0x80] sm:$0xff]
    %v1362 = vld [vmem:[%s4 + $0x88] sm:$0xff]
    %v1363 = vld [vmem:[%s4 + $0x90] sm:$0xff]
    %v1364 = vld [vmem:[%s4 + $0x98] sm:$0xff]
    %v1365 = vld [vmem:[%s4 + $0xa0] sm:$0xff]
    %v1366 = vld [vmem:[%s4 + $0xa8] sm:$0xff]
    %v1367 = vld [vmem:[%s4 + $0xb0] sm:$0xff]
    %v1368 = vld [vmem:[%s4 + $0xb8] sm:$0xff]
    %v1369 = vld [vmem:[%s4 + $0xc0] sm:$0xff]
    %v1370 = vld [vmem:[%s4 + $0xc8] sm:$0xff]
    %v1371 = vld [vmem:[%s4 + $0xd0] sm:$0xff]
    %v1372 = vld [vmem:[%s4 + $0xd8] sm:$0xff]
    %v1373 = vld [vmem:[%s4 + $0xe0] sm:$0xff]
    %v1374 = vld [vmem:[%s4 + $0xe8] sm:$0xff]
    %v1375 = vld [vmem:[%s4 + $0xf0] sm:$0xff]
    %v1376 = vld [vmem:[%s4 + $0xf8] sm:$0xff]
    %v1377 = vld [vmem:[%s4 + $0x100] sm:$0xff]
    %v1378 = vld [vmem:[%s4 + $0x108] sm:$0xff]
    %v1379 = vld [vmem:[%s4 + $0x110] sm:$0xff]
    %v1380 = vld [vmem:[%s4 + $0x118] sm:$0xff]
    %v1381 = vld [vmem:[%s4 + $0x120] sm:$0xff]
    %v1382 = vld [vmem:[%s4 + $0x128] sm:$0xff]
    %v1383 = vld [vmem:[%s4 + $0x130] sm:$0xff]
    %v1384 = vld [vmem:[%s4 + $0x138] sm:$0xff]
    %v1385 = vld [vmem:[%s4 + $0x140] sm:$0xff]
    %v1386 = vld [vmem:[%s4 + $0x148] sm:$0xff]
    %v1387 = vld [vmem:[%s4 + $0x150] sm:$0xff]
    %v1388 = vld [vmem:[%s4 + $0x158] sm:$0xff]
    %v1389 = vld [vmem:[%s4 + $0x160] sm:$0xff]
    %v1390 = vld [vmem:[%s4 + $0x168] sm:$0xff]
    %v1391 = vld [vmem:[%s4 + $0x170] sm:$0xff]
    %v1392 = vld [vmem:[%s4 + $0x178] sm:$0xff]
    %v1393 = vld [vmem:[%s4 + $0x180] sm:$0xff]
    %v1394 = vld [vmem:[%s4 + $0x188] sm:$0xff]
    %v1395 = vld [vmem:[%s4 + $0x190] sm:$0xff]
    %v1396 = vld [vmem:[%s4 + $0x198] sm:$0xff]
    %v1397 = vld [vmem:[%s4 + $0x1a0] sm:$0xff]
    %v1398 = vld [vmem:[%s4 + $0x1a8] sm:$0xff]
    %v1399 = vld [vmem:[%s4 + $0x1b0] sm:$0xff]
    %v1400 = vld [vmem:[%s4 + $0x1b8] sm:$0xff]
    %v1401 = vld [vmem:[%s4 + $0x1c0] sm:$0xff]
    %v1402 = vld [vmem:[%s4 + $0x1c8] sm:$0xff]
    %v1403 = vld [vmem:[%s4 + $0x1d0] sm:$0xff]
    %v1404 = vld [vmem:[%s4 + $0x1d8] sm:$0xff]
    %v1405 = vld [vmem:[%s4 + $0x1e0] sm:$0xff]
    %v1406 = vld [vmem:[%s4 + $0x1e8] sm:$0xff]
    %v1407 = vld [vmem:[%s4 + $0x1f0] sm:$0xff]
    %v1408 = vld [vmem:[%s4 + $0x1f8] sm:$0xff]
    %v1409 = vld [vmem:[%s4 + $0x200] sm:$0xff]
    %v1410 = vld [vmem:[%s4 + $0x208] sm:$0xff]
    %v1411 = vld [vmem:[%s4 + $0x210] sm:$0xff]
    %v1412 = vld [vmem:[%s4 + $0x218] sm:$0xff]
    %v1413 = vld [vmem:[%s4 + $0x220] sm:$0xff]
    %v1414 = vld [vmem:[%s4 + $0x228] sm:$0xff]
    %v1415 = vld [vmem:[%s4 + $0x230] sm:$0xff]
    %v1416 = vld [vmem:[%s4 + $0x238] sm:$0xff]
    %v1417 = vld [vmem:[%s4 + $0x240] sm:$0xff]
    %v1418 = vld [vmem:[%s4 + $0x248] sm:$0xff]
    %v1419 = vld [vmem:[%s4 + $0x250] sm:$0xff]
    %v1420 = vld [vmem:[%s4 + $0x258] sm:$0xff]
    %v1421 = vld [vmem:[%s4 + $0x260] sm:$0xff]
    %v1422 = vld [vmem:[%s4 + $0x268] sm:$0xff]
    %v1423 = vld [vmem:[%s4 + $0x270] sm:$0xff]
    %v1424 = vld [vmem:[%s4 + $0x278] sm:$0xff]
    %v1425 = vld [vmem:[%s4 + $0x280] sm:$0xff]
    %v1426 = vld [vmem:[%s4 + $0x288] sm:$0xff]
    %v1427 = vld [vmem:[%s4 + $0x290] sm:$0xff]
    %v1428 = vld [vmem:[%s4 + $0x298] sm:$0xff]
    %v1429 = vld [vmem:[%s4 + $0x2a0] sm:$0xff]
    %v1430 = vld [vmem:[%s4 + $0x2a8] sm:$0xff]
    %v1431 = vld [vmem:[%s4 + $0x2b0] sm:$0xff]
    %v1432 = vld [vmem:[%s4 + $0x2b8] sm:$0xff]
    %v1433 = vld [vmem:[%s4 + $0x2c0] sm:$0xff]
    %v1434 = vld [vmem:[%s4 + $0x2c8] sm:$0xff]
    %v1435 = vld [vmem:[%s4 + $0x2d0] sm:$0xff]
    %v1436 = vld [vmem:[%s4 + $0x2d8] sm:$0xff]
    %v1437 = vld [vmem:[%s4 + $0x2e0] sm:$0xff]
    %v1438 = vld [vmem:[%s4 + $0x2e8] sm:$0xff]
    %v1439 = vld [vmem:[%s4 + $0x2f0] sm:$0xff]
    %v1440 = vld [vmem:[%s4 + $0x2f8] sm:$0xff]
    %v1441 = vld [vmem:[%s4 + $0x300] sm:$0xff]
    %v1442 = vld [vmem:[%s4 + $0x308] sm:$0xff]
    %v1443 = vld [vmem:[%s4 + $0x310] sm:$0xff]
    %v1444 = vld [vmem:[%s4 + $0x318] sm:$0xff]
    %v1445 = vld [vmem:[%s4 + $0x320] sm:$0xff]
    %v1446 = vld [vmem:[%s4 + $0x328] sm:$0xff]
    %v1447 = vld [vmem:[%s4 + $0x330] sm:$0xff]
    %v1448 = vld [vmem:[%s4 + $0x338] sm:$0xff]
    %v1449 = vld [vmem:[%s4 + $0x340] sm:$0xff]
    %v1450 = vld [vmem:[%s4 + $0x348] sm:$0xff]
    %v1451 = vld [vmem:[%s4 + $0x350] sm:$0xff]
    %v1452 = vld [vmem:[%s4 + $0x358] sm:$0xff]
    %v1453 = vld [vmem:[%s4 + $0x360] sm:$0xff]
    %v1454 = vld [vmem:[%s4 + $0x368] sm:$0xff]
    %v1455 = vld [vmem:[%s4 + $0x370] sm:$0xff]
    %v1456 = vld [vmem:[%s4 + $0x378] sm:$0xff]
    %v1457 = vld [vmem:[%s4 + $0x380] sm:$0xff]
    %v1458 = vld [vmem:[%s4 + $0x388] sm:$0xff]
    %v1459 = vld [vmem:[%s4 + $0x390] sm:$0xff]
    %v1460 = vld [vmem:[%s4 + $0x398] sm:$0xff]
    %v1461 = vld [vmem:[%s4 + $0x3a0] sm:$0xff]
    %v1462 = vld [vmem:[%s4 + $0x3a8] sm:$0xff]
    %v1463 = vld [vmem:[%s4 + $0x3b0] sm:$0xff]
    %v1464 = vld [vmem:[%s4 + $0x3b8] sm:$0xff]
    %v1465 = vld [vmem:[%s4 + $0x3c0] sm:$0xff]
    %v1466 = vld [vmem:[%s4 + $0x3c8] sm:$0xff]
    %v1467 = vld [vmem:[%s4 + $0x3d0] sm:$0xff]
    %v1468 = vld [vmem:[%s4 + $0x3d8] sm:$0xff]
    %v1469 = vld [vmem:[%s4 + $0x3e0] sm:$0xff]
    %v1470 = vld [vmem:[%s4 + $0x3e8] sm:$0xff]
    %v1471 = vld [vmem:[%s4 + $0x3f0] sm:$0xff]
    %v1472 = vld [vmem:[%s4 + $0x3f8] sm:$0xff]
    %v1473 = vld [vmem:[%s5] sm:$0x3]
    %v1475 = vlaneseq
    %v1476 = vshrl.u32 %v1475, 7
    %v1477 = vsub.s32 0, %v1476
    %v1478 = vrot.slane %v1473, %v1477
    %v1479 = vlaneseq
    %v1480 = vshrl.u32 %v1479, 7
    %v1481 = vsub.s32 1, %v1480
    %v1482 = vrot.slane %v1473, %v1481
    %v1613 = vunpack.c.l.b16 %v1345
    %v1614 = vunpack.c.h.b16 %v1345
    %v1615 = vunpack.c.l.b16 %v1346
    %v1616 = vunpack.c.h.b16 %v1346
    %v1617 = vunpack.c.l.b16 %v1347
    %v1618 = vunpack.c.h.b16 %v1347
    %v1619 = vunpack.c.l.b16 %v1348
    %v1620 = vunpack.c.h.b16 %v1348
    %v1621 = vunpack.c.l.b16 %v1349
    %v1622 = vunpack.c.h.b16 %v1349
    %v1623 = vunpack.c.l.b16 %v1350
    %v1624 = vunpack.c.h.b16 %v1350
    %v1625 = vunpack.c.l.b16 %v1351
    %v1626 = vunpack.c.h.b16 %v1351
    %v1627 = vunpack.c.l.b16 %v1352
    %v1628 = vunpack.c.h.b16 %v1352
    %v1629 = vunpack.c.l.b16 %v1353
    %v1630 = vunpack.c.h.b16 %v1353
    %v1631 = vunpack.c.l.b16 %v1354
    %v1632 = vunpack.c.h.b16 %v1354
    %v1633 = vunpack.c.l.b16 %v1355
    %v1634 = vunpack.c.h.b16 %v1355
    %v1635 = vunpack.c.l.b16 %v1356
    %v1636 = vunpack.c.h.b16 %v1356
    %v1637 = vunpack.c.l.b16 %v1357
    %v1638 = vunpack.c.h.b16 %v1357
    %v1639 = vunpack.c.l.b16 %v1358
    %v1640 = vunpack.c.h.b16 %v1358
    %v1641 = vunpack.c.l.b16 %v1359
    %v1642 = vunpack.c.h.b16 %v1359
    %v1643 = vunpack.c.l.b16 %v1360
    %v1644 = vunpack.c.h.b16 %v1360
    %v1645 = vunpack.c.l.b16 %v1361
    %v1646 = vunpack.c.h.b16 %v1361
    %v1647 = vunpack.c.l.b16 %v1362
    %v1648 = vunpack.c.h.b16 %v1362
    %v1649 = vunpack.c.l.b16 %v1363
    %v1650 = vunpack.c.h.b16 %v1363
    %v1651 = vunpack.c.l.b16 %v1364
    %v1652 = vunpack.c.h.b16 %v1364
    %v1653 = vunpack.c.l.b16 %v1365
    %v1654 = vunpack.c.h.b16 %v1365
    %v1655 = vunpack.c.l.b16 %v1366
    %v1656 = vunpack.c.h.b16 %v1366
    %v1657 = vunpack.c.l.b16 %v1367
    %v1658 = vunpack.c.h.b16 %v1367
    %v1659 = vunpack.c.l.b16 %v1368
    %v1660 = vunpack.c.h.b16 %v1368
    %v1661 = vunpack.c.l.b16 %v1369
    %v1662 = vunpack.c.h.b16 %v1369
    %v1663 = vunpack.c.l.b16 %v1370
    %v1664 = vunpack.c.h.b16 %v1370
    %v1665 = vunpack.c.l.b16 %v1371
    %v1666 = vunpack.c.h.b16 %v1371
    %v1667 = vunpack.c.l.b16 %v1372
    %v1668 = vunpack.c.h.b16 %v1372
    %v1669 = vunpack.c.l.b16 %v1373
    %v1670 = vunpack.c.h.b16 %v1373
    %v1671 = vunpack.c.l.b16 %v1374
    %v1672 = vunpack.c.h.b16 %v1374
    %v1673 = vunpack.c.l.b16 %v1375
    %v1674 = vunpack.c.h.b16 %v1375
    %v1675 = vunpack.c.l.b16 %v1376
    %v1676 = vunpack.c.h.b16 %v1376
    %v1677 = vunpack.c.l.b16 %v1377
    %v1678 = vunpack.c.h.b16 %v1377
    %v1679 = vunpack.c.l.b16 %v1378
    %v1680 = vunpack.c.h.b16 %v1378
    %v1681 = vunpack.c.l.b16 %v1379
    %v1682 = vunpack.c.h.b16 %v1379
    %v1683 = vunpack.c.l.b16 %v1380
    %v1684 = vunpack.c.h.b16 %v1380
    %v1685 = vunpack.c.l.b16 %v1381
    %v1686 = vunpack.c.h.b16 %v1381
    %v1687 = vunpack.c.l.b16 %v1382
    %v1688 = vunpack.c.h.b16 %v1382
    %v1689 = vunpack.c.l.b16 %v1383
    %v1690 = vunpack.c.h.b16 %v1383
    %v1691 = vunpack.c.l.b16 %v1384
    %v1692 = vunpack.c.h.b16 %v1384
    %v1693 = vunpack.c.l.b16 %v1385
    %v1694 = vunpack.c.h.b16 %v1385
    %v1695 = vunpack.c.l.b16 %v1386
    %v1696 = vunpack.c.h.b16 %v1386
    %v1697 = vunpack.c.l.b16 %v1387
    %v1698 = vunpack.c.h.b16 %v1387
    %v1699 = vunpack.c.l.b16 %v1388
    %v1700 = vunpack.c.h.b16 %v1388
    %v1701 = vunpack.c.l.b16 %v1389
    %v1702 = vunpack.c.h.b16 %v1389
    %v1703 = vunpack.c.l.b16 %v1390
    %v1704 = vunpack.c.h.b16 %v1390
    %v1705 = vunpack.c.l.b16 %v1391
    %v1706 = vunpack.c.h.b16 %v1391
    %v1707 = vunpack.c.l.b16 %v1392
    %v1708 = vunpack.c.h.b16 %v1392
    %v1709 = vunpack.c.l.b16 %v1393
    %v1710 = vunpack.c.h.b16 %v1393
    %v1711 = vunpack.c.l.b16 %v1394
    %v1712 = vunpack.c.h.b16 %v1394
    %v1713 = vunpack.c.l.b16 %v1395
    %v1714 = vunpack.c.h.b16 %v1395
    %v1715 = vunpack.c.l.b16 %v1396
    %v1716 = vunpack.c.h.b16 %v1396
    %v1717 = vunpack.c.l.b16 %v1397
    %v1718 = vunpack.c.h.b16 %v1397
    %v1719 = vunpack.c.l.b16 %v1398
    %v1720 = vunpack.c.h.b16 %v1398
    %v1721 = vunpack.c.l.b16 %v1399
    %v1722 = vunpack.c.h.b16 %v1399
    %v1723 = vunpack.c.l.b16 %v1400
    %v1724 = vunpack.c.h.b16 %v1400
    %v1725 = vunpack.c.l.b16 %v1401
    %v1726 = vunpack.c.h.b16 %v1401
    %v1727 = vunpack.c.l.b16 %v1402
    %v1728 = vunpack.c.h.b16 %v1402
    %v1729 = vunpack.c.l.b16 %v1403
    %v1730 = vunpack.c.h.b16 %v1403
    %v1731 = vunpack.c.l.b16 %v1404
    %v1732 = vunpack.c.h.b16 %v1404
    %v1733 = vunpack.c.l.b16 %v1405
    %v1734 = vunpack.c.h.b16 %v1405
    %v1735 = vunpack.c.l.b16 %v1406
    %v1736 = vunpack.c.h.b16 %v1406
    %v1737 = vunpack.c.l.b16 %v1407
    %v1738 = vunpack.c.h.b16 %v1407
    %v1739 = vunpack.c.l.b16 %v1408
    %v1740 = vunpack.c.h.b16 %v1408
    %v1741 = vunpack.c.l.b16 %v1409
    %v1742 = vunpack.c.h.b16 %v1409
    %v1743 = vunpack.c.l.b16 %v1410
    %v1744 = vunpack.c.h.b16 %v1410
    %v1745 = vunpack.c.l.b16 %v1411
    %v1746 = vunpack.c.h.b16 %v1411
    %v1747 = vunpack.c.l.b16 %v1412
    %v1748 = vunpack.c.h.b16 %v1412
    %v1749 = vunpack.c.l.b16 %v1413
    %v1750 = vunpack.c.h.b16 %v1413
    %v1751 = vunpack.c.l.b16 %v1414
    %v1752 = vunpack.c.h.b16 %v1414
    %v1753 = vunpack.c.l.b16 %v1415
    %v1754 = vunpack.c.h.b16 %v1415
    %v1755 = vunpack.c.l.b16 %v1416
    %v1756 = vunpack.c.h.b16 %v1416
    %v1757 = vunpack.c.l.b16 %v1417
    %v1758 = vunpack.c.h.b16 %v1417
    %v1759 = vunpack.c.l.b16 %v1418
    %v1760 = vunpack.c.h.b16 %v1418
    %v1761 = vunpack.c.l.b16 %v1419
    %v1762 = vunpack.c.h.b16 %v1419
    %v1763 = vunpack.c.l.b16 %v1420
    %v1764 = vunpack.c.h.b16 %v1420
    %v1765 = vunpack.c.l.b16 %v1421
    %v1766 = vunpack.c.h.b16 %v1421
    %v1767 = vunpack.c.l.b16 %v1422
    %v1768 = vunpack.c.h.b16 %v1422
    %v1769 = vunpack.c.l.b16 %v1423
    %v1770 = vunpack.c.h.b16 %v1423
    %v1771 = vunpack.c.l.b16 %v1424
    %v1772 = vunpack.c.h.b16 %v1424
    %v1773 = vunpack.c.l.b16 %v1425
    %v1774 = vunpack.c.h.b16 %v1425
    %v1775 = vunpack.c.l.b16 %v1426
    %v1776 = vunpack.c.h.b16 %v1426
    %v1777 = vunpack.c.l.b16 %v1427
    %v1778 = vunpack.c.h.b16 %v1427
    %v1779 = vunpack.c.l.b16 %v1428
    %v1780 = vunpack.c.h.b16 %v1428
    %v1781 = vunpack.c.l.b16 %v1429
    %v1782 = vunpack.c.h.b16 %v1429
    %v1783 = vunpack.c.l.b16 %v1430
    %v1784 = vunpack.c.h.b16 %v1430
    %v1785 = vunpack.c.l.b16 %v1431
    %v1786 = vunpack.c.h.b16 %v1431
    %v1787 = vunpack.c.l.b16 %v1432
    %v1788 = vunpack.c.h.b16 %v1432
    %v1789 = vunpack.c.l.b16 %v1433
    %v1790 = vunpack.c.h.b16 %v1433
    %v1791 = vunpack.c.l.b16 %v1434
    %v1792 = vunpack.c.h.b16 %v1434
    %v1793 = vunpack.c.l.b16 %v1435
    %v1794 = vunpack.c.h.b16 %v1435
    %v1795 = vunpack.c.l.b16 %v1436
    %v1796 = vunpack.c.h.b16 %v1436
    %v1797 = vunpack.c.l.b16 %v1437
    %v1798 = vunpack.c.h.b16 %v1437
    %v1799 = vunpack.c.l.b16 %v1438
    %v1800 = vunpack.c.h.b16 %v1438
    %v1801 = vunpack.c.l.b16 %v1439
    %v1802 = vunpack.c.h.b16 %v1439
    %v1803 = vunpack.c.l.b16 %v1440
    %v1804 = vunpack.c.h.b16 %v1440
    %v1805 = vunpack.c.l.b16 %v1441
    %v1806 = vunpack.c.h.b16 %v1441
    %v1807 = vunpack.c.l.b16 %v1442
    %v1808 = vunpack.c.h.b16 %v1442
    %v1809 = vunpack.c.l.b16 %v1443
    %v1810 = vunpack.c.h.b16 %v1443
    %v1811 = vunpack.c.l.b16 %v1444
    %v1812 = vunpack.c.h.b16 %v1444
    %v1813 = vunpack.c.l.b16 %v1445
    %v1814 = vunpack.c.h.b16 %v1445
    %v1815 = vunpack.c.l.b16 %v1446
    %v1816 = vunpack.c.h.b16 %v1446
    %v1817 = vunpack.c.l.b16 %v1447
    %v1818 = vunpack.c.h.b16 %v1447
    %v1819 = vunpack.c.l.b16 %v1448
    %v1820 = vunpack.c.h.b16 %v1448
    %v1821 = vunpack.c.l.b16 %v1449
    %v1822 = vunpack.c.h.b16 %v1449
    %v1823 = vunpack.c.l.b16 %v1450
    %v1824 = vunpack.c.h.b16 %v1450
    %v1825 = vunpack.c.l.b16 %v1451
    %v1826 = vunpack.c.h.b16 %v1451
    %v1827 = vunpack.c.l.b16 %v1452
    %v1828 = vunpack.c.h.b16 %v1452
    %v1829 = vunpack.c.l.b16 %v1453
    %v1830 = vunpack.c.h.b16 %v1453
    %v1831 = vunpack.c.l.b16 %v1454
    %v1832 = vunpack.c.h.b16 %v1454
    %v1833 = vunpack.c.l.b16 %v1455
    %v1834 = vunpack.c.h.b16 %v1455
    %v1835 = vunpack.c.l.b16 %v1456
    %v1836 = vunpack.c.h.b16 %v1456
    %v1837 = vunpack.c.l.b16 %v1457
    %v1838 = vunpack.c.h.b16 %v1457
    %v1839 = vunpack.c.l.b16 %v1458
    %v1840 = vunpack.c.h.b16 %v1458
    %v1841 = vunpack.c.l.b16 %v1459
    %v1842 = vunpack.c.h.b16 %v1459
    %v1843 = vunpack.c.l.b16 %v1460
    %v1844 = vunpack.c.h.b16 %v1460
    %v1845 = vunpack.c.l.b16 %v1461
    %v1846 = vunpack.c.h.b16 %v1461
    %v1847 = vunpack.c.l.b16 %v1462
    %v1848 = vunpack.c.h.b16 %v1462
    %v1849 = vunpack.c.l.b16 %v1463
    %v1850 = vunpack.c.h.b16 %v1463
    %v1851 = vunpack.c.l.b16 %v1464
    %v1852 = vunpack.c.h.b16 %v1464
    %v1853 = vunpack.c.l.b16 %v1465
    %v1854 = vunpack.c.h.b16 %v1465
    %v1855 = vunpack.c.l.b16 %v1466
    %v1856 = vunpack.c.h.b16 %v1466
    %v1857 = vunpack.c.l.b16 %v1467
    %v1858 = vunpack.c.h.b16 %v1467
    %v1859 = vunpack.c.l.b16 %v1468
    %v1860 = vunpack.c.h.b16 %v1468
    %v1861 = vunpack.c.l.b16 %v1469
    %v1862 = vunpack.c.h.b16 %v1469
    %v1863 = vunpack.c.l.b16 %v1470
    %v1864 = vunpack.c.h.b16 %v1470
    %v1865 = vunpack.c.l.b16 %v1471
    %v1866 = vunpack.c.h.b16 %v1471
    %v1867 = vunpack.c.l.b16 %v1472
    %v1868 = vunpack.c.h.b16 %v1472
    %v1869 = vpack.c.b16 %v1615, %v1613
    %v1870 = vpack.c.b16 %v1616, %v1614
    %v1871 = vpack.c.b16 %v1619, %v1617
    %v1872 = vpack.c.b16 %v1620, %v1618
    %v1873 = vpack.c.b16 %v1623, %v1621
    %v1874 = vpack.c.b16 %v1624, %v1622
    %v1875 = vpack.c.b16 %v1627, %v1625
    %v1876 = vpack.c.b16 %v1628, %v1626
    %v1877 = vpack.c.b16 %v1631, %v1629
    %v1878 = vpack.c.b16 %v1632, %v1630
    %v1879 = vpack.c.b16 %v1635, %v1633
    %v1880 = vpack.c.b16 %v1636, %v1634
    %v1881 = vpack.c.b16 %v1639, %v1637
    %v1882 = vpack.c.b16 %v1640, %v1638
    %v1883 = vpack.c.b16 %v1643, %v1641
    %v1884 = vpack.c.b16 %v1644, %v1642
    %v1885 = vpack.c.b16 %v1647, %v1645
    %v1886 = vpack.c.b16 %v1648, %v1646
    %v1887 = vpack.c.b16 %v1651, %v1649
    %v1888 = vpack.c.b16 %v1652, %v1650
    %v1889 = vpack.c.b16 %v1655, %v1653
    %v1890 = vpack.c.b16 %v1656, %v1654
    %v1891 = vpack.c.b16 %v1659, %v1657
    %v1892 = vpack.c.b16 %v1660, %v1658
    %v1893 = vpack.c.b16 %v1663, %v1661
    %v1894 = vpack.c.b16 %v1664, %v1662
    %v1895 = vpack.c.b16 %v1667, %v1665
    %v1896 = vpack.c.b16 %v1668, %v1666
    %v1897 = vpack.c.b16 %v1671, %v1669
    %v1898 = vpack.c.b16 %v1672, %v1670
    %v1899 = vpack.c.b16 %v1675, %v1673
    %v1900 = vpack.c.b16 %v1676, %v1674
    %v1901 = vpack.c.b16 %v1679, %v1677
    %v1902 = vpack.c.b16 %v1680, %v1678
    %v1903 = vpack.c.b16 %v1683, %v1681
    %v1904 = vpack.c.b16 %v1684, %v1682
    %v1905 = vpack.c.b16 %v1687, %v1685
    %v1906 = vpack.c.b16 %v1688, %v1686
    %v1907 = vpack.c.b16 %v1691, %v1689
    %v1908 = vpack.c.b16 %v1692, %v1690
    %v1909 = vpack.c.b16 %v1695, %v1693
    %v1910 = vpack.c.b16 %v1696, %v1694
    %v1911 = vpack.c.b16 %v1699, %v1697
    %v1912 = vpack.c.b16 %v1700, %v1698
    %v1913 = vpack.c.b16 %v1703, %v1701
    %v1914 = vpack.c.b16 %v1704, %v1702
    %v1915 = vpack.c.b16 %v1707, %v1705
    %v1916 = vpack.c.b16 %v1708, %v1706
    %v1917 = vpack.c.b16 %v1711, %v1709
    %v1918 = vpack.c.b16 %v1712, %v1710
    %v1919 = vpack.c.b16 %v1715, %v1713
    %v1920 = vpack.c.b16 %v1716, %v1714
    %v1921 = vpack.c.b16 %v1719, %v1717
    %v1922 = vpack.c.b16 %v1720, %v1718
    %v1923 = vpack.c.b16 %v1723, %v1721
    %v1924 = vpack.c.b16 %v1724, %v1722
    %v1925 = vpack.c.b16 %v1727, %v1725
    %v1926 = vpack.c.b16 %v1728, %v1726
    %v1927 = vpack.c.b16 %v1731, %v1729
    %v1928 = vpack.c.b16 %v1732, %v1730
    %v1929 = vpack.c.b16 %v1735, %v1733
    %v1930 = vpack.c.b16 %v1736, %v1734
    %v1931 = vpack.c.b16 %v1739, %v1737
    %v1932 = vpack.c.b16 %v1740, %v1738
    %v1933 = vpack.c.b16 %v1743, %v1741
    %v1934 = vpack.c.b16 %v1744, %v1742
    %v1935 = vpack.c.b16 %v1747, %v1745
    %v1936 = vpack.c.b16 %v1748, %v1746
    %v1937 = vpack.c.b16 %v1751, %v1749
    %v1938 = vpack.c.b16 %v1752, %v1750
    %v1939 = vpack.c.b16 %v1755, %v1753
    %v1940 = vpack.c.b16 %v1756, %v1754
    %v1941 = vpack.c.b16 %v1759, %v1757
    %v1942 = vpack.c.b16 %v1760, %v1758
    %v1943 = vpack.c.b16 %v1763, %v1761
    %v1944 = vpack.c.b16 %v1764, %v1762
    %v1945 = vpack.c.b16 %v1767, %v1765
    %v1946 = vpack.c.b16 %v1768, %v1766
    %v1947 = vpack.c.b16 %v1771, %v1769
    %v1948 = vpack.c.b16 %v1772, %v1770
    %v1949 = vpack.c.b16 %v1775, %v1773
    %v1950 = vpack.c.b16 %v1776, %v1774
    %v1951 = vpack.c.b16 %v1779, %v1777
    %v1952 = vpack.c.b16 %v1780, %v1778
    %v1953 = vpack.c.b16 %v1783, %v1781
    %v1954 = vpack.c.b16 %v1784, %v1782
    %v1955 = vpack.c.b16 %v1787, %v1785
    %v1956 = vpack.c.b16 %v1788, %v1786
    %v1957 = vpack.c.b16 %v1791, %v1789
    %v1958 = vpack.c.b16 %v1792, %v1790
    %v1959 = vpack.c.b16 %v1795, %v1793
    %v1960 = vpack.c.b16 %v1796, %v1794
    %v1961 = vpack.c.b16 %v1799, %v1797
    %v1962 = vpack.c.b16 %v1800, %v1798
    %v1963 = vpack.c.b16 %v1803, %v1801
    %v1964 = vpack.c.b16 %v1804, %v1802
    %v1965 = vpack.c.b16 %v1807, %v1805
    %v1966 = vpack.c.b16 %v1808, %v1806
    %v1967 = vpack.c.b16 %v1811, %v1809
    %v1968 = vpack.c.b16 %v1812, %v1810
    %v1969 = vpack.c.b16 %v1815, %v1813
    %v1970 = vpack.c.b16 %v1816, %v1814
    %v1971 = vpack.c.b16 %v1819, %v1817
    %v1972 = vpack.c.b16 %v1820, %v1818
    %v1973 = vpack.c.b16 %v1823, %v1821
    %v1974 = vpack.c.b16 %v1824, %v1822
    %v1975 = vpack.c.b16 %v1827, %v1825
    %v1976 = vpack.c.b16 %v1828, %v1826
    %v1977 = vpack.c.b16 %v1831, %v1829
    %v1978 = vpack.c.b16 %v1832, %v1830
    %v1979 = vpack.c.b16 %v1835, %v1833
    %v1980 = vpack.c.b16 %v1836, %v1834
    %v1981 = vpack.c.b16 %v1839, %v1837
    %v1982 = vpack.c.b16 %v1840, %v1838
    %v1983 = vpack.c.b16 %v1843, %v1841
    %v1984 = vpack.c.b16 %v1844, %v1842
    %v1985 = vpack.c.b16 %v1847, %v1845
    %v1986 = vpack.c.b16 %v1848, %v1846
    %v1987 = vpack.c.b16 %v1851, %v1849
    %v1988 = vpack.c.b16 %v1852, %v1850
    %v1989 = vpack.c.b16 %v1855, %v1853
    %v1990 = vpack.c.b16 %v1856, %v1854
    %v1991 = vpack.c.b16 %v1859, %v1857
    %v1992 = vpack.c.b16 %v1860, %v1858
    %v1993 = vpack.c.b16 %v1863, %v1861
    %v1994 = vpack.c.b16 %v1864, %v1862
    %v1995 = vpack.c.b16 %v1867, %v1865
    %v1996 = vpack.c.b16 %v1868, %v1866
    %2125 = vmatprep.subr.bf16.mxu0 %v1870
    %2126 = vmatpush1.bf16.msra.mxu0 %v1869
    %2127 = vmatprep.subr.bf16.mxu0 %v1872
    %2128 = vmatpush1.bf16.msra.mxu0 %v1871
    %2129 = vmatprep.subr.bf16.mxu0 %v1874
    %2130 = vmatpush1.bf16.msra.mxu0 %v1873
    %2131 = vmatprep.subr.bf16.mxu0 %v1876
    %2132 = vmatpush1.bf16.msra.mxu0 %v1875
    %2133 = vmatprep.subr.bf16.mxu0 %v1878
    %2134 = vmatpush1.bf16.msra.mxu0 %v1877
    %2135 = vmatprep.subr.bf16.mxu0 %v1880
    %2136 = vmatpush1.bf16.msra.mxu0 %v1879
    %2137 = vmatprep.subr.bf16.mxu0 %v1882
    %2138 = vmatpush1.bf16.msra.mxu0 %v1881
    %2139 = vmatprep.subr.bf16.mxu0 %v1884
    %2140 = vmatpush1.bf16.msra.mxu0 %v1883
    %2141 = vmatprep.subr.bf16.mxu0 %v1886
    %2142 = vmatpush1.bf16.msra.mxu0 %v1885
    %2143 = vmatprep.subr.bf16.mxu0 %v1888
    %2144 = vmatpush1.bf16.msra.mxu0 %v1887
    %2145 = vmatprep.subr.bf16.mxu0 %v1890
    %2146 = vmatpush1.bf16.msra.mxu0 %v1889
    %2147 = vmatprep.subr.bf16.mxu0 %v1892
    %2148 = vmatpush1.bf16.msra.mxu0 %v1891
    %2149 = vmatprep.subr.bf16.mxu0 %v1894
    %2150 = vmatpush1.bf16.msra.mxu0 %v1893
    %2151 = vmatprep.subr.bf16.mxu0 %v1896
    %2152 = vmatpush1.bf16.msra.mxu0 %v1895
    %2153 = vmatprep.subr.bf16.mxu0 %v1898
    %2154 = vmatpush1.bf16.msra.mxu0 %v1897
    %2155 = vmatprep.subr.bf16.mxu0 %v1900
    %2156 = vmatpush1.bf16.msra.mxu0 %v1899
    %2157 = vmatprep.mubr.bf16.mxu0 %v1338
    %2158 = vmatmul.mubr.bf16.gmra.mrb[0].mxu0 %v1337
    %v2159 = vpop.f32.mrb[0].mxu0
    %v2160 = vadd.f32 %v1478, %v2159
    %v2161 = vpop.f32.mrb[0].mxu0
    %v2162 = vadd.f32 %v1482, %v2161
    %v2163 = vpop.f32.mrb[0].mxu0
    %v2164 = vpop.f32.mrb[0].mxu0
    %2165 = vdwg.mxu0
    %2166 = vmatprep.subr.bf16.mxu0 %v1902
    %2167 = vmatpush1.bf16.msra.mxu0 %v1901
    %2168 = vmatprep.subr.bf16.mxu0 %v1904
    %2169 = vmatpush1.bf16.msra.mxu0 %v1903
    %2170 = vmatprep.subr.bf16.mxu0 %v1906
    %2171 = vmatpush1.bf16.msra.mxu0 %v1905
    %2172 = vmatprep.subr.bf16.mxu0 %v1908
    %2173 = vmatpush1.bf16.msra.mxu0 %v1907
    %2174 = vmatprep.subr.bf16.mxu0 %v1910
    %2175 = vmatpush1.bf16.msra.mxu0 %v1909
    %2176 = vmatprep.subr.bf16.mxu0 %v1912
    %2177 = vmatpush1.bf16.msra.mxu0 %v1911
    %2178 = vmatprep.subr.bf16.mxu0 %v1914
    %2179 = vmatpush1.bf16.msra.mxu0 %v1913
    %2180 = vmatprep.subr.bf16.mxu0 %v1916
    %2181 = vmatpush1.bf16.msra.mxu0 %v1915
    %2182 = vmatprep.subr.bf16.mxu0 %v1918
    %2183 = vmatpush1.bf16.msra.mxu0 %v1917
    %2184 = vmatprep.subr.bf16.mxu0 %v1920
    %2185 = vmatpush1.bf16.msra.mxu0 %v1919
    %2186 = vmatprep.subr.bf16.mxu0 %v1922
    %2187 = vmatpush1.bf16.msra.mxu0 %v1921
    %2188 = vmatprep.subr.bf16.mxu0 %v1924
    %2189 = vmatpush1.bf16.msra.mxu0 %v1923
    %2190 = vmatprep.subr.bf16.mxu0 %v1926
    %2191 = vmatpush1.bf16.msra.mxu0 %v1925
    %2192 = vmatprep.subr.bf16.mxu0 %v1928
    %2193 = vmatpush1.bf16.msra.mxu0 %v1927
    %2194 = vmatprep.subr.bf16.mxu0 %v1930
    %2195 = vmatpush1.bf16.msra.mxu0 %v1929
    %2196 = vmatprep.subr.bf16.mxu0 %v1932
    %2197 = vmatpush1.bf16.msra.mxu0 %v1931
    %2198 = vmatprep.mubr.bf16.mxu0 %v1340
    %2199 = vmatmul.mubr.bf16.gmra.mrb[0].mxu0 %v1339
    %v2200 = vpop.f32.mrb[0].mxu0
    %v2201 = vadd.f32 %v2160, %v2200
    %v2202 = vpop.f32.mrb[0].mxu0
    %v2203 = vadd.f32 %v2162, %v2202
    %v2204 = vpop.f32.mrb[0].mxu0
    %v2205 = vpop.f32.mrb[0].mxu0
    %2206 = vdwg.mxu0
    %2207 = vmatprep.subr.bf16.mxu0 %v1934
    %2208 = vmatpush1.bf16.msra.mxu0 %v1933
    %2209 = vmatprep.subr.bf16.mxu0 %v1936
    %2210 = vmatpush1.bf16.msra.mxu0 %v1935
    %2211 = vmatprep.subr.bf16.mxu0 %v1938
    %2212 = vmatpush1.bf16.msra.mxu0 %v1937
    %2213 = vmatprep.subr.bf16.mxu0 %v1940
    %2214 = vmatpush1.bf16.msra.mxu0 %v1939
    %2215 = vmatprep.subr.bf16.mxu0 %v1942
    %2216 = vmatpush1.bf16.msra.mxu0 %v1941
    %2217 = vmatprep.subr.bf16.mxu0 %v1944
    %2218 = vmatpush1.bf16.msra.mxu0 %v1943
    %2219 = vmatprep.subr.bf16.mxu0 %v1946
    %2220 = vmatpush1.bf16.msra.mxu0 %v1945
    %2221 = vmatprep.subr.bf16.mxu0 %v1948
    %2222 = vmatpush1.bf16.msra.mxu0 %v1947
    %2223 = vmatprep.subr.bf16.mxu0 %v1950
    %2224 = vmatpush1.bf16.msra.mxu0 %v1949
    %2225 = vmatprep.subr.bf16.mxu0 %v1952
    %2226 = vmatpush1.bf16.msra.mxu0 %v1951
    %2227 = vmatprep.subr.bf16.mxu0 %v1954
    %2228 = vmatpush1.bf16.msra.mxu0 %v1953
    %2229 = vmatprep.subr.bf16.mxu0 %v1956
    %2230 = vmatpush1.bf16.msra.mxu0 %v1955
    %2231 = vmatprep.subr.bf16.mxu0 %v1958
    %2232 = vmatpush1.bf16.msra.mxu0 %v1957
    %2233 = vmatprep.subr.bf16.mxu0 %v1960
    %2234 = vmatpush1.bf16.msra.mxu0 %v1959
    %2235 = vmatprep.subr.bf16.mxu0 %v1962
    %2236 = vmatpush1.bf16.msra.mxu0 %v1961
    %2237 = vmatprep.subr.bf16.mxu0 %v1964
    %2238 = vmatpush1.bf16.msra.mxu0 %v1963
    %2239 = vmatprep.mubr.bf16.mxu0 %v1342
    %2240 = vmatmul.mubr.bf16.gmra.mrb[0].mxu0 %v1341
    %v2241 = vpop.f32.mrb[0].mxu0
    %v2242 = vadd.f32 %v2201, %v2241
    %v2243 = vpop.f32.mrb[0].mxu0
    %v2244 = vadd.f32 %v2203, %v2243
    %v2245 = vpop.f32.mrb[0].mxu0
    %v2246 = vpop.f32.mrb[0].mxu0
    %2247 = vdwg.mxu0
    %2248 = vmatprep.subr.bf16.mxu0 %v1966
    %2249 = vmatpush1.bf16.msra.mxu0 %v1965
    %2250 = vmatprep.subr.bf16.mxu0 %v1968
    %2251 = vmatpush1.bf16.msra.mxu0 %v1967
    %2252 = vmatprep.subr.bf16.mxu0 %v1970
    %2253 = vmatpush1.bf16.msra.mxu0 %v1969
    %2254 = vmatprep.subr.bf16.mxu0 %v1972
    %2255 = vmatpush1.bf16.msra.mxu0 %v1971
    %2256 = vmatprep.subr.bf16.mxu0 %v1974
    %2257 = vmatpush1.bf16.msra.mxu0 %v1973
    %2258 = vmatprep.subr.bf16.mxu0 %v1976
    %2259 = vmatpush1.bf16.msra.mxu0 %v1975
    %2260 = vmatprep.subr.bf16.mxu0 %v1978
    %2261 = vmatpush1.bf16.msra.mxu0 %v1977
    %2262 = vmatprep.subr.bf16.mxu0 %v1980
    %2263 = vmatpush1.bf16.msra.mxu0 %v1979
    %2264 = vmatprep.subr.bf16.mxu0 %v1982
    %2265 = vmatpush1.bf16.msra.mxu0 %v1981
    %2266 = vmatprep.subr.bf16.mxu0 %v1984
    %2267 = vmatpush1.bf16.msra.mxu0 %v1983
    %2268 = vmatprep.subr.bf16.mxu0 %v1986
    %2269 = vmatpush1.bf16.msra.mxu0 %v1985
    %2270 = vmatprep.subr.bf16.mxu0 %v1988
    %2271 = vmatpush1.bf16.msra.mxu0 %v1987
    %2272 = vmatprep.subr.bf16.mxu0 %v1990
    %2273 = vmatpush1.bf16.msra.mxu0 %v1989
    %2274 = vmatprep.subr.bf16.mxu0 %v1992
    %2275 = vmatpush1.bf16.msra.mxu0 %v1991
    %2276 = vmatprep.subr.bf16.mxu0 %v1994
    %2277 = vmatpush1.bf16.msra.mxu0 %v1993
    %2278 = vmatprep.subr.bf16.mxu0 %v1996
    %2279 = vmatpush1.bf16.msra.mxu0 %v1995
    %2280 = vmatprep.mubr.bf16.mxu0 %v1344
    %2281 = vmatmul.mubr.bf16.gmra.mrb[0].mxu0 %v1343
    %v2282 = vpop.f32.mrb[0].mxu0
    %v2283 = vadd.f32 %v2242, %v2282
    %v2284 = vpop.f32.mrb[0].mxu0
    %v2285 = vadd.f32 %v2244, %v2284
    %v2286 = vpop.f32.mrb[0].mxu0
    %v2287 = vpop.f32.mrb[0].mxu0
    %2288 = vdwg.mxu0
    %v2289 = vmax.f32 %v2283, 0.0
    %v2290 = vmax.f32 %v2285, 0.0
    %v2291 = vld [vmem:[%s6] sm:$0xff]
    %v2292 = vld [vmem:[%s6 + $0x8] sm:$0xff]
    %v2293 = vld [vmem:[%s6 + $0x10] sm:$0xff]
    %v2294 = vld [vmem:[%s6 + $0x18] sm:$0xff]
    %v2295 = vld [vmem:[%s6 + $0x20] sm:$0xff]
    %v2296 = vld [vmem:[%s6 + $0x28] sm:$0xff]
    %v2297 = vld [vmem:[%s6 + $0x30] sm:$0xff]
    %v2298 = vld [vmem:[%s6 + $0x38] sm:$0xff]
    %v2299 = vld [vmem:[%s6 + $0x40] sm:$0xff]
    %v2300 = vld [vmem:[%s6 + $0x48] sm:$0xff]
    %v2301 = vld [vmem:[%s6 + $0x50] sm:$0xff]
    %v2302 = vld [vmem:[%s6 + $0x58] sm:$0xff]
    %v2303 = vld [vmem:[%s6 + $0x60] sm:$0xff]
    %v2304 = vld [vmem:[%s6 + $0x68] sm:$0xff]
    %v2305 = vld [vmem:[%s6 + $0x70] sm:$0xff]
    %v2306 = vld [vmem:[%s6 + $0x78] sm:$0xff]
    %v2307 = vld [vmem:[%s6 + $0x80] sm:$0xff]
    %v2308 = vld [vmem:[%s6 + $0x88] sm:$0xff]
    %v2309 = vld [vmem:[%s6 + $0x90] sm:$0xff]
    %v2310 = vld [vmem:[%s6 + $0x98] sm:$0xff]
    %v2311 = vld [vmem:[%s6 + $0xa0] sm:$0xff]
    %v2312 = vld [vmem:[%s6 + $0xa8] sm:$0xff]
    %v2313 = vld [vmem:[%s6 + $0xb0] sm:$0xff]
    %v2314 = vld [vmem:[%s6 + $0xb8] sm:$0xff]
    %v2315 = vld [vmem:[%s6 + $0xc0] sm:$0xff]
    %v2316 = vld [vmem:[%s6 + $0xc8] sm:$0xff]
    %v2317 = vld [vmem:[%s6 + $0xd0] sm:$0xff]
    %v2318 = vld [vmem:[%s6 + $0xd8] sm:$0xff]
    %v2319 = vld [vmem:[%s6 + $0xe0] sm:$0xff]
    %v2320 = vld [vmem:[%s6 + $0xe8] sm:$0xff]
    %v2321 = vld [vmem:[%s6 + $0xf0] sm:$0xff]
    %v2322 = vld [vmem:[%s6 + $0xf8] sm:$0xff]
    %v2323 = vld [vmem:[%s7] sm:$0x1]
    %v2325 = vlaneseq
    %v2326 = vshrl.u32 %v2325, 7
    %v2327 = vsub.s32 0, %v2326
    %v2328 = vrot.slane %v2323, %v2327
    %2330 = vmatprep.subr.mxu0 0.0
    %2331 = vmatpush1.msra.mxu0 %v2291
    %2332 = vmatprep.subr.mxu0 0.0
    %2333 = vmatpush1.msra.mxu0 %v2292
    %2334 = vmatprep.subr.mxu0 0.0
    %2335 = vmatpush1.msra.mxu0 %v2293
    %2336 = vmatprep.subr.mxu0 0.0
    %2337 = vmatpush1.msra.mxu0 %v2294
    %2338 = vmatprep.subr.mxu0 0.0
    %2339 = vmatpush1.msra.mxu0 %v2295
    %2340 = vmatprep.subr.mxu0 0.0
    %2341 = vmatpush1.msra.mxu0 %v2296
    %2342 = vmatprep.subr.mxu0 0.0
    %2343 = vmatpush1.msra.mxu0 %v2297
    %2344 = vmatprep.subr.mxu0 0.0
    %2345 = vmatpush1.msra.mxu0 %v2298
    %2346 = vmatprep.subr.mxu0 0.0
    %2347 = vmatpush1.msra.mxu0 %v2299
    %2348 = vmatprep.subr.mxu0 0.0
    %2349 = vmatpush1.msra.mxu0 %v2300
    %2350 = vmatprep.subr.mxu0 0.0
    %2351 = vmatpush1.msra.mxu0 %v2301
    %2352 = vmatprep.subr.mxu0 0.0
    %2353 = vmatpush1.msra.mxu0 %v2302
    %2354 = vmatprep.subr.mxu0 0.0
    %2355 = vmatpush1.msra.mxu0 %v2303
    %2356 = vmatprep.subr.mxu0 0.0
    %2357 = vmatpush1.msra.mxu0 %v2304
    %2358 = vmatprep.subr.mxu0 0.0
    %2359 = vmatpush1.msra.mxu0 %v2305
    %2360 = vmatprep.subr.mxu0 0.0
    %2361 = vmatpush1.msra.mxu0 %v2306
    %2362 = vmatprep.subr.mxu0 0.0
    %2363 = vmatpush1.msra.mxu0 %v2307
    %2364 = vmatprep.subr.mxu0 0.0
    %2365 = vmatpush1.msra.mxu0 %v2308
    %2366 = vmatprep.subr.mxu0 0.0
    %2367 = vmatpush1.msra.mxu0 %v2309
    %2368 = vmatprep.subr.mxu0 0.0
    %2369 = vmatpush1.msra.mxu0 %v2310
    %2370 = vmatprep.subr.mxu0 0.0
    %2371 = vmatpush1.msra.mxu0 %v2311
    %2372 = vmatprep.subr.mxu0 0.0
    %2373 = vmatpush1.msra.mxu0 %v2312
    %2374 = vmatprep.subr.mxu0 0.0
    %2375 = vmatpush1.msra.mxu0 %v2313
    %2376 = vmatprep.subr.mxu0 0.0
    %2377 = vmatpush1.msra.mxu0 %v2314
    %2378 = vmatprep.subr.mxu0 0.0
    %2379 = vmatpush1.msra.mxu0 %v2315
    %2380 = vmatprep.subr.mxu0 0.0
    %2381 = vmatpush1.msra.mxu0 %v2316
    %2382 = vmatprep.subr.mxu0 0.0
    %2383 = vmatpush1.msra.mxu0 %v2317
    %2384 = vmatprep.subr.mxu0 0.0
    %2385 = vmatpush1.msra.mxu0 %v2318
    %2386 = vmatprep.subr.mxu0 0.0
    %2387 = vmatpush1.msra.mxu0 %v2319
    %2388 = vmatprep.subr.mxu0 0.0
    %2389 = vmatpush1.msra.mxu0 %v2320
    %2390 = vmatprep.subr.mxu0 0.0
    %2391 = vmatpush1.msra.mxu0 %v2321
    %2392 = vmatprep.subr.mxu0 0.0
    %2393 = vmatpush1.msra.mxu0 %v2322
    %2394 = vmatprep.mubr.f32.mxu0 %v2290
    %2395 = vmatmul.mubr.f32.gmra.mrb[0].mxu0 %v2289
    %v2396 = vpop.f32.mrb[0].mxu0
    %v2397 = vadd.f32 %v2328, %v2396
    %v2398 = vpop.f32.mrb[0].mxu0
    %2399 = vdwg.mxu0
    %vm2400 = vcmask 58368
    %v2401 = vsel %vm2400, %v2397, -inf
    %2402 = vmax.xlane.f32.xlu0 %v2401
    %v2403 = vpop.xlane.xlu0 %2402
    %v2404 = vsub.f32 %v2397, %v2403
    %v2405 = vmul.f32 %v2404, 1.442695
    %v2406 = vpow.pop %v2405
    %v2407 = vsel %vm2400, %v2406, 0.0
    %2408 = vadd.xlane.f32.xlu0 %v2407
    %v2409 = vpop.xlane.xlu0 %2408
    %v2410 = vrcp.pop %v2409
    %v2411 = vmul.f32 %v2406, %v2410
    %2412 = vst.msk [vmem:[#allocation3] sm:$0x3] %vm2400, %v2411
    // Predicated region
    $region34: #{downstream_forward.3} parent=1 // pred_check
      _
    $region35: #{downstream_forward.3} parent=1 // pred_check_branch
      %2414 = sbr.rel (0) target = $region37
    $region36: #{downstream_forward.3} parent=1 // pred_region
      %s2416 = ssub.s32 32, 32
      %2417 = vsyncadd [#allocation4], %s2416
      %s2419 = sshll.u32 [#allocation3], 4
      %s2420 = int_to_ptr.vmem [resolvable:$true] %s2419
      %2422 = dma.vmem_to_hbm [thread:$0]  %s2420, 32, %s8, [#allocation4]
    $region37: #{downstream_forward.3} parent=1 // pred_fallthru
      _
    // Predicated region
    $region38: #{downstream_forward.3} parent=1 // pred_check
      _
    $region39: #{downstream_forward.3} parent=1 // pred_check_branch
      %2424 = sbr.rel (0) target = $region41
    $region40: #{downstream_forward.3} parent=1 // pred_region
      %2425 = dma.done [#allocation4], 32
    $region41: #{downstream_forward.3} parent=1 // pred_fallthru
      _
    %2426 = vsyncpa [#allocation4], 1

// kernel: downstream_forward.2
$region0: #{downstream_forward.2}
  #allocation0 [shape = 'u32[]', space=smem, size = 0x4, offset = 0x4, fixed_abs, tag = 'smem constant byte address 0x4 - core index']
  #allocation1 [shape = 'u32[144,128]{1,0:T(1,128)}', space=vmem, size = 0x12000, scoped, tag = 'internal scratch']
  %s0 = inlined_call_operand.vmem [shape: f32[2,5,4096], index: 0, kind: input, shape index: {}]
  %s1 = inlined_call_operand.hbm [shape: bf16[6,4096,1024], index: 1, kind: input, shape index: {}]
  %s2 = inlined_call_operand.hbm [shape: f32[6,1,1024], index: 2, kind: input, shape index: {}]
  %s3 = inlined_call_operand.vmem [shape: f32[6,2,1024], index: 3, kind: output, shape index: {}]
  %s4 = sld [smem:[#allocation0]]
  $region53: #{downstream_forward.2} parent=0
    _
  %s6 = ssub.s32 1, %s4
  %s7 = scalar_select 0, %s6, %s4
  $region1: #{downstream_forward.2} parent=0
    #allocation2 [shape = 'u8[8388608]{0}', space=vmem, size = 0x800000, scoped, tag = 'input window, operand 1']
    #allocation3 [shape = 's32[2]{0}', space=sflag, size = 0x8, scoped, tag = 'scoped memory for downstream_forward.2']
    #allocation4 [shape = 'u8[4096]{0}', space=vmem, size = 0x1000, scoped, tag = 'input window, operand 2']
    #allocation5 [shape = 's32[2]{0}', space=sflag, size = 0x8, scoped, tag = 'scoped memory for downstream_forward.2']
    %8 = vsyncpa [#allocation3], 0
    %s9 = scalar_lea.sflag [#allocation3], 1
    %10 = vsyncpa %s9, 0
    %11 = vsyncpa [#allocation5], 0
    %s12 = scalar_lea.sflag [#allocation5], 1
    %13 = vsyncpa %s12, 0
    loop: start=0, step=1, limit=14
    $region2: #{downstream_forward.2} parent=1 // loop_pre_header
      _
    $region3: #{downstream_forward.2} parent=1 // loop_header
      %s15 = sphi 0, %s19
      %p16 = scmp.ge.s32.totalorder %s15, 14
      %s22 = sphi 0, %s34
      %s23 = sphi 0, %s30
      %s24 = sphi 0, %s22
      %s25 = sphi 0, %s23
      %s26 = sphi 0, %s24
      %s27 = sphi 0, %s25
      %s35 = sphi 0, %s35
      %s37 = sphi 0, %s35
      %s38 = sphi 0, %s37
      %s52 = sphi 0, %s38
      %s60 = sphi 0, %s62
      %s63 = sphi 0, %s60
      %s64 = sphi 0, %s63
      %s80 = sphi 0, %s64
      %s88 = sphi 0, %s90
      %s91 = sphi 0, %s88
      %s92 = sphi 0, %s91
      %s108 = sphi 0, %s92
      %s116 = sphi 0, %s118
      %s119 = sphi 0, %s116
      %s120 = sphi 0, %s119
      %s136 = sphi 0, %s120
    $region4: #{downstream_forward.2} parent=1 // loop_header_branch
      %18 = sbr.rel (%p16) target = $region8
    $region5: #{downstream_forward.2} parent=1 // loop_body
      %s20 = ssub.s32 %s15, 1
      %s21 = ssub.s32 %s15, 2
      %s28 = sadd.s32 1, %s23
      %p29 = scmp.ge.s32.totalorder %s28, 2
      %s30 = scalar_select %p29, 0, %s28
      %s31 = sadd.s32 1, %s22
      %s32 = scalar_select %p29, %s31, %s22
      %p33 = scmp.ge.s32.totalorder %s32, 6
      %s34 = scalar_select %p33, 0, %s32
      %s36 = sadd.s32 %s35, 1
      %p39 = scmp.eq.s32.totalorder %s15, 11
      %p40 = scmp.ne.s32.totalorder %s35, %s37
      %p41 = scmp.eq.s32.totalorder %s15, 0
      %p42 = por %p40, %p41
      %p43 = scmp.ne.s32.totalorder %s35, %s37
      %p44 = scmp.eq.s32.totalorder %s20, 11
      %p45 = por %p43, %p44
      %p46 = scmp.ne.s32.totalorder %s37, %s38
      %p47 = scmp.eq.s32.totalorder %s20, 0
      %p48 = por %p46, %p47
      %p49 = scmp.ne.s32.totalorder %s37, %s38
      %p50 = scmp.eq.s32.totalorder %s21, 11
      %p51 = por %p49, %p50
      %p53 = scmp.ne.s32.totalorder %s38, %s52
      %p54 = scmp.eq.s32.totalorder %s21, 0
      %p55 = por %p53, %p54
      %s56 = ssub.s32 %s22, %s34
      %s57 = ssub.s32 %s23, %s30
      %s58 = sor.u32 %s56, %s57
      %p59 = scmp.eq.s32.totalorder %s58, 0
      %s61 = sadd.s32 %s60, 1
      %s62 = scalar_select %p59, %s60, %s61
      %p65 = pneg %p59
      %p66 = scmp.eq.s32.totalorder %s15, 11
      %p67 = por %p65, %p66
      %p68 = scmp.ne.s32.totalorder %s60, %s63
      %p69 = scmp.eq.s32.totalorder %s15, 0
      %p70 = por %p68, %p69
      %p71 = scmp.ne.s32.totalorder %s60, %s63
      %p72 = scmp.eq.s32.totalorder %s20, 11
      %p73 = por %p71, %p72
      %p74 = scmp.ne.s32.totalorder %s63, %s64
      %p75 = scmp.eq.s32.totalorder %s20, 0
      %p76 = por %p74, %p75
      %p77 = scmp.ne.s32.totalorder %s63, %s64
      %p78 = scmp.eq.s32.totalorder %s21, 11
      %p79 = por %p77, %p78
      %p81 = scmp.ne.s32.totalorder %s64, %s80
      %p82 = scmp.eq.s32.totalorder %s21, 0
      %p83 = por %p81, %p82
      %s84 = ssub.s32 %s22, %s34
      %s85 = ssub.s32 %s23, %s30
      %s86 = sor.u32 %s84, %s85
      %p87 = scmp.eq.s32.totalorder %s86, 0
      %s89 = sadd.s32 %s88, 1
      %s90 = scalar_select %p87, %s88, %s89
      %p93 = pneg %p87
      %p94 = scmp.eq.s32.totalorder %s15, 11
      %p95 = por %p93, %p94
      %p96 = scmp.ne.s32.totalorder %s88, %s91
      %p97 = scmp.eq.s32.totalorder %s15, 0
      %p98 = por %p96, %p97
      %p99 = scmp.ne.s32.totalorder %s88, %s91
      %p100 = scmp.eq.s32.totalorder %s20, 11
      %p101 = por %p99, %p100
      %p102 = scmp.ne.s32.totalorder %s91, %s92
      %p103 = scmp.eq.s32.totalorder %s20, 0
      %p104 = por %p102, %p103
      %p105 = scmp.ne.s32.totalorder %s91, %s92
      %p106 = scmp.eq.s32.totalorder %s21, 11
      %p107 = por %p105, %p106
      %p109 = scmp.ne.s32.totalorder %s92, %s108
      %p110 = scmp.eq.s32.totalorder %s21, 0
      %p111 = por %p109, %p110
      %s112 = ssub.s32 %s22, %s34
      %s113 = ssub.s32 %s23, %s30
      %s114 = sor.u32 %s112, %s113
      %p115 = scmp.eq.s32.totalorder %s114, 0
      %s117 = sadd.s32 %s116, 1
      %s118 = scalar_select %p115, %s116, %s117
      %p121 = pneg %p115
      %p122 = scmp.eq.s32.totalorder %s15, 11
      %p123 = por %p121, %p122
      %p124 = scmp.ne.s32.totalorder %s116, %s119
      %p125 = scmp.eq.s32.totalorder %s15, 0
      %p126 = por %p124, %p125
      %p127 = scmp.ne.s32.totalorder %s116, %s119
      %p128 = scmp.eq.s32.totalorder %s20, 11
      %p129 = por %p127, %p128
      %p130 = scmp.ne.s32.totalorder %s119, %s120
      %p131 = scmp.eq.s32.totalorder %s20, 0
      %p132 = por %p130, %p131
      %p133 = scmp.ne.s32.totalorder %s119, %s120
      %p134 = scmp.eq.s32.totalorder %s21, 11
      %p135 = por %p133, %p134
      %p137 = scmp.ne.s32.totalorder %s120, %s136
      %p138 = scmp.eq.s32.totalorder %s21, 0
      %p139 = por %p137, %p138
      %p140 = scmp.le.s32.totalorder 1, %s15
      %p141 = scmp.lt.s32.totalorder %s15, 13
      %p142 = pnand %p140, %p141
      %p143 = pneg %p142
      // Predicated region
      $region9: #{downstream_forward.2} parent=5 // pred_check
        _
      $region10: #{downstream_forward.2} parent=5 // pred_check_branch
        %145 = sbr.rel (%p142) target = $region12
      $region11: #{downstream_forward.2} parent=5 // pred_region
        %s146 = ssub.s32 %s15, 1
        // Predicated region
        $region13: #{downstream_forward.2} parent=11 // pred_check
          %p147 = pneg %p48
        $region14: #{downstream_forward.2} parent=11 // pred_check_branch
          %149 = sbr.rel (%p147) target = $region16
        $region15: #{downstream_forward.2} parent=11 // pred_region
          _
        $region16: #{downstream_forward.2} parent=11 // pred_fallthru
          _
      $region12: #{downstream_forward.2} parent=5 // pred_fallthru
        _
      %p150 = scmp.lt.s32.totalorder %s15, 12
      // Predicated region
      $region17: #{downstream_forward.2} parent=5 // pred_check
        %p151 = pneg %p150
      $region18: #{downstream_forward.2} parent=5 // pred_check_branch
        %153 = sbr.rel (%p151) target = $region20
      $region19: #{downstream_forward.2} parent=5 // pred_region
        // Predicated region
        $region21: #{downstream_forward.2} parent=19 // pred_check
          %p154 = pneg %p70
        $region22: #{downstream_forward.2} parent=19 // pred_check_branch
          %156 = sbr.rel (%p154) target = $region24
        $region23: #{downstream_forward.2} parent=19 // pred_region
          %s157 = sand.u32 %s60, 1
          %s158 = scalar_lea.sflag [#allocation3], %s157
          %s159 = sand.u32 %s60, 1
          %s160 = smul.addr %s159, 8192
          %s161 = scalar_lea.vmem [#allocation2], %s160
          %s162 = smul.u32 4, %s23
          %s164 = ssub.s32 131072, 131072
          %165 = vsyncadd %s158, %s164
          %s166 = smul.addr %s22, 4096
          %s167 = sadd.s32 %s162, %s166
          %s168 = smul.addr %s167, 64
          %s169 = scalar_lea.hbm %s1, %s168
          %s170 = sshll.u32 %s161, 4
          %s171 = int_to_ptr.vmem [resolvable:$true] %s170
          %176 = dma.hbm_to_vmem [thread:$0]  %s169, 131072, %s171, %s158, 512, 256, 16
        $region24: #{downstream_forward.2} parent=19 // pred_fallthru
          _
        // Predicated region
        $region25: #{downstream_forward.2} parent=19 // pred_check
          %p177 = pneg %p98
        $region26: #{downstream_forward.2} parent=19 // pred_check_branch
          %179 = sbr.rel (%p177) target = $region28
        $region27: #{downstream_forward.2} parent=19 // pred_region
          %s180 = sand.u32 %s88, 1
          %s181 = scalar_lea.sflag [#allocation5], %s180
          %s182 = sand.u32 %s88, 1
          %s183 = smul.addr %s182, 4
          %s184 = scalar_lea.vmem [#allocation4], %s183
          %s185 = smul.u32 4, %s23
          %s187 = ssub.s32 64, 64
          %188 = vsyncadd %s181, %s187
          %s189 = smul.addr %s22, 8
          %s190 = sadd.s32 %s185, %s189
          %s191 = smul.addr %s190, 16
          %s192 = scalar_lea.hbm %s2, %s191
          %s194 = sshll.u32 %s184, 4
          %s195 = int_to_ptr.vmem [resolvable:$true] %s194
          %197 = dma.hbm_to_vmem [thread:$0]  %s192, 64, %s195, %s181
        $region28: #{downstream_forward.2} parent=19 // pred_fallthru
          _
      $region20: #{downstream_forward.2} parent=5 // pred_fallthru
        _
      %p198 = scmp.le.s32.totalorder 1, %s15
      %p199 = scmp.lt.s32.totalorder %s15, 13
      %p200 = pnand %p198, %p199
      %p201 = pneg %p200
      // Predicated region
      $region29: #{downstream_forward.2} parent=5 // pred_check
        _
      $region30: #{downstream_forward.2} parent=5 // pred_check_branch
        %203 = sbr.rel (%p200) target = $region32
      $region31: #{downstream_forward.2} parent=5 // pred_region
        %s204 = ssub.s32 %s15, 1
        %s205 = sand.u32 %s63, 1
        %s206 = scalar_lea.sflag [#allocation3], %s205
        %s207 = sand.u32 %s63, 1
        %s208 = smul.addr %s207, 8192
        %s209 = scalar_lea.vmem [#allocation2], %s208
        // Predicated region
        $region33: #{downstream_forward.2} parent=31 // pred_check
          %p210 = pneg %p76
        $region34: #{downstream_forward.2} parent=31 // pred_check_branch
          %212 = sbr.rel (%p210) target = $region36
        $region35: #{downstream_forward.2} parent=31 // pred_region
          %213 = dma.done %s206, 131072
        $region36: #{downstream_forward.2} parent=31 // pred_fallthru
          _
        %s214 = sand.u32 %s91, 1
        %s215 = scalar_lea.sflag [#allocation5], %s214
        %s216 = sand.u32 %s91, 1
        %s217 = smul.addr %s216, 4
        %s218 = scalar_lea.vmem [#allocation4], %s217
        // Predicated region
        $region37: #{downstream_forward.2} parent=31 // pred_check
          %p219 = pneg %p104
        $region38: #{downstream_forward.2} parent=31 // pred_check_branch
          %221 = sbr.rel (%p219) target = $region40
        $region39: #{downstream_forward.2} parent=31 // pred_region
          %222 = dma.done %s215, 64
        $region40: #{downstream_forward.2} parent=31 // pred_fallthru
          _
        %p223 = pneg %p48
        %p224 = pneg %p45
        %s225 = sand.u32 %s63, 1
        %s226 = scalar_lea.sflag [#allocation3], %s225
        %s227 = sand.u32 %s63, 1
        %s228 = smul.addr %s227, 8192
        %s229 = scalar_lea.vmem [#allocation2], %s228
        %p230 = pneg %p76
        %p231 = pneg %p73
        %s232 = sand.u32 %s91, 1
        %s233 = scalar_lea.sflag [#allocation5], %s232
        %s234 = sand.u32 %s91, 1
        %s235 = smul.addr %s234, 4
        %s236 = scalar_lea.vmem [#allocation4], %s235
        %p237 = pneg %p104
        %p238 = pneg %p101
        %p239 = pneg %p132
        %p240 = pneg %p129
        %s241 = smul.u32 4, %s25
        %p242 = scmp.lt.s32.totalorder %s24, 5
        %s243 = scalar_select %p242, %s24, 5
        %p244 = scmp.lt.s32.totalorder %s241, 7
        %s245 = scalar_select %p244, %s241, 7
        %s246 = smul.addr %s243, 8
        %s247 = sadd.s32 %s245, %s246
        %s248 = smul.addr %s247, 2
        %s249 = scalar_lea.vmem %s3, %s248
        %s250 = smul.u32 4, %s25
        %s251 = smul.u32 4, %s25
        %s252 = smul.u32 4, %s25
        %p253 = scmp.lt.s32.totalorder %s24, 5
        %s254 = scalar_select %p253, %s24, 5
        %p255 = scmp.lt.s32.totalorder %s252, 7
        %s256 = scalar_select %p255, %s252, 7
        %s257 = smul.addr %s254, 8
        %s258 = sadd.s32 %s256, %s257
        %s259 = smul.addr %s258, 2
        %s260 = scalar_lea.vmem %s3, %s259
        %s261 = smul.u32 4, %s25
        %p262 = scmp.eq.s32.totalorder %s24, 0
        %s263 = scalar_select %p262, 1, 0
        %s264 = scvt.s32.f32 %s263
        %p265 = scmp.eq.s32.totalorder %s24, 5
        %s266 = scalar_select %p265, 1, 0
        %s267 = scvt.s32.f32 %s266
        %s268 = smul.f32 %s267, 0.2
        %s269 = sadd.f32 %s264, %s268
        %v270 = vld [vmem:[%s0] ss:$8 sm:$0xf]
        %v271 = vld [vmem:[%s0] ss:$8 sm:$0xf0]
        %v272 = vor.u32 %v270, %v271
        %s273 = scalar_lea.vmem %s0, 64
        %v274 = vld [vmem:[%s273] ss:$8 sm:$0xf]
        %v275 = vld [vmem:[%s273] ss:$8 sm:$0xf0]
        %v276 = vor.u32 %v274, %v275
        %s277 = scalar_lea.vmem %s0, 128
        %v278 = vld [vmem:[%s277] ss:$8 sm:$0xf]
        %v279 = vld [vmem:[%s277] ss:$8 sm:$0xf0]
        %v280 = vor.u32 %v278, %v279
        %s281 = scalar_lea.vmem %s0, 192
        %v282 = vld [vmem:[%s281] ss:$8 sm:$0xf]
        %v283 = vld [vmem:[%s281] ss:$8 sm:$0xf0]
        %v284 = vor.u32 %v282, %v283
        %s285 = scalar_lea.vmem %s0, 256
        %v286 = vld [vmem:[%s285] ss:$8 sm:$0xf]
        %v287 = vld [vmem:[%s285] ss:$8 sm:$0xf0]
        %v288 = vor.u32 %v286, %v287
        %s289 = scalar_lea.vmem %s0, 320
        %v290 = vld [vmem:[%s289] ss:$8 sm:$0xf]
        %v291 = vld [vmem:[%s289] ss:$8 sm:$0xf0]
        %v292 = vor.u32 %v290, %v291
        %s293 = scalar_lea.vmem %s0, 384
        %v294 = vld [vmem:[%s293] ss:$8 sm:$0xf]
        %v295 = vld [vmem:[%s293] ss:$8 sm:$0xf0]
        %v296 = vor.u32 %v294, %v295
        %s297 = scalar_lea.vmem %s0, 448
        %v298 = vld [vmem:[%s297] ss:$8 sm:$0xf]
        %v299 = vld [vmem:[%s297] ss:$8 sm:$0xf0]
        %v300 = vor.u32 %v298, %v299
        %v301 = vstv %s269
        %v302 = vmul.f32 %v301, %v272
        %v303 = vmul.f32 %v301, %v276
        %v304 = vmul.f32 %v301, %v280
        %v305 = vmul.f32 %v301, %v284
        %v306 = vmul.f32 %v301, %v288
        %v307 = vmul.f32 %v301, %v292
        %v308 = vmul.f32 %v301, %v296
        %v309 = vmul.f32 %v301, %v300
        %p310 = scmp.eq.s32.totalorder %s24, 1
        %s311 = scalar_select %p310, 1, 0
        %s312 = scvt.s32.f32 %s311
        %s313 = sadd.f32 %s312, %s268
        %s314 = scalar_lea.vmem %s0, 1
        %v315 = vld [vmem:[%s314] ss:$8 sm:$0xf]
        %v316 = vld [vmem:[%s314] ss:$8 sm:$0xf0]
        %v317 = vor.u32 %v315, %v316
        %s318 = scalar_lea.vmem %s0, 65
        %v319 = vld [vmem:[%s318] ss:$8 sm:$0xf]
        %v320 = vld [vmem:[%s318] ss:$8 sm:$0xf0]
        %v321 = vor.u32 %v319, %v320
        %s322 = scalar_lea.vmem %s0, 129
        %v323 = vld [vmem:[%s322] ss:$8 sm:$0xf]
        %v324 = vld [vmem:[%s322] ss:$8 sm:$0xf0]
        %v325 = vor.u32 %v323, %v324
        %s326 = scalar_lea.vmem %s0, 193
        %v327 = vld [vmem:[%s326] ss:$8 sm:$0xf]
        %v328 = vld [vmem:[%s326] ss:$8 sm:$0xf0]
        %v329 = vor.u32 %v327, %v328
        %s330 = scalar_lea.vmem %s0, 257
        %v331 = vld [vmem:[%s330] ss:$8 sm:$0xf]
        %v332 = vld [vmem:[%s330] ss:$8 sm:$0xf0]
        %v333 = vor.u32 %v331, %v332
        %s334 = scalar_lea.vmem %s0, 321
        %v335 = vld [vmem:[%s334] ss:$8 sm:$0xf]
        %v336 = vld [vmem:[%s334] ss:$8 sm:$0xf0]
        %v337 = vor.u32 %v335, %v336
        %s338 = scalar_lea.vmem %s0, 385
        %v339 = vld [vmem:[%s338] ss:$8 sm:$0xf]
        %v340 = vld [vmem:[%s338] ss:$8 sm:$0xf0]
        %v341 = vor.u32 %v339, %v340
        %s342 = scalar_lea.vmem %s0, 449
        %v343 = vld [vmem:[%s342] ss:$8 sm:$0xf]
        %v344 = vld [vmem:[%s342] ss:$8 sm:$0xf0]
        %v345 = vor.u32 %v343, %v344
        %v346 = vstv %s313
        %v347 = vmul.f32 %v346, %v317
        %v348 = vmul.f32 %v346, %v321
        %v349 = vmul.f32 %v346, %v325
        %v350 = vmul.f32 %v346, %v329
        %v351 = vmul.f32 %v346, %v333
        %v352 = vmul.f32 %v346, %v337
        %v353 = vmul.f32 %v346, %v341
        %v354 = vmul.f32 %v346, %v345
        %v355 = vadd.f32 %v302, %v347
        %v356 = vadd.f32 %v303, %v348
        %v357 = vadd.f32 %v304, %v349
        %v358 = vadd.f32 %v305, %v350
        %v359 = vadd.f32 %v306, %v351
        %v360 = vadd.f32 %v307, %v352
        %v361 = vadd.f32 %v308, %v353
        %v362 = vadd.f32 %v309, %v354
        %p363 = scmp.eq.s32.totalorder %s24, 2
        %s364 = scalar_select %p363, 1, 0
        %s365 = scvt.s32.f32 %s364
        %s366 = sadd.f32 %s365, %s268
        %s367 = scalar_lea.vmem %s0, 2
        %v368 = vld [vmem:[%s367] ss:$8 sm:$0xf]
        %v369 = vld [vmem:[%s367] ss:$8 sm:$0xf0]
        %v370 = vor.u32 %v368, %v369
        %s371 = scalar_lea.vmem %s0, 66
        %v372 = vld [vmem:[%s371] ss:$8 sm:$0xf]
        %v373 = vld [vmem:[%s371] ss:$8 sm:$0xf0]
        %v374 = vor.u32 %v372, %v373
        %s375 = scalar_lea.vmem %s0, 130
        %v376 = vld [vmem:[%s375] ss:$8 sm:$0xf]
        %v377 = vld [vmem:[%s375] ss:$8 sm:$0xf0]
        %v378 = vor.u32 %v376, %v377
        %s379 = scalar_lea.vmem %s0, 194
        %v380 = vld [vmem:[%s379] ss:$8 sm:$0xf]
        %v381 = vld [vmem:[%s379] ss:$8 sm:$0xf0]
        %v382 = vor.u32 %v380, %v381
        %s383 = scalar_lea.vmem %s0, 258
        %v384 = vld [vmem:[%s383] ss:$8 sm:$0xf]
        %v385 = vld [vmem:[%s383] ss:$8 sm:$0xf0]
        %v386 = vor.u32 %v384, %v385
        %s387 = scalar_lea.vmem %s0, 322
        %v388 = vld [vmem:[%s387] ss:$8 sm:$0xf]
        %v389 = vld [vmem:[%s387] ss:$8 sm:$0xf0]
        %v390 = vor.u32 %v388, %v389
        %s391 = scalar_lea.vmem %s0, 386
        %v392 = vld [vmem:[%s391] ss:$8 sm:$0xf]
        %v393 = vld [vmem:[%s391] ss:$8 sm:$0xf0]
        %v394 = vor.u32 %v392, %v393
        %s395 = scalar_lea.vmem %s0, 450
        %v396 = vld [vmem:[%s395] ss:$8 sm:$0xf]
        %v397 = vld [vmem:[%s395] ss:$8 sm:$0xf0]
        %v398 = vor.u32 %v396, %v397
        %v399 = vstv %s366
        %v400 = vmul.f32 %v399, %v370
        %v401 = vmul.f32 %v399, %v374
        %v402 = vmul.f32 %v399, %v378
        %v403 = vmul.f32 %v399, %v382
        %v404 = vmul.f32 %v399, %v386
        %v405 = vmul.f32 %v399, %v390
        %v406 = vmul.f32 %v399, %v394
        %v407 = vmul.f32 %v399, %v398
        %v408 = vadd.f32 %v355, %v400
        %v409 = vadd.f32 %v356, %v401
        %v410 = vadd.f32 %v357, %v402
        %v411 = vadd.f32 %v358, %v403
        %v412 = vadd.f32 %v359, %v404
        %v413 = vadd.f32 %v360, %v405
        %v414 = vadd.f32 %v361, %v406
        %v415 = vadd.f32 %v362, %v407
        %p416 = scmp.eq.s32.totalorder %s24, 3
        %s417 = scalar_select %p416, 1, 0
        %s418 = scvt.s32.f32 %s417
        %s419 = sadd.f32 %s418, %s268
        %s420 = scalar_lea.vmem %s0, 3
        %v421 = vld [vmem:[%s420] ss:$8 sm:$0xf]
        %v422 = vld [vmem:[%s420] ss:$8 sm:$0xf0]
        %v423 = vor.u32 %v421, %v422
        %s424 = scalar_lea.vmem %s0, 67
        %v425 = vld [vmem:[%s424] ss:$8 sm:$0xf]
        %v426 = vld [vmem:[%s424] ss:$8 sm:$0xf0]
        %v427 = vor.u32 %v425, %v426
        %s428 = scalar_lea.vmem %s0, 131
        %v429 = vld [vmem:[%s428] ss:$8 sm:$0xf]
        %v430 = vld [vmem:[%s428] ss:$8 sm:$0xf0]
        %v431 = vor.u32 %v429, %v430
        %s432 = scalar_lea.vmem %s0, 195
        %v433 = vld [vmem:[%s432] ss:$8 sm:$0xf]
        %v434 = vld [vmem:[%s432] ss:$8 sm:$0xf0]
        %v435 = vor.u32 %v433, %v434
        %s436 = scalar_lea.vmem %s0, 259
        %v437 = vld [vmem:[%s436] ss:$8 sm:$0xf]
        %v438 = vld [vmem:[%s436] ss:$8 sm:$0xf0]
        %v439 = vor.u32 %v437, %v438
        %s440 = scalar_lea.vmem %s0, 323
        %v441 = vld [vmem:[%s440] ss:$8 sm:$0xf]
        %v442 = vld [vmem:[%s440] ss:$8 sm:$0xf0]
        %v443 = vor.u32 %v441, %v442
        %s444 = scalar_lea.vmem %s0, 387
        %v445 = vld [vmem:[%s444] ss:$8 sm:$0xf]
        %v446 = vld [vmem:[%s444] ss:$8 sm:$0xf0]
        %v447 = vor.u32 %v445, %v446
        %s448 = scalar_lea.vmem %s0, 451
        %v449 = vld [vmem:[%s448] ss:$8 sm:$0xf]
        %v450 = vld [vmem:[%s448] ss:$8 sm:$0xf0]
        %v451 = vor.u32 %v449, %v450
        %v452 = vstv %s419
        %v453 = vmul.f32 %v452, %v423
        %v454 = vmul.f32 %v452, %v427
        %v455 = vmul.f32 %v452, %v431
        %v456 = vmul.f32 %v452, %v435
        %v457 = vmul.f32 %v452, %v439
        %v458 = vmul.f32 %v452, %v443
        %v459 = vmul.f32 %v452, %v447
        %v460 = vmul.f32 %v452, %v451
        %v461 = vadd.f32 %v408, %v453
        %v462 = vadd.f32 %v409, %v454
        %v463 = vadd.f32 %v410, %v455
        %v464 = vadd.f32 %v411, %v456
        %v465 = vadd.f32 %v412, %v457
        %v466 = vadd.f32 %v413, %v458
        %v467 = vadd.f32 %v414, %v459
        %v468 = vadd.f32 %v415, %v460
        %p469 = scmp.eq.s32.totalorder %s24, 4
        %s470 = scalar_select %p469, 1, 0
        %s471 = scvt.s32.f32 %s470
        %s472 = sadd.f32 %s471, %s268
        %s473 = scalar_lea.vmem %s0, 4
        %v474 = vld [vmem:[%s473] ss:$8 sm:$0xf]
        %v475 = vld [vmem:[%s473] ss:$8 sm:$0xf0]
        %v476 = vor.u32 %v474, %v475
        %s477 = scalar_lea.vmem %s0, 68
        %v478 = vld [vmem:[%s477] ss:$8 sm:$0xf]
        %v479 = vld [vmem:[%s477] ss:$8 sm:$0xf0]
        %v480 = vor.u32 %v478, %v479
        %s481 = scalar_lea.vmem %s0, 132
        %v482 = vld [vmem:[%s481] ss:$8 sm:$0xf]
        %v483 = vld [vmem:[%s481] ss:$8 sm:$0xf0]
        %v484 = vor.u32 %v482, %v483
        %s485 = scalar_lea.vmem %s0, 196
        %v486 = vld [vmem:[%s485] ss:$8 sm:$0xf]
        %v487 = vld [vmem:[%s485] ss:$8 sm:$0xf0]
        %v488 = vor.u32 %v486, %v487
        %s489 = scalar_lea.vmem %s0, 260
        %v490 = vld [vmem:[%s489] ss:$8 sm:$0xf]
        %v491 = vld [vmem:[%s489] ss:$8 sm:$0xf0]
        %v492 = vor.u32 %v490, %v491
        %s493 = scalar_lea.vmem %s0, 324
        %v494 = vld [vmem:[%s493] ss:$8 sm:$0xf]
        %v495 = vld [vmem:[%s493] ss:$8 sm:$0xf0]
        %v496 = vor.u32 %v494, %v495
        %s497 = scalar_lea.vmem %s0, 388
        %v498 = vld [vmem:[%s497] ss:$8 sm:$0xf]
        %v499 = vld [vmem:[%s497] ss:$8 sm:$0xf0]
        %v500 = vor.u32 %v498, %v499
        %s501 = scalar_lea.vmem %s0, 452
        %v502 = vld [vmem:[%s501] ss:$8 sm:$0xf]
        %v503 = vld [vmem:[%s501] ss:$8 sm:$0xf0]
        %v504 = vor.u32 %v502, %v503
        %v505 = vstv %s472
        %v506 = vmul.f32 %v505, %v476
        %v507 = vmul.f32 %v505, %v480
        %v508 = vmul.f32 %v505, %v484
        %v509 = vmul.f32 %v505, %v488
        %v510 = vmul.f32 %v505, %v492
        %v511 = vmul.f32 %v505, %v496
        %v512 = vmul.f32 %v505, %v500
        %v513 = vmul.f32 %v505, %v504
        %v514 = vadd.f32 %v461, %v506
        %v515 = vadd.f32 %v462, %v507
        %v516 = vadd.f32 %v463, %v508
        %v517 = vadd.f32 %v464, %v509
        %v518 = vadd.f32 %v465, %v510
        %v519 = vadd.f32 %v466, %v511
        %v520 = vadd.f32 %v467, %v512
        %v521 = vadd.f32 %v468, %v513
        %v530 = vlaneseq
        %v531 = vshrl.u32 %v530, 7
        %v532 = vsub.s32 0, %v531
        %v533 = vrot.slane %v514, %v532
        %v534 = vlaneseq
        %v535 = vshrl.u32 %v534, 7
        %v536 = vsub.s32 1, %v535
        %v537 = vrot.slane %v514, %v536
        %v538 = vlaneseq
        %v539 = vshrl.u32 %v538, 7
        %v540 = vsub.s32 2, %v539
        %v541 = vrot.slane %v514, %v540
        %v542 = vlaneseq
        %v543 = vshrl.u32 %v542, 7
        %v544 = vsub.s32 3, %v543
        %v545 = vrot.slane %v514, %v544
        %v546 = vlaneseq
        %v547 = vshrl.u32 %v546, 7
        %v548 = vsub.s32 4, %v547
        %v549 = vrot.slane %v514, %v548
        %v550 = vlaneseq
        %v551 = vshrl.u32 %v550, 7
        %v552 = vsub.s32 5, %v551
        %v553 = vrot.slane %v514, %v552
        %v554 = vlaneseq
        %v555 = vshrl.u32 %v554, 7
        %v556 = vsub.s32 6, %v555
        %v557 = vrot.slane %v514, %v556
        %v558 = vlaneseq
        %v559 = vshrl.u32 %v558, 7
        %v560 = vsub.s32 7, %v559
        %v561 = vrot.slane %v514, %v560
        %v562 = vlaneseq
        %v563 = vshrl.u32 %v562, 7
        %v564 = vsub.s32 0, %v563
        %v565 = vrot.slane %v515, %v564
        %v566 = vlaneseq
        %v567 = vshrl.u32 %v566, 7
        %v568 = vsub.s32 1, %v567
        %v569 = vrot.slane %v515, %v568
        %v570 = vlaneseq
        %v571 = vshrl.u32 %v570, 7
        %v572 = vsub.s32 2, %v571
        %v573 = vrot.slane %v515, %v572
        %v574 = vlaneseq
        %v575 = vshrl.u32 %v574, 7
        %v576 = vsub.s32 3, %v575
        %v577 = vrot.slane %v515, %v576
        %v578 = vlaneseq
        %v579 = vshrl.u32 %v578, 7
        %v580 = vsub.s32 4, %v579
        %v581 = vrot.slane %v515, %v580
        %v582 = vlaneseq
        %v583 = vshrl.u32 %v582, 7
        %v584 = vsub.s32 5, %v583
        %v585 = vrot.slane %v515, %v584
        %v586 = vlaneseq
        %v587 = vshrl.u32 %v586, 7
        %v588 = vsub.s32 6, %v587
        %v589 = vrot.slane %v515, %v588
        %v590 = vlaneseq
        %v591 = vshrl.u32 %v590, 7
        %v592 = vsub.s32 7, %v591
        %v593 = vrot.slane %v515, %v592
        %v594 = vlaneseq
        %v595 = vshrl.u32 %v594, 7
        %v596 = vsub.s32 0, %v595
        %v597 = vrot.slane %v516, %v596
        %v598 = vlaneseq
        %v599 = vshrl.u32 %v598, 7
        %v600 = vsub.s32 1, %v599
        %v601 = vrot.slane %v516, %v600
        %v602 = vlaneseq
        %v603 = vshrl.u32 %v602, 7
        %v604 = vsub.s32 2, %v603
        %v605 = vrot.slane %v516, %v604
        %v606 = vlaneseq
        %v607 = vshrl.u32 %v606, 7
        %v608 = vsub.s32 3, %v607
        %v609 = vrot.slane %v516, %v608
        %v610 = vlaneseq
        %v611 = vshrl.u32 %v610, 7
        %v612 = vsub.s32 4, %v611
        %v613 = vrot.slane %v516, %v612
        %v614 = vlaneseq
        %v615 = vshrl.u32 %v614, 7
        %v616 = vsub.s32 5, %v615
        %v617 = vrot.slane %v516, %v616
        %v618 = vlaneseq
        %v619 = vshrl.u32 %v618, 7
        %v620 = vsub.s32 6, %v619
        %v621 = vrot.slane %v516, %v620
        %v622 = vlaneseq
        %v623 = vshrl.u32 %v622, 7
        %v624 = vsub.s32 7, %v623
        %v625 = vrot.slane %v516, %v624
        %v626 = vlaneseq
        %v627 = vshrl.u32 %v626, 7
        %v628 = vsub.s32 0, %v627
        %v629 = vrot.slane %v517, %v628
        %v630 = vlaneseq
        %v631 = vshrl.u32 %v630, 7
        %v632 = vsub.s32 1, %v631
        %v633 = vrot.slane %v517, %v632
        %v634 = vlaneseq
        %v635 = vshrl.u32 %v634, 7
        %v636 = vsub.s32 2, %v635
        %v637 = vrot.slane %v517, %v636
        %v638 = vlaneseq
        %v639 = vshrl.u32 %v638, 7
        %v640 = vsub.s32 3, %v639
        %v641 = vrot.slane %v517, %v640
        %v642 = vlaneseq
        %v643 = vshrl.u32 %v642, 7
        %v644 = vsub.s32 4, %v643
        %v645 = vrot.slane %v517, %v644
        %v646 = vlaneseq
        %v647 = vshrl.u32 %v646, 7
        %v648 = vsub.s32 5, %v647
        %v649 = vrot.slane %v517, %v648
        %v650 = vlaneseq
        %v651 = vshrl.u32 %v650, 7
        %v652 = vsub.s32 6, %v651
        %v653 = vrot.slane %v517, %v652
        %v654 = vlaneseq
        %v655 = vshrl.u32 %v654, 7
        %v656 = vsub.s32 7, %v655
        %v657 = vrot.slane %v517, %v656
        %v658 = vlaneseq
        %v659 = vshrl.u32 %v658, 7
        %v660 = vsub.s32 0, %v659
        %v661 = vrot.slane %v518, %v660
        %v662 = vlaneseq
        %v663 = vshrl.u32 %v662, 7
        %v664 = vsub.s32 1, %v663
        %v665 = vrot.slane %v518, %v664
        %v666 = vlaneseq
        %v667 = vshrl.u32 %v666, 7
        %v668 = vsub.s32 2, %v667
        %v669 = vrot.slane %v518, %v668
        %v670 = vlaneseq
        %v671 = vshrl.u32 %v670, 7
        %v672 = vsub.s32 3, %v671
        %v673 = vrot.slane %v518, %v672
        %v674 = vlaneseq
        %v675 = vshrl.u32 %v674, 7
        %v676 = vsub.s32 4, %v675
        %v677 = vrot.slane %v518, %v676
        %v678 = vlaneseq
        %v679 = vshrl.u32 %v678, 7
        %v680 = vsub.s32 5, %v679
        %v681 = vrot.slane %v518, %v680
        %v682 = vlaneseq
        %v683 = vshrl.u32 %v682, 7
        %v684 = vsub.s32 6, %v683
        %v685 = vrot.slane %v518, %v684
        %v686 = vlaneseq
        %v687 = vshrl.u32 %v686, 7
        %v688 = vsub.s32 7, %v687
        %v689 = vrot.slane %v518, %v688
        %v690 = vlaneseq
        %v691 = vshrl.u32 %v690, 7
        %v692 = vsub.s32 0, %v691
        %v693 = vrot.slane %v519, %v692
        %v694 = vlaneseq
        %v695 = vshrl.u32 %v694, 7
        %v696 = vsub.s32 1, %v695
        %v697 = vrot.slane %v519, %v696
        %v698 = vlaneseq
        %v699 = vshrl.u32 %v698, 7
        %v700 = vsub.s32 2, %v699
        %v701 = vrot.slane %v519, %v700
        %v702 = vlaneseq
        %v703 = vshrl.u32 %v702, 7
        %v704 = vsub.s32 3, %v703
        %v705 = vrot.slane %v519, %v704
        %v706 = vlaneseq
        %v707 = vshrl.u32 %v706, 7
        %v708 = vsub.s32 4, %v707
        %v709 = vrot.slane %v519, %v708
        %v710 = vlaneseq
        %v711 = vshrl.u32 %v710, 7
        %v712 = vsub.s32 5, %v711
        %v713 = vrot.slane %v519, %v712
        %v714 = vlaneseq
        %v715 = vshrl.u32 %v714, 7
        %v716 = vsub.s32 6, %v715
        %v717 = vrot.slane %v519, %v716
        %v718 = vlaneseq
        %v719 = vshrl.u32 %v718, 7
        %v720 = vsub.s32 7, %v719
        %v721 = vrot.slane %v519, %v720
        %v722 = vlaneseq
        %v723 = vshrl.u32 %v722, 7
        %v724 = vsub.s32 0, %v723
        %v725 = vrot.slane %v520, %v724
        %v726 = vlaneseq
        %v727 = vshrl.u32 %v726, 7
        %v728 = vsub.s32 1, %v727
        %v729 = vrot.slane %v520, %v728
        %v730 = vlaneseq
        %v731 = vshrl.u32 %v730, 7
        %v732 = vsub.s32 2, %v731
        %v733 = vrot.slane %v520, %v732
        %v734 = vlaneseq
        %v735 = vshrl.u32 %v734, 7
        %v736 = vsub.s32 3, %v735
        %v737 = vrot.slane %v520, %v736
        %v738 = vlaneseq
        %v739 = vshrl.u32 %v738, 7
        %v740 = vsub.s32 4, %v739
        %v741 = vrot.slane %v520, %v740
        %v742 = vlaneseq
        %v743 = vshrl.u32 %v742, 7
        %v744 = vsub.s32 5, %v743
        %v745 = vrot.slane %v520, %v744
        %v746 = vlaneseq
        %v747 = vshrl.u32 %v746, 7
        %v748 = vsub.s32 6, %v747
        %v749 = vrot.slane %v520, %v748
        %v750 = vlaneseq
        %v751 = vshrl.u32 %v750, 7
        %v752 = vsub.s32 7, %v751
        %v753 = vrot.slane %v520, %v752
        %v754 = vlaneseq
        %v755 = vshrl.u32 %v754, 7
        %v756 = vsub.s32 0, %v755
        %v757 = vrot.slane %v521, %v756
        %v758 = vlaneseq
        %v759 = vshrl.u32 %v758, 7
        %v760 = vsub.s32 1, %v759
        %v761 = vrot.slane %v521, %v760
        %v762 = vlaneseq
        %v763 = vshrl.u32 %v762, 7
        %v764 = vsub.s32 2, %v763
        %v765 = vrot.slane %v521, %v764
        %v766 = vlaneseq
        %v767 = vshrl.u32 %v766, 7
        %v768 = vsub.s32 3, %v767
        %v769 = vrot.slane %v521, %v768
        %v770 = vlaneseq
        %v771 = vshrl.u32 %v770, 7
        %v772 = vsub.s32 4, %v771
        %v773 = vrot.slane %v521, %v772
        %v774 = vlaneseq
        %v775 = vshrl.u32 %v774, 7
        %v776 = vsub.s32 5, %v775
        %v777 = vrot.slane %v521, %v776
        %v778 = vlaneseq
        %v779 = vshrl.u32 %v778, 7
        %v780 = vsub.s32 6, %v779
        %v781 = vrot.slane %v521, %v780
        %v782 = vlaneseq
        %v783 = vshrl.u32 %v782, 7
        %v784 = vsub.s32 7, %v783
        %v785 = vrot.slane %v521, %v784
        %v850 = vpack.c.bf16 %v533, %v533
        %v851 = vpack.c.bf16 %v537, %v537
        %v852 = vpack.c.bf16 %v541, %v541
        %v853 = vpack.c.bf16 %v545, %v545
        %v854 = vpack.c.bf16 %v549, %v549
        %v855 = vpack.c.bf16 %v553, %v553
        %v856 = vpack.c.bf16 %v557, %v557
        %v857 = vpack.c.bf16 %v561, %v561
        %v858 = vpack.c.bf16 %v565, %v565
        %v859 = vpack.c.bf16 %v569, %v569
        %v860 = vpack.c.bf16 %v573, %v573
        %v861 = vpack.c.bf16 %v577, %v577
        %v862 = vpack.c.bf16 %v581, %v581
        %v863 = vpack.c.bf16 %v585, %v585
        %v864 = vpack.c.bf16 %v589, %v589
        %v865 = vpack.c.bf16 %v593, %v593
        %v866 = vpack.c.bf16 %v597, %v597
        %v867 = vpack.c.bf16 %v601, %v601
        %v868 = vpack.c.bf16 %v605, %v605
        %v869 = vpack.c.bf16 %v609, %v609
        %v870 = vpack.c.bf16 %v613, %v613
        %v871 = vpack.c.bf16 %v617, %v617
        %v872 = vpack.c.bf16 %v621, %v621
        %v873 = vpack.c.bf16 %v625, %v625
        %v874 = vpack.c.bf16 %v629, %v629
        %v875 = vpack.c.bf16 %v633, %v633
        %v876 = vpack.c.bf16 %v637, %v637
        %v877 = vpack.c.bf16 %v641, %v641
        %v878 = vpack.c.bf16 %v645, %v645
        %v879 = vpack.c.bf16 %v649, %v649
        %v880 = vpack.c.bf16 %v653, %v653
        %v881 = vpack.c.bf16 %v657, %v657
        %v882 = vpack.c.bf16 %v661, %v661
        %v883 = vpack.c.bf16 %v665, %v665
        %v884 = vpack.c.bf16 %v669, %v669
        %v885 = vpack.c.bf16 %v673, %v673
        %v886 = vpack.c.bf16 %v677, %v677
        %v887 = vpack.c.bf16 %v681, %v681
        %v888 = vpack.c.bf16 %v685, %v685
        %v889 = vpack.c.bf16 %v689, %v689
        %v890 = vpack.c.bf16 %v693, %v693
        %v891 = vpack.c.bf16 %v697, %v697
        %v892 = vpack.c.bf16 %v701, %v701
        %v893 = vpack.c.bf16 %v705, %v705
        %v894 = vpack.c.bf16 %v709, %v709
        %v895 = vpack.c.bf16 %v713, %v713
        %v896 = vpack.c.bf16 %v717, %v717
        %v897 = vpack.c.bf16 %v721, %v721
        %v898 = vpack.c.bf16 %v725, %v725
        %v899 = vpack.c.bf16 %v729, %v729
        %v900 = vpack.c.bf16 %v733, %v733
        %v901 = vpack.c.bf16 %v737, %v737
        %v902 = vpack.c.bf16 %v741, %v741
        %v903 = vpack.c.bf16 %v745, %v745
        %v904 = vpack.c.bf16 %v749, %v749
        %v905 = vpack.c.bf16 %v753, %v753
        %v906 = vpack.c.bf16 %v757, %v757
        %v907 = vpack.c.bf16 %v761, %v761
        %v908 = vpack.c.bf16 %v765, %v765
        %v909 = vpack.c.bf16 %v769, %v769
        %v910 = vpack.c.bf16 %v773, %v773
        %v911 = vpack.c.bf16 %v777, %v777
        %v912 = vpack.c.bf16 %v781, %v781
        %v913 = vpack.c.bf16 %v785, %v785
        %v914 = vld [vmem:[%s209] sm:$0xff]
        %v915 = vld [vmem:[%s209 + $0x8] sm:$0xff]
        %v916 = vld [vmem:[%s209 + $0x10] sm:$0xff]
        %v917 = vld [vmem:[%s209 + $0x18] sm:$0xff]
        %v918 = vld [vmem:[%s209 + $0x20] sm:$0xff]
        %v919 = vld [vmem:[%s209 + $0x28] sm:$0xff]
        %v920 = vld [vmem:[%s209 + $0x30] sm:$0xff]
        %v921 = vld [vmem:[%s209 + $0x38] sm:$0xff]
        %v922 = vld [vmem:[%s209 + $0x40] sm:$0xff]
        %v923 = vld [vmem:[%s209 + $0x48] sm:$0xff]
        %v924 = vld [vmem:[%s209 + $0x50] sm:$0xff]
        %v925 = vld [vmem:[%s209 + $0x58] sm:$0xff]
        %v926 = vld [vmem:[%s209 + $0x60] sm:$0xff]
        %v927 = vld [vmem:[%s209 + $0x68] sm:$0xff]
        %v928 = vld [vmem:[%s209 + $0x70] sm:$0xff]
        %v929 = vld [vmem:[%s209 + $0x78] sm:$0xff]
        %v930 = vld [vmem:[%s209 + $0x80] sm:$0xff]
        %v931 = vld [vmem:[%s209 + $0x88] sm:$0xff]
        %v932 = vld [vmem:[%s209 + $0x90] sm:$0xff]
        %v933 = vld [vmem:[%s209 + $0x98] sm:$0xff]
        %v934 = vld [vmem:[%s209 + $0xa0] sm:$0xff]
        %v935 = vld [vmem:[%s209 + $0xa8] sm:$0xff]
        %v936 = vld [vmem:[%s209 + $0xb0] sm:$0xff]
        %v937 = vld [vmem:[%s209 + $0xb8] sm:$0xff]
        %v938 = vld [vmem:[%s209 + $0xc0] sm:$0xff]
        %v939 = vld [vmem:[%s209 + $0xc8] sm:$0xff]
        %v940 = vld [vmem:[%s209 + $0xd0] sm:$0xff]
        %v941 = vld [vmem:[%s209 + $0xd8] sm:$0xff]
        %v942 = vld [vmem:[%s209 + $0xe0] sm:$0xff]
        %v943 = vld [vmem:[%s209 + $0xe8] sm:$0xff]
        %v944 = vld [vmem:[%s209 + $0xf0] sm:$0xff]
        %v945 = vld [vmem:[%s209 + $0xf8] sm:$0xff]
        %v946 = vld [vmem:[%s209 + $0x100] sm:$0xff]
        %v947 = vld [vmem:[%s209 + $0x108] sm:$0xff]
        %v948 = vld [vmem:[%s209 + $0x110] sm:$0xff]
        %v949 = vld [vmem:[%s209 + $0x118] sm:$0xff]
        %v950 = vld [vmem:[%s209 + $0x120] sm:$0xff]
        %v951 = vld [vmem:[%s209 + $0x128] sm:$0xff]
        %v952 = vld [vmem:[%s209 + $0x130] sm:$0xff]
        %v953 = vld [vmem:[%s209 + $0x138] sm:$0xff]
        %v954 = vld [vmem:[%s209 + $0x140] sm:$0xff]
        %v955 = vld [vmem:[%s209 + $0x148] sm:$0xff]
        %v956 = vld [vmem:[%s209 + $0x150] sm:$0xff]
        %v957 = vld [vmem:[%s209 + $0x158] sm:$0xff]
        %v958 = vld [vmem:[%s209 + $0x160] sm:$0xff]
        %v959 = vld [vmem:[%s209 + $0x168] sm:$0xff]
        %v960 = vld [vmem:[%s209 + $0x170] sm:$0xff]
        %v961 = vld [vmem:[%s209 + $0x178] sm:$0xff]
        %v962 = vld [vmem:[%s209 + $0x180] sm:$0xff]
        %v963 = vld [vmem:[%s209 + $0x188] sm:$0xff]
        %v964 = vld [vmem:[%s209 + $0x190] sm:$0xff]
        %v965 = vld [vmem:[%s209 + $0x198] sm:$0xff]
        %v966 = vld [vmem:[%s209 + $0x1a0] sm:$0xff]
        %v967 = vld [vmem:[%s209 + $0x1a8] sm:$0xff]
        %v968 = vld [vmem:[%s209 + $0x1b0] sm:$0xff]
        %v969 = vld [vmem:[%s209 + $0x1b8] sm:$0xff]
        %v970 = vld [vmem:[%s209 + $0x1c0] sm:$0xff]
        %v971 = vld [vmem:[%s209 + $0x1c8] sm:$0xff]
        %v972 = vld [vmem:[%s209 + $0x1d0] sm:$0xff]
        %v973 = vld [vmem:[%s209 + $0x1d8] sm:$0xff]
        %v974 = vld [vmem:[%s209 + $0x1e0] sm:$0xff]
        %v975 = vld [vmem:[%s209 + $0x1e8] sm:$0xff]
        %v976 = vld [vmem:[%s209 + $0x1f0] sm:$0xff]
        %v977 = vld [vmem:[%s209 + $0x1f8] sm:$0xff]
        %v978 = vld [vmem:[%s209 + $0x200] sm:$0xff]
        %v979 = vld [vmem:[%s209 + $0x208] sm:$0xff]
        %v980 = vld [vmem:[%s209 + $0x210] sm:$0xff]
        %v981 = vld [vmem:[%s209 + $0x218] sm:$0xff]
        %v982 = vld [vmem:[%s209 + $0x220] sm:$0xff]
        %v983 = vld [vmem:[%s209 + $0x228] sm:$0xff]
        %v984 = vld [vmem:[%s209 + $0x230] sm:$0xff]
        %v985 = vld [vmem:[%s209 + $0x238] sm:$0xff]
        %v986 = vld [vmem:[%s209 + $0x240] sm:$0xff]
        %v987 = vld [vmem:[%s209 + $0x248] sm:$0xff]
        %v988 = vld [vmem:[%s209 + $0x250] sm:$0xff]
        %v989 = vld [vmem:[%s209 + $0x258] sm:$0xff]
        %v990 = vld [vmem:[%s209 + $0x260] sm:$0xff]
        %v991 = vld [vmem:[%s209 + $0x268] sm:$0xff]
        %v992 = vld [vmem:[%s209 + $0x270] sm:$0xff]
        %v993 = vld [vmem:[%s209 + $0x278] sm:$0xff]
        %v994 = vld [vmem:[%s209 + $0x280] sm:$0xff]
        %v995 = vld [vmem:[%s209 + $0x288] sm:$0xff]
        %v996 = vld [vmem:[%s209 + $0x290] sm:$0xff]
        %v997 = vld [vmem:[%s209 + $0x298] sm:$0xff]
        %v998 = vld [vmem:[%s209 + $0x2a0] sm:$0xff]
        %v999 = vld [vmem:[%s209 + $0x2a8] sm:$0xff]
        %v1000 = vld [vmem:[%s209 + $0x2b0] sm:$0xff]
        %v1001 = vld [vmem:[%s209 + $0x2b8] sm:$0xff]
        %v1002 = vld [vmem:[%s209 + $0x2c0] sm:$0xff]
        %v1003 = vld [vmem:[%s209 + $0x2c8] sm:$0xff]
        %v1004 = vld [vmem:[%s209 + $0x2d0] sm:$0xff]
        %v1005 = vld [vmem:[%s209 + $0x2d8] sm:$0xff]
        %v1006 = vld [vmem:[%s209 + $0x2e0] sm:$0xff]
        %v1007 = vld [vmem:[%s209 + $0x2e8] sm:$0xff]
        %v1008 = vld [vmem:[%s209 + $0x2f0] sm:$0xff]
        %v1009 = vld [vmem:[%s209 + $0x2f8] sm:$0xff]
        %v1010 = vld [vmem:[%s209 + $0x300] sm:$0xff]
        %v1011 = vld [vmem:[%s209 + $0x308] sm:$0xff]
        %v1012 = vld [vmem:[%s209 + $0x310] sm:$0xff]
        %v1013 = vld [vmem:[%s209 + $0x318] sm:$0xff]
        %v1014 = vld [vmem:[%s209 + $0x320] sm:$0xff]
        %v1015 = vld [vmem:[%s209 + $0x328] sm:$0xff]
        %v1016 = vld [vmem:[%s209 + $0x330] sm:$0xff]
        %v1017 = vld [vmem:[%s209 + $0x338] sm:$0xff]
        %v1018 = vld [vmem:[%s209 + $0x340] sm:$0xff]
        %v1019 = vld [vmem:[%s209 + $0x348] sm:$0xff]
        %v1020 = vld [vmem:[%s209 + $0x350] sm:$0xff]
        %v1021 = vld [vmem:[%s209 + $0x358] sm:$0xff]
        %v1022 = vld [vmem:[%s209 + $0x360] sm:$0xff]
        %v1023 = vld [vmem:[%s209 + $0x368] sm:$0xff]
        %v1024 = vld [vmem:[%s209 + $0x370] sm:$0xff]
        %v1025 = vld [vmem:[%s209 + $0x378] sm:$0xff]
        %v1026 = vld [vmem:[%s209 + $0x380] sm:$0xff]
        %v1027 = vld [vmem:[%s209 + $0x388] sm:$0xff]
        %v1028 = vld [vmem:[%s209 + $0x390] sm:$0xff]
        %v1029 = vld [vmem:[%s209 + $0x398] sm:$0xff]
        %v1030 = vld [vmem:[%s209 + $0x3a0] sm:$0xff]
        %v1031 = vld [vmem:[%s209 + $0x3a8] sm:$0xff]
        %v1032 = vld [vmem:[%s209 + $0x3b0] sm:$0xff]
        %v1033 = vld [vmem:[%s209 + $0x3b8] sm:$0xff]
        %v1034 = vld [vmem:[%s209 + $0x3c0] sm:$0xff]
        %v1035 = vld [vmem:[%s209 + $0x3c8] sm:$0xff]
        %v1036 = vld [vmem:[%s209 + $0x3d0] sm:$0xff]
        %v1037 = vld [vmem:[%s209 + $0x3d8] sm:$0xff]
        %v1038 = vld [vmem:[%s209 + $0x3e0] sm:$0xff]
        %v1039 = vld [vmem:[%s209 + $0x3e8] sm:$0xff]
        %v1040 = vld [vmem:[%s209 + $0x3f0] sm:$0xff]
        %v1041 = vld [vmem:[%s209 + $0x3f8] sm:$0xff]
        %v1042 = vld [vmem:[%s209 + $0x400] sm:$0xff]
        %v1043 = vld [vmem:[%s209 + $0x408] sm:$0xff]
        %v1044 = vld [vmem:[%s209 + $0x410] sm:$0xff]
        %v1045 = vld [vmem:[%s209 + $0x418] sm:$0xff]
        %v1046 = vld [vmem:[%s209 + $0x420] sm:$0xff]
        %v1047 = vld [vmem:[%s209 + $0x428] sm:$0xff]
        %v1048 = vld [vmem:[%s209 + $0x430] sm:$0xff]
        %v1049 = vld [vmem:[%s209 + $0x438] sm:$0xff]
        %v1050 = vld [vmem:[%s209 + $0x440] sm:$0xff]
        %v1051 = vld [vmem:[%s209 + $0x448] sm:$0xff]
        %v1052 = vld [vmem:[%s209 + $0x450] sm:$0xff]
        %v1053 = vld [vmem:[%s209 + $0x458] sm:$0xff]
        %v1054 = vld [vmem:[%s209 + $0x460] sm:$0xff]
        %v1055 = vld [vmem:[%s209 + $0x468] sm:$0xff]
        %v1056 = vld [vmem:[%s209 + $0x470] sm:$0xff]
        %v1057 = vld [vmem:[%s209 + $0x478] sm:$0xff]
        %v1058 = vld [vmem:[%s209 + $0x480] sm:$0xff]
        %v1059 = vld [vmem:[%s209 + $0x488] sm:$0xff]
        %v1060 = vld [vmem:[%s209 + $0x490] sm:$0xff]
        %v1061 = vld [vmem:[%s209 + $0x498] sm:$0xff]
        %v1062 = vld [vmem:[%s209 + $0x4a0] sm:$0xff]
        %v1063 = vld [vmem:[%s209 + $0x4a8] sm:$0xff]
        %v1064 = vld [vmem:[%s209 + $0x4b0] sm:$0xff]
        %v1065 = vld [vmem:[%s209 + $0x4b8] sm:$0xff]
        %v1066 = vld [vmem:[%s209 + $0x4c0] sm:$0xff]
        %v1067 = vld [vmem:[%s209 + $0x4c8] sm:$0xff]
        %v1068 = vld [vmem:[%s209 + $0x4d0] sm:$0xff]
        %v1069 = vld [vmem:[%s209 + $0x4d8] sm:$0xff]
        %v1070 = vld [vmem:[%s209 + $0x4e0] sm:$0xff]
        %v1071 = vld [vmem:[%s209 + $0x4e8] sm:$0xff]
        %v1072 = vld [vmem:[%s209 + $0x4f0] sm:$0xff]
        %v1073 = vld [vmem:[%s209 + $0x4f8] sm:$0xff]
        %v1074 = vld [vmem:[%s209 + $0x500] sm:$0xff]
        %v1075 = vld [vmem:[%s209 + $0x508] sm:$0xff]
        %v1076 = vld [vmem:[%s209 + $0x510] sm:$0xff]
        %v1077 = vld [vmem:[%s209 + $0x518] sm:$0xff]
        %v1078 = vld [vmem:[%s209 + $0x520] sm:$0xff]
        %v1079 = vld [vmem:[%s209 + $0x528] sm:$0xff]
        %v1080 = vld [vmem:[%s209 + $0x530] sm:$0xff]
        %v1081 = vld [vmem:[%s209 + $0x538] sm:$0xff]
        %v1082 = vld [vmem:[%s209 + $0x540] sm:$0xff]
        %v1083 = vld [vmem:[%s209 + $0x548] sm:$0xff]
        %v1084 = vld [vmem:[%s209 + $0x550] sm:$0xff]
        %v1085 = vld [vmem:[%s209 + $0x558] sm:$0xff]
        %v1086 = vld [vmem:[%s209 + $0x560] sm:$0xff]
        %v1087 = vld [vmem:[%s209 + $0x568] sm:$0xff]
        %v1088 = vld [vmem:[%s209 + $0x570] sm:$0xff]
        %v1089 = vld [vmem:[%s209 + $0x578] sm:$0xff]
        %v1090 = vld [vmem:[%s209 + $0x580] sm:$0xff]
        %v1091 = vld [vmem:[%s209 + $0x588] sm:$0xff]
        %v1092 = vld [vmem:[%s209 + $0x590] sm:$0xff]
        %v1093 = vld [vmem:[%s209 + $0x598] sm:$0xff]
        %v1094 = vld [vmem:[%s209 + $0x5a0] sm:$0xff]
        %v1095 = vld [vmem:[%s209 + $0x5a8] sm:$0xff]
        %v1096 = vld [vmem:[%s209 + $0x5b0] sm:$0xff]
        %v1097 = vld [vmem:[%s209 + $0x5b8] sm:$0xff]
        %v1098 = vld [vmem:[%s209 + $0x5c0] sm:$0xff]
        %v1099 = vld [vmem:[%s209 + $0x5c8] sm:$0xff]
        %v1100 = vld [vmem:[%s209 + $0x5d0] sm:$0xff]
        %v1101 = vld [vmem:[%s209 + $0x5d8] sm:$0xff]
        %v1102 = vld [vmem:[%s209 + $0x5e0] sm:$0xff]
        %v1103 = vld [vmem:[%s209 + $0x5e8] sm:$0xff]
        %v1104 = vld [vmem:[%s209 + $0x5f0] sm:$0xff]
        %v1105 = vld [vmem:[%s209 + $0x5f8] sm:$0xff]
        %v1106 = vld [vmem:[%s209 + $0x600] sm:$0xff]
        %v1107 = vld [vmem:[%s209 + $0x608] sm:$0xff]
        %v1108 = vld [vmem:[%s209 + $0x610] sm:$0xff]
        %v1109 = vld [vmem:[%s209 + $0x618] sm:$0xff]
        %v1110 = vld [vmem:[%s209 + $0x620] sm:$0xff]
        %v1111 = vld [vmem:[%s209 + $0x628] sm:$0xff]
        %v1112 = vld [vmem:[%s209 + $0x630] sm:$0xff]
        %v1113 = vld [vmem:[%s209 + $0x638] sm:$0xff]
        %v1114 = vld [vmem:[%s209 + $0x640] sm:$0xff]
        %v1115 = vld [vmem:[%s209 + $0x648] sm:$0xff]
        %v1116 = vld [vmem:[%s209 + $0x650] sm:$0xff]
        %v1117 = vld [vmem:[%s209 + $0x658] sm:$0xff]
        %v1118 = vld [vmem:[%s209 + $0x660] sm:$0xff]
        %v1119 = vld [vmem:[%s209 + $0x668] sm:$0xff]
        %v1120 = vld [vmem:[%s209 + $0x670] sm:$0xff]
        %v1121 = vld [vmem:[%s209 + $0x678] sm:$0xff]
        %v1122 = vld [vmem:[%s209 + $0x680] sm:$0xff]
        %v1123 = vld [vmem:[%s209 + $0x688] sm:$0xff]
        %v1124 = vld [vmem:[%s209 + $0x690] sm:$0xff]
        %v1125 = vld [vmem:[%s209 + $0x698] sm:$0xff]
        %v1126 = vld [vmem:[%s209 + $0x6a0] sm:$0xff]
        %v1127 = vld [vmem:[%s209 + $0x6a8] sm:$0xff]
        %v1128 = vld [vmem:[%s209 + $0x6b0] sm:$0xff]
        %v1129 = vld [vmem:[%s209 + $0x6b8] sm:$0xff]
        %v1130 = vld [vmem:[%s209 + $0x6c0] sm:$0xff]
        %v1131 = vld [vmem:[%s209 + $0x6c8] sm:$0xff]
        %v1132 = vld [vmem:[%s209 + $0x6d0] sm:$0xff]
        %v1133 = vld [vmem:[%s209 + $0x6d8] sm:$0xff]
        %v1134 = vld [vmem:[%s209 + $0x6e0] sm:$0xff]
        %v1135 = vld [vmem:[%s209 + $0x6e8] sm:$0xff]
        %v1136 = vld [vmem:[%s209 + $0x6f0] sm:$0xff]
        %v1137 = vld [vmem:[%s209 + $0x6f8] sm:$0xff]
        %v1138 = vld [vmem:[%s209 + $0x700] sm:$0xff]
        %v1139 = vld [vmem:[%s209 + $0x708] sm:$0xff]
        %v1140 = vld [vmem:[%s209 + $0x710] sm:$0xff]
        %v1141 = vld [vmem:[%s209 + $0x718] sm:$0xff]
        %v1142 = vld [vmem:[%s209 + $0x720] sm:$0xff]
        %v1143 = vld [vmem:[%s209 + $0x728] sm:$0xff]
        %v1144 = vld [vmem:[%s209 + $0x730] sm:$0xff]
        %v1145 = vld [vmem:[%s209 + $0x738] sm:$0xff]
        %v1146 = vld [vmem:[%s209 + $0x740] sm:$0xff]
        %v1147 = vld [vmem:[%s209 + $0x748] sm:$0xff]
        %v1148 = vld [vmem:[%s209 + $0x750] sm:$0xff]
        %v1149 = vld [vmem:[%s209 + $0x758] sm:$0xff]
        %v1150 = vld [vmem:[%s209 + $0x760] sm:$0xff]
        %v1151 = vld [vmem:[%s209 + $0x768] sm:$0xff]
        %v1152 = vld [vmem:[%s209 + $0x770] sm:$0xff]
        %v1153 = vld [vmem:[%s209 + $0x778] sm:$0xff]
        %v1154 = vld [vmem:[%s209 + $0x780] sm:$0xff]
        %v1155 = vld [vmem:[%s209 + $0x788] sm:$0xff]
        %v1156 = vld [vmem:[%s209 + $0x790] sm:$0xff]
        %v1157 = vld [vmem:[%s209 + $0x798] sm:$0xff]
        %v1158 = vld [vmem:[%s209 + $0x7a0] sm:$0xff]
        %v1159 = vld [vmem:[%s209 + $0x7a8] sm:$0xff]
        %v1160 = vld [vmem:[%s209 + $0x7b0] sm:$0xff]
        %v1161 = vld [vmem:[%s209 + $0x7b8] sm:$0xff]
        %v1162 = vld [vmem:[%s209 + $0x7c0] sm:$0xff]
        %v1163 = vld [vmem:[%s209 + $0x7c8] sm:$0xff]
        %v1164 = vld [vmem:[%s209 + $0x7d0] sm:$0xff]
        %v1165 = vld [vmem:[%s209 + $0x7d8] sm:$0xff]
        %v1166 = vld [vmem:[%s209 + $0x7e0] sm:$0xff]
        %v1167 = vld [vmem:[%s209 + $0x7e8] sm:$0xff]
        %v1168 = vld [vmem:[%s209 + $0x7f0] sm:$0xff]
        %v1169 = vld [vmem:[%s209 + $0x7f8] sm:$0xff]
        %v1170 = vld [vmem:[%s209 + $0x800] sm:$0xff]
        %v1171 = vld [vmem:[%s209 + $0x808] sm:$0xff]
        %v1172 = vld [vmem:[%s209 + $0x810] sm:$0xff]
        %v1173 = vld [vmem:[%s209 + $0x818] sm:$0xff]
        %v1174 = vld [vmem:[%s209 + $0x820] sm:$0xff]
        %v1175 = vld [vmem:[%s209 + $0x828] sm:$0xff]
        %v1176 = vld [vmem:[%s209 + $0x830] sm:$0xff]
        %v1177 = vld [vmem:[%s209 + $0x838] sm:$0xff]
        %v1178 = vld [vmem:[%s209 + $0x840] sm:$0xff]
        %v1179 = vld [vmem:[%s209 + $0x848] sm:$0xff]
        %v1180 = vld [vmem:[%s209 + $0x850] sm:$0xff]
        %v1181 = vld [vmem:[%s209 + $0x858] sm:$0xff]
        %v1182 = vld [vmem:[%s209 + $0x860] sm:$0xff]
        %v1183 = vld [vmem:[%s209 + $0x868] sm:$0xff]
        %v1184 = vld [vmem:[%s209 + $0x870] sm:$0xff]
        %v1185 = vld [vmem:[%s209 + $0x878] sm:$0xff]
        %v1186 = vld [vmem:[%s209 + $0x880] sm:$0xff]
        %v1187 = vld [vmem:[%s209 + $0x888] sm:$0xff]
        %v1188 = vld [vmem:[%s209 + $0x890] sm:$0xff]
        %v1189 = vld [vmem:[%s209 + $0x898] sm:$0xff]
        %v1190 = vld [vmem:[%s209 + $0x8a0] sm:$0xff]
        %v1191 = vld [vmem:[%s209 + $0x8a8] sm:$0xff]
        %v1192 = vld [vmem:[%s209 + $0x8b0] sm:$0xff]
        %v1193 = vld [vmem:[%s209 + $0x8b8] sm:$0xff]
        %v1194 = vld [vmem:[%s209 + $0x8c0] sm:$0xff]
        %v1195 = vld [vmem:[%s209 + $0x8c8] sm:$0xff]
        %v1196 = vld [vmem:[%s209 + $0x8d0] sm:$0xff]
        %v1197 = vld [vmem:[%s209 + $0x8d8] sm:$0xff]
        %v1198 = vld [vmem:[%s209 + $0x8e0] sm:$0xff]
        %v1199 = vld [vmem:[%s209 + $0x8e8] sm:$0xff]
        %v1200 = vld [vmem:[%s209 + $0x8f0] sm:$0xff]
        %v1201 = vld [vmem:[%s209 + $0x8f8] sm:$0xff]
        %v1202 = vld [vmem:[%s209 + $0x900] sm:$0xff]
        %v1203 = vld [vmem:[%s209 + $0x908] sm:$0xff]
        %v1204 = vld [vmem:[%s209 + $0x910] sm:$0xff]
        %v1205 = vld [vmem:[%s209 + $0x918] sm:$0xff]
        %v1206 = vld [vmem:[%s209 + $0x920] sm:$0xff]
        %v1207 = vld [vmem:[%s209 + $0x928] sm:$0xff]
        %v1208 = vld [vmem:[%s209 + $0x930] sm:$0xff]
        %v1209 = vld [vmem:[%s209 + $0x938] sm:$0xff]
        %v1210 = vld [vmem:[%s209 + $0x940] sm:$0xff]
        %v1211 = vld [vmem:[%s209 + $0x948] sm:$0xff]
        %v1212 = vld [vmem:[%s209 + $0x950] sm:$0xff]
        %v1213 = vld [vmem:[%s209 + $0x958] sm:$0xff]
        %v1214 = vld [vmem:[%s209 + $0x960] sm:$0xff]
        %v1215 = vld [vmem:[%s209 + $0x968] sm:$0xff]
        %v1216 = vld [vmem:[%s209 + $0x970] sm:$0xff]
        %v1217 = vld [vmem:[%s209 + $0x978] sm:$0xff]
        %v1218 = vld [vmem:[%s209 + $0x980] sm:$0xff]
        %v1219 = vld [vmem:[%s209 + $0x988] sm:$0xff]
        %v1220 = vld [vmem:[%s209 + $0x990] sm:$0xff]
        %v1221 = vld [vmem:[%s209 + $0x998] sm:$0xff]
        %v1222 = vld [vmem:[%s209 + $0x9a0] sm:$0xff]
        %v1223 = vld [vmem:[%s209 + $0x9a8] sm:$0xff]
        %v1224 = vld [vmem:[%s209 + $0x9b0] sm:$0xff]
        %v1225 = vld [vmem:[%s209 + $0x9b8] sm:$0xff]
        %v1226 = vld [vmem:[%s209 + $0x9c0] sm:$0xff]
        %v1227 = vld [vmem:[%s209 + $0x9c8] sm:$0xff]
        %v1228 = vld [vmem:[%s209 + $0x9d0] sm:$0xff]
        %v1229 = vld [vmem:[%s209 + $0x9d8] sm:$0xff]
        %v1230 = vld [vmem:[%s209 + $0x9e0] sm:$0xff]
        %v1231 = vld [vmem:[%s209 + $0x9e8] sm:$0xff]
        %v1232 = vld [vmem:[%s209 + $0x9f0] sm:$0xff]
        %v1233 = vld [vmem:[%s209 + $0x9f8] sm:$0xff]
        %v1234 = vld [vmem:[%s209 + $0xa00] sm:$0xff]
        %v1235 = vld [vmem:[%s209 + $0xa08] sm:$0xff]
        %v1236 = vld [vmem:[%s209 + $0xa10] sm:$0xff]
        %v1237 = vld [vmem:[%s209 + $0xa18] sm:$0xff]
        %v1238 = vld [vmem:[%s209 + $0xa20] sm:$0xff]
        %v1239 = vld [vmem:[%s209 + $0xa28] sm:$0xff]
        %v1240 = vld [vmem:[%s209 + $0xa30] sm:$0xff]
        %v1241 = vld [vmem:[%s209 + $0xa38] sm:$0xff]
        %v1242 = vld [vmem:[%s209 + $0xa40] sm:$0xff]
        %v1243 = vld [vmem:[%s209 + $0xa48] sm:$0xff]
        %v1244 = vld [vmem:[%s209 + $0xa50] sm:$0xff]
        %v1245 = vld [vmem:[%s209 + $0xa58] sm:$0xff]
        %v1246 = vld [vmem:[%s209 + $0xa60] sm:$0xff]
        %v1247 = vld [vmem:[%s209 + $0xa68] sm:$0xff]
        %v1248 = vld [vmem:[%s209 + $0xa70] sm:$0xff]
        %v1249 = vld [vmem:[%s209 + $0xa78] sm:$0xff]
        %v1250 = vld [vmem:[%s209 + $0xa80] sm:$0xff]
        %v1251 = vld [vmem:[%s209 + $0xa88] sm:$0xff]
        %v1252 = vld [vmem:[%s209 + $0xa90] sm:$0xff]
        %v1253 = vld [vmem:[%s209 + $0xa98] sm:$0xff]
        %v1254 = vld [vmem:[%s209 + $0xaa0] sm:$0xff]
        %v1255 = vld [vmem:[%s209 + $0xaa8] sm:$0xff]
        %v1256 = vld [vmem:[%s209 + $0xab0] sm:$0xff]
        %v1257 = vld [vmem:[%s209 + $0xab8] sm:$0xff]
        %v1258 = vld [vmem:[%s209 + $0xac0] sm:$0xff]
        %v1259 = vld [vmem:[%s209 + $0xac8] sm:$0xff]
        %v1260 = vld [vmem:[%s209 + $0xad0] sm:$0xff]
        %v1261 = vld [vmem:[%s209 + $0xad8] sm:$0xff]
        %v1262 = vld [vmem:[%s209 + $0xae0] sm:$0xff]
        %v1263 = vld [vmem:[%s209 + $0xae8] sm:$0xff]
        %v1264 = vld [vmem:[%s209 + $0xaf0] sm:$0xff]
        %v1265 = vld [vmem:[%s209 + $0xaf8] sm:$0xff]
        %v1266 = vld [vmem:[%s209 + $0xb00] sm:$0xff]
        %v1267 = vld [vmem:[%s209 + $0xb08] sm:$0xff]
        %v1268 = vld [vmem:[%s209 + $0xb10] sm:$0xff]
        %v1269 = vld [vmem:[%s209 + $0xb18] sm:$0xff]
        %v1270 = vld [vmem:[%s209 + $0xb20] sm:$0xff]
        %v1271 = vld [vmem:[%s209 + $0xb28] sm:$0xff]
        %v1272 = vld [vmem:[%s209 + $0xb30] sm:$0xff]
        %v1273 = vld [vmem:[%s209 + $0xb38] sm:$0xff]
        %v1274 = vld [vmem:[%s209 + $0xb40] sm:$0xff]
        %v1275 = vld [vmem:[%s209 + $0xb48] sm:$0xff]
        %v1276 = vld [vmem:[%s209 + $0xb50] sm:$0xff]
        %v1277 = vld [vmem:[%s209 + $0xb58] sm:$0xff]
        %v1278 = vld [vmem:[%s209 + $0xb60] sm:$0xff]
        %v1279 = vld [vmem:[%s209 + $0xb68] sm:$0xff]
        %v1280 = vld [vmem:[%s209 + $0xb70] sm:$0xff]
        %v1281 = vld [vmem:[%s209 + $0xb78] sm:$0xff]
        %v1282 = vld [vmem:[%s209 + $0xb80] sm:$0xff]
        %v1283 = vld [vmem:[%s209 + $0xb88] sm:$0xff]
        %v1284 = vld [vmem:[%s209 + $0xb90] sm:$0xff]
        %v1285 = vld [vmem:[%s209 + $0xb98] sm:$0xff]
        %v1286 = vld [vmem:[%s209 + $0xba0] sm:$0xff]
        %v1287 = vld [vmem:[%s209 + $0xba8] sm:$0xff]
        %v1288 = vld [vmem:[%s209 + $0xbb0] sm:$0xff]
        %v1289 = vld [vmem:[%s209 + $0xbb8] sm:$0xff]
        %v1290 = vld [vmem:[%s209 + $0xbc0] sm:$0xff]
        %v1291 = vld [vmem:[%s209 + $0xbc8] sm:$0xff]
        %v1292 = vld [vmem:[%s209 + $0xbd0] sm:$0xff]
        %v1293 = vld [vmem:[%s209 + $0xbd8] sm:$0xff]
        %v1294 = vld [vmem:[%s209 + $0xbe0] sm:$0xff]
        %v1295 = vld [vmem:[%s209 + $0xbe8] sm:$0xff]
        %v1296 = vld [vmem:[%s209 + $0xbf0] sm:$0xff]
        %v1297 = vld [vmem:[%s209 + $0xbf8] sm:$0xff]
        %v1298 = vld [vmem:[%s209 + $0xc00] sm:$0xff]
        %v1299 = vld [vmem:[%s209 + $0xc08] sm:$0xff]
        %v1300 = vld [vmem:[%s209 + $0xc10] sm:$0xff]
        %v1301 = vld [vmem:[%s209 + $0xc18] sm:$0xff]
        %v1302 = vld [vmem:[%s209 + $0xc20] sm:$0xff]
        %v1303 = vld [vmem:[%s209 + $0xc28] sm:$0xff]
        %v1304 = vld [vmem:[%s209 + $0xc30] sm:$0xff]
        %v1305 = vld [vmem:[%s209 + $0xc38] sm:$0xff]
        %v1306 = vld [vmem:[%s209 + $0xc40] sm:$0xff]
        %v1307 = vld [vmem:[%s209 + $0xc48] sm:$0xff]
        %v1308 = vld [vmem:[%s209 + $0xc50] sm:$0xff]
        %v1309 = vld [vmem:[%s209 + $0xc58] sm:$0xff]
        %v1310 = vld [vmem:[%s209 + $0xc60] sm:$0xff]
        %v1311 = vld [vmem:[%s209 + $0xc68] sm:$0xff]
        %v1312 = vld [vmem:[%s209 + $0xc70] sm:$0xff]
        %v1313 = vld [vmem:[%s209 + $0xc78] sm:$0xff]
        %v1314 = vld [vmem:[%s209 + $0xc80] sm:$0xff]
        %v1315 = vld [vmem:[%s209 + $0xc88] sm:$0xff]
        %v1316 = vld [vmem:[%s209 + $0xc90] sm:$0xff]
        %v1317 = vld [vmem:[%s209 + $0xc98] sm:$0xff]
        %v1318 = vld [vmem:[%s209 + $0xca0] sm:$0xff]
        %v1319 = vld [vmem:[%s209 + $0xca8] sm:$0xff]
        %v1320 = vld [vmem:[%s209 + $0xcb0] sm:$0xff]
        %v1321 = vld [vmem:[%s209 + $0xcb8] sm:$0xff]
        %v1322 = vld [vmem:[%s209 + $0xcc0] sm:$0xff]
        %v1323 = vld [vmem:[%s209 + $0xcc8] sm:$0xff]
        %v1324 = vld [vmem:[%s209 + $0xcd0] sm:$0xff]
        %v1325 = vld [vmem:[%s209 + $0xcd8] sm:$0xff]
        %v1326 = vld [vmem:[%s209 + $0xce0] sm:$0xff]
        %v1327 = vld [vmem:[%s209 + $0xce8] sm:$0xff]
        %v1328 = vld [vmem:[%s209 + $0xcf0] sm:$0xff]
        %v1329 = vld [vmem:[%s209 + $0xcf8] sm:$0xff]
        %v1330 = vld [vmem:[%s209 + $0xd00] sm:$0xff]
        %v1331 = vld [vmem:[%s209 + $0xd08] sm:$0xff]
        %v1332 = vld [vmem:[%s209 + $0xd10] sm:$0xff]
        %v1333 = vld [vmem:[%s209 + $0xd18] sm:$0xff]
        %v1334 = vld [vmem:[%s209 + $0xd20] sm:$0xff]
        %v1335 = vld [vmem:[%s209 + $0xd28] sm:$0xff]
        %v1336 = vld [vmem:[%s209 + $0xd30] sm:$0xff]
        %v1337 = vld [vmem:[%s209 + $0xd38] sm:$0xff]
        %v1338 = vld [vmem:[%s209 + $0xd40] sm:$0xff]
        %v1339 = vld [vmem:[%s209 + $0xd48] sm:$0xff]
        %v1340 = vld [vmem:[%s209 + $0xd50] sm:$0xff]
        %v1341 = vld [vmem:[%s209 + $0xd58] sm:$0xff]
        %v1342 = vld [vmem:[%s209 + $0xd60] sm:$0xff]
        %v1343 = vld [vmem:[%s209 + $0xd68] sm:$0xff]
        %v1344 = vld [vmem:[%s209 + $0xd70] sm:$0xff]
        %v1345 = vld [vmem:[%s209 + $0xd78] sm:$0xff]
        %v1346 = vld [vmem:[%s209 + $0xd80] sm:$0xff]
        %v1347 = vld [vmem:[%s209 + $0xd88] sm:$0xff]
        %v1348 = vld [vmem:[%s209 + $0xd90] sm:$0xff]
        %v1349 = vld [vmem:[%s209 + $0xd98] sm:$0xff]
        %v1350 = vld [vmem:[%s209 + $0xda0] sm:$0xff]
        %v1351 = vld [vmem:[%s209 + $0xda8] sm:$0xff]
        %v1352 = vld [vmem:[%s209 + $0xdb0] sm:$0xff]
        %v1353 = vld [vmem:[%s209 + $0xdb8] sm:$0xff]
        %v1354 = vld [vmem:[%s209 + $0xdc0] sm:$0xff]
        %v1355 = vld [vmem:[%s209 + $0xdc8] sm:$0xff]
        %v1356 = vld [vmem:[%s209 + $0xdd0] sm:$0xff]
        %v1357 = vld [vmem:[%s209 + $0xdd8] sm:$0xff]
        %v1358 = vld [vmem:[%s209 + $0xde0] sm:$0xff]
        %v1359 = vld [vmem:[%s209 + $0xde8] sm:$0xff]
        %v1360 = vld [vmem:[%s209 + $0xdf0] sm:$0xff]
        %v1361 = vld [vmem:[%s209 + $0xdf8] sm:$0xff]
        %v1362 = vld [vmem:[%s209 + $0xe00] sm:$0xff]
        %v1363 = vld [vmem:[%s209 + $0xe08] sm:$0xff]
        %v1364 = vld [vmem:[%s209 + $0xe10] sm:$0xff]
        %v1365 = vld [vmem:[%s209 + $0xe18] sm:$0xff]
        %v1366 = vld [vmem:[%s209 + $0xe20] sm:$0xff]
        %v1367 = vld [vmem:[%s209 + $0xe28] sm:$0xff]
        %v1368 = vld [vmem:[%s209 + $0xe30] sm:$0xff]
        %v1369 = vld [vmem:[%s209 + $0xe38] sm:$0xff]
        %v1370 = vld [vmem:[%s209 + $0xe40] sm:$0xff]
        %v1371 = vld [vmem:[%s209 + $0xe48] sm:$0xff]
        %v1372 = vld [vmem:[%s209 + $0xe50] sm:$0xff]
        %v1373 = vld [vmem:[%s209 + $0xe58] sm:$0xff]
        %v1374 = vld [vmem:[%s209 + $0xe60] sm:$0xff]
        %v1375 = vld [vmem:[%s209 + $0xe68] sm:$0xff]
        %v1376 = vld [vmem:[%s209 + $0xe70] sm:$0xff]
        %v1377 = vld [vmem:[%s209 + $0xe78] sm:$0xff]
        %v1378 = vld [vmem:[%s209 + $0xe80] sm:$0xff]
        %v1379 = vld [vmem:[%s209 + $0xe88] sm:$0xff]
        %v1380 = vld [vmem:[%s209 + $0xe90] sm:$0xff]
        %v1381 = vld [vmem:[%s209 + $0xe98] sm:$0xff]
        %v1382 = vld [vmem:[%s209 + $0xea0] sm:$0xff]
        %v1383 = vld [vmem:[%s209 + $0xea8] sm:$0xff]
        %v1384 = vld [vmem:[%s209 + $0xeb0] sm:$0xff]
        %v1385 = vld [vmem:[%s209 + $0xeb8] sm:$0xff]
        %v1386 = vld [vmem:[%s209 + $0xec0] sm:$0xff]
        %v1387 = vld [vmem:[%s209 + $0xec8] sm:$0xff]
        %v1388 = vld [vmem:[%s209 + $0xed0] sm:$0xff]
        %v1389 = vld [vmem:[%s209 + $0xed8] sm:$0xff]
        %v1390 = vld [vmem:[%s209 + $0xee0] sm:$0xff]
        %v1391 = vld [vmem:[%s209 + $0xee8] sm:$0xff]
        %v1392 = vld [vmem:[%s209 + $0xef0] sm:$0xff]
        %v1393 = vld [vmem:[%s209 + $0xef8] sm:$0xff]
        %v1394 = vld [vmem:[%s209 + $0xf00] sm:$0xff]
        %v1395 = vld [vmem:[%s209 + $0xf08] sm:$0xff]
        %v1396 = vld [vmem:[%s209 + $0xf10] sm:$0xff]
        %v1397 = vld [vmem:[%s209 + $0xf18] sm:$0xff]
        %v1398 = vld [vmem:[%s209 + $0xf20] sm:$0xff]
        %v1399 = vld [vmem:[%s209 + $0xf28] sm:$0xff]
        %v1400 = vld [vmem:[%s209 + $0xf30] sm:$0xff]
        %v1401 = vld [vmem:[%s209 + $0xf38] sm:$0xff]
        %v1402 = vld [vmem:[%s209 + $0xf40] sm:$0xff]
        %v1403 = vld [vmem:[%s209 + $0xf48] sm:$0xff]
        %v1404 = vld [vmem:[%s209 + $0xf50] sm:$0xff]
        %v1405 = vld [vmem:[%s209 + $0xf58] sm:$0xff]
        %v1406 = vld [vmem:[%s209 + $0xf60] sm:$0xff]
        %v1407 = vld [vmem:[%s209 + $0xf68] sm:$0xff]
        %v1408 = vld [vmem:[%s209 + $0xf70] sm:$0xff]
        %v1409 = vld [vmem:[%s209 + $0xf78] sm:$0xff]
        %v1410 = vld [vmem:[%s209 + $0xf80] sm:$0xff]
        %v1411 = vld [vmem:[%s209 + $0xf88] sm:$0xff]
        %v1412 = vld [vmem:[%s209 + $0xf90] sm:$0xff]
        %v1413 = vld [vmem:[%s209 + $0xf98] sm:$0xff]
        %v1414 = vld [vmem:[%s209 + $0xfa0] sm:$0xff]
        %v1415 = vld [vmem:[%s209 + $0xfa8] sm:$0xff]
        %v1416 = vld [vmem:[%s209 + $0xfb0] sm:$0xff]
        %v1417 = vld [vmem:[%s209 + $0xfb8] sm:$0xff]
        %v1418 = vld [vmem:[%s209 + $0xfc0] sm:$0xff]
        %v1419 = vld [vmem:[%s209 + $0xfc8] sm:$0xff]
        %v1420 = vld [vmem:[%s209 + $0xfd0] sm:$0xff]
        %v1421 = vld [vmem:[%s209 + $0xfd8] sm:$0xff]
        %v1422 = vld [vmem:[%s209 + $0xfe0] sm:$0xff]
        %v1423 = vld [vmem:[%s209 + $0xfe8] sm:$0xff]
        %v1424 = vld [vmem:[%s209 + $0xff0] sm:$0xff]
        %v1425 = vld [vmem:[%s209 + $0xff8] sm:$0xff]
        %v1426 = vld [vmem:[%s209 + $0x1000] sm:$0xff]
        %v1427 = vld [vmem:[%s209 + $0x1008] sm:$0xff]
        %v1428 = vld [vmem:[%s209 + $0x1010] sm:$0xff]
        %v1429 = vld [vmem:[%s209 + $0x1018] sm:$0xff]
        %v1430 = vld [vmem:[%s209 + $0x1020] sm:$0xff]
        %v1431 = vld [vmem:[%s209 + $0x1028] sm:$0xff]
        %v1432 = vld [vmem:[%s209 + $0x1030] sm:$0xff]
        %v1433 = vld [vmem:[%s209 + $0x1038] sm:$0xff]
        %v1434 = vld [vmem:[%s209 + $0x1040] sm:$0xff]
        %v1435 = vld [vmem:[%s209 + $0x1048] sm:$0xff]
        %v1436 = vld [vmem:[%s209 + $0x1050] sm:$0xff]
        %v1437 = vld [vmem:[%s209 + $0x1058] sm:$0xff]
        %v1438 = vld [vmem:[%s209 + $0x1060] sm:$0xff]
        %v1439 = vld [vmem:[%s209 + $0x1068] sm:$0xff]
        %v1440 = vld [vmem:[%s209 + $0x1070] sm:$0xff]
        %v1441 = vld [vmem:[%s209 + $0x1078] sm:$0xff]
        %v1442 = vld [vmem:[%s209 + $0x1080] sm:$0xff]
        %v1443 = vld [vmem:[%s209 + $0x1088] sm:$0xff]
        %v1444 = vld [vmem:[%s209 + $0x1090] sm:$0xff]
        %v1445 = vld [vmem:[%s209 + $0x1098] sm:$0xff]
        %v1446 = vld [vmem:[%s209 + $0x10a0] sm:$0xff]
        %v1447 = vld [vmem:[%s209 + $0x10a8] sm:$0xff]
        %v1448 = vld [vmem:[%s209 + $0x10b0] sm:$0xff]
        %v1449 = vld [vmem:[%s209 + $0x10b8] sm:$0xff]
        %v1450 = vld [vmem:[%s209 + $0x10c0] sm:$0xff]
        %v1451 = vld [vmem:[%s209 + $0x10c8] sm:$0xff]
        %v1452 = vld [vmem:[%s209 + $0x10d0] sm:$0xff]
        %v1453 = vld [vmem:[%s209 + $0x10d8] sm:$0xff]
        %v1454 = vld [vmem:[%s209 + $0x10e0] sm:$0xff]
        %v1455 = vld [vmem:[%s209 + $0x10e8] sm:$0xff]
        %v1456 = vld [vmem:[%s209 + $0x10f0] sm:$0xff]
        %v1457 = vld [vmem:[%s209 + $0x10f8] sm:$0xff]
        %v1458 = vld [vmem:[%s209 + $0x1100] sm:$0xff]
        %v1459 = vld [vmem:[%s209 + $0x1108] sm:$0xff]
        %v1460 = vld [vmem:[%s209 + $0x1110] sm:$0xff]
        %v1461 = vld [vmem:[%s209 + $0x1118] sm:$0xff]
        %v1462 = vld [vmem:[%s209 + $0x1120] sm:$0xff]
        %v1463 = vld [vmem:[%s209 + $0x1128] sm:$0xff]
        %v1464 = vld [vmem:[%s209 + $0x1130] sm:$0xff]
        %v1465 = vld [vmem:[%s209 + $0x1138] sm:$0xff]
        %v1466 = vld [vmem:[%s209 + $0x1140] sm:$0xff]
        %v1467 = vld [vmem:[%s209 + $0x1148] sm:$0xff]
        %v1468 = vld [vmem:[%s209 + $0x1150] sm:$0xff]
        %v1469 = vld [vmem:[%s209 + $0x1158] sm:$0xff]
        %v1470 = vld [vmem:[%s209 + $0x1160] sm:$0xff]
        %v1471 = vld [vmem:[%s209 + $0x1168] sm:$0xff]
        %v1472 = vld [vmem:[%s209 + $0x1170] sm:$0xff]
        %v1473 = vld [vmem:[%s209 + $0x1178] sm:$0xff]
        %v1474 = vld [vmem:[%s209 + $0x1180] sm:$0xff]
        %v1475 = vld [vmem:[%s209 + $0x1188] sm:$0xff]
        %v1476 = vld [vmem:[%s209 + $0x1190] sm:$0xff]
        %v1477 = vld [vmem:[%s209 + $0x1198] sm:$0xff]
        %v1478 = vld [vmem:[%s209 + $0x11a0] sm:$0xff]
        %v1479 = vld [vmem:[%s209 + $0x11a8] sm:$0xff]
        %v1480 = vld [vmem:[%s209 + $0x11b0] sm:$0xff]
        %v1481 = vld [vmem:[%s209 + $0x11b8] sm:$0xff]
        %v1482 = vld [vmem:[%s209 + $0x11c0] sm:$0xff]
        %v1483 = vld [vmem:[%s209 + $0x11c8] sm:$0xff]
        %v1484 = vld [vmem:[%s209 + $0x11d0] sm:$0xff]
        %v1485 = vld [vmem:[%s209 + $0x11d8] sm:$0xff]
        %v1486 = vld [vmem:[%s209 + $0x11e0] sm:$0xff]
        %v1487 = vld [vmem:[%s209 + $0x11e8] sm:$0xff]
        %v1488 = vld [vmem:[%s209 + $0x11f0] sm:$0xff]
        %v1489 = vld [vmem:[%s209 + $0x11f8] sm:$0xff]
        %v1490 = vld [vmem:[%s209 + $0x1200] sm:$0xff]
        %v1491 = vld [vmem:[%s209 + $0x1208] sm:$0xff]
        %v1492 = vld [vmem:[%s209 + $0x1210] sm:$0xff]
        %v1493 = vld [vmem:[%s209 + $0x1218] sm:$0xff]
        %v1494 = vld [vmem:[%s209 + $0x1220] sm:$0xff]
        %v1495 = vld [vmem:[%s209 + $0x1228] sm:$0xff]
        %v1496 = vld [vmem:[%s209 + $0x1230] sm:$0xff]
        %v1497 = vld [vmem:[%s209 + $0x1238] sm:$0xff]
        %v1498 = vld [vmem:[%s209 + $0x1240] sm:$0xff]
        %v1499 = vld [vmem:[%s209 + $0x1248] sm:$0xff]
        %v1500 = vld [vmem:[%s209 + $0x1250] sm:$0xff]
        %v1501 = vld [vmem:[%s209 + $0x1258] sm:$0xff]
        %v1502 = vld [vmem:[%s209 + $0x1260] sm:$0xff]
        %v1503 = vld [vmem:[%s209 + $0x1268] sm:$0xff]
        %v1504 = vld [vmem:[%s209 + $0x1270] sm:$0xff]
        %v1505 = vld [vmem:[%s209 + $0x1278] sm:$0xff]
        %v1506 = vld [vmem:[%s209 + $0x1280] sm:$0xff]
        %v1507 = vld [vmem:[%s209 + $0x1288] sm:$0xff]
        %v1508 = vld [vmem:[%s209 + $0x1290] sm:$0xff]
        %v1509 = vld [vmem:[%s209 + $0x1298] sm:$0xff]
        %v1510 = vld [vmem:[%s209 + $0x12a0] sm:$0xff]
        %v1511 = vld [vmem:[%s209 + $0x12a8] sm:$0xff]
        %v1512 = vld [vmem:[%s209 + $0x12b0] sm:$0xff]
        %v1513 = vld [vmem:[%s209 + $0x12b8] sm:$0xff]
        %v1514 = vld [vmem:[%s209 + $0x12c0] sm:$0xff]
        %v1515 = vld [vmem:[%s209 + $0x12c8] sm:$0xff]
        %v1516 = vld [vmem:[%s209 + $0x12d0] sm:$0xff]
        %v1517 = vld [vmem:[%s209 + $0x12d8] sm:$0xff]
        %v1518 = vld [vmem:[%s209 + $0x12e0] sm:$0xff]
        %v1519 = vld [vmem:[%s209 + $0x12e8] sm:$0xff]
        %v1520 = vld [vmem:[%s209 + $0x12f0] sm:$0xff]
        %v1521 = vld [vmem:[%s209 + $0x12f8] sm:$0xff]
        %v1522 = vld [vmem:[%s209 + $0x1300] sm:$0xff]
        %v1523 = vld [vmem:[%s209 + $0x1308] sm:$0xff]
        %v1524 = vld [vmem:[%s209 + $0x1310] sm:$0xff]
        %v1525 = vld [vmem:[%s209 + $0x1318] sm:$0xff]
        %v1526 = vld [vmem:[%s209 + $0x1320] sm:$0xff]
        %v1527 = vld [vmem:[%s209 + $0x1328] sm:$0xff]
        %v1528 = vld [vmem:[%s209 + $0x1330] sm:$0xff]
        %v1529 = vld [vmem:[%s209 + $0x1338] sm:$0xff]
        %v1530 = vld [vmem:[%s209 + $0x1340] sm:$0xff]
        %v1531 = vld [vmem:[%s209 + $0x1348] sm:$0xff]
        %v1532 = vld [vmem:[%s209 + $0x1350] sm:$0xff]
        %v1533 = vld [vmem:[%s209 + $0x1358] sm:$0xff]
        %v1534 = vld [vmem:[%s209 + $0x1360] sm:$0xff]
        %v1535 = vld [vmem:[%s209 + $0x1368] sm:$0xff]
        %v1536 = vld [vmem:[%s209 + $0x1370] sm:$0xff]
        %v1537 = vld [vmem:[%s209 + $0x1378] sm:$0xff]
        %v1538 = vld [vmem:[%s209 + $0x1380] sm:$0xff]
        %v1539 = vld [vmem:[%s209 + $0x1388] sm:$0xff]
        %v1540 = vld [vmem:[%s209 + $0x1390] sm:$0xff]
        %v1541 = vld [vmem:[%s209 + $0x1398] sm:$0xff]
        %v1542 = vld [vmem:[%s209 + $0x13a0] sm:$0xff]
        %v1543 = vld [vmem:[%s209 + $0x13a8] sm:$0xff]
        %v1544 = vld [vmem:[%s209 + $0x13b0] sm:$0xff]
        %v1545 = vld [vmem:[%s209 + $0x13b8] sm:$0xff]
        %v1546 = vld [vmem:[%s209 + $0x13c0] sm:$0xff]
        %v1547 = vld [vmem:[%s209 + $0x13c8] sm:$0xff]
        %v1548 = vld [vmem:[%s209 + $0x13d0] sm:$0xff]
        %v1549 = vld [vmem:[%s209 + $0x13d8] sm:$0xff]
        %v1550 = vld [vmem:[%s209 + $0x13e0] sm:$0xff]
        %v1551 = vld [vmem:[%s209 + $0x13e8] sm:$0xff]
        %v1552 = vld [vmem:[%s209 + $0x13f0] sm:$0xff]
        %v1553 = vld [vmem:[%s209 + $0x13f8] sm:$0xff]
        %v1554 = vld [vmem:[%s209 + $0x1400] sm:$0xff]
        %v1555 = vld [vmem:[%s209 + $0x1408] sm:$0xff]
        %v1556 = vld [vmem:[%s209 + $0x1410] sm:$0xff]
        %v1557 = vld [vmem:[%s209 + $0x1418] sm:$0xff]
        %v1558 = vld [vmem:[%s209 + $0x1420] sm:$0xff]
        %v1559 = vld [vmem:[%s209 + $0x1428] sm:$0xff]
        %v1560 = vld [vmem:[%s209 + $0x1430] sm:$0xff]
        %v1561 = vld [vmem:[%s209 + $0x1438] sm:$0xff]
        %v1562 = vld [vmem:[%s209 + $0x1440] sm:$0xff]
        %v1563 = vld [vmem:[%s209 + $0x1448] sm:$0xff]
        %v1564 = vld [vmem:[%s209 + $0x1450] sm:$0xff]
        %v1565 = vld [vmem:[%s209 + $0x1458] sm:$0xff]
        %v1566 = vld [vmem:[%s209 + $0x1460] sm:$0xff]
        %v1567 = vld [vmem:[%s209 + $0x1468] sm:$0xff]
        %v1568 = vld [vmem:[%s209 + $0x1470] sm:$0xff]
        %v1569 = vld [vmem:[%s209 + $0x1478] sm:$0xff]
        %v1570 = vld [vmem:[%s209 + $0x1480] sm:$0xff]
        %v1571 = vld [vmem:[%s209 + $0x1488] sm:$0xff]
        %v1572 = vld [vmem:[%s209 + $0x1490] sm:$0xff]
        %v1573 = vld [vmem:[%s209 + $0x1498] sm:$0xff]
        %v1574 = vld [vmem:[%s209 + $0x14a0] sm:$0xff]
        %v1575 = vld [vmem:[%s209 + $0x14a8] sm:$0xff]
        %v1576 = vld [vmem:[%s209 + $0x14b0] sm:$0xff]
        %v1577 = vld [vmem:[%s209 + $0x14b8] sm:$0xff]
        %v1578 = vld [vmem:[%s209 + $0x14c0] sm:$0xff]
        %v1579 = vld [vmem:[%s209 + $0x14c8] sm:$0xff]
        %v1580 = vld [vmem:[%s209 + $0x14d0] sm:$0xff]
        %v1581 = vld [vmem:[%s209 + $0x14d8] sm:$0xff]
        %v1582 = vld [vmem:[%s209 + $0x14e0] sm:$0xff]
        %v1583 = vld [vmem:[%s209 + $0x14e8] sm:$0xff]
        %v1584 = vld [vmem:[%s209 + $0x14f0] sm:$0xff]
        %v1585 = vld [vmem:[%s209 + $0x14f8] sm:$0xff]
        %v1586 = vld [vmem:[%s209 + $0x1500] sm:$0xff]
        %v1587 = vld [vmem:[%s209 + $0x1508] sm:$0xff]
        %v1588 = vld [vmem:[%s209 + $0x1510] sm:$0xff]
        %v1589 = vld [vmem:[%s209 + $0x1518] sm:$0xff]
        %v1590 = vld [vmem:[%s209 + $0x1520] sm:$0xff]
        %v1591 = vld [vmem:[%s209 + $0x1528] sm:$0xff]
        %v1592 = vld [vmem:[%s209 + $0x1530] sm:$0xff]
        %v1593 = vld [vmem:[%s209 + $0x1538] sm:$0xff]
        %v1594 = vld [vmem:[%s209 + $0x1540] sm:$0xff]
        %v1595 = vld [vmem:[%s209 + $0x1548] sm:$0xff]
        %v1596 = vld [vmem:[%s209 + $0x1550] sm:$0xff]
        %v1597 = vld [vmem:[%s209 + $0x1558] sm:$0xff]
        %v1598 = vld [vmem:[%s209 + $0x1560] sm:$0xff]
        %v1599 = vld [vmem:[%s209 + $0x1568] sm:$0xff]
        %v1600 = vld [vmem:[%s209 + $0x1570] sm:$0xff]
        %v1601 = vld [vmem:[%s209 + $0x1578] sm:$0xff]
        %v1602 = vld [vmem:[%s209 + $0x1580] sm:$0xff]
        %v1603 = vld [vmem:[%s209 + $0x1588] sm:$0xff]
        %v1604 = vld [vmem:[%s209 + $0x1590] sm:$0xff]
        %v1605 = vld [vmem:[%s209 + $0x1598] sm:$0xff]
        %v1606 = vld [vmem:[%s209 + $0x15a0] sm:$0xff]
        %v1607 = vld [vmem:[%s209 + $0x15a8] sm:$0xff]
        %v1608 = vld [vmem:[%s209 + $0x15b0] sm:$0xff]
        %v1609 = vld [vmem:[%s209 + $0x15b8] sm:$0xff]
        %v1610 = vld [vmem:[%s209 + $0x15c0] sm:$0xff]
        %v1611 = vld [vmem:[%s209 + $0x15c8] sm:$0xff]
        %v1612 = vld [vmem:[%s209 + $0x15d0] sm:$0xff]
        %v1613 = vld [vmem:[%s209 + $0x15d8] sm:$0xff]
        %v1614 = vld [vmem:[%s209 + $0x15e0] sm:$0xff]
        %v1615 = vld [vmem:[%s209 + $0x15e8] sm:$0xff]
        %v1616 = vld [vmem:[%s209 + $0x15f0] sm:$0xff]
        %v1617 = vld [vmem:[%s209 + $0x15f8] sm:$0xff]
        %v1618 = vld [vmem:[%s209 + $0x1600] sm:$0xff]
        %v1619 = vld [vmem:[%s209 + $0x1608] sm:$0xff]
        %v1620 = vld [vmem:[%s209 + $0x1610] sm:$0xff]
        %v1621 = vld [vmem:[%s209 + $0x1618] sm:$0xff]
        %v1622 = vld [vmem:[%s209 + $0x1620] sm:$0xff]
        %v1623 = vld [vmem:[%s209 + $0x1628] sm:$0xff]
        %v1624 = vld [vmem:[%s209 + $0x1630] sm:$0xff]
        %v1625 = vld [vmem:[%s209 + $0x1638] sm:$0xff]
        %v1626 = vld [vmem:[%s209 + $0x1640] sm:$0xff]
        %v1627 = vld [vmem:[%s209 + $0x1648] sm:$0xff]
        %v1628 = vld [vmem:[%s209 + $0x1650] sm:$0xff]
        %v1629 = vld [vmem:[%s209 + $0x1658] sm:$0xff]
        %v1630 = vld [vmem:[%s209 + $0x1660] sm:$0xff]
        %v1631 = vld [vmem:[%s209 + $0x1668] sm:$0xff]
        %v1632 = vld [vmem:[%s209 + $0x1670] sm:$0xff]
        %v1633 = vld [vmem:[%s209 + $0x1678] sm:$0xff]
        %v1634 = vld [vmem:[%s209 + $0x1680] sm:$0xff]
        %v1635 = vld [vmem:[%s209 + $0x1688] sm:$0xff]
        %v1636 = vld [vmem:[%s209 + $0x1690] sm:$0xff]
        %v1637 = vld [vmem:[%s209 + $0x1698] sm:$0xff]
        %v1638 = vld [vmem:[%s209 + $0x16a0] sm:$0xff]
        %v1639 = vld [vmem:[%s209 + $0x16a8] sm:$0xff]
        %v1640 = vld [vmem:[%s209 + $0x16b0] sm:$0xff]
        %v1641 = vld [vmem:[%s209 + $0x16b8] sm:$0xff]
        %v1642 = vld [vmem:[%s209 + $0x16c0] sm:$0xff]
        %v1643 = vld [vmem:[%s209 + $0x16c8] sm:$0xff]
        %v1644 = vld [vmem:[%s209 + $0x16d0] sm:$0xff]
        %v1645 = vld [vmem:[%s209 + $0x16d8] sm:$0xff]
        %v1646 = vld [vmem:[%s209 + $0x16e0] sm:$0xff]
        %v1647 = vld [vmem:[%s209 + $0x16e8] sm:$0xff]
        %v1648 = vld [vmem:[%s209 + $0x16f0] sm:$0xff]
        %v1649 = vld [vmem:[%s209 + $0x16f8] sm:$0xff]
        %v1650 = vld [vmem:[%s209 + $0x1700] sm:$0xff]
        %v1651 = vld [vmem:[%s209 + $0x1708] sm:$0xff]
        %v1652 = vld [vmem:[%s209 + $0x1710] sm:$0xff]
        %v1653 = vld [vmem:[%s209 + $0x1718] sm:$0xff]
        %v1654 = vld [vmem:[%s209 + $0x1720] sm:$0xff]
        %v1655 = vld [vmem:[%s209 + $0x1728] sm:$0xff]
        %v1656 = vld [vmem:[%s209 + $0x1730] sm:$0xff]
        %v1657 = vld [vmem:[%s209 + $0x1738] sm:$0xff]
        %v1658 = vld [vmem:[%s209 + $0x1740] sm:$0xff]
        %v1659 = vld [vmem:[%s209 + $0x1748] sm:$0xff]
        %v1660 = vld [vmem:[%s209 + $0x1750] sm:$0xff]
        %v1661 = vld [vmem:[%s209 + $0x1758] sm:$0xff]
        %v1662 = vld [vmem:[%s209 + $0x1760] sm:$0xff]
        %v1663 = vld [vmem:[%s209 + $0x1768] sm:$0xff]
        %v1664 = vld [vmem:[%s209 + $0x1770] sm:$0xff]
        %v1665 = vld [vmem:[%s209 + $0x1778] sm:$0xff]
        %v1666 = vld [vmem:[%s209 + $0x1780] sm:$0xff]
        %v1667 = vld [vmem:[%s209 + $0x1788] sm:$0xff]
        %v1668 = vld [vmem:[%s209 + $0x1790] sm:$0xff]
        %v1669 = vld [vmem:[%s209 + $0x1798] sm:$0xff]
        %v1670 = vld [vmem:[%s209 + $0x17a0] sm:$0xff]
        %v1671 = vld [vmem:[%s209 + $0x17a8] sm:$0xff]
        %v1672 = vld [vmem:[%s209 + $0x17b0] sm:$0xff]
        %v1673 = vld [vmem:[%s209 + $0x17b8] sm:$0xff]
        %v1674 = vld [vmem:[%s209 + $0x17c0] sm:$0xff]
        %v1675 = vld [vmem:[%s209 + $0x17c8] sm:$0xff]
        %v1676 = vld [vmem:[%s209 + $0x17d0] sm:$0xff]
        %v1677 = vld [vmem:[%s209 + $0x17d8] sm:$0xff]
        %v1678 = vld [vmem:[%s209 + $0x17e0] sm:$0xff]
        %v1679 = vld [vmem:[%s209 + $0x17e8] sm:$0xff]
        %v1680 = vld [vmem:[%s209 + $0x17f0] sm:$0xff]
        %v1681 = vld [vmem:[%s209 + $0x17f8] sm:$0xff]
        %v1682 = vld [vmem:[%s209 + $0x1800] sm:$0xff]
        %v1683 = vld [vmem:[%s209 + $0x1808] sm:$0xff]
        %v1684 = vld [vmem:[%s209 + $0x1810] sm:$0xff]
        %v1685 = vld [vmem:[%s209 + $0x1818] sm:$0xff]
        %v1686 = vld [vmem:[%s209 + $0x1820] sm:$0xff]
        %v1687 = vld [vmem:[%s209 + $0x1828] sm:$0xff]
        %v1688 = vld [vmem:[%s209 + $0x1830] sm:$0xff]
        %v1689 = vld [vmem:[%s209 + $0x1838] sm:$0xff]
        %v1690 = vld [vmem:[%s209 + $0x1840] sm:$0xff]
        %v1691 = vld [vmem:[%s209 + $0x1848] sm:$0xff]
        %v1692 = vld [vmem:[%s209 + $0x1850] sm:$0xff]
        %v1693 = vld [vmem:[%s209 + $0x1858] sm:$0xff]
        %v1694 = vld [vmem:[%s209 + $0x1860] sm:$0xff]
        %v1695 = vld [vmem:[%s209 + $0x1868] sm:$0xff]
        %v1696 = vld [vmem:[%s209 + $0x1870] sm:$0xff]
        %v1697 = vld [vmem:[%s209 + $0x1878] sm:$0xff]
        %v1698 = vld [vmem:[%s209 + $0x1880] sm:$0xff]
        %v1699 = vld [vmem:[%s209 + $0x1888] sm:$0xff]
        %v1700 = vld [vmem:[%s209 + $0x1890] sm:$0xff]
        %v1701 = vld [vmem:[%s209 + $0x1898] sm:$0xff]
        %v1702 = vld [vmem:[%s209 + $0x18a0] sm:$0xff]
        %v1703 = vld [vmem:[%s209 + $0x18a8] sm:$0xff]
        %v1704 = vld [vmem:[%s209 + $0x18b0] sm:$0xff]
        %v1705 = vld [vmem:[%s209 + $0x18b8] sm:$0xff]
        %v1706 = vld [vmem:[%s209 + $0x18c0] sm:$0xff]
        %v1707 = vld [vmem:[%s209 + $0x18c8] sm:$0xff]
        %v1708 = vld [vmem:[%s209 + $0x18d0] sm:$0xff]
        %v1709 = vld [vmem:[%s209 + $0x18d8] sm:$0xff]
        %v1710 = vld [vmem:[%s209 + $0x18e0] sm:$0xff]
        %v1711 = vld [vmem:[%s209 + $0x18e8] sm:$0xff]
        %v1712 = vld [vmem:[%s209 + $0x18f0] sm:$0xff]
        %v1713 = vld [vmem:[%s209 + $0x18f8] sm:$0xff]
        %v1714 = vld [vmem:[%s209 + $0x1900] sm:$0xff]
        %v1715 = vld [vmem:[%s209 + $0x1908] sm:$0xff]
        %v1716 = vld [vmem:[%s209 + $0x1910] sm:$0xff]
        %v1717 = vld [vmem:[%s209 + $0x1918] sm:$0xff]
        %v1718 = vld [vmem:[%s209 + $0x1920] sm:$0xff]
        %v1719 = vld [vmem:[%s209 + $0x1928] sm:$0xff]
        %v1720 = vld [vmem:[%s209 + $0x1930] sm:$0xff]
        %v1721 = vld [vmem:[%s209 + $0x1938] sm:$0xff]
        %v1722 = vld [vmem:[%s209 + $0x1940] sm:$0xff]
        %v1723 = vld [vmem:[%s209 + $0x1948] sm:$0xff]
        %v1724 = vld [vmem:[%s209 + $0x1950] sm:$0xff]
        %v1725 = vld [vmem:[%s209 + $0x1958] sm:$0xff]
        %v1726 = vld [vmem:[%s209 + $0x1960] sm:$0xff]
        %v1727 = vld [vmem:[%s209 + $0x1968] sm:$0xff]
        %v1728 = vld [vmem:[%s209 + $0x1970] sm:$0xff]
        %v1729 = vld [vmem:[%s209 + $0x1978] sm:$0xff]
        %v1730 = vld [vmem:[%s209 + $0x1980] sm:$0xff]
        %v1731 = vld [vmem:[%s209 + $0x1988] sm:$0xff]
        %v1732 = vld [vmem:[%s209 + $0x1990] sm:$0xff]
        %v1733 = vld [vmem:[%s209 + $0x1998] sm:$0xff]
        %v1734 = vld [vmem:[%s209 + $0x19a0] sm:$0xff]
        %v1735 = vld [vmem:[%s209 + $0x19a8] sm:$0xff]
        %v1736 = vld [vmem:[%s209 + $0x19b0] sm:$0xff]
        %v1737 = vld [vmem:[%s209 + $0x19b8] sm:$0xff]
        %v1738 = vld [vmem:[%s209 + $0x19c0] sm:$0xff]
        %v1739 = vld [vmem:[%s209 + $0x19c8] sm:$0xff]
        %v1740 = vld [vmem:[%s209 + $0x19d0] sm:$0xff]
        %v1741 = vld [vmem:[%s209 + $0x19d8] sm:$0xff]
        %v1742 = vld [vmem:[%s209 + $0x19e0] sm:$0xff]
        %v1743 = vld [vmem:[%s209 + $0x19e8] sm:$0xff]
        %v1744 = vld [vmem:[%s209 + $0x19f0] sm:$0xff]
        %v1745 = vld [vmem:[%s209 + $0x19f8] sm:$0xff]
        %v1746 = vld [vmem:[%s209 + $0x1a00] sm:$0xff]
        %v1747 = vld [vmem:[%s209 + $0x1a08] sm:$0xff]
        %v1748 = vld [vmem:[%s209 + $0x1a10] sm:$0xff]
        %v1749 = vld [vmem:[%s209 + $0x1a18] sm:$0xff]
        %v1750 = vld [vmem:[%s209 + $0x1a20] sm:$0xff]
        %v1751 = vld [vmem:[%s209 + $0x1a28] sm:$0xff]
        %v1752 = vld [vmem:[%s209 + $0x1a30] sm:$0xff]
        %v1753 = vld [vmem:[%s209 + $0x1a38] sm:$0xff]
        %v1754 = vld [vmem:[%s209 + $0x1a40] sm:$0xff]
        %v1755 = vld [vmem:[%s209 + $0x1a48] sm:$0xff]
        %v1756 = vld [vmem:[%s209 + $0x1a50] sm:$0xff]
        %v1757 = vld [vmem:[%s209 + $0x1a58] sm:$0xff]
        %v1758 = vld [vmem:[%s209 + $0x1a60] sm:$0xff]
        %v1759 = vld [vmem:[%s209 + $0x1a68] sm:$0xff]
        %v1760 = vld [vmem:[%s209 + $0x1a70] sm:$0xff]
        %v1761 = vld [vmem:[%s209 + $0x1a78] sm:$0xff]
        %v1762 = vld [vmem:[%s209 + $0x1a80] sm:$0xff]
        %v1763 = vld [vmem:[%s209 + $0x1a88] sm:$0xff]
        %v1764 = vld [vmem:[%s209 + $0x1a90] sm:$0xff]
        %v1765 = vld [vmem:[%s209 + $0x1a98] sm:$0xff]
        %v1766 = vld [vmem:[%s209 + $0x1aa0] sm:$0xff]
        %v1767 = vld [vmem:[%s209 + $0x1aa8] sm:$0xff]
        %v1768 = vld [vmem:[%s209 + $0x1ab0] sm:$0xff]
        %v1769 = vld [vmem:[%s209 + $0x1ab8] sm:$0xff]
        %v1770 = vld [vmem:[%s209 + $0x1ac0] sm:$0xff]
        %v1771 = vld [vmem:[%s209 + $0x1ac8] sm:$0xff]
        %v1772 = vld [vmem:[%s209 + $0x1ad0] sm:$0xff]
        %v1773 = vld [vmem:[%s209 + $0x1ad8] sm:$0xff]
        %v1774 = vld [vmem:[%s209 + $0x1ae0] sm:$0xff]
        %v1775 = vld [vmem:[%s209 + $0x1ae8] sm:$0xff]
        %v1776 = vld [vmem:[%s209 + $0x1af0] sm:$0xff]
        %v1777 = vld [vmem:[%s209 + $0x1af8] sm:$0xff]
        %v1778 = vld [vmem:[%s209 + $0x1b00] sm:$0xff]
        %v1779 = vld [vmem:[%s209 + $0x1b08] sm:$0xff]
        %v1780 = vld [vmem:[%s209 + $0x1b10] sm:$0xff]
        %v1781 = vld [vmem:[%s209 + $0x1b18] sm:$0xff]
        %v1782 = vld [vmem:[%s209 + $0x1b20] sm:$0xff]
        %v1783 = vld [vmem:[%s209 + $0x1b28] sm:$0xff]
        %v1784 = vld [vmem:[%s209 + $0x1b30] sm:$0xff]
        %v1785 = vld [vmem:[%s209 + $0x1b38] sm:$0xff]
        %v1786 = vld [vmem:[%s209 + $0x1b40] sm:$0xff]
        %v1787 = vld [vmem:[%s209 + $0x1b48] sm:$0xff]
        %v1788 = vld [vmem:[%s209 + $0x1b50] sm:$0xff]
        %v1789 = vld [vmem:[%s209 + $0x1b58] sm:$0xff]
        %v1790 = vld [vmem:[%s209 + $0x1b60] sm:$0xff]
        %v1791 = vld [vmem:[%s209 + $0x1b68] sm:$0xff]
        %v1792 = vld [vmem:[%s209 + $0x1b70] sm:$0xff]
        %v1793 = vld [vmem:[%s209 + $0x1b78] sm:$0xff]
        %v1794 = vld [vmem:[%s209 + $0x1b80] sm:$0xff]
        %v1795 = vld [vmem:[%s209 + $0x1b88] sm:$0xff]
        %v1796 = vld [vmem:[%s209 + $0x1b90] sm:$0xff]
        %v1797 = vld [vmem:[%s209 + $0x1b98] sm:$0xff]
        %v1798 = vld [vmem:[%s209 + $0x1ba0] sm:$0xff]
        %v1799 = vld [vmem:[%s209 + $0x1ba8] sm:$0xff]
        %v1800 = vld [vmem:[%s209 + $0x1bb0] sm:$0xff]
        %v1801 = vld [vmem:[%s209 + $0x1bb8] sm:$0xff]
        %v1802 = vld [vmem:[%s209 + $0x1bc0] sm:$0xff]
        %v1803 = vld [vmem:[%s209 + $0x1bc8] sm:$0xff]
        %v1804 = vld [vmem:[%s209 + $0x1bd0] sm:$0xff]
        %v1805 = vld [vmem:[%s209 + $0x1bd8] sm:$0xff]
        %v1806 = vld [vmem:[%s209 + $0x1be0] sm:$0xff]
        %v1807 = vld [vmem:[%s209 + $0x1be8] sm:$0xff]
        %v1808 = vld [vmem:[%s209 + $0x1bf0] sm:$0xff]
        %v1809 = vld [vmem:[%s209 + $0x1bf8] sm:$0xff]
        %v1810 = vld [vmem:[%s209 + $0x1c00] sm:$0xff]
        %v1811 = vld [vmem:[%s209 + $0x1c08] sm:$0xff]
        %v1812 = vld [vmem:[%s209 + $0x1c10] sm:$0xff]
        %v1813 = vld [vmem:[%s209 + $0x1c18] sm:$0xff]
        %v1814 = vld [vmem:[%s209 + $0x1c20] sm:$0xff]
        %v1815 = vld [vmem:[%s209 + $0x1c28] sm:$0xff]
        %v1816 = vld [vmem:[%s209 + $0x1c30] sm:$0xff]
        %v1817 = vld [vmem:[%s209 + $0x1c38] sm:$0xff]
        %v1818 = vld [vmem:[%s209 + $0x1c40] sm:$0xff]
        %v1819 = vld [vmem:[%s209 + $0x1c48] sm:$0xff]
        %v1820 = vld [vmem:[%s209 + $0x1c50] sm:$0xff]
        %v1821 = vld [vmem:[%s209 + $0x1c58] sm:$0xff]
        %v1822 = vld [vmem:[%s209 + $0x1c60] sm:$0xff]
        %v1823 = vld [vmem:[%s209 + $0x1c68] sm:$0xff]
        %v1824 = vld [vmem:[%s209 + $0x1c70] sm:$0xff]
        %v1825 = vld [vmem:[%s209 + $0x1c78] sm:$0xff]
        %v1826 = vld [vmem:[%s209 + $0x1c80] sm:$0xff]
        %v1827 = vld [vmem:[%s209 + $0x1c88] sm:$0xff]
        %v1828 = vld [vmem:[%s209 + $0x1c90] sm:$0xff]
        %v1829 = vld [vmem:[%s209 + $0x1c98] sm:$0xff]
        %v1830 = vld [vmem:[%s209 + $0x1ca0] sm:$0xff]
        %v1831 = vld [vmem:[%s209 + $0x1ca8] sm:$0xff]
        %v1832 = vld [vmem:[%s209 + $0x1cb0] sm:$0xff]
        %v1833 = vld [vmem:[%s209 + $0x1cb8] sm:$0xff]
        %v1834 = vld [vmem:[%s209 + $0x1cc0] sm:$0xff]
        %v1835 = vld [vmem:[%s209 + $0x1cc8] sm:$0xff]
        %v1836 = vld [vmem:[%s209 + $0x1cd0] sm:$0xff]
        %v1837 = vld [vmem:[%s209 + $0x1cd8] sm:$0xff]
        %v1838 = vld [vmem:[%s209 + $0x1ce0] sm:$0xff]
        %v1839 = vld [vmem:[%s209 + $0x1ce8] sm:$0xff]
        %v1840 = vld [vmem:[%s209 + $0x1cf0] sm:$0xff]
        %v1841 = vld [vmem:[%s209 + $0x1cf8] sm:$0xff]
        %v1842 = vld [vmem:[%s209 + $0x1d00] sm:$0xff]
        %v1843 = vld [vmem:[%s209 + $0x1d08] sm:$0xff]
        %v1844 = vld [vmem:[%s209 + $0x1d10] sm:$0xff]
        %v1845 = vld [vmem:[%s209 + $0x1d18] sm:$0xff]
        %v1846 = vld [vmem:[%s209 + $0x1d20] sm:$0xff]
        %v1847 = vld [vmem:[%s209 + $0x1d28] sm:$0xff]
        %v1848 = vld [vmem:[%s209 + $0x1d30] sm:$0xff]
        %v1849 = vld [vmem:[%s209 + $0x1d38] sm:$0xff]
        %v1850 = vld [vmem:[%s209 + $0x1d40] sm:$0xff]
        %v1851 = vld [vmem:[%s209 + $0x1d48] sm:$0xff]
        %v1852 = vld [vmem:[%s209 + $0x1d50] sm:$0xff]
        %v1853 = vld [vmem:[%s209 + $0x1d58] sm:$0xff]
        %v1854 = vld [vmem:[%s209 + $0x1d60] sm:$0xff]
        %v1855 = vld [vmem:[%s209 + $0x1d68] sm:$0xff]
        %v1856 = vld [vmem:[%s209 + $0x1d70] sm:$0xff]
        %v1857 = vld [vmem:[%s209 + $0x1d78] sm:$0xff]
        %v1858 = vld [vmem:[%s209 + $0x1d80] sm:$0xff]
        %v1859 = vld [vmem:[%s209 + $0x1d88] sm:$0xff]
        %v1860 = vld [vmem:[%s209 + $0x1d90] sm:$0xff]
        %v1861 = vld [vmem:[%s209 + $0x1d98] sm:$0xff]
        %v1862 = vld [vmem:[%s209 + $0x1da0] sm:$0xff]
        %v1863 = vld [vmem:[%s209 + $0x1da8] sm:$0xff]
        %v1864 = vld [vmem:[%s209 + $0x1db0] sm:$0xff]
        %v1865 = vld [vmem:[%s209 + $0x1db8] sm:$0xff]
        %v1866 = vld [vmem:[%s209 + $0x1dc0] sm:$0xff]
        %v1867 = vld [vmem:[%s209 + $0x1dc8] sm:$0xff]
        %v1868 = vld [vmem:[%s209 + $0x1dd0] sm:$0xff]
        %v1869 = vld [vmem:[%s209 + $0x1dd8] sm:$0xff]
        %v1870 = vld [vmem:[%s209 + $0x1de0] sm:$0xff]
        %v1871 = vld [vmem:[%s209 + $0x1de8] sm:$0xff]
        %v1872 = vld [vmem:[%s209 + $0x1df0] sm:$0xff]
        %v1873 = vld [vmem:[%s209 + $0x1df8] sm:$0xff]
        %v1874 = vld [vmem:[%s209 + $0x1e00] sm:$0xff]
        %v1875 = vld [vmem:[%s209 + $0x1e08] sm:$0xff]
        %v1876 = vld [vmem:[%s209 + $0x1e10] sm:$0xff]
        %v1877 = vld [vmem:[%s209 + $0x1e18] sm:$0xff]
        %v1878 = vld [vmem:[%s209 + $0x1e20] sm:$0xff]
        %v1879 = vld [vmem:[%s209 + $0x1e28] sm:$0xff]
        %v1880 = vld [vmem:[%s209 + $0x1e30] sm:$0xff]
        %v1881 = vld [vmem:[%s209 + $0x1e38] sm:$0xff]
        %v1882 = vld [vmem:[%s209 + $0x1e40] sm:$0xff]
        %v1883 = vld [vmem:[%s209 + $0x1e48] sm:$0xff]
        %v1884 = vld [vmem:[%s209 + $0x1e50] sm:$0xff]
        %v1885 = vld [vmem:[%s209 + $0x1e58] sm:$0xff]
        %v1886 = vld [vmem:[%s209 + $0x1e60] sm:$0xff]
        %v1887 = vld [vmem:[%s209 + $0x1e68] sm:$0xff]
        %v1888 = vld [vmem:[%s209 + $0x1e70] sm:$0xff]
        %v1889 = vld [vmem:[%s209 + $0x1e78] sm:$0xff]
        %v1890 = vld [vmem:[%s209 + $0x1e80] sm:$0xff]
        %v1891 = vld [vmem:[%s209 + $0x1e88] sm:$0xff]
        %v1892 = vld [vmem:[%s209 + $0x1e90] sm:$0xff]
        %v1893 = vld [vmem:[%s209 + $0x1e98] sm:$0xff]
        %v1894 = vld [vmem:[%s209 + $0x1ea0] sm:$0xff]
        %v1895 = vld [vmem:[%s209 + $0x1ea8] sm:$0xff]
        %v1896 = vld [vmem:[%s209 + $0x1eb0] sm:$0xff]
        %v1897 = vld [vmem:[%s209 + $0x1eb8] sm:$0xff]
        %v1898 = vld [vmem:[%s209 + $0x1ec0] sm:$0xff]
        %v1899 = vld [vmem:[%s209 + $0x1ec8] sm:$0xff]
        %v1900 = vld [vmem:[%s209 + $0x1ed0] sm:$0xff]
        %v1901 = vld [vmem:[%s209 + $0x1ed8] sm:$0xff]
        %v1902 = vld [vmem:[%s209 + $0x1ee0] sm:$0xff]
        %v1903 = vld [vmem:[%s209 + $0x1ee8] sm:$0xff]
        %v1904 = vld [vmem:[%s209 + $0x1ef0] sm:$0xff]
        %v1905 = vld [vmem:[%s209 + $0x1ef8] sm:$0xff]
        %v1906 = vld [vmem:[%s209 + $0x1f00] sm:$0xff]
        %v1907 = vld [vmem:[%s209 + $0x1f08] sm:$0xff]
        %v1908 = vld [vmem:[%s209 + $0x1f10] sm:$0xff]
        %v1909 = vld [vmem:[%s209 + $0x1f18] sm:$0xff]
        %v1910 = vld [vmem:[%s209 + $0x1f20] sm:$0xff]
        %v1911 = vld [vmem:[%s209 + $0x1f28] sm:$0xff]
        %v1912 = vld [vmem:[%s209 + $0x1f30] sm:$0xff]
        %v1913 = vld [vmem:[%s209 + $0x1f38] sm:$0xff]
        %v1914 = vld [vmem:[%s209 + $0x1f40] sm:$0xff]
        %v1915 = vld [vmem:[%s209 + $0x1f48] sm:$0xff]
        %v1916 = vld [vmem:[%s209 + $0x1f50] sm:$0xff]
        %v1917 = vld [vmem:[%s209 + $0x1f58] sm:$0xff]
        %v1918 = vld [vmem:[%s209 + $0x1f60] sm:$0xff]
        %v1919 = vld [vmem:[%s209 + $0x1f68] sm:$0xff]
        %v1920 = vld [vmem:[%s209 + $0x1f70] sm:$0xff]
        %v1921 = vld [vmem:[%s209 + $0x1f78] sm:$0xff]
        %v1922 = vld [vmem:[%s209 + $0x1f80] sm:$0xff]
        %v1923 = vld [vmem:[%s209 + $0x1f88] sm:$0xff]
        %v1924 = vld [vmem:[%s209 + $0x1f90] sm:$0xff]
        %v1925 = vld [vmem:[%s209 + $0x1f98] sm:$0xff]
        %v1926 = vld [vmem:[%s209 + $0x1fa0] sm:$0xff]
        %v1927 = vld [vmem:[%s209 + $0x1fa8] sm:$0xff]
        %v1928 = vld [vmem:[%s209 + $0x1fb0] sm:$0xff]
        %v1929 = vld [vmem:[%s209 + $0x1fb8] sm:$0xff]
        %v1930 = vld [vmem:[%s209 + $0x1fc0] sm:$0xff]
        %v1931 = vld [vmem:[%s209 + $0x1fc8] sm:$0xff]
        %v1932 = vld [vmem:[%s209 + $0x1fd0] sm:$0xff]
        %v1933 = vld [vmem:[%s209 + $0x1fd8] sm:$0xff]
        %v1934 = vld [vmem:[%s209 + $0x1fe0] sm:$0xff]
        %v1935 = vld [vmem:[%s209 + $0x1fe8] sm:$0xff]
        %v1936 = vld [vmem:[%s209 + $0x1ff0] sm:$0xff]
        %v1937 = vld [vmem:[%s209 + $0x1ff8] sm:$0xff]
        %v1938 = vld [vmem:[%s218] sm:$0xf]
        %v1940 = vlaneseq
        %v1941 = vshrl.u32 %v1940, 7
        %v1942 = vsub.s32 0, %v1941
        %v1943 = vrot.slane %v1938, %v1942
        %v1944 = vlaneseq
        %v1945 = vshrl.u32 %v1944, 7
        %v1946 = vsub.s32 1, %v1945
        %v1947 = vrot.slane %v1938, %v1946
        %v1948 = vlaneseq
        %v1949 = vshrl.u32 %v1948, 7
        %v1950 = vsub.s32 2, %v1949
        %v1951 = vrot.slane %v1938, %v1950
        %v1952 = vlaneseq
        %v1953 = vshrl.u32 %v1952, 7
        %v1954 = vsub.s32 3, %v1953
        %v1955 = vrot.slane %v1938, %v1954
        %v2024 = vunpack.c.l.b16 %v850
        %v2025 = vunpack.c.l.b16 %v851
        %v2026 = vunpack.c.l.b16 %v852
        %v2027 = vunpack.c.l.b16 %v853
        %v2028 = vunpack.c.l.b16 %v854
        %v2029 = vunpack.c.l.b16 %v855
        %v2030 = vunpack.c.l.b16 %v856
        %v2031 = vunpack.c.l.b16 %v857
        %v2032 = vunpack.c.l.b16 %v858
        %v2033 = vunpack.c.l.b16 %v859
        %v2034 = vunpack.c.l.b16 %v860
        %v2035 = vunpack.c.l.b16 %v861
        %v2036 = vunpack.c.l.b16 %v862
        %v2037 = vunpack.c.l.b16 %v863
        %v2038 = vunpack.c.l.b16 %v864
        %v2039 = vunpack.c.l.b16 %v865
        %v2040 = vunpack.c.l.b16 %v866
        %v2041 = vunpack.c.l.b16 %v867
        %v2042 = vunpack.c.l.b16 %v868
        %v2043 = vunpack.c.l.b16 %v869
        %v2044 = vunpack.c.l.b16 %v870
        %v2045 = vunpack.c.l.b16 %v871
        %v2046 = vunpack.c.l.b16 %v872
        %v2047 = vunpack.c.l.b16 %v873
        %v2048 = vunpack.c.l.b16 %v874
        %v2049 = vunpack.c.l.b16 %v875
        %v2050 = vunpack.c.l.b16 %v876
        %v2051 = vunpack.c.l.b16 %v877
        %v2052 = vunpack.c.l.b16 %v878
        %v2053 = vunpack.c.l.b16 %v879
        %v2054 = vunpack.c.l.b16 %v880
        %v2055 = vunpack.c.l.b16 %v881
        %v2056 = vunpack.c.l.b16 %v882
        %v2057 = vunpack.c.l.b16 %v883
        %v2058 = vunpack.c.l.b16 %v884
        %v2059 = vunpack.c.l.b16 %v885
        %v2060 = vunpack.c.l.b16 %v886
        %v2061 = vunpack.c.l.b16 %v887
        %v2062 = vunpack.c.l.b16 %v888
        %v2063 = vunpack.c.l.b16 %v889
        %v2064 = vunpack.c.l.b16 %v890
        %v2065 = vunpack.c.l.b16 %v891
        %v2066 = vunpack.c.l.b16 %v892
        %v2067 = vunpack.c.l.b16 %v893
        %v2068 = vunpack.c.l.b16 %v894
        %v2069 = vunpack.c.l.b16 %v895
        %v2070 = vunpack.c.l.b16 %v896
        %v2071 = vunpack.c.l.b16 %v897
        %v2072 = vunpack.c.l.b16 %v898
        %v2073 = vunpack.c.l.b16 %v899
        %v2074 = vunpack.c.l.b16 %v900
        %v2075 = vunpack.c.l.b16 %v901
        %v2076 = vunpack.c.l.b16 %v902
        %v2077 = vunpack.c.l.b16 %v903
        %v2078 = vunpack.c.l.b16 %v904
        %v2079 = vunpack.c.l.b16 %v905
        %v2080 = vunpack.c.l.b16 %v906
        %v2081 = vunpack.c.l.b16 %v907
        %v2082 = vunpack.c.l.b16 %v908
        %v2083 = vunpack.c.l.b16 %v909
        %v2084 = vunpack.c.l.b16 %v910
        %v2085 = vunpack.c.l.b16 %v911
        %v2086 = vunpack.c.l.b16 %v912
        %v2087 = vunpack.c.l.b16 %v913
        %v2088 = vrot.slane %v2056, 7
        %vm2089 = vcmask 1041409
        %v2090 = vsel %vm2089, %v2088, %v2024
        %v2091 = vrot.slane %v2057, 7
        %v2092 = vsel %vm2089, %v2091, %v2025
        %v2093 = vrot.slane %v2058, 7
        %v2094 = vsel %vm2089, %v2093, %v2026
        %v2095 = vrot.slane %v2059, 7
        %v2096 = vsel %vm2089, %v2095, %v2027
        %v2097 = vrot.slane %v2060, 7
        %v2098 = vsel %vm2089, %v2097, %v2028
        %v2099 = vrot.slane %v2061, 7
        %v2100 = vsel %vm2089, %v2099, %v2029
        %v2101 = vrot.slane %v2062, 7
        %v2102 = vsel %vm2089, %v2101, %v2030
        %v2103 = vrot.slane %v2063, 7
        %v2104 = vsel %vm2089, %v2103, %v2031
        %v2105 = vrot.slane %v2064, 7
        %v2106 = vsel %vm2089, %v2105, %v2032
        %v2107 = vrot.slane %v2065, 7
        %v2108 = vsel %vm2089, %v2107, %v2033
        %v2109 = vrot.slane %v2066, 7
        %v2110 = vsel %vm2089, %v2109, %v2034
        %v2111 = vrot.slane %v2067, 7
        %v2112 = vsel %vm2089, %v2111, %v2035
        %v2113 = vrot.slane %v2068, 7
        %v2114 = vsel %vm2089, %v2113, %v2036
        %v2115 = vrot.slane %v2069, 7
        %v2116 = vsel %vm2089, %v2115, %v2037
        %v2117 = vrot.slane %v2070, 7
        %v2118 = vsel %vm2089, %v2117, %v2038
        %v2119 = vrot.slane %v2071, 7
        %v2120 = vsel %vm2089, %v2119, %v2039
        %v2121 = vrot.slane %v2072, 7
        %v2122 = vsel %vm2089, %v2121, %v2040
        %v2123 = vrot.slane %v2073, 7
        %v2124 = vsel %vm2089, %v2123, %v2041
        %v2125 = vrot.slane %v2074, 7
        %v2126 = vsel %vm2089, %v2125, %v2042
        %v2127 = vrot.slane %v2075, 7
        %v2128 = vsel %vm2089, %v2127, %v2043
        %v2129 = vrot.slane %v2076, 7
        %v2130 = vsel %vm2089, %v2129, %v2044
        %v2131 = vrot.slane %v2077, 7
        %v2132 = vsel %vm2089, %v2131, %v2045
        %v2133 = vrot.slane %v2078, 7
        %v2134 = vsel %vm2089, %v2133, %v2046
        %v2135 = vrot.slane %v2079, 7
        %v2136 = vsel %vm2089, %v2135, %v2047
        %v2137 = vrot.slane %v2080, 7
        %v2138 = vsel %vm2089, %v2137, %v2048
        %v2139 = vrot.slane %v2081, 7
        %v2140 = vsel %vm2089, %v2139, %v2049
        %v2141 = vrot.slane %v2082, 7
        %v2142 = vsel %vm2089, %v2141, %v2050
        %v2143 = vrot.slane %v2083, 7
        %v2144 = vsel %vm2089, %v2143, %v2051
        %v2145 = vrot.slane %v2084, 7
        %v2146 = vsel %vm2089, %v2145, %v2052
        %v2147 = vrot.slane %v2085, 7
        %v2148 = vsel %vm2089, %v2147, %v2053
        %v2149 = vrot.slane %v2086, 7
        %v2150 = vsel %vm2089, %v2149, %v2054
        %v2151 = vrot.slane %v2087, 7
        %v2152 = vsel %vm2089, %v2151, %v2055
        %v2153 = vpack.c.b16 %v2090, %v2090
        %v2154 = vpack.c.b16 %v2092, %v2092
        %v2155 = vpack.c.b16 %v2094, %v2094
        %v2156 = vpack.c.b16 %v2096, %v2096
        %v2157 = vpack.c.b16 %v2098, %v2098
        %v2158 = vpack.c.b16 %v2100, %v2100
        %v2159 = vpack.c.b16 %v2102, %v2102
        %v2160 = vpack.c.b16 %v2104, %v2104
        %v2161 = vpack.c.b16 %v2106, %v2106
        %v2162 = vpack.c.b16 %v2108, %v2108
        %v2163 = vpack.c.b16 %v2110, %v2110
        %v2164 = vpack.c.b16 %v2112, %v2112
        %v2165 = vpack.c.b16 %v2114, %v2114
        %v2166 = vpack.c.b16 %v2116, %v2116
        %v2167 = vpack.c.b16 %v2118, %v2118
        %v2168 = vpack.c.b16 %v2120, %v2120
        %v2169 = vpack.c.b16 %v2122, %v2122
        %v2170 = vpack.c.b16 %v2124, %v2124
        %v2171 = vpack.c.b16 %v2126, %v2126
        %v2172 = vpack.c.b16 %v2128, %v2128
        %v2173 = vpack.c.b16 %v2130, %v2130
        %v2174 = vpack.c.b16 %v2132, %v2132
        %v2175 = vpack.c.b16 %v2134, %v2134
        %v2176 = vpack.c.b16 %v2136, %v2136
        %v2177 = vpack.c.b16 %v2138, %v2138
        %v2178 = vpack.c.b16 %v2140, %v2140
        %v2179 = vpack.c.b16 %v2142, %v2142
        %v2180 = vpack.c.b16 %v2144, %v2144
        %v2181 = vpack.c.b16 %v2146, %v2146
        %v2182 = vpack.c.b16 %v2148, %v2148
        %v2183 = vpack.c.b16 %v2150, %v2150
        %v2184 = vpack.c.b16 %v2152, %v2152
        %v3241 = vunpack.c.l.b16 %v914
        %v3242 = vunpack.c.h.b16 %v914
        %v3243 = vunpack.c.l.b16 %v915
        %v3244 = vunpack.c.h.b16 %v915
        %v3245 = vunpack.c.l.b16 %v916
        %v3246 = vunpack.c.h.b16 %v916
        %v3247 = vunpack.c.l.b16 %v917
        %v3248 = vunpack.c.h.b16 %v917
        %v3249 = vunpack.c.l.b16 %v918
        %v3250 = vunpack.c.h.b16 %v918
        %v3251 = vunpack.c.l.b16 %v919
        %v3252 = vunpack.c.h.b16 %v919
        %v3253 = vunpack.c.l.b16 %v920
        %v3254 = vunpack.c.h.b16 %v920
        %v3255 = vunpack.c.l.b16 %v921
        %v3256 = vunpack.c.h.b16 %v921
        %v3257 = vunpack.c.l.b16 %v922
        %v3258 = vunpack.c.h.b16 %v922
        %v3259 = vunpack.c.l.b16 %v923
        %v3260 = vunpack.c.h.b16 %v923
        %v3261 = vunpack.c.l.b16 %v924
        %v3262 = vunpack.c.h.b16 %v924
        %v3263 = vunpack.c.l.b16 %v925
        %v3264 = vunpack.c.h.b16 %v925
        %v3265 = vunpack.c.l.b16 %v926
        %v3266 = vunpack.c.h.b16 %v926
        %v3267 = vunpack.c.l.b16 %v927
        %v3268 = vunpack.c.h.b16 %v927
        %v3269 = vunpack.c.l.b16 %v928
        %v3270 = vunpack.c.h.b16 %v928
        %v3271 = vunpack.c.l.b16 %v929
        %v3272 = vunpack.c.h.b16 %v929
        %v3273 = vunpack.c.l.b16 %v930
        %v3274 = vunpack.c.h.b16 %v930
        %v3275 = vunpack.c.l.b16 %v931
        %v3276 = vunpack.c.h.b16 %v931
        %v3277 = vunpack.c.l.b16 %v932
        %v3278 = vunpack.c.h.b16 %v932
        %v3279 = vunpack.c.l.b16 %v933
        %v3280 = vunpack.c.h.b16 %v933
        %v3281 = vunpack.c.l.b16 %v934
        %v3282 = vunpack.c.h.b16 %v934
        %v3283 = vunpack.c.l.b16 %v935
        %v3284 = vunpack.c.h.b16 %v935
        %v3285 = vunpack.c.l.b16 %v936
        %v3286 = vunpack.c.h.b16 %v936
        %v3287 = vunpack.c.l.b16 %v937
        %v3288 = vunpack.c.h.b16 %v937
        %v3289 = vunpack.c.l.b16 %v938
        %v3290 = vunpack.c.h.b16 %v938
        %v3291 = vunpack.c.l.b16 %v939
        %v3292 = vunpack.c.h.b16 %v939
        %v3293 = vunpack.c.l.b16 %v940
        %v3294 = vunpack.c.h.b16 %v940
        %v3295 = vunpack.c.l.b16 %v941
        %v3296 = vunpack.c.h.b16 %v941
        %v3297 = vunpack.c.l.b16 %v942
        %v3298 = vunpack.c.h.b16 %v942
        %v3299 = vunpack.c.l.b16 %v943
        %v3300 = vunpack.c.h.b16 %v943
        %v3301 = vunpack.c.l.b16 %v944
        %v3302 = vunpack.c.h.b16 %v944
        %v3303 = vunpack.c.l.b16 %v945
        %v3304 = vunpack.c.h.b16 %v945
        %v3305 = vunpack.c.l.b16 %v946
        %v3306 = vunpack.c.h.b16 %v946
        %v3307 = vunpack.c.l.b16 %v947
        %v3308 = vunpack.c.h.b16 %v947
        %v3309 = vunpack.c.l.b16 %v948
        %v3310 = vunpack.c.h.b16 %v948
        %v3311 = vunpack.c.l.b16 %v949
        %v3312 = vunpack.c.h.b16 %v949
        %v3313 = vunpack.c.l.b16 %v950
        %v3314 = vunpack.c.h.b16 %v950
        %v3315 = vunpack.c.l.b16 %v951
        %v3316 = vunpack.c.h.b16 %v951
        %v3317 = vunpack.c.l.b16 %v952
        %v3318 = vunpack.c.h.b16 %v952
        %v3319 = vunpack.c.l.b16 %v953
        %v3320 = vunpack.c.h.b16 %v953
        %v3321 = vunpack.c.l.b16 %v954
        %v3322 = vunpack.c.h.b16 %v954
        %v3323 = vunpack.c.l.b16 %v955
        %v3324 = vunpack.c.h.b16 %v955
        %v3325 = vunpack.c.l.b16 %v956
        %v3326 = vunpack.c.h.b16 %v956
        %v3327 = vunpack.c.l.b16 %v957
        %v3328 = vunpack.c.h.b16 %v957
        %v3329 = vunpack.c.l.b16 %v958
        %v3330 = vunpack.c.h.b16 %v958
        %v3331 = vunpack.c.l.b16 %v959
        %v3332 = vunpack.c.h.b16 %v959
        %v3333 = vunpack.c.l.b16 %v960
        %v3334 = vunpack.c.h.b16 %v960
        %v3335 = vunpack.c.l.b16 %v961
        %v3336 = vunpack.c.h.b16 %v961
        %v3337 = vunpack.c.l.b16 %v962
        %v3338 = vunpack.c.h.b16 %v962
        %v3339 = vunpack.c.l.b16 %v963
        %v3340 = vunpack.c.h.b16 %v963
        %v3341 = vunpack.c.l.b16 %v964
        %v3342 = vunpack.c.h.b16 %v964
        %v3343 = vunpack.c.l.b16 %v965
        %v3344 = vunpack.c.h.b16 %v965
        %v3345 = vunpack.c.l.b16 %v966
        %v3346 = vunpack.c.h.b16 %v966
        %v3347 = vunpack.c.l.b16 %v967
        %v3348 = vunpack.c.h.b16 %v967
        %v3349 = vunpack.c.l.b16 %v968
        %v3350 = vunpack.c.h.b16 %v968
        %v3351 = vunpack.c.l.b16 %v969
        %v3352 = vunpack.c.h.b16 %v969
        %v3353 = vunpack.c.l.b16 %v970
        %v3354 = vunpack.c.h.b16 %v970
        %v3355 = vunpack.c.l.b16 %v971
        %v3356 = vunpack.c.h.b16 %v971
        %v3357 = vunpack.c.l.b16 %v972
        %v3358 = vunpack.c.h.b16 %v972
        %v3359 = vunpack.c.l.b16 %v973
        %v3360 = vunpack.c.h.b16 %v973
        %v3361 = vunpack.c.l.b16 %v974
        %v3362 = vunpack.c.h.b16 %v974
        %v3363 = vunpack.c.l.b16 %v975
        %v3364 = vunpack.c.h.b16 %v975
        %v3365 = vunpack.c.l.b16 %v976
        %v3366 = vunpack.c.h.b16 %v976
        %v3367 = vunpack.c.l.b16 %v977
        %v3368 = vunpack.c.h.b16 %v977
        %v3369 = vunpack.c.l.b16 %v978
        %v3370 = vunpack.c.h.b16 %v978
        %v3371 = vunpack.c.l.b16 %v979
        %v3372 = vunpack.c.h.b16 %v979
        %v3373 = vunpack.c.l.b16 %v980
        %v3374 = vunpack.c.h.b16 %v980
        %v3375 = vunpack.c.l.b16 %v981
        %v3376 = vunpack.c.h.b16 %v981
        %v3377 = vunpack.c.l.b16 %v982
        %v3378 = vunpack.c.h.b16 %v982
        %v3379 = vunpack.c.l.b16 %v983
        %v3380 = vunpack.c.h.b16 %v983
        %v3381 = vunpack.c.l.b16 %v984
        %v3382 = vunpack.c.h.b16 %v984
        %v3383 = vunpack.c.l.b16 %v985
        %v3384 = vunpack.c.h.b16 %v985
        %v3385 = vunpack.c.l.b16 %v986
        %v3386 = vunpack.c.h.b16 %v986
        %v3387 = vunpack.c.l.b16 %v987
        %v3388 = vunpack.c.h.b16 %v987
        %v3389 = vunpack.c.l.b16 %v988
        %v3390 = vunpack.c.h.b16 %v988
        %v3391 = vunpack.c.l.b16 %v989
        %v3392 = vunpack.c.h.b16 %v989
        %v3393 = vunpack.c.l.b16 %v990
        %v3394 = vunpack.c.h.b16 %v990
        %v3395 = vunpack.c.l.b16 %v991
        %v3396 = vunpack.c.h.b16 %v991
        %v3397 = vunpack.c.l.b16 %v992
        %v3398 = vunpack.c.h.b16 %v992
        %v3399 = vunpack.c.l.b16 %v993
        %v3400 = vunpack.c.h.b16 %v993
        %v3401 = vunpack.c.l.b16 %v994
        %v3402 = vunpack.c.h.b16 %v994
        %v3403 = vunpack.c.l.b16 %v995
        %v3404 = vunpack.c.h.b16 %v995
        %v3405 = vunpack.c.l.b16 %v996
        %v3406 = vunpack.c.h.b16 %v996
        %v3407 = vunpack.c.l.b16 %v997
        %v3408 = vunpack.c.h.b16 %v997
        %v3409 = vunpack.c.l.b16 %v998
        %v3410 = vunpack.c.h.b16 %v998
        %v3411 = vunpack.c.l.b16 %v999
        %v3412 = vunpack.c.h.b16 %v999
        %v3413 = vunpack.c.l.b16 %v1000
        %v3414 = vunpack.c.h.b16 %v1000
        %v3415 = vunpack.c.l.b16 %v1001
        %v3416 = vunpack.c.h.b16 %v1001
        %v3417 = vunpack.c.l.b16 %v1002
        %v3418 = vunpack.c.h.b16 %v1002
        %v3419 = vunpack.c.l.b16 %v1003
        %v3420 = vunpack.c.h.b16 %v1003
        %v3421 = vunpack.c.l.b16 %v1004
        %v3422 = vunpack.c.h.b16 %v1004
        %v3423 = vunpack.c.l.b16 %v1005
        %v3424 = vunpack.c.h.b16 %v1005
        %v3425 = vunpack.c.l.b16 %v1006
        %v3426 = vunpack.c.h.b16 %v1006
        %v3427 = vunpack.c.l.b16 %v1007
        %v3428 = vunpack.c.h.b16 %v1007
        %v3429 = vunpack.c.l.b16 %v1008
        %v3430 = vunpack.c.h.b16 %v1008
        %v3431 = vunpack.c.l.b16 %v1009
        %v3432 = vunpack.c.h.b16 %v1009
        %v3433 = vunpack.c.l.b16 %v1010
        %v3434 = vunpack.c.h.b16 %v1010
        %v3435 = vunpack.c.l.b16 %v1011
        %v3436 = vunpack.c.h.b16 %v1011
        %v3437 = vunpack.c.l.b16 %v1012
        %v3438 = vunpack.c.h.b16 %v1012
        %v3439 = vunpack.c.l.b16 %v1013
        %v3440 = vunpack.c.h.b16 %v1013
        %v3441 = vunpack.c.l.b16 %v1014
        %v3442 = vunpack.c.h.b16 %v1014
        %v3443 = vunpack.c.l.b16 %v1015
        %v3444 = vunpack.c.h.b16 %v1015
        %v3445 = vunpack.c.l.b16 %v1016
        %v3446 = vunpack.c.h.b16 %v1016
        %v3447 = vunpack.c.l.b16 %v1017
        %v3448 = vunpack.c.h.b16 %v1017
        %v3449 = vunpack.c.l.b16 %v1018
        %v3450 = vunpack.c.h.b16 %v1018
        %v3451 = vunpack.c.l.b16 %v1019
        %v3452 = vunpack.c.h.b16 %v1019
        %v3453 = vunpack.c.l.b16 %v1020
        %v3454 = vunpack.c.h.b16 %v1020
        %v3455 = vunpack.c.l.b16 %v1021
        %v3456 = vunpack.c.h.b16 %v1021
        %v3457 = vunpack.c.l.b16 %v1022
        %v3458 = vunpack.c.h.b16 %v1022
        %v3459 = vunpack.c.l.b16 %v1023
        %v3460 = vunpack.c.h.b16 %v1023
        %v3461 = vunpack.c.l.b16 %v1024
        %v3462 = vunpack.c.h.b16 %v1024
        %v3463 = vunpack.c.l.b16 %v1025
        %v3464 = vunpack.c.h.b16 %v1025
        %v3465 = vunpack.c.l.b16 %v1026
        %v3466 = vunpack.c.h.b16 %v1026
        %v3467 = vunpack.c.l.b16 %v1027
        %v3468 = vunpack.c.h.b16 %v1027
        %v3469 = vunpack.c.l.b16 %v1028
        %v3470 = vunpack.c.h.b16 %v1028
        %v3471 = vunpack.c.l.b16 %v1029
        %v3472 = vunpack.c.h.b16 %v1029
        %v3473 = vunpack.c.l.b16 %v1030
        %v3474 = vunpack.c.h.b16 %v1030
        %v3475 = vunpack.c.l.b16 %v1031
        %v3476 = vunpack.c.h.b16 %v1031
        %v3477 = vunpack.c.l.b16 %v1032
        %v3478 = vunpack.c.h.b16 %v1032
        %v3479 = vunpack.c.l.b16 %v1033
        %v3480 = vunpack.c.h.b16 %v1033
        %v3481 = vunpack.c.l.b16 %v1034
        %v3482 = vunpack.c.h.b16 %v1034
        %v3483 = vunpack.c.l.b16 %v1035
        %v3484 = vunpack.c.h.b16 %v1035
        %v3485 = vunpack.c.l.b16 %v1036
        %v3486 = vunpack.c.h.b16 %v1036
        %v3487 = vunpack.c.l.b16 %v1037
        %v3488 = vunpack.c.h.b16 %v1037
        %v3489 = vunpack.c.l.b16 %v1038
        %v3490 = vunpack.c.h.b16 %v1038
        %v3491 = vunpack.c.l.b16 %v1039
        %v3492 = vunpack.c.h.b16 %v1039
        %v3493 = vunpack.c.l.b16 %v1040
        %v3494 = vunpack.c.h.b16 %v1040
        %v3495 = vunpack.c.l.b16 %v1041
        %v3496 = vunpack.c.h.b16 %v1041
        %v3497 = vunpack.c.l.b16 %v1042
        %v3498 = vunpack.c.h.b16 %v1042
        %v3499 = vunpack.c.l.b16 %v1043
        %v3500 = vunpack.c.h.b16 %v1043
        %v3501 = vunpack.c.l.b16 %v1044
        %v3502 = vunpack.c.h.b16 %v1044
        %v3503 = vunpack.c.l.b16 %v1045
        %v3504 = vunpack.c.h.b16 %v1045
        %v3505 = vunpack.c.l.b16 %v1046
        %v3506 = vunpack.c.h.b16 %v1046
        %v3507 = vunpack.c.l.b16 %v1047
        %v3508 = vunpack.c.h.b16 %v1047
        %v3509 = vunpack.c.l.b16 %v1048
        %v3510 = vunpack.c.h.b16 %v1048
        %v3511 = vunpack.c.l.b16 %v1049
        %v3512 = vunpack.c.h.b16 %v1049
        %v3513 = vunpack.c.l.b16 %v1050
        %v3514 = vunpack.c.h.b16 %v1050
        %v3515 = vunpack.c.l.b16 %v1051
        %v3516 = vunpack.c.h.b16 %v1051
        %v3517 = vunpack.c.l.b16 %v1052
        %v3518 = vunpack.c.h.b16 %v1052
        %v3519 = vunpack.c.l.b16 %v1053
        %v3520 = vunpack.c.h.b16 %v1053
        %v3521 = vunpack.c.l.b16 %v1054
        %v3522 = vunpack.c.h.b16 %v1054
        %v3523 = vunpack.c.l.b16 %v1055
        %v3524 = vunpack.c.h.b16 %v1055
        %v3525 = vunpack.c.l.b16 %v1056
        %v3526 = vunpack.c.h.b16 %v1056
        %v3527 = vunpack.c.l.b16 %v1057
        %v3528 = vunpack.c.h.b16 %v1057
        %v3529 = vunpack.c.l.b16 %v1058
        %v3530 = vunpack.c.h.b16 %v1058
        %v3531 = vunpack.c.l.b16 %v1059
        %v3532 = vunpack.c.h.b16 %v1059
        %v3533 = vunpack.c.l.b16 %v1060
        %v3534 = vunpack.c.h.b16 %v1060
        %v3535 = vunpack.c.l.b16 %v1061
        %v3536 = vunpack.c.h.b16 %v1061
        %v3537 = vunpack.c.l.b16 %v1062
        %v3538 = vunpack.c.h.b16 %v1062
        %v3539 = vunpack.c.l.b16 %v1063
        %v3540 = vunpack.c.h.b16 %v1063
        %v3541 = vunpack.c.l.b16 %v1064
        %v3542 = vunpack.c.h.b16 %v1064
        %v3543 = vunpack.c.l.b16 %v1065
        %v3544 = vunpack.c.h.b16 %v1065
        %v3545 = vunpack.c.l.b16 %v1066
        %v3546 = vunpack.c.h.b16 %v1066
        %v3547 = vunpack.c.l.b16 %v1067
        %v3548 = vunpack.c.h.b16 %v1067
        %v3549 = vunpack.c.l.b16 %v1068
        %v3550 = vunpack.c.h.b16 %v1068
        %v3551 = vunpack.c.l.b16 %v1069
        %v3552 = vunpack.c.h.b16 %v1069
        %v3553 = vunpack.c.l.b16 %v1070
        %v3554 = vunpack.c.h.b16 %v1070
        %v3555 = vunpack.c.l.b16 %v1071
        %v3556 = vunpack.c.h.b16 %v1071
        %v3557 = vunpack.c.l.b16 %v1072
        %v3558 = vunpack.c.h.b16 %v1072
        %v3559 = vunpack.c.l.b16 %v1073
        %v3560 = vunpack.c.h.b16 %v1073
        %v3561 = vunpack.c.l.b16 %v1074
        %v3562 = vunpack.c.h.b16 %v1074
        %v3563 = vunpack.c.l.b16 %v1075
        %v3564 = vunpack.c.h.b16 %v1075
        %v3565 = vunpack.c.l.b16 %v1076
        %v3566 = vunpack.c.h.b16 %v1076
        %v3567 = vunpack.c.l.b16 %v1077
        %v3568 = vunpack.c.h.b16 %v1077
        %v3569 = vunpack.c.l.b16 %v1078
        %v3570 = vunpack.c.h.b16 %v1078
        %v3571 = vunpack.c.l.b16 %v1079
        %v3572 = vunpack.c.h.b16 %v1079
        %v3573 = vunpack.c.l.b16 %v1080
        %v3574 = vunpack.c.h.b16 %v1080
        %v3575 = vunpack.c.l.b16 %v1081
        %v3576 = vunpack.c.h.b16 %v1081
        %v3577 = vunpack.c.l.b16 %v1082
        %v3578 = vunpack.c.h.b16 %v1082
        %v3579 = vunpack.c.l.b16 %v1083
        %v3580 = vunpack.c.h.b16 %v1083
        %v3581 = vunpack.c.l.b16 %v1084
        %v3582 = vunpack.c.h.b16 %v1084
        %v3583 = vunpack.c.l.b16 %v1085
        %v3584 = vunpack.c.h.b16 %v1085
        %v3585 = vunpack.c.l.b16 %v1086
        %v3586 = vunpack.c.h.b16 %v1086
        %v3587 = vunpack.c.l.b16 %v1087
        %v3588 = vunpack.c.h.b16 %v1087
        %v3589 = vunpack.c.l.b16 %v1088
        %v3590 = vunpack.c.h.b16 %v1088
        %v3591 = vunpack.c.l.b16 %v1089
        %v3592 = vunpack.c.h.b16 %v1089
        %v3593 = vunpack.c.l.b16 %v1090
        %v3594 = vunpack.c.h.b16 %v1090
        %v3595 = vunpack.c.l.b16 %v1091
        %v3596 = vunpack.c.h.b16 %v1091
        %v3597 = vunpack.c.l.b16 %v1092
        %v3598 = vunpack.c.h.b16 %v1092
        %v3599 = vunpack.c.l.b16 %v1093
        %v3600 = vunpack.c.h.b16 %v1093
        %v3601 = vunpack.c.l.b16 %v1094
        %v3602 = vunpack.c.h.b16 %v1094
        %v3603 = vunpack.c.l.b16 %v1095
        %v3604 = vunpack.c.h.b16 %v1095
        %v3605 = vunpack.c.l.b16 %v1096
        %v3606 = vunpack.c.h.b16 %v1096
        %v3607 = vunpack.c.l.b16 %v1097
        %v3608 = vunpack.c.h.b16 %v1097
        %v3609 = vunpack.c.l.b16 %v1098
        %v3610 = vunpack.c.h.b16 %v1098
        %v3611 = vunpack.c.l.b16 %v1099
        %v3612 = vunpack.c.h.b16 %v1099
        %v3613 = vunpack.c.l.b16 %v1100
        %v3614 = vunpack.c.h.b16 %v1100
        %v3615 = vunpack.c.l.b16 %v1101
        %v3616 = vunpack.c.h.b16 %v1101
        %v3617 = vunpack.c.l.b16 %v1102
        %v3618 = vunpack.c.h.b16 %v1102
        %v3619 = vunpack.c.l.b16 %v1103
        %v3620 = vunpack.c.h.b16 %v1103
        %v3621 = vunpack.c.l.b16 %v1104
        %v3622 = vunpack.c.h.b16 %v1104
        %v3623 = vunpack.c.l.b16 %v1105
        %v3624 = vunpack.c.h.b16 %v1105
        %v3625 = vunpack.c.l.b16 %v1106
        %v3626 = vunpack.c.h.b16 %v1106
        %v3627 = vunpack.c.l.b16 %v1107
        %v3628 = vunpack.c.h.b16 %v1107
        %v3629 = vunpack.c.l.b16 %v1108
        %v3630 = vunpack.c.h.b16 %v1108
        %v3631 = vunpack.c.l.b16 %v1109
        %v3632 = vunpack.c.h.b16 %v1109
        %v3633 = vunpack.c.l.b16 %v1110
        %v3634 = vunpack.c.h.b16 %v1110
        %v3635 = vunpack.c.l.b16 %v1111
        %v3636 = vunpack.c.h.b16 %v1111
        %v3637 = vunpack.c.l.b16 %v1112
        %v3638 = vunpack.c.h.b16 %v1112
        %v3639 = vunpack.c.l.b16 %v1113
        %v3640 = vunpack.c.h.b16 %v1113
        %v3641 = vunpack.c.l.b16 %v1114
        %v3642 = vunpack.c.h.b16 %v1114
        %v3643 = vunpack.c.l.b16 %v1115
        %v3644 = vunpack.c.h.b16 %v1115
        %v3645 = vunpack.c.l.b16 %v1116
        %v3646 = vunpack.c.h.b16 %v1116
        %v3647 = vunpack.c.l.b16 %v1117
        %v3648 = vunpack.c.h.b16 %v1117
        %v3649 = vunpack.c.l.b16 %v1118
        %v3650 = vunpack.c.h.b16 %v1118
        %v3651 = vunpack.c.l.b16 %v1119
        %v3652 = vunpack.c.h.b16 %v1119
        %v3653 = vunpack.c.l.b16 %v1120
        %v3654 = vunpack.c.h.b16 %v1120
        %v3655 = vunpack.c.l.b16 %v1121
        %v3656 = vunpack.c.h.b16 %v1121
        %v3657 = vunpack.c.l.b16 %v1122
        %v3658 = vunpack.c.h.b16 %v1122
        %v3659 = vunpack.c.l.b16 %v1123
        %v3660 = vunpack.c.h.b16 %v1123
        %v3661 = vunpack.c.l.b16 %v1124
        %v3662 = vunpack.c.h.b16 %v1124
        %v3663 = vunpack.c.l.b16 %v1125
        %v3664 = vunpack.c.h.b16 %v1125
        %v3665 = vunpack.c.l.b16 %v1126
        %v3666 = vunpack.c.h.b16 %v1126
        %v3667 = vunpack.c.l.b16 %v1127
        %v3668 = vunpack.c.h.b16 %v1127
        %v3669 = vunpack.c.l.b16 %v1128
        %v3670 = vunpack.c.h.b16 %v1128
        %v3671 = vunpack.c.l.b16 %v1129
        %v3672 = vunpack.c.h.b16 %v1129
        %v3673 = vunpack.c.l.b16 %v1130
        %v3674 = vunpack.c.h.b16 %v1130
        %v3675 = vunpack.c.l.b16 %v1131
        %v3676 = vunpack.c.h.b16 %v1131
        %v3677 = vunpack.c.l.b16 %v1132
        %v3678 = vunpack.c.h.b16 %v1132
        %v3679 = vunpack.c.l.b16 %v1133
        %v3680 = vunpack.c.h.b16 %v1133
        %v3681 = vunpack.c.l.b16 %v1134
        %v3682 = vunpack.c.h.b16 %v1134
        %v3683 = vunpack.c.l.b16 %v1135
        %v3684 = vunpack.c.h.b16 %v1135
        %v3685 = vunpack.c.l.b16 %v1136
        %v3686 = vunpack.c.h.b16 %v1136
        %v3687 = vunpack.c.l.b16 %v1137
        %v3688 = vunpack.c.h.b16 %v1137
        %v3689 = vunpack.c.l.b16 %v1138
        %v3690 = vunpack.c.h.b16 %v1138
        %v3691 = vunpack.c.l.b16 %v1139
        %v3692 = vunpack.c.h.b16 %v1139
        %v3693 = vunpack.c.l.b16 %v1140
        %v3694 = vunpack.c.h.b16 %v1140
        %v3695 = vunpack.c.l.b16 %v1141
        %v3696 = vunpack.c.h.b16 %v1141
        %v3697 = vunpack.c.l.b16 %v1142
        %v3698 = vunpack.c.h.b16 %v1142
        %v3699 = vunpack.c.l.b16 %v1143
        %v3700 = vunpack.c.h.b16 %v1143
        %v3701 = vunpack.c.l.b16 %v1144
        %v3702 = vunpack.c.h.b16 %v1144
        %v3703 = vunpack.c.l.b16 %v1145
        %v3704 = vunpack.c.h.b16 %v1145
        %v3705 = vunpack.c.l.b16 %v1146
        %v3706 = vunpack.c.h.b16 %v1146
        %v3707 = vunpack.c.l.b16 %v1147
        %v3708 = vunpack.c.h.b16 %v1147
        %v3709 = vunpack.c.l.b16 %v1148
        %v3710 = vunpack.c.h.b16 %v1148
        %v3711 = vunpack.c.l.b16 %v1149
        %v3712 = vunpack.c.h.b16 %v1149
        %v3713 = vunpack.c.l.b16 %v1150
        %v3714 = vunpack.c.h.b16 %v1150
        %v3715 = vunpack.c.l.b16 %v1151
        %v3716 = vunpack.c.h.b16 %v1151
        %v3717 = vunpack.c.l.b16 %v1152
        %v3718 = vunpack.c.h.b16 %v1152
        %v3719 = vunpack.c.l.b16 %v1153
        %v3720 = vunpack.c.h.b16 %v1153
        %v3721 = vunpack.c.l.b16 %v1154
        %v3722 = vunpack.c.h.b16 %v1154
        %v3723 = vunpack.c.l.b16 %v1155
        %v3724 = vunpack.c.h.b16 %v1155
        %v3725 = vunpack.c.l.b16 %v1156
        %v3726 = vunpack.c.h.b16 %v1156
        %v3727 = vunpack.c.l.b16 %v1157
        %v3728 = vunpack.c.h.b16 %v1157
        %v3729 = vunpack.c.l.b16 %v1158
        %v3730 = vunpack.c.h.b16 %v1158
        %v3731 = vunpack.c.l.b16 %v1159
        %v3732 = vunpack.c.h.b16 %v1159
        %v3733 = vunpack.c.l.b16 %v1160
        %v3734 = vunpack.c.h.b16 %v1160
        %v3735 = vunpack.c.l.b16 %v1161
        %v3736 = vunpack.c.h.b16 %v1161
        %v3737 = vunpack.c.l.b16 %v1162
        %v3738 = vunpack.c.h.b16 %v1162
        %v3739 = vunpack.c.l.b16 %v1163
        %v3740 = vunpack.c.h.b16 %v1163
        %v3741 = vunpack.c.l.b16 %v1164
        %v3742 = vunpack.c.h.b16 %v1164
        %v3743 = vunpack.c.l.b16 %v1165
        %v3744 = vunpack.c.h.b16 %v1165
        %v3745 = vunpack.c.l.b16 %v1166
        %v3746 = vunpack.c.h.b16 %v1166
        %v3747 = vunpack.c.l.b16 %v1167
        %v3748 = vunpack.c.h.b16 %v1167
        %v3749 = vunpack.c.l.b16 %v1168
        %v3750 = vunpack.c.h.b16 %v1168
        %v3751 = vunpack.c.l.b16 %v1169
        %v3752 = vunpack.c.h.b16 %v1169
        %v3753 = vunpack.c.l.b16 %v1170
        %v3754 = vunpack.c.h.b16 %v1170
        %v3755 = vunpack.c.l.b16 %v1171
        %v3756 = vunpack.c.h.b16 %v1171
        %v3757 = vunpack.c.l.b16 %v1172
        %v3758 = vunpack.c.h.b16 %v1172
        %v3759 = vunpack.c.l.b16 %v1173
        %v3760 = vunpack.c.h.b16 %v1173
        %v3761 = vunpack.c.l.b16 %v1174
        %v3762 = vunpack.c.h.b16 %v1174
        %v3763 = vunpack.c.l.b16 %v1175
        %v3764 = vunpack.c.h.b16 %v1175
        %v3765 = vunpack.c.l.b16 %v1176
        %v3766 = vunpack.c.h.b16 %v1176
        %v3767 = vunpack.c.l.b16 %v1177
        %v3768 = vunpack.c.h.b16 %v1177
        %v3769 = vunpack.c.l.b16 %v1178
        %v3770 = vunpack.c.h.b16 %v1178
        %v3771 = vunpack.c.l.b16 %v1179
        %v3772 = vunpack.c.h.b16 %v1179
        %v3773 = vunpack.c.l.b16 %v1180
        %v3774 = vunpack.c.h.b16 %v1180
        %v3775 = vunpack.c.l.b16 %v1181
        %v3776 = vunpack.c.h.b16 %v1181
        %v3777 = vunpack.c.l.b16 %v1182
        %v3778 = vunpack.c.h.b16 %v1182
        %v3779 = vunpack.c.l.b16 %v1183
        %v3780 = vunpack.c.h.b16 %v1183
        %v3781 = vunpack.c.l.b16 %v1184
        %v3782 = vunpack.c.h.b16 %v1184
        %v3783 = vunpack.c.l.b16 %v1185
        %v3784 = vunpack.c.h.b16 %v1185
        %v3785 = vunpack.c.l.b16 %v1186
        %v3786 = vunpack.c.h.b16 %v1186
        %v3787 = vunpack.c.l.b16 %v1187
        %v3788 = vunpack.c.h.b16 %v1187
        %v3789 = vunpack.c.l.b16 %v1188
        %v3790 = vunpack.c.h.b16 %v1188
        %v3791 = vunpack.c.l.b16 %v1189
        %v3792 = vunpack.c.h.b16 %v1189
        %v3793 = vunpack.c.l.b16 %v1190
        %v3794 = vunpack.c.h.b16 %v1190
        %v3795 = vunpack.c.l.b16 %v1191
        %v3796 = vunpack.c.h.b16 %v1191
        %v3797 = vunpack.c.l.b16 %v1192
        %v3798 = vunpack.c.h.b16 %v1192
        %v3799 = vunpack.c.l.b16 %v1193
        %v3800 = vunpack.c.h.b16 %v1193
        %v3801 = vunpack.c.l.b16 %v1194
        %v3802 = vunpack.c.h.b16 %v1194
        %v3803 = vunpack.c.l.b16 %v1195
        %v3804 = vunpack.c.h.b16 %v1195
        %v3805 = vunpack.c.l.b16 %v1196
        %v3806 = vunpack.c.h.b16 %v1196
        %v3807 = vunpack.c.l.b16 %v1197
        %v3808 = vunpack.c.h.b16 %v1197
        %v3809 = vunpack.c.l.b16 %v1198
        %v3810 = vunpack.c.h.b16 %v1198
        %v3811 = vunpack.c.l.b16 %v1199
        %v3812 = vunpack.c.h.b16 %v1199
        %v3813 = vunpack.c.l.b16 %v1200
        %v3814 = vunpack.c.h.b16 %v1200
        %v3815 = vunpack.c.l.b16 %v1201
        %v3816 = vunpack.c.h.b16 %v1201
        %v3817 = vunpack.c.l.b16 %v1202
        %v3818 = vunpack.c.h.b16 %v1202
        %v3819 = vunpack.c.l.b16 %v1203
        %v3820 = vunpack.c.h.b16 %v1203
        %v3821 = vunpack.c.l.b16 %v1204
        %v3822 = vunpack.c.h.b16 %v1204
        %v3823 = vunpack.c.l.b16 %v1205
        %v3824 = vunpack.c.h.b16 %v1205
        %v3825 = vunpack.c.l.b16 %v1206
        %v3826 = vunpack.c.h.b16 %v1206
        %v3827 = vunpack.c.l.b16 %v1207
        %v3828 = vunpack.c.h.b16 %v1207
        %v3829 = vunpack.c.l.b16 %v1208
        %v3830 = vunpack.c.h.b16 %v1208
        %v3831 = vunpack.c.l.b16 %v1209
        %v3832 = vunpack.c.h.b16 %v1209
        %v3833 = vunpack.c.l.b16 %v1210
        %v3834 = vunpack.c.h.b16 %v1210
        %v3835 = vunpack.c.l.b16 %v1211
        %v3836 = vunpack.c.h.b16 %v1211
        %v3837 = vunpack.c.l.b16 %v1212
        %v3838 = vunpack.c.h.b16 %v1212
        %v3839 = vunpack.c.l.b16 %v1213
        %v3840 = vunpack.c.h.b16 %v1213
        %v3841 = vunpack.c.l.b16 %v1214
        %v3842 = vunpack.c.h.b16 %v1214
        %v3843 = vunpack.c.l.b16 %v1215
        %v3844 = vunpack.c.h.b16 %v1215
        %v3845 = vunpack.c.l.b16 %v1216
        %v3846 = vunpack.c.h.b16 %v1216
        %v3847 = vunpack.c.l.b16 %v1217
        %v3848 = vunpack.c.h.b16 %v1217
        %v3849 = vunpack.c.l.b16 %v1218
        %v3850 = vunpack.c.h.b16 %v1218
        %v3851 = vunpack.c.l.b16 %v1219
        %v3852 = vunpack.c.h.b16 %v1219
        %v3853 = vunpack.c.l.b16 %v1220
        %v3854 = vunpack.c.h.b16 %v1220
        %v3855 = vunpack.c.l.b16 %v1221
        %v3856 = vunpack.c.h.b16 %v1221
        %v3857 = vunpack.c.l.b16 %v1222
        %v3858 = vunpack.c.h.b16 %v1222
        %v3859 = vunpack.c.l.b16 %v1223
        %v3860 = vunpack.c.h.b16 %v1223
        %v3861 = vunpack.c.l.b16 %v1224
        %v3862 = vunpack.c.h.b16 %v1224
        %v3863 = vunpack.c.l.b16 %v1225
        %v3864 = vunpack.c.h.b16 %v1225
        %v3865 = vunpack.c.l.b16 %v1226
        %v3866 = vunpack.c.h.b16 %v1226
        %v3867 = vunpack.c.l.b16 %v1227
        %v3868 = vunpack.c.h.b16 %v1227
        %v3869 = vunpack.c.l.b16 %v1228
        %v3870 = vunpack.c.h.b16 %v1228
        %v3871 = vunpack.c.l.b16 %v1229
        %v3872 = vunpack.c.h.b16 %v1229
        %v3873 = vunpack.c.l.b16 %v1230
        %v3874 = vunpack.c.h.b16 %v1230
        %v3875 = vunpack.c.l.b16 %v1231
        %v3876 = vunpack.c.h.b16 %v1231
        %v3877 = vunpack.c.l.b16 %v1232
        %v3878 = vunpack.c.h.b16 %v1232
        %v3879 = vunpack.c.l.b16 %v1233
        %v3880 = vunpack.c.h.b16 %v1233
        %v3881 = vunpack.c.l.b16 %v1234
        %v3882 = vunpack.c.h.b16 %v1234
        %v3883 = vunpack.c.l.b16 %v1235
        %v3884 = vunpack.c.h.b16 %v1235
        %v3885 = vunpack.c.l.b16 %v1236
        %v3886 = vunpack.c.h.b16 %v1236
        %v3887 = vunpack.c.l.b16 %v1237
        %v3888 = vunpack.c.h.b16 %v1237
        %v3889 = vunpack.c.l.b16 %v1238
        %v3890 = vunpack.c.h.b16 %v1238
        %v3891 = vunpack.c.l.b16 %v1239
        %v3892 = vunpack.c.h.b16 %v1239
        %v3893 = vunpack.c.l.b16 %v1240
        %v3894 = vunpack.c.h.b16 %v1240
        %v3895 = vunpack.c.l.b16 %v1241
        %v3896 = vunpack.c.h.b16 %v1241
        %v3897 = vunpack.c.l.b16 %v1242
        %v3898 = vunpack.c.h.b16 %v1242
        %v3899 = vunpack.c.l.b16 %v1243
        %v3900 = vunpack.c.h.b16 %v1243
        %v3901 = vunpack.c.l.b16 %v1244
        %v3902 = vunpack.c.h.b16 %v1244
        %v3903 = vunpack.c.l.b16 %v1245
        %v3904 = vunpack.c.h.b16 %v1245
        %v3905 = vunpack.c.l.b16 %v1246
        %v3906 = vunpack.c.h.b16 %v1246
        %v3907 = vunpack.c.l.b16 %v1247
        %v3908 = vunpack.c.h.b16 %v1247
        %v3909 = vunpack.c.l.b16 %v1248
        %v3910 = vunpack.c.h.b16 %v1248
        %v3911 = vunpack.c.l.b16 %v1249
        %v3912 = vunpack.c.h.b16 %v1249
        %v3913 = vunpack.c.l.b16 %v1250
        %v3914 = vunpack.c.h.b16 %v1250
        %v3915 = vunpack.c.l.b16 %v1251
        %v3916 = vunpack.c.h.b16 %v1251
        %v3917 = vunpack.c.l.b16 %v1252
        %v3918 = vunpack.c.h.b16 %v1252
        %v3919 = vunpack.c.l.b16 %v1253
        %v3920 = vunpack.c.h.b16 %v1253
        %v3921 = vunpack.c.l.b16 %v1254
        %v3922 = vunpack.c.h.b16 %v1254
        %v3923 = vunpack.c.l.b16 %v1255
        %v3924 = vunpack.c.h.b16 %v1255
        %v3925 = vunpack.c.l.b16 %v1256
        %v3926 = vunpack.c.h.b16 %v1256
        %v3927 = vunpack.c.l.b16 %v1257
        %v3928 = vunpack.c.h.b16 %v1257
        %v3929 = vunpack.c.l.b16 %v1258
        %v3930 = vunpack.c.h.b16 %v1258
        %v3931 = vunpack.c.l.b16 %v1259
        %v3932 = vunpack.c.h.b16 %v1259
        %v3933 = vunpack.c.l.b16 %v1260
        %v3934 = vunpack.c.h.b16 %v1260
        %v3935 = vunpack.c.l.b16 %v1261
        %v3936 = vunpack.c.h.b16 %v1261
        %v3937 = vunpack.c.l.b16 %v1262
        %v3938 = vunpack.c.h.b16 %v1262
        %v3939 = vunpack.c.l.b16 %v1263
        %v3940 = vunpack.c.h.b16 %v1263
        %v3941 = vunpack.c.l.b16 %v1264
        %v3942 = vunpack.c.h.b16 %v1264
        %v3943 = vunpack.c.l.b16 %v1265
        %v3944 = vunpack.c.h.b16 %v1265
        %v3945 = vunpack.c.l.b16 %v1266
        %v3946 = vunpack.c.h.b16 %v1266
        %v3947 = vunpack.c.l.b16 %v1267
        %v3948 = vunpack.c.h.b16 %v1267
        %v3949 = vunpack.c.l.b16 %v1268
        %v3950 = vunpack.c.h.b16 %v1268
        %v3951 = vunpack.c.l.b16 %v1269
        %v3952 = vunpack.c.h.b16 %v1269
        %v3953 = vunpack.c.l.b16 %v1270
        %v3954 = vunpack.c.h.b16 %v1270
        %v3955 = vunpack.c.l.b16 %v1271
        %v3956 = vunpack.c.h.b16 %v1271
        %v3957 = vunpack.c.l.b16 %v1272
        %v3958 = vunpack.c.h.b16 %v1272
        %v3959 = vunpack.c.l.b16 %v1273
        %v3960 = vunpack.c.h.b16 %v1273
        %v3961 = vunpack.c.l.b16 %v1274
        %v3962 = vunpack.c.h.b16 %v1274
        %v3963 = vunpack.c.l.b16 %v1275
        %v3964 = vunpack.c.h.b16 %v1275
        %v3965 = vunpack.c.l.b16 %v1276
        %v3966 = vunpack.c.h.b16 %v1276
        %v3967 = vunpack.c.l.b16 %v1277
        %v3968 = vunpack.c.h.b16 %v1277
        %v3969 = vunpack.c.l.b16 %v1278
        %v3970 = vunpack.c.h.b16 %v1278
        %v3971 = vunpack.c.l.b16 %v1279
        %v3972 = vunpack.c.h.b16 %v1279
        %v3973 = vunpack.c.l.b16 %v1280
        %v3974 = vunpack.c.h.b16 %v1280
        %v3975 = vunpack.c.l.b16 %v1281
        %v3976 = vunpack.c.h.b16 %v1281
        %v3977 = vunpack.c.l.b16 %v1282
        %v3978 = vunpack.c.h.b16 %v1282
        %v3979 = vunpack.c.l.b16 %v1283
        %v3980 = vunpack.c.h.b16 %v1283
        %v3981 = vunpack.c.l.b16 %v1284
        %v3982 = vunpack.c.h.b16 %v1284
        %v3983 = vunpack.c.l.b16 %v1285
        %v3984 = vunpack.c.h.b16 %v1285
        %v3985 = vunpack.c.l.b16 %v1286
        %v3986 = vunpack.c.h.b16 %v1286
        %v3987 = vunpack.c.l.b16 %v1287
        %v3988 = vunpack.c.h.b16 %v1287
        %v3989 = vunpack.c.l.b16 %v1288
        %v3990 = vunpack.c.h.b16 %v1288
        %v3991 = vunpack.c.l.b16 %v1289
        %v3992 = vunpack.c.h.b16 %v1289
        %v3993 = vunpack.c.l.b16 %v1290
        %v3994 = vunpack.c.h.b16 %v1290
        %v3995 = vunpack.c.l.b16 %v1291
        %v3996 = vunpack.c.h.b16 %v1291
        %v3997 = vunpack.c.l.b16 %v1292
        %v3998 = vunpack.c.h.b16 %v1292
        %v3999 = vunpack.c.l.b16 %v1293
        %v4000 = vunpack.c.h.b16 %v1293
        %v4001 = vunpack.c.l.b16 %v1294
        %v4002 = vunpack.c.h.b16 %v1294
        %v4003 = vunpack.c.l.b16 %v1295
        %v4004 = vunpack.c.h.b16 %v1295
        %v4005 = vunpack.c.l.b16 %v1296
        %v4006 = vunpack.c.h.b16 %v1296
        %v4007 = vunpack.c.l.b16 %v1297
        %v4008 = vunpack.c.h.b16 %v1297
        %v4009 = vunpack.c.l.b16 %v1298
        %v4010 = vunpack.c.h.b16 %v1298
        %v4011 = vunpack.c.l.b16 %v1299
        %v4012 = vunpack.c.h.b16 %v1299
        %v4013 = vunpack.c.l.b16 %v1300
        %v4014 = vunpack.c.h.b16 %v1300
        %v4015 = vunpack.c.l.b16 %v1301
        %v4016 = vunpack.c.h.b16 %v1301
        %v4017 = vunpack.c.l.b16 %v1302
        %v4018 = vunpack.c.h.b16 %v1302
        %v4019 = vunpack.c.l.b16 %v1303
        %v4020 = vunpack.c.h.b16 %v1303
        %v4021 = vunpack.c.l.b16 %v1304
        %v4022 = vunpack.c.h.b16 %v1304
        %v4023 = vunpack.c.l.b16 %v1305
        %v4024 = vunpack.c.h.b16 %v1305
        %v4025 = vunpack.c.l.b16 %v1306
        %v4026 = vunpack.c.h.b16 %v1306
        %v4027 = vunpack.c.l.b16 %v1307
        %v4028 = vunpack.c.h.b16 %v1307
        %v4029 = vunpack.c.l.b16 %v1308
        %v4030 = vunpack.c.h.b16 %v1308
        %v4031 = vunpack.c.l.b16 %v1309
        %v4032 = vunpack.c.h.b16 %v1309
        %v4033 = vunpack.c.l.b16 %v1310
        %v4034 = vunpack.c.h.b16 %v1310
        %v4035 = vunpack.c.l.b16 %v1311
        %v4036 = vunpack.c.h.b16 %v1311
        %v4037 = vunpack.c.l.b16 %v1312
        %v4038 = vunpack.c.h.b16 %v1312
        %v4039 = vunpack.c.l.b16 %v1313
        %v4040 = vunpack.c.h.b16 %v1313
        %v4041 = vunpack.c.l.b16 %v1314
        %v4042 = vunpack.c.h.b16 %v1314
        %v4043 = vunpack.c.l.b16 %v1315
        %v4044 = vunpack.c.h.b16 %v1315
        %v4045 = vunpack.c.l.b16 %v1316
        %v4046 = vunpack.c.h.b16 %v1316
        %v4047 = vunpack.c.l.b16 %v1317
        %v4048 = vunpack.c.h.b16 %v1317
        %v4049 = vunpack.c.l.b16 %v1318
        %v4050 = vunpack.c.h.b16 %v1318
        %v4051 = vunpack.c.l.b16 %v1319
        %v4052 = vunpack.c.h.b16 %v1319
        %v4053 = vunpack.c.l.b16 %v1320
        %v4054 = vunpack.c.h.b16 %v1320
        %v4055 = vunpack.c.l.b16 %v1321
        %v4056 = vunpack.c.h.b16 %v1321
        %v4057 = vunpack.c.l.b16 %v1322
        %v4058 = vunpack.c.h.b16 %v1322
        %v4059 = vunpack.c.l.b16 %v1323
        %v4060 = vunpack.c.h.b16 %v1323
        %v4061 = vunpack.c.l.b16 %v1324
        %v4062 = vunpack.c.h.b16 %v1324
        %v4063 = vunpack.c.l.b16 %v1325
        %v4064 = vunpack.c.h.b16 %v1325
        %v4065 = vunpack.c.l.b16 %v1326
        %v4066 = vunpack.c.h.b16 %v1326
        %v4067 = vunpack.c.l.b16 %v1327
        %v4068 = vunpack.c.h.b16 %v1327
        %v4069 = vunpack.c.l.b16 %v1328
        %v4070 = vunpack.c.h.b16 %v1328
        %v4071 = vunpack.c.l.b16 %v1329
        %v4072 = vunpack.c.h.b16 %v1329
        %v4073 = vunpack.c.l.b16 %v1330
        %v4074 = vunpack.c.h.b16 %v1330
        %v4075 = vunpack.c.l.b16 %v1331
        %v4076 = vunpack.c.h.b16 %v1331
        %v4077 = vunpack.c.l.b16 %v1332
        %v4078 = vunpack.c.h.b16 %v1332
        %v4079 = vunpack.c.l.b16 %v1333
        %v4080 = vunpack.c.h.b16 %v1333
        %v4081 = vunpack.c.l.b16 %v1334
        %v4082 = vunpack.c.h.b16 %v1334
        %v4083 = vunpack.c.l.b16 %v1335
        %v4084 = vunpack.c.h.b16 %v1335
        %v4085 = vunpack.c.l.b16 %v1336
        %v4086 = vunpack.c.h.b16 %v1336
        %v4087 = vunpack.c.l.b16 %v1337
        %v4088 = vunpack.c.h.b16 %v1337
        %v4089 = vunpack.c.l.b16 %v1338
        %v4090 = vunpack.c.h.b16 %v1338
        %v4091 = vunpack.c.l.b16 %v1339
        %v4092 = vunpack.c.h.b16 %v1339
        %v4093 = vunpack.c.l.b16 %v1340
        %v4094 = vunpack.c.h.b16 %v1340
        %v4095 = vunpack.c.l.b16 %v1341
        %v4096 = vunpack.c.h.b16 %v1341
        %v4097 = vunpack.c.l.b16 %v1342
        %v4098 = vunpack.c.h.b16 %v1342
        %v4099 = vunpack.c.l.b16 %v1343
        %v4100 = vunpack.c.h.b16 %v1343
        %v4101 = vunpack.c.l.b16 %v1344
        %v4102 = vunpack.c.h.b16 %v1344
        %v4103 = vunpack.c.l.b16 %v1345
        %v4104 = vunpack.c.h.b16 %v1345
        %v4105 = vunpack.c.l.b16 %v1346
        %v4106 = vunpack.c.h.b16 %v1346
        %v4107 = vunpack.c.l.b16 %v1347
        %v4108 = vunpack.c.h.b16 %v1347
        %v4109 = vunpack.c.l.b16 %v1348
        %v4110 = vunpack.c.h.b16 %v1348
        %v4111 = vunpack.c.l.b16 %v1349
        %v4112 = vunpack.c.h.b16 %v1349
        %v4113 = vunpack.c.l.b16 %v1350
        %v4114 = vunpack.c.h.b16 %v1350
        %v4115 = vunpack.c.l.b16 %v1351
        %v4116 = vunpack.c.h.b16 %v1351
        %v4117 = vunpack.c.l.b16 %v1352
        %v4118 = vunpack.c.h.b16 %v1352
        %v4119 = vunpack.c.l.b16 %v1353
        %v4120 = vunpack.c.h.b16 %v1353
        %v4121 = vunpack.c.l.b16 %v1354
        %v4122 = vunpack.c.h.b16 %v1354
        %v4123 = vunpack.c.l.b16 %v1355
        %v4124 = vunpack.c.h.b16 %v1355
        %v4125 = vunpack.c.l.b16 %v1356
        %v4126 = vunpack.c.h.b16 %v1356
        %v4127 = vunpack.c.l.b16 %v1357
        %v4128 = vunpack.c.h.b16 %v1357
        %v4129 = vunpack.c.l.b16 %v1358
        %v4130 = vunpack.c.h.b16 %v1358
        %v4131 = vunpack.c.l.b16 %v1359
        %v4132 = vunpack.c.h.b16 %v1359
        %v4133 = vunpack.c.l.b16 %v1360
        %v4134 = vunpack.c.h.b16 %v1360
        %v4135 = vunpack.c.l.b16 %v1361
        %v4136 = vunpack.c.h.b16 %v1361
        %v4137 = vunpack.c.l.b16 %v1362
        %v4138 = vunpack.c.h.b16 %v1362
        %v4139 = vunpack.c.l.b16 %v1363
        %v4140 = vunpack.c.h.b16 %v1363
        %v4141 = vunpack.c.l.b16 %v1364
        %v4142 = vunpack.c.h.b16 %v1364
        %v4143 = vunpack.c.l.b16 %v1365
        %v4144 = vunpack.c.h.b16 %v1365
        %v4145 = vunpack.c.l.b16 %v1366
        %v4146 = vunpack.c.h.b16 %v1366
        %v4147 = vunpack.c.l.b16 %v1367
        %v4148 = vunpack.c.h.b16 %v1367
        %v4149 = vunpack.c.l.b16 %v1368
        %v4150 = vunpack.c.h.b16 %v1368
        %v4151 = vunpack.c.l.b16 %v1369
        %v4152 = vunpack.c.h.b16 %v1369
        %v4153 = vunpack.c.l.b16 %v1370
        %v4154 = vunpack.c.h.b16 %v1370
        %v4155 = vunpack.c.l.b16 %v1371
        %v4156 = vunpack.c.h.b16 %v1371
        %v4157 = vunpack.c.l.b16 %v1372
        %v4158 = vunpack.c.h.b16 %v1372
        %v4159 = vunpack.c.l.b16 %v1373
        %v4160 = vunpack.c.h.b16 %v1373
        %v4161 = vunpack.c.l.b16 %v1374
        %v4162 = vunpack.c.h.b16 %v1374
        %v4163 = vunpack.c.l.b16 %v1375
        %v4164 = vunpack.c.h.b16 %v1375
        %v4165 = vunpack.c.l.b16 %v1376
        %v4166 = vunpack.c.h.b16 %v1376
        %v4167 = vunpack.c.l.b16 %v1377
        %v4168 = vunpack.c.h.b16 %v1377
        %v4169 = vunpack.c.l.b16 %v1378
        %v4170 = vunpack.c.h.b16 %v1378
        %v4171 = vunpack.c.l.b16 %v1379
        %v4172 = vunpack.c.h.b16 %v1379
        %v4173 = vunpack.c.l.b16 %v1380
        %v4174 = vunpack.c.h.b16 %v1380
        %v4175 = vunpack.c.l.b16 %v1381
        %v4176 = vunpack.c.h.b16 %v1381
        %v4177 = vunpack.c.l.b16 %v1382
        %v4178 = vunpack.c.h.b16 %v1382
        %v4179 = vunpack.c.l.b16 %v1383
        %v4180 = vunpack.c.h.b16 %v1383
        %v4181 = vunpack.c.l.b16 %v1384
        %v4182 = vunpack.c.h.b16 %v1384
        %v4183 = vunpack.c.l.b16 %v1385
        %v4184 = vunpack.c.h.b16 %v1385
        %v4185 = vunpack.c.l.b16 %v1386
        %v4186 = vunpack.c.h.b16 %v1386
        %v4187 = vunpack.c.l.b16 %v1387
        %v4188 = vunpack.c.h.b16 %v1387
        %v4189 = vunpack.c.l.b16 %v1388
        %v4190 = vunpack.c.h.b16 %v1388
        %v4191 = vunpack.c.l.b16 %v1389
        %v4192 = vunpack.c.h.b16 %v1389
        %v4193 = vunpack.c.l.b16 %v1390
        %v4194 = vunpack.c.h.b16 %v1390
        %v4195 = vunpack.c.l.b16 %v1391
        %v4196 = vunpack.c.h.b16 %v1391
        %v4197 = vunpack.c.l.b16 %v1392
        %v4198 = vunpack.c.h.b16 %v1392
        %v4199 = vunpack.c.l.b16 %v1393
        %v4200 = vunpack.c.h.b16 %v1393
        %v4201 = vunpack.c.l.b16 %v1394
        %v4202 = vunpack.c.h.b16 %v1394
        %v4203 = vunpack.c.l.b16 %v1395
        %v4204 = vunpack.c.h.b16 %v1395
        %v4205 = vunpack.c.l.b16 %v1396
        %v4206 = vunpack.c.h.b16 %v1396
        %v4207 = vunpack.c.l.b16 %v1397
        %v4208 = vunpack.c.h.b16 %v1397
        %v4209 = vunpack.c.l.b16 %v1398
        %v4210 = vunpack.c.h.b16 %v1398
        %v4211 = vunpack.c.l.b16 %v1399
        %v4212 = vunpack.c.h.b16 %v1399
        %v4213 = vunpack.c.l.b16 %v1400
        %v4214 = vunpack.c.h.b16 %v1400
        %v4215 = vunpack.c.l.b16 %v1401
        %v4216 = vunpack.c.h.b16 %v1401
        %v4217 = vunpack.c.l.b16 %v1402
        %v4218 = vunpack.c.h.b16 %v1402
        %v4219 = vunpack.c.l.b16 %v1403
        %v4220 = vunpack.c.h.b16 %v1403
        %v4221 = vunpack.c.l.b16 %v1404
        %v4222 = vunpack.c.h.b16 %v1404
        %v4223 = vunpack.c.l.b16 %v1405
        %v4224 = vunpack.c.h.b16 %v1405
        %v4225 = vunpack.c.l.b16 %v1406
        %v4226 = vunpack.c.h.b16 %v1406
        %v4227 = vunpack.c.l.b16 %v1407
        %v4228 = vunpack.c.h.b16 %v1407
        %v4229 = vunpack.c.l.b16 %v1408
        %v4230 = vunpack.c.h.b16 %v1408
        %v4231 = vunpack.c.l.b16 %v1409
        %v4232 = vunpack.c.h.b16 %v1409
        %v4233 = vunpack.c.l.b16 %v1410
        %v4234 = vunpack.c.h.b16 %v1410
        %v4235 = vunpack.c.l.b16 %v1411
        %v4236 = vunpack.c.h.b16 %v1411
        %v4237 = vunpack.c.l.b16 %v1412
        %v4238 = vunpack.c.h.b16 %v1412
        %v4239 = vunpack.c.l.b16 %v1413
        %v4240 = vunpack.c.h.b16 %v1413
        %v4241 = vunpack.c.l.b16 %v1414
        %v4242 = vunpack.c.h.b16 %v1414
        %v4243 = vunpack.c.l.b16 %v1415
        %v4244 = vunpack.c.h.b16 %v1415
        %v4245 = vunpack.c.l.b16 %v1416
        %v4246 = vunpack.c.h.b16 %v1416
        %v4247 = vunpack.c.l.b16 %v1417
        %v4248 = vunpack.c.h.b16 %v1417
        %v4249 = vunpack.c.l.b16 %v1418
        %v4250 = vunpack.c.h.b16 %v1418
        %v4251 = vunpack.c.l.b16 %v1419
        %v4252 = vunpack.c.h.b16 %v1419
        %v4253 = vunpack.c.l.b16 %v1420
        %v4254 = vunpack.c.h.b16 %v1420
        %v4255 = vunpack.c.l.b16 %v1421
        %v4256 = vunpack.c.h.b16 %v1421
        %v4257 = vunpack.c.l.b16 %v1422
        %v4258 = vunpack.c.h.b16 %v1422
        %v4259 = vunpack.c.l.b16 %v1423
        %v4260 = vunpack.c.h.b16 %v1423
        %v4261 = vunpack.c.l.b16 %v1424
        %v4262 = vunpack.c.h.b16 %v1424
        %v4263 = vunpack.c.l.b16 %v1425
        %v4264 = vunpack.c.h.b16 %v1425
        %v4265 = vunpack.c.l.b16 %v1426
        %v4266 = vunpack.c.h.b16 %v1426
        %v4267 = vunpack.c.l.b16 %v1427
        %v4268 = vunpack.c.h.b16 %v1427
        %v4269 = vunpack.c.l.b16 %v1428
        %v4270 = vunpack.c.h.b16 %v1428
        %v4271 = vunpack.c.l.b16 %v1429
        %v4272 = vunpack.c.h.b16 %v1429
        %v4273 = vunpack.c.l.b16 %v1430
        %v4274 = vunpack.c.h.b16 %v1430
        %v4275 = vunpack.c.l.b16 %v1431
        %v4276 = vunpack.c.h.b16 %v1431
        %v4277 = vunpack.c.l.b16 %v1432
        %v4278 = vunpack.c.h.b16 %v1432
        %v4279 = vunpack.c.l.b16 %v1433
        %v4280 = vunpack.c.h.b16 %v1433
        %v4281 = vunpack.c.l.b16 %v1434
        %v4282 = vunpack.c.h.b16 %v1434
        %v4283 = vunpack.c.l.b16 %v1435
        %v4284 = vunpack.c.h.b16 %v1435
        %v4285 = vunpack.c.l.b16 %v1436
        %v4286 = vunpack.c.h.b16 %v1436
        %v4287 = vunpack.c.l.b16 %v1437
        %v4288 = vunpack.c.h.b16 %v1437
        %v4289 = vunpack.c.l.b16 %v1438
        %v4290 = vunpack.c.h.b16 %v1438
        %v4291 = vunpack.c.l.b16 %v1439
        %v4292 = vunpack.c.h.b16 %v1439
        %v4293 = vunpack.c.l.b16 %v1440
        %v4294 = vunpack.c.h.b16 %v1440
        %v4295 = vunpack.c.l.b16 %v1441
        %v4296 = vunpack.c.h.b16 %v1441
        %v4297 = vunpack.c.l.b16 %v1442
        %v4298 = vunpack.c.h.b16 %v1442
        %v4299 = vunpack.c.l.b16 %v1443
        %v4300 = vunpack.c.h.b16 %v1443
        %v4301 = vunpack.c.l.b16 %v1444
        %v4302 = vunpack.c.h.b16 %v1444
        %v4303 = vunpack.c.l.b16 %v1445
        %v4304 = vunpack.c.h.b16 %v1445
        %v4305 = vunpack.c.l.b16 %v1446
        %v4306 = vunpack.c.h.b16 %v1446
        %v4307 = vunpack.c.l.b16 %v1447
        %v4308 = vunpack.c.h.b16 %v1447
        %v4309 = vunpack.c.l.b16 %v1448
        %v4310 = vunpack.c.h.b16 %v1448
        %v4311 = vunpack.c.l.b16 %v1449
        %v4312 = vunpack.c.h.b16 %v1449
        %v4313 = vunpack.c.l.b16 %v1450
        %v4314 = vunpack.c.h.b16 %v1450
        %v4315 = vunpack.c.l.b16 %v1451
        %v4316 = vunpack.c.h.b16 %v1451
        %v4317 = vunpack.c.l.b16 %v1452
        %v4318 = vunpack.c.h.b16 %v1452
        %v4319 = vunpack.c.l.b16 %v1453
        %v4320 = vunpack.c.h.b16 %v1453
        %v4321 = vunpack.c.l.b16 %v1454
        %v4322 = vunpack.c.h.b16 %v1454
        %v4323 = vunpack.c.l.b16 %v1455
        %v4324 = vunpack.c.h.b16 %v1455
        %v4325 = vunpack.c.l.b16 %v1456
        %v4326 = vunpack.c.h.b16 %v1456
        %v4327 = vunpack.c.l.b16 %v1457
        %v4328 = vunpack.c.h.b16 %v1457
        %v4329 = vunpack.c.l.b16 %v1458
        %v4330 = vunpack.c.h.b16 %v1458
        %v4331 = vunpack.c.l.b16 %v1459
        %v4332 = vunpack.c.h.b16 %v1459
        %v4333 = vunpack.c.l.b16 %v1460
        %v4334 = vunpack.c.h.b16 %v1460
        %v4335 = vunpack.c.l.b16 %v1461
        %v4336 = vunpack.c.h.b16 %v1461
        %v4337 = vunpack.c.l.b16 %v1462
        %v4338 = vunpack.c.h.b16 %v1462
        %v4339 = vunpack.c.l.b16 %v1463
        %v4340 = vunpack.c.h.b16 %v1463
        %v4341 = vunpack.c.l.b16 %v1464
        %v4342 = vunpack.c.h.b16 %v1464
        %v4343 = vunpack.c.l.b16 %v1465
        %v4344 = vunpack.c.h.b16 %v1465
        %v4345 = vunpack.c.l.b16 %v1466
        %v4346 = vunpack.c.h.b16 %v1466
        %v4347 = vunpack.c.l.b16 %v1467
        %v4348 = vunpack.c.h.b16 %v1467
        %v4349 = vunpack.c.l.b16 %v1468
        %v4350 = vunpack.c.h.b16 %v1468
        %v4351 = vunpack.c.l.b16 %v1469
        %v4352 = vunpack.c.h.b16 %v1469
        %v4353 = vunpack.c.l.b16 %v1470
        %v4354 = vunpack.c.h.b16 %v1470
        %v4355 = vunpack.c.l.b16 %v1471
        %v4356 = vunpack.c.h.b16 %v1471
        %v4357 = vunpack.c.l.b16 %v1472
        %v4358 = vunpack.c.h.b16 %v1472
        %v4359 = vunpack.c.l.b16 %v1473
        %v4360 = vunpack.c.h.b16 %v1473
        %v4361 = vunpack.c.l.b16 %v1474
        %v4362 = vunpack.c.h.b16 %v1474
        %v4363 = vunpack.c.l.b16 %v1475
        %v4364 = vunpack.c.h.b16 %v1475
        %v4365 = vunpack.c.l.b16 %v1476
        %v4366 = vunpack.c.h.b16 %v1476
        %v4367 = vunpack.c.l.b16 %v1477
        %v4368 = vunpack.c.h.b16 %v1477
        %v4369 = vunpack.c.l.b16 %v1478
        %v4370 = vunpack.c.h.b16 %v1478
        %v4371 = vunpack.c.l.b16 %v1479
        %v4372 = vunpack.c.h.b16 %v1479
        %v4373 = vunpack.c.l.b16 %v1480
        %v4374 = vunpack.c.h.b16 %v1480
        %v4375 = vunpack.c.l.b16 %v1481
        %v4376 = vunpack.c.h.b16 %v1481
        %v4377 = vunpack.c.l.b16 %v1482
        %v4378 = vunpack.c.h.b16 %v1482
        %v4379 = vunpack.c.l.b16 %v1483
        %v4380 = vunpack.c.h.b16 %v1483
        %v4381 = vunpack.c.l.b16 %v1484
        %v4382 = vunpack.c.h.b16 %v1484
        %v4383 = vunpack.c.l.b16 %v1485
        %v4384 = vunpack.c.h.b16 %v1485
        %v4385 = vunpack.c.l.b16 %v1486
        %v4386 = vunpack.c.h.b16 %v1486
        %v4387 = vunpack.c.l.b16 %v1487
        %v4388 = vunpack.c.h.b16 %v1487
        %v4389 = vunpack.c.l.b16 %v1488
        %v4390 = vunpack.c.h.b16 %v1488
        %v4391 = vunpack.c.l.b16 %v1489
        %v4392 = vunpack.c.h.b16 %v1489
        %v4393 = vunpack.c.l.b16 %v1490
        %v4394 = vunpack.c.h.b16 %v1490
        %v4395 = vunpack.c.l.b16 %v1491
        %v4396 = vunpack.c.h.b16 %v1491
        %v4397 = vunpack.c.l.b16 %v1492
        %v4398 = vunpack.c.h.b16 %v1492
        %v4399 = vunpack.c.l.b16 %v1493
        %v4400 = vunpack.c.h.b16 %v1493
        %v4401 = vunpack.c.l.b16 %v1494
        %v4402 = vunpack.c.h.b16 %v1494
        %v4403 = vunpack.c.l.b16 %v1495
        %v4404 = vunpack.c.h.b16 %v1495
        %v4405 = vunpack.c.l.b16 %v1496
        %v4406 = vunpack.c.h.b16 %v1496
        %v4407 = vunpack.c.l.b16 %v1497
        %v4408 = vunpack.c.h.b16 %v1497
        %v4409 = vunpack.c.l.b16 %v1498
        %v4410 = vunpack.c.h.b16 %v1498
        %v4411 = vunpack.c.l.b16 %v1499
        %v4412 = vunpack.c.h.b16 %v1499
        %v4413 = vunpack.c.l.b16 %v1500
        %v4414 = vunpack.c.h.b16 %v1500
        %v4415 = vunpack.c.l.b16 %v1501
        %v4416 = vunpack.c.h.b16 %v1501
        %v4417 = vunpack.c.l.b16 %v1502
        %v4418 = vunpack.c.h.b16 %v1502
        %v4419 = vunpack.c.l.b16 %v1503
        %v4420 = vunpack.c.h.b16 %v1503
        %v4421 = vunpack.c.l.b16 %v1504
        %v4422 = vunpack.c.h.b16 %v1504
        %v4423 = vunpack.c.l.b16 %v1505
        %v4424 = vunpack.c.h.b16 %v1505
        %v4425 = vunpack.c.l.b16 %v1506
        %v4426 = vunpack.c.h.b16 %v1506
        %v4427 = vunpack.c.l.b16 %v1507
        %v4428 = vunpack.c.h.b16 %v1507
        %v4429 = vunpack.c.l.b16 %v1508
        %v4430 = vunpack.c.h.b16 %v1508
        %v4431 = vunpack.c.l.b16 %v1509
        %v4432 = vunpack.c.h.b16 %v1509
        %v4433 = vunpack.c.l.b16 %v1510
        %v4434 = vunpack.c.h.b16 %v1510
        %v4435 = vunpack.c.l.b16 %v1511
        %v4436 = vunpack.c.h.b16 %v1511
        %v4437 = vunpack.c.l.b16 %v1512
        %v4438 = vunpack.c.h.b16 %v1512
        %v4439 = vunpack.c.l.b16 %v1513
        %v4440 = vunpack.c.h.b16 %v1513
        %v4441 = vunpack.c.l.b16 %v1514
        %v4442 = vunpack.c.h.b16 %v1514
        %v4443 = vunpack.c.l.b16 %v1515
        %v4444 = vunpack.c.h.b16 %v1515
        %v4445 = vunpack.c.l.b16 %v1516
        %v4446 = vunpack.c.h.b16 %v1516
        %v4447 = vunpack.c.l.b16 %v1517
        %v4448 = vunpack.c.h.b16 %v1517
        %v4449 = vunpack.c.l.b16 %v1518
        %v4450 = vunpack.c.h.b16 %v1518
        %v4451 = vunpack.c.l.b16 %v1519
        %v4452 = vunpack.c.h.b16 %v1519
        %v4453 = vunpack.c.l.b16 %v1520
        %v4454 = vunpack.c.h.b16 %v1520
        %v4455 = vunpack.c.l.b16 %v1521
        %v4456 = vunpack.c.h.b16 %v1521
        %v4457 = vunpack.c.l.b16 %v1522
        %v4458 = vunpack.c.h.b16 %v1522
        %v4459 = vunpack.c.l.b16 %v1523
        %v4460 = vunpack.c.h.b16 %v1523
        %v4461 = vunpack.c.l.b16 %v1524
        %v4462 = vunpack.c.h.b16 %v1524
        %v4463 = vunpack.c.l.b16 %v1525
        %v4464 = vunpack.c.h.b16 %v1525
        %v4465 = vunpack.c.l.b16 %v1526
        %v4466 = vunpack.c.h.b16 %v1526
        %v4467 = vunpack.c.l.b16 %v1527
        %v4468 = vunpack.c.h.b16 %v1527
        %v4469 = vunpack.c.l.b16 %v1528
        %v4470 = vunpack.c.h.b16 %v1528
        %v4471 = vunpack.c.l.b16 %v1529
        %v4472 = vunpack.c.h.b16 %v1529
        %v4473 = vunpack.c.l.b16 %v1530
        %v4474 = vunpack.c.h.b16 %v1530
        %v4475 = vunpack.c.l.b16 %v1531
        %v4476 = vunpack.c.h.b16 %v1531
        %v4477 = vunpack.c.l.b16 %v1532
        %v4478 = vunpack.c.h.b16 %v1532
        %v4479 = vunpack.c.l.b16 %v1533
        %v4480 = vunpack.c.h.b16 %v1533
        %v4481 = vunpack.c.l.b16 %v1534
        %v4482 = vunpack.c.h.b16 %v1534
        %v4483 = vunpack.c.l.b16 %v1535
        %v4484 = vunpack.c.h.b16 %v1535
        %v4485 = vunpack.c.l.b16 %v1536
        %v4486 = vunpack.c.h.b16 %v1536
        %v4487 = vunpack.c.l.b16 %v1537
        %v4488 = vunpack.c.h.b16 %v1537
        %v4489 = vunpack.c.l.b16 %v1538
        %v4490 = vunpack.c.h.b16 %v1538
        %v4491 = vunpack.c.l.b16 %v1539
        %v4492 = vunpack.c.h.b16 %v1539
        %v4493 = vunpack.c.l.b16 %v1540
        %v4494 = vunpack.c.h.b16 %v1540
        %v4495 = vunpack.c.l.b16 %v1541
        %v4496 = vunpack.c.h.b16 %v1541
        %v4497 = vunpack.c.l.b16 %v1542
        %v4498 = vunpack.c.h.b16 %v1542
        %v4499 = vunpack.c.l.b16 %v1543
        %v4500 = vunpack.c.h.b16 %v1543
        %v4501 = vunpack.c.l.b16 %v1544
        %v4502 = vunpack.c.h.b16 %v1544
        %v4503 = vunpack.c.l.b16 %v1545
        %v4504 = vunpack.c.h.b16 %v1545
        %v4505 = vunpack.c.l.b16 %v1546
        %v4506 = vunpack.c.h.b16 %v1546
        %v4507 = vunpack.c.l.b16 %v1547
        %v4508 = vunpack.c.h.b16 %v1547
        %v4509 = vunpack.c.l.b16 %v1548
        %v4510 = vunpack.c.h.b16 %v1548
        %v4511 = vunpack.c.l.b16 %v1549
        %v4512 = vunpack.c.h.b16 %v1549
        %v4513 = vunpack.c.l.b16 %v1550
        %v4514 = vunpack.c.h.b16 %v1550
        %v4515 = vunpack.c.l.b16 %v1551
        %v4516 = vunpack.c.h.b16 %v1551
        %v4517 = vunpack.c.l.b16 %v1552
        %v4518 = vunpack.c.h.b16 %v1552
        %v4519 = vunpack.c.l.b16 %v1553
        %v4520 = vunpack.c.h.b16 %v1553
        %v4521 = vunpack.c.l.b16 %v1554
        %v4522 = vunpack.c.h.b16 %v1554
        %v4523 = vunpack.c.l.b16 %v1555
        %v4524 = vunpack.c.h.b16 %v1555
        %v4525 = vunpack.c.l.b16 %v1556
        %v4526 = vunpack.c.h.b16 %v1556
        %v4527 = vunpack.c.l.b16 %v1557
        %v4528 = vunpack.c.h.b16 %v1557
        %v4529 = vunpack.c.l.b16 %v1558
        %v4530 = vunpack.c.h.b16 %v1558
        %v4531 = vunpack.c.l.b16 %v1559
        %v4532 = vunpack.c.h.b16 %v1559
        %v4533 = vunpack.c.l.b16 %v1560
        %v4534 = vunpack.c.h.b16 %v1560
        %v4535 = vunpack.c.l.b16 %v1561
        %v4536 = vunpack.c.h.b16 %v1561
        %v4537 = vunpack.c.l.b16 %v1562
        %v4538 = vunpack.c.h.b16 %v1562
        %v4539 = vunpack.c.l.b16 %v1563
        %v4540 = vunpack.c.h.b16 %v1563
        %v4541 = vunpack.c.l.b16 %v1564
        %v4542 = vunpack.c.h.b16 %v1564
        %v4543 = vunpack.c.l.b16 %v1565
        %v4544 = vunpack.c.h.b16 %v1565
        %v4545 = vunpack.c.l.b16 %v1566
        %v4546 = vunpack.c.h.b16 %v1566
        %v4547 = vunpack.c.l.b16 %v1567
        %v4548 = vunpack.c.h.b16 %v1567
        %v4549 = vunpack.c.l.b16 %v1568
        %v4550 = vunpack.c.h.b16 %v1568
        %v4551 = vunpack.c.l.b16 %v1569
        %v4552 = vunpack.c.h.b16 %v1569
        %v4553 = vunpack.c.l.b16 %v1570
        %v4554 = vunpack.c.h.b16 %v1570
        %v4555 = vunpack.c.l.b16 %v1571
        %v4556 = vunpack.c.h.b16 %v1571
        %v4557 = vunpack.c.l.b16 %v1572
        %v4558 = vunpack.c.h.b16 %v1572
        %v4559 = vunpack.c.l.b16 %v1573
        %v4560 = vunpack.c.h.b16 %v1573
        %v4561 = vunpack.c.l.b16 %v1574
        %v4562 = vunpack.c.h.b16 %v1574
        %v4563 = vunpack.c.l.b16 %v1575
        %v4564 = vunpack.c.h.b16 %v1575
        %v4565 = vunpack.c.l.b16 %v1576
        %v4566 = vunpack.c.h.b16 %v1576
        %v4567 = vunpack.c.l.b16 %v1577
        %v4568 = vunpack.c.h.b16 %v1577
        %v4569 = vunpack.c.l.b16 %v1578
        %v4570 = vunpack.c.h.b16 %v1578
        %v4571 = vunpack.c.l.b16 %v1579
        %v4572 = vunpack.c.h.b16 %v1579
        %v4573 = vunpack.c.l.b16 %v1580
        %v4574 = vunpack.c.h.b16 %v1580
        %v4575 = vunpack.c.l.b16 %v1581
        %v4576 = vunpack.c.h.b16 %v1581
        %v4577 = vunpack.c.l.b16 %v1582
        %v4578 = vunpack.c.h.b16 %v1582
        %v4579 = vunpack.c.l.b16 %v1583
        %v4580 = vunpack.c.h.b16 %v1583
        %v4581 = vunpack.c.l.b16 %v1584
        %v4582 = vunpack.c.h.b16 %v1584
        %v4583 = vunpack.c.l.b16 %v1585
        %v4584 = vunpack.c.h.b16 %v1585
        %v4585 = vunpack.c.l.b16 %v1586
        %v4586 = vunpack.c.h.b16 %v1586
        %v4587 = vunpack.c.l.b16 %v1587
        %v4588 = vunpack.c.h.b16 %v1587
        %v4589 = vunpack.c.l.b16 %v1588
        %v4590 = vunpack.c.h.b16 %v1588
        %v4591 = vunpack.c.l.b16 %v1589
        %v4592 = vunpack.c.h.b16 %v1589
        %v4593 = vunpack.c.l.b16 %v1590
        %v4594 = vunpack.c.h.b16 %v1590
        %v4595 = vunpack.c.l.b16 %v1591
        %v4596 = vunpack.c.h.b16 %v1591
        %v4597 = vunpack.c.l.b16 %v1592
        %v4598 = vunpack.c.h.b16 %v1592
        %v4599 = vunpack.c.l.b16 %v1593
        %v4600 = vunpack.c.h.b16 %v1593
        %v4601 = vunpack.c.l.b16 %v1594
        %v4602 = vunpack.c.h.b16 %v1594
        %v4603 = vunpack.c.l.b16 %v1595
        %v4604 = vunpack.c.h.b16 %v1595
        %v4605 = vunpack.c.l.b16 %v1596
        %v4606 = vunpack.c.h.b16 %v1596
        %v4607 = vunpack.c.l.b16 %v1597
        %v4608 = vunpack.c.h.b16 %v1597
        %v4609 = vunpack.c.l.b16 %v1598
        %v4610 = vunpack.c.h.b16 %v1598
        %v4611 = vunpack.c.l.b16 %v1599
        %v4612 = vunpack.c.h.b16 %v1599
        %v4613 = vunpack.c.l.b16 %v1600
        %v4614 = vunpack.c.h.b16 %v1600
        %v4615 = vunpack.c.l.b16 %v1601
        %v4616 = vunpack.c.h.b16 %v1601
        %v4617 = vunpack.c.l.b16 %v1602
        %v4618 = vunpack.c.h.b16 %v1602
        %v4619 = vunpack.c.l.b16 %v1603
        %v4620 = vunpack.c.h.b16 %v1603
        %v4621 = vunpack.c.l.b16 %v1604
        %v4622 = vunpack.c.h.b16 %v1604
        %v4623 = vunpack.c.l.b16 %v1605
        %v4624 = vunpack.c.h.b16 %v1605
        %v4625 = vunpack.c.l.b16 %v1606
        %v4626 = vunpack.c.h.b16 %v1606
        %v4627 = vunpack.c.l.b16 %v1607
        %v4628 = vunpack.c.h.b16 %v1607
        %v4629 = vunpack.c.l.b16 %v1608
        %v4630 = vunpack.c.h.b16 %v1608
        %v4631 = vunpack.c.l.b16 %v1609
        %v4632 = vunpack.c.h.b16 %v1609
        %v4633 = vunpack.c.l.b16 %v1610
        %v4634 = vunpack.c.h.b16 %v1610
        %v4635 = vunpack.c.l.b16 %v1611
        %v4636 = vunpack.c.h.b16 %v1611
        %v4637 = vunpack.c.l.b16 %v1612
        %v4638 = vunpack.c.h.b16 %v1612
        %v4639 = vunpack.c.l.b16 %v1613
        %v4640 = vunpack.c.h.b16 %v1613
        %v4641 = vunpack.c.l.b16 %v1614
        %v4642 = vunpack.c.h.b16 %v1614
        %v4643 = vunpack.c.l.b16 %v1615
        %v4644 = vunpack.c.h.b16 %v1615
        %v4645 = vunpack.c.l.b16 %v1616
        %v4646 = vunpack.c.h.b16 %v1616
        %v4647 = vunpack.c.l.b16 %v1617
        %v4648 = vunpack.c.h.b16 %v1617
        %v4649 = vunpack.c.l.b16 %v1618
        %v4650 = vunpack.c.h.b16 %v1618
        %v4651 = vunpack.c.l.b16 %v1619
        %v4652 = vunpack.c.h.b16 %v1619
        %v4653 = vunpack.c.l.b16 %v1620
        %v4654 = vunpack.c.h.b16 %v1620
        %v4655 = vunpack.c.l.b16 %v1621
        %v4656 = vunpack.c.h.b16 %v1621
        %v4657 = vunpack.c.l.b16 %v1622
        %v4658 = vunpack.c.h.b16 %v1622
        %v4659 = vunpack.c.l.b16 %v1623
        %v4660 = vunpack.c.h.b16 %v1623
        %v4661 = vunpack.c.l.b16 %v1624
        %v4662 = vunpack.c.h.b16 %v1624
        %v4663 = vunpack.c.l.b16 %v1625
        %v4664 = vunpack.c.h.b16 %v1625
        %v4665 = vunpack.c.l.b16 %v1626
        %v4666 = vunpack.c.h.b16 %v1626
        %v4667 = vunpack.c.l.b16 %v1627
        %v4668 = vunpack.c.h.b16 %v1627
        %v4669 = vunpack.c.l.b16 %v1628
        %v4670 = vunpack.c.h.b16 %v1628
        %v4671 = vunpack.c.l.b16 %v1629
        %v4672 = vunpack.c.h.b16 %v1629
        %v4673 = vunpack.c.l.b16 %v1630
        %v4674 = vunpack.c.h.b16 %v1630
        %v4675 = vunpack.c.l.b16 %v1631
        %v4676 = vunpack.c.h.b16 %v1631
        %v4677 = vunpack.c.l.b16 %v1632
        %v4678 = vunpack.c.h.b16 %v1632
        %v4679 = vunpack.c.l.b16 %v1633
        %v4680 = vunpack.c.h.b16 %v1633
        %v4681 = vunpack.c.l.b16 %v1634
        %v4682 = vunpack.c.h.b16 %v1634
        %v4683 = vunpack.c.l.b16 %v1635
        %v4684 = vunpack.c.h.b16 %v1635
        %v4685 = vunpack.c.l.b16 %v1636
        %v4686 = vunpack.c.h.b16 %v1636
        %v4687 = vunpack.c.l.b16 %v1637
        %v4688 = vunpack.c.h.b16 %v1637
        %v4689 = vunpack.c.l.b16 %v1638
        %v4690 = vunpack.c.h.b16 %v1638
        %v4691 = vunpack.c.l.b16 %v1639
        %v4692 = vunpack.c.h.b16 %v1639
        %v4693 = vunpack.c.l.b16 %v1640
        %v4694 = vunpack.c.h.b16 %v1640
        %v4695 = vunpack.c.l.b16 %v1641
        %v4696 = vunpack.c.h.b16 %v1641
        %v4697 = vunpack.c.l.b16 %v1642
        %v4698 = vunpack.c.h.b16 %v1642
        %v4699 = vunpack.c.l.b16 %v1643
        %v4700 = vunpack.c.h.b16 %v1643
        %v4701 = vunpack.c.l.b16 %v1644
        %v4702 = vunpack.c.h.b16 %v1644
        %v4703 = vunpack.c.l.b16 %v1645
        %v4704 = vunpack.c.h.b16 %v1645
        %v4705 = vunpack.c.l.b16 %v1646
        %v4706 = vunpack.c.h.b16 %v1646
        %v4707 = vunpack.c.l.b16 %v1647
        %v4708 = vunpack.c.h.b16 %v1647
        %v4709 = vunpack.c.l.b16 %v1648
        %v4710 = vunpack.c.h.b16 %v1648
        %v4711 = vunpack.c.l.b16 %v1649
        %v4712 = vunpack.c.h.b16 %v1649
        %v4713 = vunpack.c.l.b16 %v1650
        %v4714 = vunpack.c.h.b16 %v1650
        %v4715 = vunpack.c.l.b16 %v1651
        %v4716 = vunpack.c.h.b16 %v1651
        %v4717 = vunpack.c.l.b16 %v1652
        %v4718 = vunpack.c.h.b16 %v1652
        %v4719 = vunpack.c.l.b16 %v1653
        %v4720 = vunpack.c.h.b16 %v1653
        %v4721 = vunpack.c.l.b16 %v1654
        %v4722 = vunpack.c.h.b16 %v1654
        %v4723 = vunpack.c.l.b16 %v1655
        %v4724 = vunpack.c.h.b16 %v1655
        %v4725 = vunpack.c.l.b16 %v1656
        %v4726 = vunpack.c.h.b16 %v1656
        %v4727 = vunpack.c.l.b16 %v1657
        %v4728 = vunpack.c.h.b16 %v1657
        %v4729 = vunpack.c.l.b16 %v1658
        %v4730 = vunpack.c.h.b16 %v1658
        %v4731 = vunpack.c.l.b16 %v1659
        %v4732 = vunpack.c.h.b16 %v1659
        %v4733 = vunpack.c.l.b16 %v1660
        %v4734 = vunpack.c.h.b16 %v1660
        %v4735 = vunpack.c.l.b16 %v1661
        %v4736 = vunpack.c.h.b16 %v1661
        %v4737 = vunpack.c.l.b16 %v1662
        %v4738 = vunpack.c.h.b16 %v1662
        %v4739 = vunpack.c.l.b16 %v1663
        %v4740 = vunpack.c.h.b16 %v1663
        %v4741 = vunpack.c.l.b16 %v1664
        %v4742 = vunpack.c.h.b16 %v1664
        %v4743 = vunpack.c.l.b16 %v1665
        %v4744 = vunpack.c.h.b16 %v1665
        %v4745 = vunpack.c.l.b16 %v1666
        %v4746 = vunpack.c.h.b16 %v1666
        %v4747 = vunpack.c.l.b16 %v1667
        %v4748 = vunpack.c.h.b16 %v1667
        %v4749 = vunpack.c.l.b16 %v1668
        %v4750 = vunpack.c.h.b16 %v1668
        %v4751 = vunpack.c.l.b16 %v1669
        %v4752 = vunpack.c.h.b16 %v1669
        %v4753 = vunpack.c.l.b16 %v1670
        %v4754 = vunpack.c.h.b16 %v1670
        %v4755 = vunpack.c.l.b16 %v1671
        %v4756 = vunpack.c.h.b16 %v1671
        %v4757 = vunpack.c.l.b16 %v1672
        %v4758 = vunpack.c.h.b16 %v1672
        %v4759 = vunpack.c.l.b16 %v1673
        %v4760 = vunpack.c.h.b16 %v1673
        %v4761 = vunpack.c.l.b16 %v1674
        %v4762 = vunpack.c.h.b16 %v1674
        %v4763 = vunpack.c.l.b16 %v1675
        %v4764 = vunpack.c.h.b16 %v1675
        %v4765 = vunpack.c.l.b16 %v1676
        %v4766 = vunpack.c.h.b16 %v1676
        %v4767 = vunpack.c.l.b16 %v1677
        %v4768 = vunpack.c.h.b16 %v1677
        %v4769 = vunpack.c.l.b16 %v1678
        %v4770 = vunpack.c.h.b16 %v1678
        %v4771 = vunpack.c.l.b16 %v1679
        %v4772 = vunpack.c.h.b16 %v1679
        %v4773 = vunpack.c.l.b16 %v1680
        %v4774 = vunpack.c.h.b16 %v1680
        %v4775 = vunpack.c.l.b16 %v1681
        %v4776 = vunpack.c.h.b16 %v1681
        %v4777 = vunpack.c.l.b16 %v1682
        %v4778 = vunpack.c.h.b16 %v1682
        %v4779 = vunpack.c.l.b16 %v1683
        %v4780 = vunpack.c.h.b16 %v1683
        %v4781 = vunpack.c.l.b16 %v1684
        %v4782 = vunpack.c.h.b16 %v1684
        %v4783 = vunpack.c.l.b16 %v1685
        %v4784 = vunpack.c.h.b16 %v1685
        %v4785 = vunpack.c.l.b16 %v1686
        %v4786 = vunpack.c.h.b16 %v1686
        %v4787 = vunpack.c.l.b16 %v1687
        %v4788 = vunpack.c.h.b16 %v1687
        %v4789 = vunpack.c.l.b16 %v1688
        %v4790 = vunpack.c.h.b16 %v1688
        %v4791 = vunpack.c.l.b16 %v1689
        %v4792 = vunpack.c.h.b16 %v1689
        %v4793 = vunpack.c.l.b16 %v1690
        %v4794 = vunpack.c.h.b16 %v1690
        %v4795 = vunpack.c.l.b16 %v1691
        %v4796 = vunpack.c.h.b16 %v1691
        %v4797 = vunpack.c.l.b16 %v1692
        %v4798 = vunpack.c.h.b16 %v1692
        %v4799 = vunpack.c.l.b16 %v1693
        %v4800 = vunpack.c.h.b16 %v1693
        %v4801 = vunpack.c.l.b16 %v1694
        %v4802 = vunpack.c.h.b16 %v1694
        %v4803 = vunpack.c.l.b16 %v1695
        %v4804 = vunpack.c.h.b16 %v1695
        %v4805 = vunpack.c.l.b16 %v1696
        %v4806 = vunpack.c.h.b16 %v1696
        %v4807 = vunpack.c.l.b16 %v1697
        %v4808 = vunpack.c.h.b16 %v1697
        %v4809 = vunpack.c.l.b16 %v1698
        %v4810 = vunpack.c.h.b16 %v1698
        %v4811 = vunpack.c.l.b16 %v1699
        %v4812 = vunpack.c.h.b16 %v1699
        %v4813 = vunpack.c.l.b16 %v1700
        %v4814 = vunpack.c.h.b16 %v1700
        %v4815 = vunpack.c.l.b16 %v1701
        %v4816 = vunpack.c.h.b16 %v1701
        %v4817 = vunpack.c.l.b16 %v1702
        %v4818 = vunpack.c.h.b16 %v1702
        %v4819 = vunpack.c.l.b16 %v1703
        %v4820 = vunpack.c.h.b16 %v1703
        %v4821 = vunpack.c.l.b16 %v1704
        %v4822 = vunpack.c.h.b16 %v1704
        %v4823 = vunpack.c.l.b16 %v1705
        %v4824 = vunpack.c.h.b16 %v1705
        %v4825 = vunpack.c.l.b16 %v1706
        %v4826 = vunpack.c.h.b16 %v1706
        %v4827 = vunpack.c.l.b16 %v1707
        %v4828 = vunpack.c.h.b16 %v1707
        %v4829 = vunpack.c.l.b16 %v1708
        %v4830 = vunpack.c.h.b16 %v1708
        %v4831 = vunpack.c.l.b16 %v1709
        %v4832 = vunpack.c.h.b16 %v1709
        %v4833 = vunpack.c.l.b16 %v1710
        %v4834 = vunpack.c.h.b16 %v1710
        %v4835 = vunpack.c.l.b16 %v1711
        %v4836 = vunpack.c.h.b16 %v1711
        %v4837 = vunpack.c.l.b16 %v1712
        %v4838 = vunpack.c.h.b16 %v1712
        %v4839 = vunpack.c.l.b16 %v1713
        %v4840 = vunpack.c.h.b16 %v1713
        %v4841 = vunpack.c.l.b16 %v1714
        %v4842 = vunpack.c.h.b16 %v1714
        %v4843 = vunpack.c.l.b16 %v1715
        %v4844 = vunpack.c.h.b16 %v1715
        %v4845 = vunpack.c.l.b16 %v1716
        %v4846 = vunpack.c.h.b16 %v1716
        %v4847 = vunpack.c.l.b16 %v1717
        %v4848 = vunpack.c.h.b16 %v1717
        %v4849 = vunpack.c.l.b16 %v1718
        %v4850 = vunpack.c.h.b16 %v1718
        %v4851 = vunpack.c.l.b16 %v1719
        %v4852 = vunpack.c.h.b16 %v1719
        %v4853 = vunpack.c.l.b16 %v1720
        %v4854 = vunpack.c.h.b16 %v1720
        %v4855 = vunpack.c.l.b16 %v1721
        %v4856 = vunpack.c.h.b16 %v1721
        %v4857 = vunpack.c.l.b16 %v1722
        %v4858 = vunpack.c.h.b16 %v1722
        %v4859 = vunpack.c.l.b16 %v1723
        %v4860 = vunpack.c.h.b16 %v1723
        %v4861 = vunpack.c.l.b16 %v1724
        %v4862 = vunpack.c.h.b16 %v1724
        %v4863 = vunpack.c.l.b16 %v1725
        %v4864 = vunpack.c.h.b16 %v1725
        %v4865 = vunpack.c.l.b16 %v1726
        %v4866 = vunpack.c.h.b16 %v1726
        %v4867 = vunpack.c.l.b16 %v1727
        %v4868 = vunpack.c.h.b16 %v1727
        %v4869 = vunpack.c.l.b16 %v1728
        %v4870 = vunpack.c.h.b16 %v1728
        %v4871 = vunpack.c.l.b16 %v1729
        %v4872 = vunpack.c.h.b16 %v1729
        %v4873 = vunpack.c.l.b16 %v1730
        %v4874 = vunpack.c.h.b16 %v1730
        %v4875 = vunpack.c.l.b16 %v1731
        %v4876 = vunpack.c.h.b16 %v1731
        %v4877 = vunpack.c.l.b16 %v1732
        %v4878 = vunpack.c.h.b16 %v1732
        %v4879 = vunpack.c.l.b16 %v1733
        %v4880 = vunpack.c.h.b16 %v1733
        %v4881 = vunpack.c.l.b16 %v1734
        %v4882 = vunpack.c.h.b16 %v1734
        %v4883 = vunpack.c.l.b16 %v1735
        %v4884 = vunpack.c.h.b16 %v1735
        %v4885 = vunpack.c.l.b16 %v1736
        %v4886 = vunpack.c.h.b16 %v1736
        %v4887 = vunpack.c.l.b16 %v1737
        %v4888 = vunpack.c.h.b16 %v1737
        %v4889 = vunpack.c.l.b16 %v1738
        %v4890 = vunpack.c.h.b16 %v1738
        %v4891 = vunpack.c.l.b16 %v1739
        %v4892 = vunpack.c.h.b16 %v1739
        %v4893 = vunpack.c.l.b16 %v1740
        %v4894 = vunpack.c.h.b16 %v1740
        %v4895 = vunpack.c.l.b16 %v1741
        %v4896 = vunpack.c.h.b16 %v1741
        %v4897 = vunpack.c.l.b16 %v1742
        %v4898 = vunpack.c.h.b16 %v1742
        %v4899 = vunpack.c.l.b16 %v1743
        %v4900 = vunpack.c.h.b16 %v1743
        %v4901 = vunpack.c.l.b16 %v1744
        %v4902 = vunpack.c.h.b16 %v1744
        %v4903 = vunpack.c.l.b16 %v1745
        %v4904 = vunpack.c.h.b16 %v1745
        %v4905 = vunpack.c.l.b16 %v1746
        %v4906 = vunpack.c.h.b16 %v1746
        %v4907 = vunpack.c.l.b16 %v1747
        %v4908 = vunpack.c.h.b16 %v1747
        %v4909 = vunpack.c.l.b16 %v1748
        %v4910 = vunpack.c.h.b16 %v1748
        %v4911 = vunpack.c.l.b16 %v1749
        %v4912 = vunpack.c.h.b16 %v1749
        %v4913 = vunpack.c.l.b16 %v1750
        %v4914 = vunpack.c.h.b16 %v1750
        %v4915 = vunpack.c.l.b16 %v1751
        %v4916 = vunpack.c.h.b16 %v1751
        %v4917 = vunpack.c.l.b16 %v1752
        %v4918 = vunpack.c.h.b16 %v1752
        %v4919 = vunpack.c.l.b16 %v1753
        %v4920 = vunpack.c.h.b16 %v1753
        %v4921 = vunpack.c.l.b16 %v1754
        %v4922 = vunpack.c.h.b16 %v1754
        %v4923 = vunpack.c.l.b16 %v1755
        %v4924 = vunpack.c.h.b16 %v1755
        %v4925 = vunpack.c.l.b16 %v1756
        %v4926 = vunpack.c.h.b16 %v1756
        %v4927 = vunpack.c.l.b16 %v1757
        %v4928 = vunpack.c.h.b16 %v1757
        %v4929 = vunpack.c.l.b16 %v1758
        %v4930 = vunpack.c.h.b16 %v1758
        %v4931 = vunpack.c.l.b16 %v1759
        %v4932 = vunpack.c.h.b16 %v1759
        %v4933 = vunpack.c.l.b16 %v1760
        %v4934 = vunpack.c.h.b16 %v1760
        %v4935 = vunpack.c.l.b16 %v1761
        %v4936 = vunpack.c.h.b16 %v1761
        %v4937 = vunpack.c.l.b16 %v1762
        %v4938 = vunpack.c.h.b16 %v1762
        %v4939 = vunpack.c.l.b16 %v1763
        %v4940 = vunpack.c.h.b16 %v1763
        %v4941 = vunpack.c.l.b16 %v1764
        %v4942 = vunpack.c.h.b16 %v1764
        %v4943 = vunpack.c.l.b16 %v1765
        %v4944 = vunpack.c.h.b16 %v1765
        %v4945 = vunpack.c.l.b16 %v1766
        %v4946 = vunpack.c.h.b16 %v1766
        %v4947 = vunpack.c.l.b16 %v1767
        %v4948 = vunpack.c.h.b16 %v1767
        %v4949 = vunpack.c.l.b16 %v1768
        %v4950 = vunpack.c.h.b16 %v1768
        %v4951 = vunpack.c.l.b16 %v1769
        %v4952 = vunpack.c.h.b16 %v1769
        %v4953 = vunpack.c.l.b16 %v1770
        %v4954 = vunpack.c.h.b16 %v1770
        %v4955 = vunpack.c.l.b16 %v1771
        %v4956 = vunpack.c.h.b16 %v1771
        %v4957 = vunpack.c.l.b16 %v1772
        %v4958 = vunpack.c.h.b16 %v1772
        %v4959 = vunpack.c.l.b16 %v1773
        %v4960 = vunpack.c.h.b16 %v1773
        %v4961 = vunpack.c.l.b16 %v1774
        %v4962 = vunpack.c.h.b16 %v1774
        %v4963 = vunpack.c.l.b16 %v1775
        %v4964 = vunpack.c.h.b16 %v1775
        %v4965 = vunpack.c.l.b16 %v1776
        %v4966 = vunpack.c.h.b16 %v1776
        %v4967 = vunpack.c.l.b16 %v1777
        %v4968 = vunpack.c.h.b16 %v1777
        %v4969 = vunpack.c.l.b16 %v1778
        %v4970 = vunpack.c.h.b16 %v1778
        %v4971 = vunpack.c.l.b16 %v1779
        %v4972 = vunpack.c.h.b16 %v1779
        %v4973 = vunpack.c.l.b16 %v1780
        %v4974 = vunpack.c.h.b16 %v1780
        %v4975 = vunpack.c.l.b16 %v1781
        %v4976 = vunpack.c.h.b16 %v1781
        %v4977 = vunpack.c.l.b16 %v1782
        %v4978 = vunpack.c.h.b16 %v1782
        %v4979 = vunpack.c.l.b16 %v1783
        %v4980 = vunpack.c.h.b16 %v1783
        %v4981 = vunpack.c.l.b16 %v1784
        %v4982 = vunpack.c.h.b16 %v1784
        %v4983 = vunpack.c.l.b16 %v1785
        %v4984 = vunpack.c.h.b16 %v1785
        %v4985 = vunpack.c.l.b16 %v1786
        %v4986 = vunpack.c.h.b16 %v1786
        %v4987 = vunpack.c.l.b16 %v1787
        %v4988 = vunpack.c.h.b16 %v1787
        %v4989 = vunpack.c.l.b16 %v1788
        %v4990 = vunpack.c.h.b16 %v1788
        %v4991 = vunpack.c.l.b16 %v1789
        %v4992 = vunpack.c.h.b16 %v1789
        %v4993 = vunpack.c.l.b16 %v1790
        %v4994 = vunpack.c.h.b16 %v1790
        %v4995 = vunpack.c.l.b16 %v1791
        %v4996 = vunpack.c.h.b16 %v1791
        %v4997 = vunpack.c.l.b16 %v1792
        %v4998 = vunpack.c.h.b16 %v1792
        %v4999 = vunpack.c.l.b16 %v1793
        %v5000 = vunpack.c.h.b16 %v1793
        %v5001 = vunpack.c.l.b16 %v1794
        %v5002 = vunpack.c.h.b16 %v1794
        %v5003 = vunpack.c.l.b16 %v1795
        %v5004 = vunpack.c.h.b16 %v1795
        %v5005 = vunpack.c.l.b16 %v1796
        %v5006 = vunpack.c.h.b16 %v1796
        %v5007 = vunpack.c.l.b16 %v1797
        %v5008 = vunpack.c.h.b16 %v1797
        %v5009 = vunpack.c.l.b16 %v1798
        %v5010 = vunpack.c.h.b16 %v1798
        %v5011 = vunpack.c.l.b16 %v1799
        %v5012 = vunpack.c.h.b16 %v1799
        %v5013 = vunpack.c.l.b16 %v1800
        %v5014 = vunpack.c.h.b16 %v1800
        %v5015 = vunpack.c.l.b16 %v1801
        %v5016 = vunpack.c.h.b16 %v1801
        %v5017 = vunpack.c.l.b16 %v1802
        %v5018 = vunpack.c.h.b16 %v1802
        %v5019 = vunpack.c.l.b16 %v1803
        %v5020 = vunpack.c.h.b16 %v1803
        %v5021 = vunpack.c.l.b16 %v1804
        %v5022 = vunpack.c.h.b16 %v1804
        %v5023 = vunpack.c.l.b16 %v1805
        %v5024 = vunpack.c.h.b16 %v1805
        %v5025 = vunpack.c.l.b16 %v1806
        %v5026 = vunpack.c.h.b16 %v1806
        %v5027 = vunpack.c.l.b16 %v1807
        %v5028 = vunpack.c.h.b16 %v1807
        %v5029 = vunpack.c.l.b16 %v1808
        %v5030 = vunpack.c.h.b16 %v1808
        %v5031 = vunpack.c.l.b16 %v1809
        %v5032 = vunpack.c.h.b16 %v1809
        %v5033 = vunpack.c.l.b16 %v1810
        %v5034 = vunpack.c.h.b16 %v1810
        %v5035 = vunpack.c.l.b16 %v1811
        %v5036 = vunpack.c.h.b16 %v1811
        %v5037 = vunpack.c.l.b16 %v1812
        %v5038 = vunpack.c.h.b16 %v1812
        %v5039 = vunpack.c.l.b16 %v1813
        %v5040 = vunpack.c.h.b16 %v1813
        %v5041 = vunpack.c.l.b16 %v1814
        %v5042 = vunpack.c.h.b16 %v1814
        %v5043 = vunpack.c.l.b16 %v1815
        %v5044 = vunpack.c.h.b16 %v1815
        %v5045 = vunpack.c.l.b16 %v1816
        %v5046 = vunpack.c.h.b16 %v1816
        %v5047 = vunpack.c.l.b16 %v1817
        %v5048 = vunpack.c.h.b16 %v1817
        %v5049 = vunpack.c.l.b16 %v1818
        %v5050 = vunpack.c.h.b16 %v1818
        %v5051 = vunpack.c.l.b16 %v1819
        %v5052 = vunpack.c.h.b16 %v1819
        %v5053 = vunpack.c.l.b16 %v1820
        %v5054 = vunpack.c.h.b16 %v1820
        %v5055 = vunpack.c.l.b16 %v1821
        %v5056 = vunpack.c.h.b16 %v1821
        %v5057 = vunpack.c.l.b16 %v1822
        %v5058 = vunpack.c.h.b16 %v1822
        %v5059 = vunpack.c.l.b16 %v1823
        %v5060 = vunpack.c.h.b16 %v1823
        %v5061 = vunpack.c.l.b16 %v1824
        %v5062 = vunpack.c.h.b16 %v1824
        %v5063 = vunpack.c.l.b16 %v1825
        %v5064 = vunpack.c.h.b16 %v1825
        %v5065 = vunpack.c.l.b16 %v1826
        %v5066 = vunpack.c.h.b16 %v1826
        %v5067 = vunpack.c.l.b16 %v1827
        %v5068 = vunpack.c.h.b16 %v1827
        %v5069 = vunpack.c.l.b16 %v1828
        %v5070 = vunpack.c.h.b16 %v1828
        %v5071 = vunpack.c.l.b16 %v1829
        %v5072 = vunpack.c.h.b16 %v1829
        %v5073 = vunpack.c.l.b16 %v1830
        %v5074 = vunpack.c.h.b16 %v1830
        %v5075 = vunpack.c.l.b16 %v1831
        %v5076 = vunpack.c.h.b16 %v1831
        %v5077 = vunpack.c.l.b16 %v1832
        %v5078 = vunpack.c.h.b16 %v1832
        %v5079 = vunpack.c.l.b16 %v1833
        %v5080 = vunpack.c.h.b16 %v1833
        %v5081 = vunpack.c.l.b16 %v1834
        %v5082 = vunpack.c.h.b16 %v1834
        %v5083 = vunpack.c.l.b16 %v1835
        %v5084 = vunpack.c.h.b16 %v1835
        %v5085 = vunpack.c.l.b16 %v1836
        %v5086 = vunpack.c.h.b16 %v1836
        %v5087 = vunpack.c.l.b16 %v1837
        %v5088 = vunpack.c.h.b16 %v1837
        %v5089 = vunpack.c.l.b16 %v1838
        %v5090 = vunpack.c.h.b16 %v1838
        %v5091 = vunpack.c.l.b16 %v1839
        %v5092 = vunpack.c.h.b16 %v1839
        %v5093 = vunpack.c.l.b16 %v1840
        %v5094 = vunpack.c.h.b16 %v1840
        %v5095 = vunpack.c.l.b16 %v1841
        %v5096 = vunpack.c.h.b16 %v1841
        %v5097 = vunpack.c.l.b16 %v1842
        %v5098 = vunpack.c.h.b16 %v1842
        %v5099 = vunpack.c.l.b16 %v1843
        %v5100 = vunpack.c.h.b16 %v1843
        %v5101 = vunpack.c.l.b16 %v1844
        %v5102 = vunpack.c.h.b16 %v1844
        %v5103 = vunpack.c.l.b16 %v1845
        %v5104 = vunpack.c.h.b16 %v1845
        %v5105 = vunpack.c.l.b16 %v1846
        %v5106 = vunpack.c.h.b16 %v1846
        %v5107 = vunpack.c.l.b16 %v1847
        %v5108 = vunpack.c.h.b16 %v1847
        %v5109 = vunpack.c.l.b16 %v1848
        %v5110 = vunpack.c.h.b16 %v1848
        %v5111 = vunpack.c.l.b16 %v1849
        %v5112 = vunpack.c.h.b16 %v1849
        %v5113 = vunpack.c.l.b16 %v1850
        %v5114 = vunpack.c.h.b16 %v1850
        %v5115 = vunpack.c.l.b16 %v1851
        %v5116 = vunpack.c.h.b16 %v1851
        %v5117 = vunpack.c.l.b16 %v1852
        %v5118 = vunpack.c.h.b16 %v1852
        %v5119 = vunpack.c.l.b16 %v1853
        %v5120 = vunpack.c.h.b16 %v1853
        %v5121 = vunpack.c.l.b16 %v1854
        %v5122 = vunpack.c.h.b16 %v1854
        %v5123 = vunpack.c.l.b16 %v1855
        %v5124 = vunpack.c.h.b16 %v1855
        %v5125 = vunpack.c.l.b16 %v1856
        %v5126 = vunpack.c.h.b16 %v1856
        %v5127 = vunpack.c.l.b16 %v1857
        %v5128 = vunpack.c.h.b16 %v1857
        %v5129 = vunpack.c.l.b16 %v1858
        %v5130 = vunpack.c.h.b16 %v1858
        %v5131 = vunpack.c.l.b16 %v1859
        %v5132 = vunpack.c.h.b16 %v1859
        %v5133 = vunpack.c.l.b16 %v1860
        %v5134 = vunpack.c.h.b16 %v1860
        %v5135 = vunpack.c.l.b16 %v1861
        %v5136 = vunpack.c.h.b16 %v1861
        %v5137 = vunpack.c.l.b16 %v1862
        %v5138 = vunpack.c.h.b16 %v1862
        %v5139 = vunpack.c.l.b16 %v1863
        %v5140 = vunpack.c.h.b16 %v1863
        %v5141 = vunpack.c.l.b16 %v1864
        %v5142 = vunpack.c.h.b16 %v1864
        %v5143 = vunpack.c.l.b16 %v1865
        %v5144 = vunpack.c.h.b16 %v1865
        %v5145 = vunpack.c.l.b16 %v1866
        %v5146 = vunpack.c.h.b16 %v1866
        %v5147 = vunpack.c.l.b16 %v1867
        %v5148 = vunpack.c.h.b16 %v1867
        %v5149 = vunpack.c.l.b16 %v1868
        %v5150 = vunpack.c.h.b16 %v1868
        %v5151 = vunpack.c.l.b16 %v1869
        %v5152 = vunpack.c.h.b16 %v1869
        %v5153 = vunpack.c.l.b16 %v1870
        %v5154 = vunpack.c.h.b16 %v1870
        %v5155 = vunpack.c.l.b16 %v1871
        %v5156 = vunpack.c.h.b16 %v1871
        %v5157 = vunpack.c.l.b16 %v1872
        %v5158 = vunpack.c.h.b16 %v1872
        %v5159 = vunpack.c.l.b16 %v1873
        %v5160 = vunpack.c.h.b16 %v1873
        %v5161 = vunpack.c.l.b16 %v1874
        %v5162 = vunpack.c.h.b16 %v1874
        %v5163 = vunpack.c.l.b16 %v1875
        %v5164 = vunpack.c.h.b16 %v1875
        %v5165 = vunpack.c.l.b16 %v1876
        %v5166 = vunpack.c.h.b16 %v1876
        %v5167 = vunpack.c.l.b16 %v1877
        %v5168 = vunpack.c.h.b16 %v1877
        %v5169 = vunpack.c.l.b16 %v1878
        %v5170 = vunpack.c.h.b16 %v1878
        %v5171 = vunpack.c.l.b16 %v1879
        %v5172 = vunpack.c.h.b16 %v1879
        %v5173 = vunpack.c.l.b16 %v1880
        %v5174 = vunpack.c.h.b16 %v1880
        %v5175 = vunpack.c.l.b16 %v1881
        %v5176 = vunpack.c.h.b16 %v1881
        %v5177 = vunpack.c.l.b16 %v1882
        %v5178 = vunpack.c.h.b16 %v1882
        %v5179 = vunpack.c.l.b16 %v1883
        %v5180 = vunpack.c.h.b16 %v1883
        %v5181 = vunpack.c.l.b16 %v1884
        %v5182 = vunpack.c.h.b16 %v1884
        %v5183 = vunpack.c.l.b16 %v1885
        %v5184 = vunpack.c.h.b16 %v1885
        %v5185 = vunpack.c.l.b16 %v1886
        %v5186 = vunpack.c.h.b16 %v1886
        %v5187 = vunpack.c.l.b16 %v1887
        %v5188 = vunpack.c.h.b16 %v1887
        %v5189 = vunpack.c.l.b16 %v1888
        %v5190 = vunpack.c.h.b16 %v1888
        %v5191 = vunpack.c.l.b16 %v1889
        %v5192 = vunpack.c.h.b16 %v1889
        %v5193 = vunpack.c.l.b16 %v1890
        %v5194 = vunpack.c.h.b16 %v1890
        %v5195 = vunpack.c.l.b16 %v1891
        %v5196 = vunpack.c.h.b16 %v1891
        %v5197 = vunpack.c.l.b16 %v1892
        %v5198 = vunpack.c.h.b16 %v1892
        %v5199 = vunpack.c.l.b16 %v1893
        %v5200 = vunpack.c.h.b16 %v1893
        %v5201 = vunpack.c.l.b16 %v1894
        %v5202 = vunpack.c.h.b16 %v1894
        %v5203 = vunpack.c.l.b16 %v1895
        %v5204 = vunpack.c.h.b16 %v1895
        %v5205 = vunpack.c.l.b16 %v1896
        %v5206 = vunpack.c.h.b16 %v1896
        %v5207 = vunpack.c.l.b16 %v1897
        %v5208 = vunpack.c.h.b16 %v1897
        %v5209 = vunpack.c.l.b16 %v1898
        %v5210 = vunpack.c.h.b16 %v1898
        %v5211 = vunpack.c.l.b16 %v1899
        %v5212 = vunpack.c.h.b16 %v1899
        %v5213 = vunpack.c.l.b16 %v1900
        %v5214 = vunpack.c.h.b16 %v1900
        %v5215 = vunpack.c.l.b16 %v1901
        %v5216 = vunpack.c.h.b16 %v1901
        %v5217 = vunpack.c.l.b16 %v1902
        %v5218 = vunpack.c.h.b16 %v1902
        %v5219 = vunpack.c.l.b16 %v1903
        %v5220 = vunpack.c.h.b16 %v1903
        %v5221 = vunpack.c.l.b16 %v1904
        %v5222 = vunpack.c.h.b16 %v1904
        %v5223 = vunpack.c.l.b16 %v1905
        %v5224 = vunpack.c.h.b16 %v1905
        %v5225 = vunpack.c.l.b16 %v1906
        %v5226 = vunpack.c.h.b16 %v1906
        %v5227 = vunpack.c.l.b16 %v1907
        %v5228 = vunpack.c.h.b16 %v1907
        %v5229 = vunpack.c.l.b16 %v1908
        %v5230 = vunpack.c.h.b16 %v1908
        %v5231 = vunpack.c.l.b16 %v1909
        %v5232 = vunpack.c.h.b16 %v1909
        %v5233 = vunpack.c.l.b16 %v1910
        %v5234 = vunpack.c.h.b16 %v1910
        %v5235 = vunpack.c.l.b16 %v1911
        %v5236 = vunpack.c.h.b16 %v1911
        %v5237 = vunpack.c.l.b16 %v1912
        %v5238 = vunpack.c.h.b16 %v1912
        %v5239 = vunpack.c.l.b16 %v1913
        %v5240 = vunpack.c.h.b16 %v1913
        %v5241 = vunpack.c.l.b16 %v1914
        %v5242 = vunpack.c.h.b16 %v1914
        %v5243 = vunpack.c.l.b16 %v1915
        %v5244 = vunpack.c.h.b16 %v1915
        %v5245 = vunpack.c.l.b16 %v1916
        %v5246 = vunpack.c.h.b16 %v1916
        %v5247 = vunpack.c.l.b16 %v1917
        %v5248 = vunpack.c.h.b16 %v1917
        %v5249 = vunpack.c.l.b16 %v1918
        %v5250 = vunpack.c.h.b16 %v1918
        %v5251 = vunpack.c.l.b16 %v1919
        %v5252 = vunpack.c.h.b16 %v1919
        %v5253 = vunpack.c.l.b16 %v1920
        %v5254 = vunpack.c.h.b16 %v1920
        %v5255 = vunpack.c.l.b16 %v1921
        %v5256 = vunpack.c.h.b16 %v1921
        %v5257 = vunpack.c.l.b16 %v1922
        %v5258 = vunpack.c.h.b16 %v1922
        %v5259 = vunpack.c.l.b16 %v1923
        %v5260 = vunpack.c.h.b16 %v1923
        %v5261 = vunpack.c.l.b16 %v1924
        %v5262 = vunpack.c.h.b16 %v1924
        %v5263 = vunpack.c.l.b16 %v1925
        %v5264 = vunpack.c.h.b16 %v1925
        %v5265 = vunpack.c.l.b16 %v1926
        %v5266 = vunpack.c.h.b16 %v1926
        %v5267 = vunpack.c.l.b16 %v1927
        %v5268 = vunpack.c.h.b16 %v1927
        %v5269 = vunpack.c.l.b16 %v1928
        %v5270 = vunpack.c.h.b16 %v1928
        %v5271 = vunpack.c.l.b16 %v1929
        %v5272 = vunpack.c.h.b16 %v1929
        %v5273 = vunpack.c.l.b16 %v1930
        %v5274 = vunpack.c.h.b16 %v1930
        %v5275 = vunpack.c.l.b16 %v1931
        %v5276 = vunpack.c.h.b16 %v1931
        %v5277 = vunpack.c.l.b16 %v1932
        %v5278 = vunpack.c.h.b16 %v1932
        %v5279 = vunpack.c.l.b16 %v1933
        %v5280 = vunpack.c.h.b16 %v1933
        %v5281 = vunpack.c.l.b16 %v1934
        %v5282 = vunpack.c.h.b16 %v1934
        %v5283 = vunpack.c.l.b16 %v1935
        %v5284 = vunpack.c.h.b16 %v1935
        %v5285 = vunpack.c.l.b16 %v1936
        %v5286 = vunpack.c.h.b16 %v1936
        %v5287 = vunpack.c.l.b16 %v1937
        %v5288 = vunpack.c.h.b16 %v1937
        %v5289 = vpack.c.b16 %v3245, %v3241
        %v5290 = vpack.c.b16 %v3246, %v3242
        %v5291 = vpack.c.b16 %v3247, %v3243
        %v5292 = vpack.c.b16 %v3248, %v3244
        %v5293 = vpack.c.b16 %v3253, %v3249
        %v5294 = vpack.c.b16 %v3254, %v3250
        %v5295 = vpack.c.b16 %v3255, %v3251
        %v5296 = vpack.c.b16 %v3256, %v3252
        %v5297 = vpack.c.b16 %v3261, %v3257
        %v5298 = vpack.c.b16 %v3262, %v3258
        %v5299 = vpack.c.b16 %v3263, %v3259
        %v5300 = vpack.c.b16 %v3264, %v3260
        %v5301 = vpack.c.b16 %v3269, %v3265
        %v5302 = vpack.c.b16 %v3270, %v3266
        %v5303 = vpack.c.b16 %v3271, %v3267
        %v5304 = vpack.c.b16 %v3272, %v3268
        %v5305 = vpack.c.b16 %v3277, %v3273
        %v5306 = vpack.c.b16 %v3278, %v3274
        %v5307 = vpack.c.b16 %v3279, %v3275
        %v5308 = vpack.c.b16 %v3280, %v3276
        %v5309 = vpack.c.b16 %v3285, %v3281
        %v5310 = vpack.c.b16 %v3286, %v3282
        %v5311 = vpack.c.b16 %v3287, %v3283
        %v5312 = vpack.c.b16 %v3288, %v3284
        %v5313 = vpack.c.b16 %v3293, %v3289
        %v5314 = vpack.c.b16 %v3294, %v3290
        %v5315 = vpack.c.b16 %v3295, %v3291
        %v5316 = vpack.c.b16 %v3296, %v3292
        %v5317 = vpack.c.b16 %v3301, %v3297
        %v5318 = vpack.c.b16 %v3302, %v3298
        %v5319 = vpack.c.b16 %v3303, %v3299
        %v5320 = vpack.c.b16 %v3304, %v3300
        %v5321 = vpack.c.b16 %v3309, %v3305
        %v5322 = vpack.c.b16 %v3310, %v3306
        %v5323 = vpack.c.b16 %v3311, %v3307
        %v5324 = vpack.c.b16 %v3312, %v3308
        %v5325 = vpack.c.b16 %v3317, %v3313
        %v5326 = vpack.c.b16 %v3318, %v3314
        %v5327 = vpack.c.b16 %v3319, %v3315
        %v5328 = vpack.c.b16 %v3320, %v3316
        %v5329 = vpack.c.b16 %v3325, %v3321
        %v5330 = vpack.c.b16 %v3326, %v3322
        %v5331 = vpack.c.b16 %v3327, %v3323
        %v5332 = vpack.c.b16 %v3328, %v3324
        %v5333 = vpack.c.b16 %v3333, %v3329
        %v5334 = vpack.c.b16 %v3334, %v3330
        %v5335 = vpack.c.b16 %v3335, %v3331
        %v5336 = vpack.c.b16 %v3336, %v3332
        %v5337 = vpack.c.b16 %v3341, %v3337
        %v5338 = vpack.c.b16 %v3342, %v3338
        %v5339 = vpack.c.b16 %v3343, %v3339
        %v5340 = vpack.c.b16 %v3344, %v3340
        %v5341 = vpack.c.b16 %v3349, %v3345
        %v5342 = vpack.c.b16 %v3350, %v3346
        %v5343 = vpack.c.b16 %v3351, %v3347
        %v5344 = vpack.c.b16 %v3352, %v3348
        %v5345 = vpack.c.b16 %v3357, %v3353
        %v5346 = vpack.c.b16 %v3358, %v3354
        %v5347 = vpack.c.b16 %v3359, %v3355
        %v5348 = vpack.c.b16 %v3360, %v3356
        %v5349 = vpack.c.b16 %v3365, %v3361
        %v5350 = vpack.c.b16 %v3366, %v3362
        %v5351 = vpack.c.b16 %v3367, %v3363
        %v5352 = vpack.c.b16 %v3368, %v3364
        %v5353 = vpack.c.b16 %v3373, %v3369
        %v5354 = vpack.c.b16 %v3374, %v3370
        %v5355 = vpack.c.b16 %v3375, %v3371
        %v5356 = vpack.c.b16 %v3376, %v3372
        %v5357 = vpack.c.b16 %v3381, %v3377
        %v5358 = vpack.c.b16 %v3382, %v3378
        %v5359 = vpack.c.b16 %v3383, %v3379
        %v5360 = vpack.c.b16 %v3384, %v3380
        %v5361 = vpack.c.b16 %v3389, %v3385
        %v5362 = vpack.c.b16 %v3390, %v3386
        %v5363 = vpack.c.b16 %v3391, %v3387
        %v5364 = vpack.c.b16 %v3392, %v3388
        %v5365 = vpack.c.b16 %v3397, %v3393
        %v5366 = vpack.c.b16 %v3398, %v3394
        %v5367 = vpack.c.b16 %v3399, %v3395
        %v5368 = vpack.c.b16 %v3400, %v3396
        %v5369 = vpack.c.b16 %v3405, %v3401
        %v5370 = vpack.c.b16 %v3406, %v3402
        %v5371 = vpack.c.b16 %v3407, %v3403
        %v5372 = vpack.c.b16 %v3408, %v3404
        %v5373 = vpack.c.b16 %v3413, %v3409
        %v5374 = vpack.c.b16 %v3414, %v3410
        %v5375 = vpack.c.b16 %v3415, %v3411
        %v5376 = vpack.c.b16 %v3416, %v3412
        %v5377 = vpack.c.b16 %v3421, %v3417
        %v5378 = vpack.c.b16 %v3422, %v3418
        %v5379 = vpack.c.b16 %v3423, %v3419
        %v5380 = vpack.c.b16 %v3424, %v3420
        %v5381 = vpack.c.b16 %v3429, %v3425
        %v5382 = vpack.c.b16 %v3430, %v3426
        %v5383 = vpack.c.b16 %v3431, %v3427
        %v5384 = vpack.c.b16 %v3432, %v3428
        %v5385 = vpack.c.b16 %v3437, %v3433
        %v5386 = vpack.c.b16 %v3438, %v3434
        %v5387 = vpack.c.b16 %v3439, %v3435
        %v5388 = vpack.c.b16 %v3440, %v3436
        %v5389 = vpack.c.b16 %v3445, %v3441
        %v5390 = vpack.c.b16 %v3446, %v3442
        %v5391 = vpack.c.b16 %v3447, %v3443
        %v5392 = vpack.c.b16 %v3448, %v3444
        %v5393 = vpack.c.b16 %v3453, %v3449
        %v5394 = vpack.c.b16 %v3454, %v3450
        %v5395 = vpack.c.b16 %v3455, %v3451
        %v5396 = vpack.c.b16 %v3456, %v3452
        %v5397 = vpack.c.b16 %v3461, %v3457
        %v5398 = vpack.c.b16 %v3462, %v3458
        %v5399 = vpack.c.b16 %v3463, %v3459
        %v5400 = vpack.c.b16 %v3464, %v3460
        %v5401 = vpack.c.b16 %v3469, %v3465
        %v5402 = vpack.c.b16 %v3470, %v3466
        %v5403 = vpack.c.b16 %v3471, %v3467
        %v5404 = vpack.c.b16 %v3472, %v3468
        %v5405 = vpack.c.b16 %v3477, %v3473
        %v5406 = vpack.c.b16 %v3478, %v3474
        %v5407 = vpack.c.b16 %v3479, %v3475
        %v5408 = vpack.c.b16 %v3480, %v3476
        %v5409 = vpack.c.b16 %v3485, %v3481
        %v5410 = vpack.c.b16 %v3486, %v3482
        %v5411 = vpack.c.b16 %v3487, %v3483
        %v5412 = vpack.c.b16 %v3488, %v3484
        %v5413 = vpack.c.b16 %v3493, %v3489
        %v5414 = vpack.c.b16 %v3494, %v3490
        %v5415 = vpack.c.b16 %v3495, %v3491
        %v5416 = vpack.c.b16 %v3496, %v3492
        %v5417 = vpack.c.b16 %v3501, %v3497
        %v5418 = vpack.c.b16 %v3502, %v3498
        %v5419 = vpack.c.b16 %v3503, %v3499
        %v5420 = vpack.c.b16 %v3504, %v3500
        %v5421 = vpack.c.b16 %v3509, %v3505
        %v5422 = vpack.c.b16 %v3510, %v3506
        %v5423 = vpack.c.b16 %v3511, %v3507
        %v5424 = vpack.c.b16 %v3512, %v3508
        %v5425 = vpack.c.b16 %v3517, %v3513
        %v5426 = vpack.c.b16 %v3518, %v3514
        %v5427 = vpack.c.b16 %v3519, %v3515
        %v5428 = vpack.c.b16 %v3520, %v3516
        %v5429 = vpack.c.b16 %v3525, %v3521
        %v5430 = vpack.c.b16 %v3526, %v3522
        %v5431 = vpack.c.b16 %v3527, %v3523
        %v5432 = vpack.c.b16 %v3528, %v3524
        %v5433 = vpack.c.b16 %v3533, %v3529
        %v5434 = vpack.c.b16 %v3534, %v3530
        %v5435 = vpack.c.b16 %v3535, %v3531
        %v5436 = vpack.c.b16 %v3536, %v3532
        %v5437 = vpack.c.b16 %v3541, %v3537
        %v5438 = vpack.c.b16 %v3542, %v3538
        %v5439 = vpack.c.b16 %v3543, %v3539
        %v5440 = vpack.c.b16 %v3544, %v3540
        %v5441 = vpack.c.b16 %v3549, %v3545
        %v5442 = vpack.c.b16 %v3550, %v3546
        %v5443 = vpack.c.b16 %v3551, %v3547
        %v5444 = vpack.c.b16 %v3552, %v3548
        %v5445 = vpack.c.b16 %v3557, %v3553
        %v5446 = vpack.c.b16 %v3558, %v3554
        %v5447 = vpack.c.b16 %v3559, %v3555
        %v5448 = vpack.c.b16 %v3560, %v3556
        %v5449 = vpack.c.b16 %v3565, %v3561
        %v5450 = vpack.c.b16 %v3566, %v3562
        %v5451 = vpack.c.b16 %v3567, %v3563
        %v5452 = vpack.c.b16 %v3568, %v3564
        %v5453 = vpack.c.b16 %v3573, %v3569
        %v5454 = vpack.c.b16 %v3574, %v3570
        %v5455 = vpack.c.b16 %v3575, %v3571
        %v5456 = vpack.c.b16 %v3576, %v3572
        %v5457 = vpack.c.b16 %v3581, %v3577
        %v5458 = vpack.c.b16 %v3582, %v3578
        %v5459 = vpack.c.b16 %v3583, %v3579
        %v5460 = vpack.c.b16 %v3584, %v3580
        %v5461 = vpack.c.b16 %v3589, %v3585
        %v5462 = vpack.c.b16 %v3590, %v3586
        %v5463 = vpack.c.b16 %v3591, %v3587
        %v5464 = vpack.c.b16 %v3592, %v3588
        %v5465 = vpack.c.b16 %v3597, %v3593
        %v5466 = vpack.c.b16 %v3598, %v3594
        %v5467 = vpack.c.b16 %v3599, %v3595
        %v5468 = vpack.c.b16 %v3600, %v3596
        %v5469 = vpack.c.b16 %v3605, %v3601
        %v5470 = vpack.c.b16 %v3606, %v3602
        %v5471 = vpack.c.b16 %v3607, %v3603
        %v5472 = vpack.c.b16 %v3608, %v3604
        %v5473 = vpack.c.b16 %v3613, %v3609
        %v5474 = vpack.c.b16 %v3614, %v3610
        %v5475 = vpack.c.b16 %v3615, %v3611
        %v5476 = vpack.c.b16 %v3616, %v3612
        %v5477 = vpack.c.b16 %v3621, %v3617
        %v5478 = vpack.c.b16 %v3622, %v3618
        %v5479 = vpack.c.b16 %v3623, %v3619
        %v5480 = vpack.c.b16 %v3624, %v3620
        %v5481 = vpack.c.b16 %v3629, %v3625
        %v5482 = vpack.c.b16 %v3630, %v3626
        %v5483 = vpack.c.b16 %v3631, %v3627
        %v5484 = vpack.c.b16 %v3632, %v3628
        %v5485 = vpack.c.b16 %v3637, %v3633
        %v5486 = vpack.c.b16 %v3638, %v3634
        %v5487 = vpack.c.b16 %v3639, %v3635
        %v5488 = vpack.c.b16 %v3640, %v3636
        %v5489 = vpack.c.b16 %v3645, %v3641
        %v5490 = vpack.c.b16 %v3646, %v3642
        %v5491 = vpack.c.b16 %v3647, %v3643
        %v5492 = vpack.c.b16 %v3648, %v3644
        %v5493 = vpack.c.b16 %v3653, %v3649
        %v5494 = vpack.c.b16 %v3654, %v3650
        %v5495 = vpack.c.b16 %v3655, %v3651
        %v5496 = vpack.c.b16 %v3656, %v3652
        %v5497 = vpack.c.b16 %v3661, %v3657
        %v5498 = vpack.c.b16 %v3662, %v3658
        %v5499 = vpack.c.b16 %v3663, %v3659
        %v5500 = vpack.c.b16 %v3664, %v3660
        %v5501 = vpack.c.b16 %v3669, %v3665
        %v5502 = vpack.c.b16 %v3670, %v3666
        %v5503 = vpack.c.b16 %v3671, %v3667
        %v5504 = vpack.c.b16 %v3672, %v3668
        %v5505 = vpack.c.b16 %v3677, %v3673
        %v5506 = vpack.c.b16 %v3678, %v3674
        %v5507 = vpack.c.b16 %v3679, %v3675
        %v5508 = vpack.c.b16 %v3680, %v3676
        %v5509 = vpack.c.b16 %v3685, %v3681
        %v5510 = vpack.c.b16 %v3686, %v3682
        %v5511 = vpack.c.b16 %v3687, %v3683
        %v5512 = vpack.c.b16 %v3688, %v3684
        %v5513 = vpack.c.b16 %v3693, %v3689
        %v5514 = vpack.c.b16 %v3694, %v3690
        %v5515 = vpack.c.b16 %v3695, %v3691
        %v5516 = vpack.c.b16 %v3696, %v3692
        %v5517 = vpack.c.b16 %v3701, %v3697
        %v5518 = vpack.c.b16 %v3702, %v3698
        %v5519 = vpack.c.b16 %v3703, %v3699
        %v5520 = vpack.c.b16 %v3704, %v3700
        %v5521 = vpack.c.b16 %v3709, %v3705
        %v5522 = vpack.c.b16 %v3710, %v3706
        %v5523 = vpack.c.b16 %v3711, %v3707
        %v5524 = vpack.c.b16 %v3712, %v3708
        %v5525 = vpack.c.b16 %v3717, %v3713
        %v5526 = vpack.c.b16 %v3718, %v3714
        %v5527 = vpack.c.b16 %v3719, %v3715
        %v5528 = vpack.c.b16 %v3720, %v3716
        %v5529 = vpack.c.b16 %v3725, %v3721
        %v5530 = vpack.c.b16 %v3726, %v3722
        %v5531 = vpack.c.b16 %v3727, %v3723
        %v5532 = vpack.c.b16 %v3728, %v3724
        %v5533 = vpack.c.b16 %v3733, %v3729
        %v5534 = vpack.c.b16 %v3734, %v3730
        %v5535 = vpack.c.b16 %v3735, %v3731
        %v5536 = vpack.c.b16 %v3736, %v3732
        %v5537 = vpack.c.b16 %v3741, %v3737
        %v5538 = vpack.c.b16 %v3742, %v3738
        %v5539 = vpack.c.b16 %v3743, %v3739
        %v5540 = vpack.c.b16 %v3744, %v3740
        %v5541 = vpack.c.b16 %v3749, %v3745
        %v5542 = vpack.c.b16 %v3750, %v3746
        %v5543 = vpack.c.b16 %v3751, %v3747
        %v5544 = vpack.c.b16 %v3752, %v3748
        %v5545 = vpack.c.b16 %v3757, %v3753
        %v5546 = vpack.c.b16 %v3758, %v3754
        %v5547 = vpack.c.b16 %v3759, %v3755
        %v5548 = vpack.c.b16 %v3760, %v3756
        %v5549 = vpack.c.b16 %v3765, %v3761
        %v5550 = vpack.c.b16 %v3766, %v3762
        %v5551 = vpack.c.b16 %v3767, %v3763
        %v5552 = vpack.c.b16 %v3768, %v3764
        %v5553 = vpack.c.b16 %v3773, %v3769
        %v5554 = vpack.c.b16 %v3774, %v3770
        %v5555 = vpack.c.b16 %v3775, %v3771
        %v5556 = vpack.c.b16 %v3776, %v3772
        %v5557 = vpack.c.b16 %v3781, %v3777
        %v5558 = vpack.c.b16 %v3782, %v3778
        %v5559 = vpack.c.b16 %v3783, %v3779
        %v5560 = vpack.c.b16 %v3784, %v3780
        %v5561 = vpack.c.b16 %v3789, %v3785
        %v5562 = vpack.c.b16 %v3790, %v3786
        %v5563 = vpack.c.b16 %v3791, %v3787
        %v5564 = vpack.c.b16 %v3792, %v3788
        %v5565 = vpack.c.b16 %v3797, %v3793
        %v5566 = vpack.c.b16 %v3798, %v3794
        %v5567 = vpack.c.b16 %v3799, %v3795
        %v5568 = vpack.c.b16 %v3800, %v3796
        %v5569 = vpack.c.b16 %v3805, %v3801
        %v5570 = vpack.c.b16 %v3806, %v3802
        %v5571 = vpack.c.b16 %v3807, %v3803
        %v5572 = vpack.c.b16 %v3808, %v3804
        %v5573 = vpack.c.b16 %v3813, %v3809
        %v5574 = vpack.c.b16 %v3814, %v3810
        %v5575 = vpack.c.b16 %v3815, %v3811
        %v5576 = vpack.c.b16 %v3816, %v3812
        %v5577 = vpack.c.b16 %v3821, %v3817
        %v5578 = vpack.c.b16 %v3822, %v3818
        %v5579 = vpack.c.b16 %v3823, %v3819
        %v5580 = vpack.c.b16 %v3824, %v3820
        %v5581 = vpack.c.b16 %v3829, %v3825
        %v5582 = vpack.c.b16 %v3830, %v3826
        %v5583 = vpack.c.b16 %v3831, %v3827
        %v5584 = vpack.c.b16 %v3832, %v3828
        %v5585 = vpack.c.b16 %v3837, %v3833
        %v5586 = vpack.c.b16 %v3838, %v3834
        %v5587 = vpack.c.b16 %v3839, %v3835
        %v5588 = vpack.c.b16 %v3840, %v3836
        %v5589 = vpack.c.b16 %v3845, %v3841
        %v5590 = vpack.c.b16 %v3846, %v3842
        %v5591 = vpack.c.b16 %v3847, %v3843
        %v5592 = vpack.c.b16 %v3848, %v3844
        %v5593 = vpack.c.b16 %v3853, %v3849
        %v5594 = vpack.c.b16 %v3854, %v3850
        %v5595 = vpack.c.b16 %v3855, %v3851
        %v5596 = vpack.c.b16 %v3856, %v3852
        %v5597 = vpack.c.b16 %v3861, %v3857
        %v5598 = vpack.c.b16 %v3862, %v3858
        %v5599 = vpack.c.b16 %v3863, %v3859
        %v5600 = vpack.c.b16 %v3864, %v3860
        %v5601 = vpack.c.b16 %v3869, %v3865
        %v5602 = vpack.c.b16 %v3870, %v3866
        %v5603 = vpack.c.b16 %v3871, %v3867
        %v5604 = vpack.c.b16 %v3872, %v3868
        %v5605 = vpack.c.b16 %v3877, %v3873
        %v5606 = vpack.c.b16 %v3878, %v3874
        %v5607 = vpack.c.b16 %v3879, %v3875
        %v5608 = vpack.c.b16 %v3880, %v3876
        %v5609 = vpack.c.b16 %v3885, %v3881
        %v5610 = vpack.c.b16 %v3886, %v3882
        %v5611 = vpack.c.b16 %v3887, %v3883
        %v5612 = vpack.c.b16 %v3888, %v3884
        %v5613 = vpack.c.b16 %v3893, %v3889
        %v5614 = vpack.c.b16 %v3894, %v3890
        %v5615 = vpack.c.b16 %v3895, %v3891
        %v5616 = vpack.c.b16 %v3896, %v3892
        %v5617 = vpack.c.b16 %v3901, %v3897
        %v5618 = vpack.c.b16 %v3902, %v3898
        %v5619 = vpack.c.b16 %v3903, %v3899
        %v5620 = vpack.c.b16 %v3904, %v3900
        %v5621 = vpack.c.b16 %v3909, %v3905
        %v5622 = vpack.c.b16 %v3910, %v3906
        %v5623 = vpack.c.b16 %v3911, %v3907
        %v5624 = vpack.c.b16 %v3912, %v3908
        %v5625 = vpack.c.b16 %v3917, %v3913
        %v5626 = vpack.c.b16 %v3918, %v3914
        %v5627 = vpack.c.b16 %v3919, %v3915
        %v5628 = vpack.c.b16 %v3920, %v3916
        %v5629 = vpack.c.b16 %v3925, %v3921
        %v5630 = vpack.c.b16 %v3926, %v3922
        %v5631 = vpack.c.b16 %v3927, %v3923
        %v5632 = vpack.c.b16 %v3928, %v3924
        %v5633 = vpack.c.b16 %v3933, %v3929
        %v5634 = vpack.c.b16 %v3934, %v3930
        %v5635 = vpack.c.b16 %v3935, %v3931
        %v5636 = vpack.c.b16 %v3936, %v3932
        %v5637 = vpack.c.b16 %v3941, %v3937
        %v5638 = vpack.c.b16 %v3942, %v3938
        %v5639 = vpack.c.b16 %v3943, %v3939
        %v5640 = vpack.c.b16 %v3944, %v3940
        %v5641 = vpack.c.b16 %v3949, %v3945
        %v5642 = vpack.c.b16 %v3950, %v3946
        %v5643 = vpack.c.b16 %v3951, %v3947
        %v5644 = vpack.c.b16 %v3952, %v3948
        %v5645 = vpack.c.b16 %v3957, %v3953
        %v5646 = vpack.c.b16 %v3958, %v3954
        %v5647 = vpack.c.b16 %v3959, %v3955
        %v5648 = vpack.c.b16 %v3960, %v3956
        %v5649 = vpack.c.b16 %v3965, %v3961
        %v5650 = vpack.c.b16 %v3966, %v3962
        %v5651 = vpack.c.b16 %v3967, %v3963
        %v5652 = vpack.c.b16 %v3968, %v3964
        %v5653 = vpack.c.b16 %v3973, %v3969
        %v5654 = vpack.c.b16 %v3974, %v3970
        %v5655 = vpack.c.b16 %v3975, %v3971
        %v5656 = vpack.c.b16 %v3976, %v3972
        %v5657 = vpack.c.b16 %v3981, %v3977
        %v5658 = vpack.c.b16 %v3982, %v3978
        %v5659 = vpack.c.b16 %v3983, %v3979
        %v5660 = vpack.c.b16 %v3984, %v3980
        %v5661 = vpack.c.b16 %v3989, %v3985
        %v5662 = vpack.c.b16 %v3990, %v3986
        %v5663 = vpack.c.b16 %v3991, %v3987
        %v5664 = vpack.c.b16 %v3992, %v3988
        %v5665 = vpack.c.b16 %v3997, %v3993
        %v5666 = vpack.c.b16 %v3998, %v3994
        %v5667 = vpack.c.b16 %v3999, %v3995
        %v5668 = vpack.c.b16 %v4000, %v3996
        %v5669 = vpack.c.b16 %v4005, %v4001
        %v5670 = vpack.c.b16 %v4006, %v4002
        %v5671 = vpack.c.b16 %v4007, %v4003
        %v5672 = vpack.c.b16 %v4008, %v4004
        %v5673 = vpack.c.b16 %v4013, %v4009
        %v5674 = vpack.c.b16 %v4014, %v4010
        %v5675 = vpack.c.b16 %v4015, %v4011
        %v5676 = vpack.c.b16 %v4016, %v4012
        %v5677 = vpack.c.b16 %v4021, %v4017
        %v5678 = vpack.c.b16 %v4022, %v4018
        %v5679 = vpack.c.b16 %v4023, %v4019
        %v5680 = vpack.c.b16 %v4024, %v4020
        %v5681 = vpack.c.b16 %v4029, %v4025
        %v5682 = vpack.c.b16 %v4030, %v4026
        %v5683 = vpack.c.b16 %v4031, %v4027
        %v5684 = vpack.c.b16 %v4032, %v4028
        %v5685 = vpack.c.b16 %v4037, %v4033
        %v5686 = vpack.c.b16 %v4038, %v4034
        %v5687 = vpack.c.b16 %v4039, %v4035
        %v5688 = vpack.c.b16 %v4040, %v4036
        %v5689 = vpack.c.b16 %v4045, %v4041
        %v5690 = vpack.c.b16 %v4046, %v4042
        %v5691 = vpack.c.b16 %v4047, %v4043
        %v5692 = vpack.c.b16 %v4048, %v4044
        %v5693 = vpack.c.b16 %v4053, %v4049
        %v5694 = vpack.c.b16 %v4054, %v4050
        %v5695 = vpack.c.b16 %v4055, %v4051
        %v5696 = vpack.c.b16 %v4056, %v4052
        %v5697 = vpack.c.b16 %v4061, %v4057
        %v5698 = vpack.c.b16 %v4062, %v4058
        %v5699 = vpack.c.b16 %v4063, %v4059
        %v5700 = vpack.c.b16 %v4064, %v4060
        %v5701 = vpack.c.b16 %v4069, %v4065
        %v5702 = vpack.c.b16 %v4070, %v4066
        %v5703 = vpack.c.b16 %v4071, %v4067
        %v5704 = vpack.c.b16 %v4072, %v4068
        %v5705 = vpack.c.b16 %v4077, %v4073
        %v5706 = vpack.c.b16 %v4078, %v4074
        %v5707 = vpack.c.b16 %v4079, %v4075
        %v5708 = vpack.c.b16 %v4080, %v4076
        %v5709 = vpack.c.b16 %v4085, %v4081
        %v5710 = vpack.c.b16 %v4086, %v4082
        %v5711 = vpack.c.b16 %v4087, %v4083
        %v5712 = vpack.c.b16 %v4088, %v4084
        %v5713 = vpack.c.b16 %v4093, %v4089
        %v5714 = vpack.c.b16 %v4094, %v4090
        %v5715 = vpack.c.b16 %v4095, %v4091
        %v5716 = vpack.c.b16 %v4096, %v4092
        %v5717 = vpack.c.b16 %v4101, %v4097
        %v5718 = vpack.c.b16 %v4102, %v4098
        %v5719 = vpack.c.b16 %v4103, %v4099
        %v5720 = vpack.c.b16 %v4104, %v4100
        %v5721 = vpack.c.b16 %v4109, %v4105
        %v5722 = vpack.c.b16 %v4110, %v4106
        %v5723 = vpack.c.b16 %v4111, %v4107
        %v5724 = vpack.c.b16 %v4112, %v4108
        %v5725 = vpack.c.b16 %v4117, %v4113
        %v5726 = vpack.c.b16 %v4118, %v4114
        %v5727 = vpack.c.b16 %v4119, %v4115
        %v5728 = vpack.c.b16 %v4120, %v4116
        %v5729 = vpack.c.b16 %v4125, %v4121
        %v5730 = vpack.c.b16 %v4126, %v4122
        %v5731 = vpack.c.b16 %v4127, %v4123
        %v5732 = vpack.c.b16 %v4128, %v4124
        %v5733 = vpack.c.b16 %v4133, %v4129
        %v5734 = vpack.c.b16 %v4134, %v4130
        %v5735 = vpack.c.b16 %v4135, %v4131
        %v5736 = vpack.c.b16 %v4136, %v4132
        %v5737 = vpack.c.b16 %v4141, %v4137
        %v5738 = vpack.c.b16 %v4142, %v4138
        %v5739 = vpack.c.b16 %v4143, %v4139
        %v5740 = vpack.c.b16 %v4144, %v4140
        %v5741 = vpack.c.b16 %v4149, %v4145
        %v5742 = vpack.c.b16 %v4150, %v4146
        %v5743 = vpack.c.b16 %v4151, %v4147
        %v5744 = vpack.c.b16 %v4152, %v4148
        %v5745 = vpack.c.b16 %v4157, %v4153
        %v5746 = vpack.c.b16 %v4158, %v4154
        %v5747 = vpack.c.b16 %v4159, %v4155
        %v5748 = vpack.c.b16 %v4160, %v4156
        %v5749 = vpack.c.b16 %v4165, %v4161
        %v5750 = vpack.c.b16 %v4166, %v4162
        %v5751 = vpack.c.b16 %v4167, %v4163
        %v5752 = vpack.c.b16 %v4168, %v4164
        %v5753 = vpack.c.b16 %v4173, %v4169
        %v5754 = vpack.c.b16 %v4174, %v4170
        %v5755 = vpack.c.b16 %v4175, %v4171
        %v5756 = vpack.c.b16 %v4176, %v4172
        %v5757 = vpack.c.b16 %v4181, %v4177
        %v5758 = vpack.c.b16 %v4182, %v4178
        %v5759 = vpack.c.b16 %v4183, %v4179
        %v5760 = vpack.c.b16 %v4184, %v4180
        %v5761 = vpack.c.b16 %v4189, %v4185
        %v5762 = vpack.c.b16 %v4190, %v4186
        %v5763 = vpack.c.b16 %v4191, %v4187
        %v5764 = vpack.c.b16 %v4192, %v4188
        %v5765 = vpack.c.b16 %v4197, %v4193
        %v5766 = vpack.c.b16 %v4198, %v4194
        %v5767 = vpack.c.b16 %v4199, %v4195
        %v5768 = vpack.c.b16 %v4200, %v4196
        %v5769 = vpack.c.b16 %v4205, %v4201
        %v5770 = vpack.c.b16 %v4206, %v4202
        %v5771 = vpack.c.b16 %v4207, %v4203
        %v5772 = vpack.c.b16 %v4208, %v4204
        %v5773 = vpack.c.b16 %v4213, %v4209
        %v5774 = vpack.c.b16 %v4214, %v4210
        %v5775 = vpack.c.b16 %v4215, %v4211
        %v5776 = vpack.c.b16 %v4216, %v4212
        %v5777 = vpack.c.b16 %v4221, %v4217
        %v5778 = vpack.c.b16 %v4222, %v4218
        %v5779 = vpack.c.b16 %v4223, %v4219
        %v5780 = vpack.c.b16 %v4224, %v4220
        %v5781 = vpack.c.b16 %v4229, %v4225
        %v5782 = vpack.c.b16 %v4230, %v4226
        %v5783 = vpack.c.b16 %v4231, %v4227
        %v5784 = vpack.c.b16 %v4232, %v4228
        %v5785 = vpack.c.b16 %v4237, %v4233
        %v5786 = vpack.c.b16 %v4238, %v4234
        %v5787 = vpack.c.b16 %v4239, %v4235
        %v5788 = vpack.c.b16 %v4240, %v4236
        %v5789 = vpack.c.b16 %v4245, %v4241
        %v5790 = vpack.c.b16 %v4246, %v4242
        %v5791 = vpack.c.b16 %v4247, %v4243
        %v5792 = vpack.c.b16 %v4248, %v4244
        %v5793 = vpack.c.b16 %v4253, %v4249
        %v5794 = vpack.c.b16 %v4254, %v4250
        %v5795 = vpack.c.b16 %v4255, %v4251
        %v5796 = vpack.c.b16 %v4256, %v4252
        %v5797 = vpack.c.b16 %v4261, %v4257
        %v5798 = vpack.c.b16 %v4262, %v4258
        %v5799 = vpack.c.b16 %v4263, %v4259
        %v5800 = vpack.c.b16 %v4264, %v4260
        %v5801 = vpack.c.b16 %v4269, %v4265
        %v5802 = vpack.c.b16 %v4270, %v4266
        %v5803 = vpack.c.b16 %v4271, %v4267
        %v5804 = vpack.c.b16 %v4272, %v4268
        %v5805 = vpack.c.b16 %v4277, %v4273
        %v5806 = vpack.c.b16 %v4278, %v4274
        %v5807 = vpack.c.b16 %v4279, %v4275
        %v5808 = vpack.c.b16 %v4280, %v4276
        %v5809 = vpack.c.b16 %v4285, %v4281
        %v5810 = vpack.c.b16 %v4286, %v4282
        %v5811 = vpack.c.b16 %v4287, %v4283
        %v5812 = vpack.c.b16 %v4288, %v4284
        %v5813 = vpack.c.b16 %v4293, %v4289
        %v5814 = vpack.c.b16 %v4294, %v4290
        %v5815 = vpack.c.b16 %v4295, %v4291
        %v5816 = vpack.c.b16 %v4296, %v4292
        %v5817 = vpack.c.b16 %v4301, %v4297
        %v5818 = vpack.c.b16 %v4302, %v4298
        %v5819 = vpack.c.b16 %v4303, %v4299
        %v5820 = vpack.c.b16 %v4304, %v4300
        %v5821 = vpack.c.b16 %v4309, %v4305
        %v5822 = vpack.c.b16 %v4310, %v4306
        %v5823 = vpack.c.b16 %v4311, %v4307
        %v5824 = vpack.c.b16 %v4312, %v4308
        %v5825 = vpack.c.b16 %v4317, %v4313
        %v5826 = vpack.c.b16 %v4318, %v4314
        %v5827 = vpack.c.b16 %v4319, %v4315
        %v5828 = vpack.c.b16 %v4320, %v4316
        %v5829 = vpack.c.b16 %v4325, %v4321
        %v5830 = vpack.c.b16 %v4326, %v4322
        %v5831 = vpack.c.b16 %v4327, %v4323
        %v5832 = vpack.c.b16 %v4328, %v4324
        %v5833 = vpack.c.b16 %v4333, %v4329
        %v5834 = vpack.c.b16 %v4334, %v4330
        %v5835 = vpack.c.b16 %v4335, %v4331
        %v5836 = vpack.c.b16 %v4336, %v4332
        %v5837 = vpack.c.b16 %v4341, %v4337
        %v5838 = vpack.c.b16 %v4342, %v4338
        %v5839 = vpack.c.b16 %v4343, %v4339
        %v5840 = vpack.c.b16 %v4344, %v4340
        %v5841 = vpack.c.b16 %v4349, %v4345
        %v5842 = vpack.c.b16 %v4350, %v4346
        %v5843 = vpack.c.b16 %v4351, %v4347
        %v5844 = vpack.c.b16 %v4352, %v4348
        %v5845 = vpack.c.b16 %v4357, %v4353
        %v5846 = vpack.c.b16 %v4358, %v4354
        %v5847 = vpack.c.b16 %v4359, %v4355
        %v5848 = vpack.c.b16 %v4360, %v4356
        %v5849 = vpack.c.b16 %v4365, %v4361
        %v5850 = vpack.c.b16 %v4366, %v4362
        %v5851 = vpack.c.b16 %v4367, %v4363
        %v5852 = vpack.c.b16 %v4368, %v4364
        %v5853 = vpack.c.b16 %v4373, %v4369
        %v5854 = vpack.c.b16 %v4374, %v4370
        %v5855 = vpack.c.b16 %v4375, %v4371
        %v5856 = vpack.c.b16 %v4376, %v4372
        %v5857 = vpack.c.b16 %v4381, %v4377
        %v5858 = vpack.c.b16 %v4382, %v4378
        %v5859 = vpack.c.b16 %v4383, %v4379
        %v5860 = vpack.c.b16 %v4384, %v4380
        %v5861 = vpack.c.b16 %v4389, %v4385
        %v5862 = vpack.c.b16 %v4390, %v4386
        %v5863 = vpack.c.b16 %v4391, %v4387
        %v5864 = vpack.c.b16 %v4392, %v4388
        %v5865 = vpack.c.b16 %v4397, %v4393
        %v5866 = vpack.c.b16 %v4398, %v4394
        %v5867 = vpack.c.b16 %v4399, %v4395
        %v5868 = vpack.c.b16 %v4400, %v4396
        %v5869 = vpack.c.b16 %v4405, %v4401
        %v5870 = vpack.c.b16 %v4406, %v4402
        %v5871 = vpack.c.b16 %v4407, %v4403
        %v5872 = vpack.c.b16 %v4408, %v4404
        %v5873 = vpack.c.b16 %v4413, %v4409
        %v5874 = vpack.c.b16 %v4414, %v4410
        %v5875 = vpack.c.b16 %v4415, %v4411
        %v5876 = vpack.c.b16 %v4416, %v4412
        %v5877 = vpack.c.b16 %v4421, %v4417
        %v5878 = vpack.c.b16 %v4422, %v4418
        %v5879 = vpack.c.b16 %v4423, %v4419
        %v5880 = vpack.c.b16 %v4424, %v4420
        %v5881 = vpack.c.b16 %v4429, %v4425
        %v5882 = vpack.c.b16 %v4430, %v4426
        %v5883 = vpack.c.b16 %v4431, %v4427
        %v5884 = vpack.c.b16 %v4432, %v4428
        %v5885 = vpack.c.b16 %v4437, %v4433
        %v5886 = vpack.c.b16 %v4438, %v4434
        %v5887 = vpack.c.b16 %v4439, %v4435
        %v5888 = vpack.c.b16 %v4440, %v4436
        %v5889 = vpack.c.b16 %v4445, %v4441
        %v5890 = vpack.c.b16 %v4446, %v4442
        %v5891 = vpack.c.b16 %v4447, %v4443
        %v5892 = vpack.c.b16 %v4448, %v4444
        %v5893 = vpack.c.b16 %v4453, %v4449
        %v5894 = vpack.c.b16 %v4454, %v4450
        %v5895 = vpack.c.b16 %v4455, %v4451
        %v5896 = vpack.c.b16 %v4456, %v4452
        %v5897 = vpack.c.b16 %v4461, %v4457
        %v5898 = vpack.c.b16 %v4462, %v4458
        %v5899 = vpack.c.b16 %v4463, %v4459
        %v5900 = vpack.c.b16 %v4464, %v4460
        %v5901 = vpack.c.b16 %v4469, %v4465
        %v5902 = vpack.c.b16 %v4470, %v4466
        %v5903 = vpack.c.b16 %v4471, %v4467
        %v5904 = vpack.c.b16 %v4472, %v4468
        %v5905 = vpack.c.b16 %v4477, %v4473
        %v5906 = vpack.c.b16 %v4478, %v4474
        %v5907 = vpack.c.b16 %v4479, %v4475
        %v5908 = vpack.c.b16 %v4480, %v4476
        %v5909 = vpack.c.b16 %v4485, %v4481
        %v5910 = vpack.c.b16 %v4486, %v4482
        %v5911 = vpack.c.b16 %v4487, %v4483
        %v5912 = vpack.c.b16 %v4488, %v4484
        %v5913 = vpack.c.b16 %v4493, %v4489
        %v5914 = vpack.c.b16 %v4494, %v4490
        %v5915 = vpack.c.b16 %v4495, %v4491
        %v5916 = vpack.c.b16 %v4496, %v4492
        %v5917 = vpack.c.b16 %v4501, %v4497
        %v5918 = vpack.c.b16 %v4502, %v4498
        %v5919 = vpack.c.b16 %v4503, %v4499
        %v5920 = vpack.c.b16 %v4504, %v4500
        %v5921 = vpack.c.b16 %v4509, %v4505
        %v5922 = vpack.c.b16 %v4510, %v4506
        %v5923 = vpack.c.b16 %v4511, %v4507
        %v5924 = vpack.c.b16 %v4512, %v4508
        %v5925 = vpack.c.b16 %v4517, %v4513
        %v5926 = vpack.c.b16 %v4518, %v4514
        %v5927 = vpack.c.b16 %v4519, %v4515
        %v5928 = vpack.c.b16 %v4520, %v4516
        %v5929 = vpack.c.b16 %v4525, %v4521
        %v5930 = vpack.c.b16 %v4526, %v4522
        %v5931 = vpack.c.b16 %v4527, %v4523
        %v5932 = vpack.c.b16 %v4528, %v4524
        %v5933 = vpack.c.b16 %v4533, %v4529
        %v5934 = vpack.c.b16 %v4534, %v4530
        %v5935 = vpack.c.b16 %v4535, %v4531
        %v5936 = vpack.c.b16 %v4536, %v4532
        %v5937 = vpack.c.b16 %v4541, %v4537
        %v5938 = vpack.c.b16 %v4542, %v4538
        %v5939 = vpack.c.b16 %v4543, %v4539
        %v5940 = vpack.c.b16 %v4544, %v4540
        %v5941 = vpack.c.b16 %v4549, %v4545
        %v5942 = vpack.c.b16 %v4550, %v4546
        %v5943 = vpack.c.b16 %v4551, %v4547
        %v5944 = vpack.c.b16 %v4552, %v4548
        %v5945 = vpack.c.b16 %v4557, %v4553
        %v5946 = vpack.c.b16 %v4558, %v4554
        %v5947 = vpack.c.b16 %v4559, %v4555
        %v5948 = vpack.c.b16 %v4560, %v4556
        %v5949 = vpack.c.b16 %v4565, %v4561
        %v5950 = vpack.c.b16 %v4566, %v4562
        %v5951 = vpack.c.b16 %v4567, %v4563
        %v5952 = vpack.c.b16 %v4568, %v4564
        %v5953 = vpack.c.b16 %v4573, %v4569
        %v5954 = vpack.c.b16 %v4574, %v4570
        %v5955 = vpack.c.b16 %v4575, %v4571
        %v5956 = vpack.c.b16 %v4576, %v4572
        %v5957 = vpack.c.b16 %v4581, %v4577
        %v5958 = vpack.c.b16 %v4582, %v4578
        %v5959 = vpack.c.b16 %v4583, %v4579
        %v5960 = vpack.c.b16 %v4584, %v4580
        %v5961 = vpack.c.b16 %v4589, %v4585
        %v5962 = vpack.c.b16 %v4590, %v4586
        %v5963 = vpack.c.b16 %v4591, %v4587
        %v5964 = vpack.c.b16 %v4592, %v4588
        %v5965 = vpack.c.b16 %v4597, %v4593
        %v5966 = vpack.c.b16 %v4598, %v4594
        %v5967 = vpack.c.b16 %v4599, %v4595
        %v5968 = vpack.c.b16 %v4600, %v4596
        %v5969 = vpack.c.b16 %v4605, %v4601
        %v5970 = vpack.c.b16 %v4606, %v4602
        %v5971 = vpack.c.b16 %v4607, %v4603
        %v5972 = vpack.c.b16 %v4608, %v4604
        %v5973 = vpack.c.b16 %v4613, %v4609
        %v5974 = vpack.c.b16 %v4614, %v4610
        %v5975 = vpack.c.b16 %v4615, %v4611
        %v5976 = vpack.c.b16 %v4616, %v4612
        %v5977 = vpack.c.b16 %v4621, %v4617
        %v5978 = vpack.c.b16 %v4622, %v4618
        %v5979 = vpack.c.b16 %v4623, %v4619
        %v5980 = vpack.c.b16 %v4624, %v4620
        %v5981 = vpack.c.b16 %v4629, %v4625
        %v5982 = vpack.c.b16 %v4630, %v4626
        %v5983 = vpack.c.b16 %v4631, %v4627
        %v5984 = vpack.c.b16 %v4632, %v4628
        %v5985 = vpack.c.b16 %v4637, %v4633
        %v5986 = vpack.c.b16 %v4638, %v4634
        %v5987 = vpack.c.b16 %v4639, %v4635
        %v5988 = vpack.c.b16 %v4640, %v4636
        %v5989 = vpack.c.b16 %v4645, %v4641
        %v5990 = vpack.c.b16 %v4646, %v4642
        %v5991 = vpack.c.b16 %v4647, %v4643
        %v5992 = vpack.c.b16 %v4648, %v4644
        %v5993 = vpack.c.b16 %v4653, %v4649
        %v5994 = vpack.c.b16 %v4654, %v4650
        %v5995 = vpack.c.b16 %v4655, %v4651
        %v5996 = vpack.c.b16 %v4656, %v4652
        %v5997 = vpack.c.b16 %v4661, %v4657
        %v5998 = vpack.c.b16 %v4662, %v4658
        %v5999 = vpack.c.b16 %v4663, %v4659
        %v6000 = vpack.c.b16 %v4664, %v4660
        %v6001 = vpack.c.b16 %v4669, %v4665
        %v6002 = vpack.c.b16 %v4670, %v4666
        %v6003 = vpack.c.b16 %v4671, %v4667
        %v6004 = vpack.c.b16 %v4672, %v4668
        %v6005 = vpack.c.b16 %v4677, %v4673
        %v6006 = vpack.c.b16 %v4678, %v4674
        %v6007 = vpack.c.b16 %v4679, %v4675
        %v6008 = vpack.c.b16 %v4680, %v4676
        %v6009 = vpack.c.b16 %v4685, %v4681
        %v6010 = vpack.c.b16 %v4686, %v4682
        %v6011 = vpack.c.b16 %v4687, %v4683
        %v6012 = vpack.c.b16 %v4688, %v4684
        %v6013 = vpack.c.b16 %v4693, %v4689
        %v6014 = vpack.c.b16 %v4694, %v4690
        %v6015 = vpack.c.b16 %v4695, %v4691
        %v6016 = vpack.c.b16 %v4696, %v4692
        %v6017 = vpack.c.b16 %v4701, %v4697
        %v6018 = vpack.c.b16 %v4702, %v4698
        %v6019 = vpack.c.b16 %v4703, %v4699
        %v6020 = vpack.c.b16 %v4704, %v4700
        %v6021 = vpack.c.b16 %v4709, %v4705
        %v6022 = vpack.c.b16 %v4710, %v4706
        %v6023 = vpack.c.b16 %v4711, %v4707
        %v6024 = vpack.c.b16 %v4712, %v4708
        %v6025 = vpack.c.b16 %v4717, %v4713
        %v6026 = vpack.c.b16 %v4718, %v4714
        %v6027 = vpack.c.b16 %v4719, %v4715
        %v6028 = vpack.c.b16 %v4720, %v4716
        %v6029 = vpack.c.b16 %v4725, %v4721
        %v6030 = vpack.c.b16 %v4726, %v4722
        %v6031 = vpack.c.b16 %v4727, %v4723
        %v6032 = vpack.c.b16 %v4728, %v4724
        %v6033 = vpack.c.b16 %v4733, %v4729
        %v6034 = vpack.c.b16 %v4734, %v4730
        %v6035 = vpack.c.b16 %v4735, %v4731
        %v6036 = vpack.c.b16 %v4736, %v4732
        %v6037 = vpack.c.b16 %v4741, %v4737
        %v6038 = vpack.c.b16 %v4742, %v4738
        %v6039 = vpack.c.b16 %v4743, %v4739
        %v6040 = vpack.c.b16 %v4744, %v4740
        %v6041 = vpack.c.b16 %v4749, %v4745
        %v6042 = vpack.c.b16 %v4750, %v4746
        %v6043 = vpack.c.b16 %v4751, %v4747
        %v6044 = vpack.c.b16 %v4752, %v4748
        %v6045 = vpack.c.b16 %v4757, %v4753
        %v6046 = vpack.c.b16 %v4758, %v4754
        %v6047 = vpack.c.b16 %v4759, %v4755
        %v6048 = vpack.c.b16 %v4760, %v4756
        %v6049 = vpack.c.b16 %v4765, %v4761
        %v6050 = vpack.c.b16 %v4766, %v4762
        %v6051 = vpack.c.b16 %v4767, %v4763
        %v6052 = vpack.c.b16 %v4768, %v4764
        %v6053 = vpack.c.b16 %v4773, %v4769
        %v6054 = vpack.c.b16 %v4774, %v4770
        %v6055 = vpack.c.b16 %v4775, %v4771
        %v6056 = vpack.c.b16 %v4776, %v4772
        %v6057 = vpack.c.b16 %v4781, %v4777
        %v6058 = vpack.c.b16 %v4782, %v4778
        %v6059 = vpack.c.b16 %v4783, %v4779
        %v6060 = vpack.c.b16 %v4784, %v4780
        %v6061 = vpack.c.b16 %v4789, %v4785
        %v6062 = vpack.c.b16 %v4790, %v4786
        %v6063 = vpack.c.b16 %v4791, %v4787
        %v6064 = vpack.c.b16 %v4792, %v4788
        %v6065 = vpack.c.b16 %v4797, %v4793
        %v6066 = vpack.c.b16 %v4798, %v4794
        %v6067 = vpack.c.b16 %v4799, %v4795
        %v6068 = vpack.c.b16 %v4800, %v4796
        %v6069 = vpack.c.b16 %v4805, %v4801
        %v6070 = vpack.c.b16 %v4806, %v4802
        %v6071 = vpack.c.b16 %v4807, %v4803
        %v6072 = vpack.c.b16 %v4808, %v4804
        %v6073 = vpack.c.b16 %v4813, %v4809
        %v6074 = vpack.c.b16 %v4814, %v4810
        %v6075 = vpack.c.b16 %v4815, %v4811
        %v6076 = vpack.c.b16 %v4816, %v4812
        %v6077 = vpack.c.b16 %v4821, %v4817
        %v6078 = vpack.c.b16 %v4822, %v4818
        %v6079 = vpack.c.b16 %v4823, %v4819
        %v6080 = vpack.c.b16 %v4824, %v4820
        %v6081 = vpack.c.b16 %v4829, %v4825
        %v6082 = vpack.c.b16 %v4830, %v4826
        %v6083 = vpack.c.b16 %v4831, %v4827
        %v6084 = vpack.c.b16 %v4832, %v4828
        %v6085 = vpack.c.b16 %v4837, %v4833
        %v6086 = vpack.c.b16 %v4838, %v4834
        %v6087 = vpack.c.b16 %v4839, %v4835
        %v6088 = vpack.c.b16 %v4840, %v4836
        %v6089 = vpack.c.b16 %v4845, %v4841
        %v6090 = vpack.c.b16 %v4846, %v4842
        %v6091 = vpack.c.b16 %v4847, %v4843
        %v6092 = vpack.c.b16 %v4848, %v4844
        %v6093 = vpack.c.b16 %v4853, %v4849
        %v6094 = vpack.c.b16 %v4854, %v4850
        %v6095 = vpack.c.b16 %v4855, %v4851
        %v6096 = vpack.c.b16 %v4856, %v4852
        %v6097 = vpack.c.b16 %v4861, %v4857
        %v6098 = vpack.c.b16 %v4862, %v4858
        %v6099 = vpack.c.b16 %v4863, %v4859
        %v6100 = vpack.c.b16 %v4864, %v4860
        %v6101 = vpack.c.b16 %v4869, %v4865
        %v6102 = vpack.c.b16 %v4870, %v4866
        %v6103 = vpack.c.b16 %v4871, %v4867
        %v6104 = vpack.c.b16 %v4872, %v4868
        %v6105 = vpack.c.b16 %v4877, %v4873
        %v6106 = vpack.c.b16 %v4878, %v4874
        %v6107 = vpack.c.b16 %v4879, %v4875
        %v6108 = vpack.c.b16 %v4880, %v4876
        %v6109 = vpack.c.b16 %v4885, %v4881
        %v6110 = vpack.c.b16 %v4886, %v4882
        %v6111 = vpack.c.b16 %v4887, %v4883
        %v6112 = vpack.c.b16 %v4888, %v4884
        %v6113 = vpack.c.b16 %v4893, %v4889
        %v6114 = vpack.c.b16 %v4894, %v4890
        %v6115 = vpack.c.b16 %v4895, %v4891
        %v6116 = vpack.c.b16 %v4896, %v4892
        %v6117 = vpack.c.b16 %v4901, %v4897
        %v6118 = vpack.c.b16 %v4902, %v4898
        %v6119 = vpack.c.b16 %v4903, %v4899
        %v6120 = vpack.c.b16 %v4904, %v4900
        %v6121 = vpack.c.b16 %v4909, %v4905
        %v6122 = vpack.c.b16 %v4910, %v4906
        %v6123 = vpack.c.b16 %v4911, %v4907
        %v6124 = vpack.c.b16 %v4912, %v4908
        %v6125 = vpack.c.b16 %v4917, %v4913
        %v6126 = vpack.c.b16 %v4918, %v4914
        %v6127 = vpack.c.b16 %v4919, %v4915
        %v6128 = vpack.c.b16 %v4920, %v4916
        %v6129 = vpack.c.b16 %v4925, %v4921
        %v6130 = vpack.c.b16 %v4926, %v4922
        %v6131 = vpack.c.b16 %v4927, %v4923
        %v6132 = vpack.c.b16 %v4928, %v4924
        %v6133 = vpack.c.b16 %v4933, %v4929
        %v6134 = vpack.c.b16 %v4934, %v4930
        %v6135 = vpack.c.b16 %v4935, %v4931
        %v6136 = vpack.c.b16 %v4936, %v4932
        %v6137 = vpack.c.b16 %v4941, %v4937
        %v6138 = vpack.c.b16 %v4942, %v4938
        %v6139 = vpack.c.b16 %v4943, %v4939
        %v6140 = vpack.c.b16 %v4944, %v4940
        %v6141 = vpack.c.b16 %v4949, %v4945
        %v6142 = vpack.c.b16 %v4950, %v4946
        %v6143 = vpack.c.b16 %v4951, %v4947
        %v6144 = vpack.c.b16 %v4952, %v4948
        %v6145 = vpack.c.b16 %v4957, %v4953
        %v6146 = vpack.c.b16 %v4958, %v4954
        %v6147 = vpack.c.b16 %v4959, %v4955
        %v6148 = vpack.c.b16 %v4960, %v4956
        %v6149 = vpack.c.b16 %v4965, %v4961
        %v6150 = vpack.c.b16 %v4966, %v4962
        %v6151 = vpack.c.b16 %v4967, %v4963
        %v6152 = vpack.c.b16 %v4968, %v4964
        %v6153 = vpack.c.b16 %v4973, %v4969
        %v6154 = vpack.c.b16 %v4974, %v4970
        %v6155 = vpack.c.b16 %v4975, %v4971
        %v6156 = vpack.c.b16 %v4976, %v4972
        %v6157 = vpack.c.b16 %v4981, %v4977
        %v6158 = vpack.c.b16 %v4982, %v4978
        %v6159 = vpack.c.b16 %v4983, %v4979
        %v6160 = vpack.c.b16 %v4984, %v4980
        %v6161 = vpack.c.b16 %v4989, %v4985
        %v6162 = vpack.c.b16 %v4990, %v4986
        %v6163 = vpack.c.b16 %v4991, %v4987
        %v6164 = vpack.c.b16 %v4992, %v4988
        %v6165 = vpack.c.b16 %v4997, %v4993
        %v6166 = vpack.c.b16 %v4998, %v4994
        %v6167 = vpack.c.b16 %v4999, %v4995
        %v6168 = vpack.c.b16 %v5000, %v4996
        %v6169 = vpack.c.b16 %v5005, %v5001
        %v6170 = vpack.c.b16 %v5006, %v5002
        %v6171 = vpack.c.b16 %v5007, %v5003
        %v6172 = vpack.c.b16 %v5008, %v5004
        %v6173 = vpack.c.b16 %v5013, %v5009
        %v6174 = vpack.c.b16 %v5014, %v5010
        %v6175 = vpack.c.b16 %v5015, %v5011
        %v6176 = vpack.c.b16 %v5016, %v5012
        %v6177 = vpack.c.b16 %v5021, %v5017
        %v6178 = vpack.c.b16 %v5022, %v5018
        %v6179 = vpack.c.b16 %v5023, %v5019
        %v6180 = vpack.c.b16 %v5024, %v5020
        %v6181 = vpack.c.b16 %v5029, %v5025
        %v6182 = vpack.c.b16 %v5030, %v5026
        %v6183 = vpack.c.b16 %v5031, %v5027
        %v6184 = vpack.c.b16 %v5032, %v5028
        %v6185 = vpack.c.b16 %v5037, %v5033
        %v6186 = vpack.c.b16 %v5038, %v5034
        %v6187 = vpack.c.b16 %v5039, %v5035
        %v6188 = vpack.c.b16 %v5040, %v5036
        %v6189 = vpack.c.b16 %v5045, %v5041
        %v6190 = vpack.c.b16 %v5046, %v5042
        %v6191 = vpack.c.b16 %v5047, %v5043
        %v6192 = vpack.c.b16 %v5048, %v5044
        %v6193 = vpack.c.b16 %v5053, %v5049
        %v6194 = vpack.c.b16 %v5054, %v5050
        %v6195 = vpack.c.b16 %v5055, %v5051
        %v6196 = vpack.c.b16 %v5056, %v5052
        %v6197 = vpack.c.b16 %v5061, %v5057
        %v6198 = vpack.c.b16 %v5062, %v5058
        %v6199 = vpack.c.b16 %v5063, %v5059
        %v6200 = vpack.c.b16 %v5064, %v5060
        %v6201 = vpack.c.b16 %v5069, %v5065
        %v6202 = vpack.c.b16 %v5070, %v5066
        %v6203 = vpack.c.b16 %v5071, %v5067
        %v6204 = vpack.c.b16 %v5072, %v5068
        %v6205 = vpack.c.b16 %v5077, %v5073
        %v6206 = vpack.c.b16 %v5078, %v5074
        %v6207 = vpack.c.b16 %v5079, %v5075
        %v6208 = vpack.c.b16 %v5080, %v5076
        %v6209 = vpack.c.b16 %v5085, %v5081
        %v6210 = vpack.c.b16 %v5086, %v5082
        %v6211 = vpack.c.b16 %v5087, %v5083
        %v6212 = vpack.c.b16 %v5088, %v5084
        %v6213 = vpack.c.b16 %v5093, %v5089
        %v6214 = vpack.c.b16 %v5094, %v5090
        %v6215 = vpack.c.b16 %v5095, %v5091
        %v6216 = vpack.c.b16 %v5096, %v5092
        %v6217 = vpack.c.b16 %v5101, %v5097
        %v6218 = vpack.c.b16 %v5102, %v5098
        %v6219 = vpack.c.b16 %v5103, %v5099
        %v6220 = vpack.c.b16 %v5104, %v5100
        %v6221 = vpack.c.b16 %v5109, %v5105
        %v6222 = vpack.c.b16 %v5110, %v5106
        %v6223 = vpack.c.b16 %v5111, %v5107
        %v6224 = vpack.c.b16 %v5112, %v5108
        %v6225 = vpack.c.b16 %v5117, %v5113
        %v6226 = vpack.c.b16 %v5118, %v5114
        %v6227 = vpack.c.b16 %v5119, %v5115
        %v6228 = vpack.c.b16 %v5120, %v5116
        %v6229 = vpack.c.b16 %v5125, %v5121
        %v6230 = vpack.c.b16 %v5126, %v5122
        %v6231 = vpack.c.b16 %v5127, %v5123
        %v6232 = vpack.c.b16 %v5128, %v5124
        %v6233 = vpack.c.b16 %v5133, %v5129
        %v6234 = vpack.c.b16 %v5134, %v5130
        %v6235 = vpack.c.b16 %v5135, %v5131
        %v6236 = vpack.c.b16 %v5136, %v5132
        %v6237 = vpack.c.b16 %v5141, %v5137
        %v6238 = vpack.c.b16 %v5142, %v5138
        %v6239 = vpack.c.b16 %v5143, %v5139
        %v6240 = vpack.c.b16 %v5144, %v5140
        %v6241 = vpack.c.b16 %v5149, %v5145
        %v6242 = vpack.c.b16 %v5150, %v5146
        %v6243 = vpack.c.b16 %v5151, %v5147
        %v6244 = vpack.c.b16 %v5152, %v5148
        %v6245 = vpack.c.b16 %v5157, %v5153
        %v6246 = vpack.c.b16 %v5158, %v5154
        %v6247 = vpack.c.b16 %v5159, %v5155
        %v6248 = vpack.c.b16 %v5160, %v5156
        %v6249 = vpack.c.b16 %v5165, %v5161
        %v6250 = vpack.c.b16 %v5166, %v5162
        %v6251 = vpack.c.b16 %v5167, %v5163
        %v6252 = vpack.c.b16 %v5168, %v5164
        %v6253 = vpack.c.b16 %v5173, %v5169
        %v6254 = vpack.c.b16 %v5174, %v5170
        %v6255 = vpack.c.b16 %v5175, %v5171
        %v6256 = vpack.c.b16 %v5176, %v5172
        %v6257 = vpack.c.b16 %v5181, %v5177
        %v6258 = vpack.c.b16 %v5182, %v5178
        %v6259 = vpack.c.b16 %v5183, %v5179
        %v6260 = vpack.c.b16 %v5184, %v5180
        %v6261 = vpack.c.b16 %v5189, %v5185
        %v6262 = vpack.c.b16 %v5190, %v5186
        %v6263 = vpack.c.b16 %v5191, %v5187
        %v6264 = vpack.c.b16 %v5192, %v5188
        %v6265 = vpack.c.b16 %v5197, %v5193
        %v6266 = vpack.c.b16 %v5198, %v5194
        %v6267 = vpack.c.b16 %v5199, %v5195
        %v6268 = vpack.c.b16 %v5200, %v5196
        %v6269 = vpack.c.b16 %v5205, %v5201
        %v6270 = vpack.c.b16 %v5206, %v5202
        %v6271 = vpack.c.b16 %v5207, %v5203
        %v6272 = vpack.c.b16 %v5208, %v5204
        %v6273 = vpack.c.b16 %v5213, %v5209
        %v6274 = vpack.c.b16 %v5214, %v5210
        %v6275 = vpack.c.b16 %v5215, %v5211
        %v6276 = vpack.c.b16 %v5216, %v5212
        %v6277 = vpack.c.b16 %v5221, %v5217
        %v6278 = vpack.c.b16 %v5222, %v5218
        %v6279 = vpack.c.b16 %v5223, %v5219
        %v6280 = vpack.c.b16 %v5224, %v5220
        %v6281 = vpack.c.b16 %v5229, %v5225
        %v6282 = vpack.c.b16 %v5230, %v5226
        %v6283 = vpack.c.b16 %v5231, %v5227
        %v6284 = vpack.c.b16 %v5232, %v5228
        %v6285 = vpack.c.b16 %v5237, %v5233
        %v6286 = vpack.c.b16 %v5238, %v5234
        %v6287 = vpack.c.b16 %v5239, %v5235
        %v6288 = vpack.c.b16 %v5240, %v5236
        %v6289 = vpack.c.b16 %v5245, %v5241
        %v6290 = vpack.c.b16 %v5246, %v5242
        %v6291 = vpack.c.b16 %v5247, %v5243
        %v6292 = vpack.c.b16 %v5248, %v5244
        %v6293 = vpack.c.b16 %v5253, %v5249
        %v6294 = vpack.c.b16 %v5254, %v5250
        %v6295 = vpack.c.b16 %v5255, %v5251
        %v6296 = vpack.c.b16 %v5256, %v5252
        %v6297 = vpack.c.b16 %v5261, %v5257
        %v6298 = vpack.c.b16 %v5262, %v5258
        %v6299 = vpack.c.b16 %v5263, %v5259
        %v6300 = vpack.c.b16 %v5264, %v5260
        %v6301 = vpack.c.b16 %v5269, %v5265
        %v6302 = vpack.c.b16 %v5270, %v5266
        %v6303 = vpack.c.b16 %v5271, %v5267
        %v6304 = vpack.c.b16 %v5272, %v5268
        %v6305 = vpack.c.b16 %v5277, %v5273
        %v6306 = vpack.c.b16 %v5278, %v5274
        %v6307 = vpack.c.b16 %v5279, %v5275
        %v6308 = vpack.c.b16 %v5280, %v5276
        %v6309 = vpack.c.b16 %v5285, %v5281
        %v6310 = vpack.c.b16 %v5286, %v5282
        %v6311 = vpack.c.b16 %v5287, %v5283
        %v6312 = vpack.c.b16 %v5288, %v5284
        %7337 = vmatprep.subr.bf16.mxu0 %v5290
        %7338 = vmatpush1.bf16.msra.mxu0 %v5289
        %7339 = vmatprep.subr.bf16.mxu0 %v5294
        %7340 = vmatpush1.bf16.msra.mxu0 %v5293
        %7341 = vmatprep.subr.bf16.mxu0 %v5298
        %7342 = vmatpush1.bf16.msra.mxu0 %v5297
        %7343 = vmatprep.subr.bf16.mxu0 %v5302
        %7344 = vmatpush1.bf16.msra.mxu0 %v5301
        %7345 = vmatprep.subr.bf16.mxu0 %v5306
        %7346 = vmatpush1.bf16.msra.mxu0 %v5305
        %7347 = vmatprep.subr.bf16.mxu0 %v5310
        %7348 = vmatpush1.bf16.msra.mxu0 %v5309
        %7349 = vmatprep.subr.bf16.mxu0 %v5314
        %7350 = vmatpush1.bf16.msra.mxu0 %v5313
        %7351 = vmatprep.subr.bf16.mxu0 %v5318
        %7352 = vmatpush1.bf16.msra.mxu0 %v5317
        %7353 = vmatprep.subr.bf16.mxu0 %v5322
        %7354 = vmatpush1.bf16.msra.mxu0 %v5321
        %7355 = vmatprep.subr.bf16.mxu0 %v5326
        %7356 = vmatpush1.bf16.msra.mxu0 %v5325
        %7357 = vmatprep.subr.bf16.mxu0 %v5330
        %7358 = vmatpush1.bf16.msra.mxu0 %v5329
        %7359 = vmatprep.subr.bf16.mxu0 %v5334
        %7360 = vmatpush1.bf16.msra.mxu0 %v5333
        %7361 = vmatprep.subr.bf16.mxu0 %v5338
        %7362 = vmatpush1.bf16.msra.mxu0 %v5337
        %7363 = vmatprep.subr.bf16.mxu0 %v5342
        %7364 = vmatpush1.bf16.msra.mxu0 %v5341
        %7365 = vmatprep.subr.bf16.mxu0 %v5346
        %7366 = vmatpush1.bf16.msra.mxu0 %v5345
        %7367 = vmatprep.subr.bf16.mxu0 %v5350
        %7368 = vmatpush1.bf16.msra.mxu0 %v5349
        %7369 = vmatprep.mubr.bf16.mxu0 %v2154
        %7370 = vmatmul.mubr.bf16.gmra.mrb[0].mxu0 %v2153
        %v7371 = vpop.f32.mrb[0].mxu0
        %v7372 = vadd.f32 %v1943, %v7371
        %v7373 = vpop.f32.mrb[0].mxu0
        %v7374 = vadd.f32 %v1947, %v7373
        %v7375 = vpop.f32.mrb[0].mxu0
        %v7376 = vpop.f32.mrb[0].mxu0
        %7377 = vdwg.mxu0
        %7378 = vmatprep.subr.bf16.mxu0 %v5354
        %7379 = vmatpush1.bf16.msra.mxu0 %v5353
        %7380 = vmatprep.subr.bf16.mxu0 %v5358
        %7381 = vmatpush1.bf16.msra.mxu0 %v5357
        %7382 = vmatprep.subr.bf16.mxu0 %v5362
        %7383 = vmatpush1.bf16.msra.mxu0 %v5361
        %7384 = vmatprep.subr.bf16.mxu0 %v5366
        %7385 = vmatpush1.bf16.msra.mxu0 %v5365
        %7386 = vmatprep.subr.bf16.mxu0 %v5370
        %7387 = vmatpush1.bf16.msra.mxu0 %v5369
        %7388 = vmatprep.subr.bf16.mxu0 %v5374
        %7389 = vmatpush1.bf16.msra.mxu0 %v5373
        %7390 = vmatprep.subr.bf16.mxu0 %v5378
        %7391 = vmatpush1.bf16.msra.mxu0 %v5377
        %7392 = vmatprep.subr.bf16.mxu0 %v5382
        %7393 = vmatpush1.bf16.msra.mxu0 %v5381
        %7394 = vmatprep.subr.bf16.mxu0 %v5386
        %7395 = vmatpush1.bf16.msra.mxu0 %v5385
        %7396 = vmatprep.subr.bf16.mxu0 %v5390
        %7397 = vmatpush1.bf16.msra.mxu0 %v5389
        %7398 = vmatprep.subr.bf16.mxu0 %v5394
        %7399 = vmatpush1.bf16.msra.mxu0 %v5393
        %7400 = vmatprep.subr.bf16.mxu0 %v5398
        %7401 = vmatpush1.bf16.msra.mxu0 %v5397
        %7402 = vmatprep.subr.bf16.mxu0 %v5402
        %7403 = vmatpush1.bf16.msra.mxu0 %v5401
        %7404 = vmatprep.subr.bf16.mxu0 %v5406
        %7405 = vmatpush1.bf16.msra.mxu0 %v5405
        %7406 = vmatprep.subr.bf16.mxu0 %v5410
        %7407 = vmatpush1.bf16.msra.mxu0 %v5409
        %7408 = vmatprep.subr.bf16.mxu0 %v5414
        %7409 = vmatpush1.bf16.msra.mxu0 %v5413
        %7410 = vmatprep.mubr.bf16.mxu0 %v2156
        %7411 = vmatmul.mubr.bf16.gmra.mrb[0].mxu0 %v2155
        %v7412 = vpop.f32.mrb[0].mxu0
        %v7413 = vadd.f32 %v7372, %v7412
        %v7414 = vpop.f32.mrb[0].mxu0
        %v7415 = vadd.f32 %v7374, %v7414
        %v7416 = vpop.f32.mrb[0].mxu0
        %v7417 = vpop.f32.mrb[0].mxu0
        %7418 = vdwg.mxu0
        %7419 = vmatprep.subr.bf16.mxu0 %v5418
        %7420 = vmatpush1.bf16.msra.mxu0 %v5417
        %7421 = vmatprep.subr.bf16.mxu0 %v5422
        %7422 = vmatpush1.bf16.msra.mxu0 %v5421
        %7423 = vmatprep.subr.bf16.mxu0 %v5426
        %7424 = vmatpush1.bf16.msra.mxu0 %v5425
        %7425 = vmatprep.subr.bf16.mxu0 %v5430
        %7426 = vmatpush1.bf16.msra.mxu0 %v5429
        %7427 = vmatprep.subr.bf16.mxu0 %v5434
        %7428 = vmatpush1.bf16.msra.mxu0 %v5433
        %7429 = vmatprep.subr.bf16.mxu0 %v5438
        %7430 = vmatpush1.bf16.msra.mxu0 %v5437
        %7431 = vmatprep.subr.bf16.mxu0 %v5442
        %7432 = vmatpush1.bf16.msra.mxu0 %v5441
        %7433 = vmatprep.subr.bf16.mxu0 %v5446
        %7434 = vmatpush1.bf16.msra.mxu0 %v5445
        %7435 = vmatprep.subr.bf16.mxu0 %v5450
        %7436 = vmatpush1.bf16.msra.mxu0 %v5449
        %7437 = vmatprep.subr.bf16.mxu0 %v5454
        %7438 = vmatpush1.bf16.msra.mxu0 %v5453
        %7439 = vmatprep.subr.bf16.mxu0 %v5458
        %7440 = vmatpush1.bf16.msra.mxu0 %v5457
        %7441 = vmatprep.subr.bf16.mxu0 %v5462
        %7442 = vmatpush1.bf16.msra.mxu0 %v5461
        %7443 = vmatprep.subr.bf16.mxu0 %v5466
        %7444 = vmatpush1.bf16.msra.mxu0 %v5465
        %7445 = vmatprep.subr.bf16.mxu0 %v5470
        %7446 = vmatpush1.bf16.msra.mxu0 %v5469
        %7447 = vmatprep.subr.bf16.mxu0 %v5474
        %7448 = vmatpush1.bf16.msra.mxu0 %v5473
        %7449 = vmatprep.subr.bf16.mxu0 %v5478
        %7450 = vmatpush1.bf16.msra.mxu0 %v5477
        %7451 = vmatprep.mubr.bf16.mxu0 %v2158
        %7452 = vmatmul.mubr.bf16.gmra.mrb[0].mxu0 %v2157
        %v7453 = vpop.f32.mrb[0].mxu0
        %v7454 = vadd.f32 %v7413, %v7453
        %v7455 = vpop.f32.mrb[0].mxu0
        %v7456 = vadd.f32 %v7415, %v7455
        %v7457 = vpop.f32.mrb[0].mxu0
        %v7458 = vpop.f32.mrb[0].mxu0
        %7459 = vdwg.mxu0
        %7460 = vmatprep.subr.bf16.mxu0 %v5482
        %7461 = vmatpush1.bf16.msra.mxu0 %v5481
        %7462 = vmatprep.subr.bf16.mxu0 %v5486
        %7463 = vmatpush1.bf16.msra.mxu0 %v5485
        %7464 = vmatprep.subr.bf16.mxu0 %v5490
        %7465 = vmatpush1.bf16.msra.mxu0 %v5489
        %7466 = vmatprep.subr.bf16.mxu0 %v5494
        %7467 = vmatpush1.bf16.msra.mxu0 %v5493
        %7468 = vmatprep.subr.bf16.mxu0 %v5498
        %7469 = vmatpush1.bf16.msra.mxu0 %v5497
        %7470 = vmatprep.subr.bf16.mxu0 %v5502
        %7471 = vmatpush1.bf16.msra.mxu0 %v5501
        %7472 = vmatprep.subr.bf16.mxu0 %v5506
        %7473 = vmatpush1.bf16.msra.mxu0 %v5505
        %7474 = vmatprep.subr.bf16.mxu0 %v5510
        %7475 = vmatpush1.bf16.msra.mxu0 %v5509
        %7476 = vmatprep.subr.bf16.mxu0 %v5514
        %7477 = vmatpush1.bf16.msra.mxu0 %v5513
        %7478 = vmatprep.subr.bf16.mxu0 %v5518
        %7479 = vmatpush1.bf16.msra.mxu0 %v5517
        %7480 = vmatprep.subr.bf16.mxu0 %v5522
        %7481 = vmatpush1.bf16.msra.mxu0 %v5521
        %7482 = vmatprep.subr.bf16.mxu0 %v5526
        %7483 = vmatpush1.bf16.msra.mxu0 %v5525
        %7484 = vmatprep.subr.bf16.mxu0 %v5530
        %7485 = vmatpush1.bf16.msra.mxu0 %v5529
        %7486 = vmatprep.subr.bf16.mxu0 %v5534
        %7487 = vmatpush1.bf16.msra.mxu0 %v5533
        %7488 = vmatprep.subr.bf16.mxu0 %v5538
        %7489 = vmatpush1.bf16.msra.mxu0 %v5537
        %7490 = vmatprep.subr.bf16.mxu0 %v5542
        %7491 = vmatpush1.bf16.msra.mxu0 %v5541
        %7492 = vmatprep.mubr.bf16.mxu0 %v2160
        %7493 = vmatmul.mubr.bf16.gmra.mrb[0].mxu0 %v2159
        %v7494 = vpop.f32.mrb[0].mxu0
        %v7495 = vadd.f32 %v7454, %v7494
        %v7496 = vpop.f32.mrb[0].mxu0
        %v7497 = vadd.f32 %v7456, %v7496
        %v7498 = vpop.f32.mrb[0].mxu0
        %v7499 = vpop.f32.mrb[0].mxu0
        %7500 = vdwg.mxu0
        %7501 = vmatprep.subr.bf16.mxu0 %v5546
        %7502 = vmatpush1.bf16.msra.mxu0 %v5545
        %7503 = vmatprep.subr.bf16.mxu0 %v5550
        %7504 = vmatpush1.bf16.msra.mxu0 %v5549
        %7505 = vmatprep.subr.bf16.mxu0 %v5554
        %7506 = vmatpush1.bf16.msra.mxu0 %v5553
        %7507 = vmatprep.subr.bf16.mxu0 %v5558
        %7508 = vmatpush1.bf16.msra.mxu0 %v5557
        %7509 = vmatprep.subr.bf16.mxu0 %v5562
        %7510 = vmatpush1.bf16.msra.mxu0 %v5561
        %7511 = vmatprep.subr.bf16.mxu0 %v5566
        %7512 = vmatpush1.bf16.msra.mxu0 %v5565
        %7513 = vmatprep.subr.bf16.mxu0 %v5570
        %7514 = vmatpush1.bf16.msra.mxu0 %v5569
        %7515 = vmatprep.subr.bf16.mxu0 %v5574
        %7516 = vmatpush1.bf16.msra.mxu0 %v5573
        %7517 = vmatprep.subr.bf16.mxu0 %v5578
        %7518 = vmatpush1.bf16.msra.mxu0 %v5577
        %7519 = vmatprep.subr.bf16.mxu0 %v5582
        %7520 = vmatpush1.bf16.msra.mxu0 %v5581
        %7521 = vmatprep.subr.bf16.mxu0 %v5586
        %7522 = vmatpush1.bf16.msra.mxu0 %v5585
        %7523 = vmatprep.subr.bf16.mxu0 %v5590
        %7524 = vmatpush1.bf16.msra.mxu0 %v5589
        %7525 = vmatprep.subr.bf16.mxu0 %v5594
        %7526 = vmatpush1.bf16.msra.mxu0 %v5593
        %7527 = vmatprep.subr.bf16.mxu0 %v5598
        %7528 = vmatpush1.bf16.msra.mxu0 %v5597
        %7529 = vmatprep.subr.bf16.mxu0 %v5602
        %7530 = vmatpush1.bf16.msra.mxu0 %v5601
        %7531 = vmatprep.subr.bf16.mxu0 %v5606
        %7532 = vmatpush1.bf16.msra.mxu0 %v5605
        %7533 = vmatprep.mubr.bf16.mxu0 %v2162
        %7534 = vmatmul.mubr.bf16.gmra.mrb[0].mxu0 %v2161
        %v7535 = vpop.f32.mrb[0].mxu0
        %v7536 = vadd.f32 %v7495, %v7535
        %v7537 = vpop.f32.mrb[0].mxu0
        %v7538 = vadd.f32 %v7497, %v7537
        %v7539 = vpop.f32.mrb[0].mxu0
        %v7540 = vpop.f32.mrb[0].mxu0
        %7541 = vdwg.mxu0
        %7542 = vmatprep.subr.bf16.mxu0 %v5610
        %7543 = vmatpush1.bf16.msra.mxu0 %v5609
        %7544 = vmatprep.subr.bf16.mxu0 %v5614
        %7545 = vmatpush1.bf16.msra.mxu0 %v5613
        %7546 = vmatprep.subr.bf16.mxu0 %v5618
        %7547 = vmatpush1.bf16.msra.mxu0 %v5617
        %7548 = vmatprep.subr.bf16.mxu0 %v5622
        %7549 = vmatpush1.bf16.msra.mxu0 %v5621
        %7550 = vmatprep.subr.bf16.mxu0 %v5626
        %7551 = vmatpush1.bf16.msra.mxu0 %v5625
        %7552 = vmatprep.subr.bf16.mxu0 %v5630
        %7553 = vmatpush1.bf16.msra.mxu0 %v5629
        %7554 = vmatprep.subr.bf16.mxu0 %v5634
        %7555 = vmatpush1.bf16.msra.mxu0 %v5633
        %7556 = vmatprep.subr.bf16.mxu0 %v5638
        %7557 = vmatpush1.bf16.msra.mxu0 %v5637
        %7558 = vmatprep.subr.bf16.mxu0 %v5642
        %7559 = vmatpush1.bf16.msra.mxu0 %v5641
        %7560 = vmatprep.subr.bf16.mxu0 %v5646
        %7561 = vmatpush1.bf16.msra.mxu0 %v5645
        %7562 = vmatprep.subr.bf16.mxu0 %v5650
        %7563 = vmatpush1.bf16.msra.mxu0 %v5649
        %7564 = vmatprep.subr.bf16.mxu0 %v5654
        %7565 = vmatpush1.bf16.msra.mxu0 %v5653
        %7566 = vmatprep.subr.bf16.mxu0 %v5658
        %7567 = vmatpush1.bf16.msra.mxu0 %v5657
        %7568 = vmatprep.subr.bf16.mxu0 %v5662
        %7569 = vmatpush1.bf16.msra.mxu0 %v5661
        %7570 = vmatprep.subr.bf16.mxu0 %v5666
        %7571 = vmatpush1.bf16.msra.mxu0 %v5665
        %7572 = vmatprep.subr.bf16.mxu0 %v5670
        %7573 = vmatpush1.bf16.msra.mxu0 %v5669
        %7574 = vmatprep.mubr.bf16.mxu0 %v2164
        %7575 = vmatmul.mubr.bf16.gmra.mrb[0].mxu0 %v2163
        %v7576 = vpop.f32.mrb[0].mxu0
        %v7577 = vadd.f32 %v7536, %v7576
        %v7578 = vpop.f32.mrb[0].mxu0
        %v7579 = vadd.f32 %v7538, %v7578
        %v7580 = vpop.f32.mrb[0].mxu0
        %v7581 = vpop.f32.mrb[0].mxu0
        %7582 = vdwg.mxu0
        %7583 = vmatprep.subr.bf16.mxu0 %v5674
        %7584 = vmatpush1.bf16.msra.mxu0 %v5673
        %7585 = vmatprep.subr.bf16.mxu0 %v5678
        %7586 = vmatpush1.bf16.msra.mxu0 %v5677
        %7587 = vmatprep.subr.bf16.mxu0 %v5682
        %7588 = vmatpush1.bf16.msra.mxu0 %v5681
        %7589 = vmatprep.subr.bf16.mxu0 %v5686
        %7590 = vmatpush1.bf16.msra.mxu0 %v5685
        %7591 = vmatprep.subr.bf16.mxu0 %v5690
        %7592 = vmatpush1.bf16.msra.mxu0 %v5689
        %7593 = vmatprep.subr.bf16.mxu0 %v5694
        %7594 = vmatpush1.bf16.msra.mxu0 %v5693
        %7595 = vmatprep.subr.bf16.mxu0 %v5698
        %7596 = vmatpush1.bf16.msra.mxu0 %v5697
        %7597 = vmatprep.subr.bf16.mxu0 %v5702
        %7598 = vmatpush1.bf16.msra.mxu0 %v5701
        %7599 = vmatprep.subr.bf16.mxu0 %v5706
        %7600 = vmatpush1.bf16.msra.mxu0 %v5705
        %7601 = vmatprep.subr.bf16.mxu0 %v5710
        %7602 = vmatpush1.bf16.msra.mxu0 %v5709
        %7603 = vmatprep.subr.bf16.mxu0 %v5714
        %7604 = vmatpush1.bf16.msra.mxu0 %v5713
        %7605 = vmatprep.subr.bf16.mxu0 %v5718
        %7606 = vmatpush1.bf16.msra.mxu0 %v5717
        %7607 = vmatprep.subr.bf16.mxu0 %v5722
        %7608 = vmatpush1.bf16.msra.mxu0 %v5721
        %7609 = vmatprep.subr.bf16.mxu0 %v5726
        %7610 = vmatpush1.bf16.msra.mxu0 %v5725
        %7611 = vmatprep.subr.bf16.mxu0 %v5730
        %7612 = vmatpush1.bf16.msra.mxu0 %v5729
        %7613 = vmatprep.subr.bf16.mxu0 %v5734
        %7614 = vmatpush1.bf16.msra.mxu0 %v5733
        %7615 = vmatprep.mubr.bf16.mxu0 %v2166
        %7616 = vmatmul.mubr.bf16.gmra.mrb[0].mxu0 %v2165
        %v7617 = vpop.f32.mrb[0].mxu0
        %v7618 = vadd.f32 %v7577, %v7617
        %v7619 = vpop.f32.mrb[0].mxu0
        %v7620 = vadd.f32 %v7579, %v7619
        %v7621 = vpop.f32.mrb[0].mxu0
        %v7622 = vpop.f32.mrb[0].mxu0
        %7623 = vdwg.mxu0
        %7624 = vmatprep.subr.bf16.mxu0 %v5738
        %7625 = vmatpush1.bf16.msra.mxu0 %v5737
        %7626 = vmatprep.subr.bf16.mxu0 %v5742
        %7627 = vmatpush1.bf16.msra.mxu0 %v5741
        %7628 = vmatprep.subr.bf16.mxu0 %v5746
        %7629 = vmatpush1.bf16.msra.mxu0 %v5745
        %7630 = vmatprep.subr.bf16.mxu0 %v5750
        %7631 = vmatpush1.bf16.msra.mxu0 %v5749
        %7632 = vmatprep.subr.bf16.mxu0 %v5754
        %7633 = vmatpush1.bf16.msra.mxu0 %v5753
        %7634 = vmatprep.subr.bf16.mxu0 %v5758
        %7635 = vmatpush1.bf16.msra.mxu0 %v5757
        %7636 = vmatprep.subr.bf16.mxu0 %v5762
        %7637 = vmatpush1.bf16.msra.mxu0 %v5761
        %7638 = vmatprep.subr.bf16.mxu0 %v5766
        %7639 = vmatpush1.bf16.msra.mxu0 %v5765
        %7640 = vmatprep.subr.bf16.mxu0 %v5770
        %7641 = vmatpush1.bf16.msra.mxu0 %v5769
        %7642 = vmatprep.subr.bf16.mxu0 %v5774
        %7643 = vmatpush1.bf16.msra.mxu0 %v5773
        %7644 = vmatprep.subr.bf16.mxu0 %v5778
        %7645 = vmatpush1.bf16.msra.mxu0 %v5777
        %7646 = vmatprep.subr.bf16.mxu0 %v5782
        %7647 = vmatpush1.bf16.msra.mxu0 %v5781
        %7648 = vmatprep.subr.bf16.mxu0 %v5786
        %7649 = vmatpush1.bf16.msra.mxu0 %v5785
        %7650 = vmatprep.subr.bf16.mxu0 %v5790
        %7651 = vmatpush1.bf16.msra.mxu0 %v5789
        %7652 = vmatprep.subr.bf16.mxu0 %v5794
        %7653 = vmatpush1.bf16.msra.mxu0 %v5793
        %7654 = vmatprep.subr.bf16.mxu0 %v5798
        %7655 = vmatpush1.bf16.msra.mxu0 %v5797
        %7656 = vmatprep.mubr.bf16.mxu0 %v2168
        %7657 = vmatmul.mubr.bf16.gmra.mrb[0].mxu0 %v2167
        %v7658 = vpop.f32.mrb[0].mxu0
        %v7659 = vadd.f32 %v7618, %v7658
        %v7660 = vpop.f32.mrb[0].mxu0
        %v7661 = vadd.f32 %v7620, %v7660
        %v7662 = vpop.f32.mrb[0].mxu0
        %v7663 = vpop.f32.mrb[0].mxu0
        %7664 = vdwg.mxu0
        %7665 = vmatprep.subr.bf16.mxu0 %v5802
        %7666 = vmatpush1.bf16.msra.mxu0 %v5801
        %7667 = vmatprep.subr.bf16.mxu0 %v5806
        %7668 = vmatpush1.bf16.msra.mxu0 %v5805
        %7669 = vmatprep.subr.bf16.mxu0 %v5810
        %7670 = vmatpush1.bf16.msra.mxu0 %v5809
        %7671 = vmatprep.subr.bf16.mxu0 %v5814
        %7672 = vmatpush1.bf16.msra.mxu0 %v5813
        %7673 = vmatprep.subr.bf16.mxu0 %v5818
        %7674 = vmatpush1.bf16.msra.mxu0 %v5817
        %7675 = vmatprep.subr.bf16.mxu0 %v5822
        %7676 = vmatpush1.bf16.msra.mxu0 %v5821
        %7677 = vmatprep.subr.bf16.mxu0 %v5826
        %7678 = vmatpush1.bf16.msra.mxu0 %v5825
        %7679 = vmatprep.subr.bf16.mxu0 %v5830
        %7680 = vmatpush1.bf16.msra.mxu0 %v5829
        %7681 = vmatprep.subr.bf16.mxu0 %v5834
        %7682 = vmatpush1.bf16.msra.mxu0 %v5833
        %7683 = vmatprep.subr.bf16.mxu0 %v5838
        %7684 = vmatpush1.bf16.msra.mxu0 %v5837
        %7685 = vmatprep.subr.bf16.mxu0 %v5842
        %7686 = vmatpush1.bf16.msra.mxu0 %v5841
        %7687 = vmatprep.subr.bf16.mxu0 %v5846
        %7688 = vmatpush1.bf16.msra.mxu0 %v5845
        %7689 = vmatprep.subr.bf16.mxu0 %v5850
        %7690 = vmatpush1.bf16.msra.mxu0 %v5849
        %7691 = vmatprep.subr.bf16.mxu0 %v5854
        %7692 = vmatpush1.bf16.msra.mxu0 %v5853
        %7693 = vmatprep.subr.bf16.mxu0 %v5858
        %7694 = vmatpush1.bf16.msra.mxu0 %v5857
        %7695 = vmatprep.subr.bf16.mxu0 %v5862
        %7696 = vmatpush1.bf16.msra.mxu0 %v5861
        %7697 = vmatprep.mubr.bf16.mxu0 %v2170
        %7698 = vmatmul.mubr.bf16.gmra.mrb[0].mxu0 %v2169
        %v7699 = vpop.f32.mrb[0].mxu0
        %v7700 = vadd.f32 %v7659, %v7699
        %v7701 = vpop.f32.mrb[0].mxu0
        %v7702 = vadd.f32 %v7661, %v7701
        %v7703 = vpop.f32.mrb[0].mxu0
        %v7704 = vpop.f32.mrb[0].mxu0
        %7705 = vdwg.mxu0
        %7706 = vmatprep.subr.bf16.mxu0 %v5866
        %7707 = vmatpush1.bf16.msra.mxu0 %v5865
        %7708 = vmatprep.subr.bf16.mxu0 %v5870
        %7709 = vmatpush1.bf16.msra.mxu0 %v5869
        %7710 = vmatprep.subr.bf16.mxu0 %v5874
        %7711 = vmatpush1.bf16.msra.mxu0 %v5873
        %7712 = vmatprep.subr.bf16.mxu0 %v5878
        %7713 = vmatpush1.bf16.msra.mxu0 %v5877
        %7714 = vmatprep.subr.bf16.mxu0 %v5882
        %7715 = vmatpush1.bf16.msra.mxu0 %v5881
        %7716 = vmatprep.subr.bf16.mxu0 %v5886
        %7717 = vmatpush1.bf16.msra.mxu0 %v5885
        %7718 = vmatprep.subr.bf16.mxu0 %v5890
        %7719 = vmatpush1.bf16.msra.mxu0 %v5889
        %7720 = vmatprep.subr.bf16.mxu0 %v5894
        %7721 = vmatpush1.bf16.msra.mxu0 %v5893
        %7722 = vmatprep.subr.bf16.mxu0 %v5898
        %7723 = vmatpush1.bf16.msra.mxu0 %v5897
        %7724 = vmatprep.subr.bf16.mxu0 %v5902
        %7725 = vmatpush1.bf16.msra.mxu0 %v5901
        %7726 = vmatprep.subr.bf16.mxu0 %v5906
        %7727 = vmatpush1.bf16.msra.mxu0 %v5905
        %7728 = vmatprep.subr.bf16.mxu0 %v5910
        %7729 = vmatpush1.bf16.msra.mxu0 %v5909
        %7730 = vmatprep.subr.bf16.mxu0 %v5914
        %7731 = vmatpush1.bf16.msra.mxu0 %v5913
        %7732 = vmatprep.subr.bf16.mxu0 %v5918
        %7733 = vmatpush1.bf16.msra.mxu0 %v5917
        %7734 = vmatprep.subr.bf16.mxu0 %v5922
        %7735 = vmatpush1.bf16.msra.mxu0 %v5921
        %7736 = vmatprep.subr.bf16.mxu0 %v5926
        %7737 = vmatpush1.bf16.msra.mxu0 %v5925
        %7738 = vmatprep.mubr.bf16.mxu0 %v2172
        %7739 = vmatmul.mubr.bf16.gmra.mrb[0].mxu0 %v2171
        %v7740 = vpop.f32.mrb[0].mxu0
        %v7741 = vadd.f32 %v7700, %v7740
        %v7742 = vpop.f32.mrb[0].mxu0
        %v7743 = vadd.f32 %v7702, %v7742
        %v7744 = vpop.f32.mrb[0].mxu0
        %v7745 = vpop.f32.mrb[0].mxu0
        %7746 = vdwg.mxu0
        %7747 = vmatprep.subr.bf16.mxu0 %v5930
        %7748 = vmatpush1.bf16.msra.mxu0 %v5929
        %7749 = vmatprep.subr.bf16.mxu0 %v5934
        %7750 = vmatpush1.bf16.msra.mxu0 %v5933
        %7751 = vmatprep.subr.bf16.mxu0 %v5938
        %7752 = vmatpush1.bf16.msra.mxu0 %v5937
        %7753 = vmatprep.subr.bf16.mxu0 %v5942
        %7754 = vmatpush1.bf16.msra.mxu0 %v5941
        %7755 = vmatprep.subr.bf16.mxu0 %v5946
        %7756 = vmatpush1.bf16.msra.mxu0 %v5945
        %7757 = vmatprep.subr.bf16.mxu0 %v5950
        %7758 = vmatpush1.bf16.msra.mxu0 %v5949
        %7759 = vmatprep.subr.bf16.mxu0 %v5954
        %7760 = vmatpush1.bf16.msra.mxu0 %v5953
        %7761 = vmatprep.subr.bf16.mxu0 %v5958
        %7762 = vmatpush1.bf16.msra.mxu0 %v5957
        %7763 = vmatprep.subr.bf16.mxu0 %v5962
        %7764 = vmatpush1.bf16.msra.mxu0 %v5961
        %7765 = vmatprep.subr.bf16.mxu0 %v5966
        %7766 = vmatpush1.bf16.msra.mxu0 %v5965
        %7767 = vmatprep.subr.bf16.mxu0 %v5970
        %7768 = vmatpush1.bf16.msra.mxu0 %v5969
        %7769 = vmatprep.subr.bf16.mxu0 %v5974
        %7770 = vmatpush1.bf16.msra.mxu0 %v5973
        %7771 = vmatprep.subr.bf16.mxu0 %v5978
        %7772 = vmatpush1.bf16.msra.mxu0 %v5977
        %7773 = vmatprep.subr.bf16.mxu0 %v5982
        %7774 = vmatpush1.bf16.msra.mxu0 %v5981
        %7775 = vmatprep.subr.bf16.mxu0 %v5986
        %7776 = vmatpush1.bf16.msra.mxu0 %v5985
        %7777 = vmatprep.subr.bf16.mxu0 %v5990
        %7778 = vmatpush1.bf16.msra.mxu0 %v5989
        %7779 = vmatprep.mubr.bf16.mxu0 %v2174
        %7780 = vmatmul.mubr.bf16.gmra.mrb[0].mxu0 %v2173
        %v7781 = vpop.f32.mrb[0].mxu0
        %v7782 = vadd.f32 %v7741, %v7781
        %v7783 = vpop.f32.mrb[0].mxu0
        %v7784 = vadd.f32 %v7743, %v7783
        %v7785 = vpop.f32.mrb[0].mxu0
        %v7786 = vpop.f32.mrb[0].mxu0
        %7787 = vdwg.mxu0
        %7788 = vmatprep.subr.bf16.mxu0 %v5994
        %7789 = vmatpush1.bf16.msra.mxu0 %v5993
        %7790 = vmatprep.subr.bf16.mxu0 %v5998
        %7791 = vmatpush1.bf16.msra.mxu0 %v5997
        %7792 = vmatprep.subr.bf16.mxu0 %v6002
        %7793 = vmatpush1.bf16.msra.mxu0 %v6001
        %7794 = vmatprep.subr.bf16.mxu0 %v6006
        %7795 = vmatpush1.bf16.msra.mxu0 %v6005
        %7796 = vmatprep.subr.bf16.mxu0 %v6010
        %7797 = vmatpush1.bf16.msra.mxu0 %v6009
        %7798 = vmatprep.subr.bf16.mxu0 %v6014
        %7799 = vmatpush1.bf16.msra.mxu0 %v6013
        %7800 = vmatprep.subr.bf16.mxu0 %v6018
        %7801 = vmatpush1.bf16.msra.mxu0 %v6017
        %7802 = vmatprep.subr.bf16.mxu0 %v6022
        %7803 = vmatpush1.bf16.msra.mxu0 %v6021
        %7804 = vmatprep.subr.bf16.mxu0 %v6026
        %7805 = vmatpush1.bf16.msra.mxu0 %v6025
        %7806 = vmatprep.subr.bf16.mxu0 %v6030
        %7807 = vmatpush1.bf16.msra.mxu0 %v6029
        %7808 = vmatprep.subr.bf16.mxu0 %v6034
        %7809 = vmatpush1.bf16.msra.mxu0 %v6033
        %7810 = vmatprep.subr.bf16.mxu0 %v6038
        %7811 = vmatpush1.bf16.msra.mxu0 %v6037
        %7812 = vmatprep.subr.bf16.mxu0 %v6042
        %7813 = vmatpush1.bf16.msra.mxu0 %v6041
        %7814 = vmatprep.subr.bf16.mxu0 %v6046
        %7815 = vmatpush1.bf16.msra.mxu0 %v6045
        %7816 = vmatprep.subr.bf16.mxu0 %v6050
        %7817 = vmatpush1.bf16.msra.mxu0 %v6049
        %7818 = vmatprep.subr.bf16.mxu0 %v6054
        %7819 = vmatpush1.bf16.msra.mxu0 %v6053
        %7820 = vmatprep.mubr.bf16.mxu0 %v2176
        %7821 = vmatmul.mubr.bf16.gmra.mrb[0].mxu0 %v2175
        %v7822 = vpop.f32.mrb[0].mxu0
        %v7823 = vadd.f32 %v7782, %v7822
        %v7824 = vpop.f32.mrb[0].mxu0
        %v7825 = vadd.f32 %v7784, %v7824
        %v7826 = vpop.f32.mrb[0].mxu0
        %v7827 = vpop.f32.mrb[0].mxu0
        %7828 = vdwg.mxu0
        %7829 = vmatprep.subr.bf16.mxu0 %v6058
        %7830 = vmatpush1.bf16.msra.mxu0 %v6057
        %7831 = vmatprep.subr.bf16.mxu0 %v6062
        %7832 = vmatpush1.bf16.msra.mxu0 %v6061
        %7833 = vmatprep.subr.bf16.mxu0 %v6066
        %7834 = vmatpush1.bf16.msra.mxu0 %v6065
        %7835 = vmatprep.subr.bf16.mxu0 %v6070
        %7836 = vmatpush1.bf16.msra.mxu0 %v6069
        %7837 = vmatprep.subr.bf16.mxu0 %v6074
        %7838 = vmatpush1.bf16.msra.mxu0 %v6073
        %7839 = vmatprep.subr.bf16.mxu0 %v6078
        %7840 = vmatpush1.bf16.msra.mxu0 %v6077
        %7841 = vmatprep.subr.bf16.mxu0 %v6082
        %7842 = vmatpush1.bf16.msra.mxu0 %v6081
        %7843 = vmatprep.subr.bf16.mxu0 %v6086
        %7844 = vmatpush1.bf16.msra.mxu0 %v6085
        %7845 = vmatprep.subr.bf16.mxu0 %v6090
        %7846 = vmatpush1.bf16.msra.mxu0 %v6089
        %7847 = vmatprep.subr.bf16.mxu0 %v6094
        %7848 = vmatpush1.bf16.msra.mxu0 %v6093
        %7849 = vmatprep.subr.bf16.mxu0 %v6098
        %7850 = vmatpush1.bf16.msra.mxu0 %v6097
        %7851 = vmatprep.subr.bf16.mxu0 %v6102
        %7852 = vmatpush1.bf16.msra.mxu0 %v6101
        %7853 = vmatprep.subr.bf16.mxu0 %v6106
        %7854 = vmatpush1.bf16.msra.mxu0 %v6105
        %7855 = vmatprep.subr.bf16.mxu0 %v6110
        %7856 = vmatpush1.bf16.msra.mxu0 %v6109
        %7857 = vmatprep.subr.bf16.mxu0 %v6114
        %7858 = vmatpush1.bf16.msra.mxu0 %v6113
        %7859 = vmatprep.subr.bf16.mxu0 %v6118
        %7860 = vmatpush1.bf16.msra.mxu0 %v6117
        %7861 = vmatprep.mubr.bf16.mxu0 %v2178
        %7862 = vmatmul.mubr.bf16.gmra.mrb[0].mxu0 %v2177
        %v7863 = vpop.f32.mrb[0].mxu0
        %v7864 = vadd.f32 %v7823, %v7863
        %v7865 = vpop.f32.mrb[0].mxu0
        %v7866 = vadd.f32 %v7825, %v7865
        %v7867 = vpop.f32.mrb[0].mxu0
        %v7868 = vpop.f32.mrb[0].mxu0
        %7869 = vdwg.mxu0
        %7870 = vmatprep.subr.bf16.mxu0 %v6122
        %7871 = vmatpush1.bf16.msra.mxu0 %v6121
        %7872 = vmatprep.subr.bf16.mxu0 %v6126
        %7873 = vmatpush1.bf16.msra.mxu0 %v6125
        %7874 = vmatprep.subr.bf16.mxu0 %v6130
        %7875 = vmatpush1.bf16.msra.mxu0 %v6129
        %7876 = vmatprep.subr.bf16.mxu0 %v6134
        %7877 = vmatpush1.bf16.msra.mxu0 %v6133
        %7878 = vmatprep.subr.bf16.mxu0 %v6138
        %7879 = vmatpush1.bf16.msra.mxu0 %v6137
        %7880 = vmatprep.subr.bf16.mxu0 %v6142
        %7881 = vmatpush1.bf16.msra.mxu0 %v6141
        %7882 = vmatprep.subr.bf16.mxu0 %v6146
        %7883 = vmatpush1.bf16.msra.mxu0 %v6145
        %7884 = vmatprep.subr.bf16.mxu0 %v6150
        %7885 = vmatpush1.bf16.msra.mxu0 %v6149
        %7886 = vmatprep.subr.bf16.mxu0 %v6154
        %7887 = vmatpush1.bf16.msra.mxu0 %v6153
        %7888 = vmatprep.subr.bf16.mxu0 %v6158
        %7889 = vmatpush1.bf16.msra.mxu0 %v6157
        %7890 = vmatprep.subr.bf16.mxu0 %v6162
        %7891 = vmatpush1.bf16.msra.mxu0 %v6161
        %7892 = vmatprep.subr.bf16.mxu0 %v6166
        %7893 = vmatpush1.bf16.msra.mxu0 %v6165
        %7894 = vmatprep.subr.bf16.mxu0 %v6170
        %7895 = vmatpush1.bf16.msra.mxu0 %v6169
        %7896 = vmatprep.subr.bf16.mxu0 %v6174
        %7897 = vmatpush1.bf16.msra.mxu0 %v6173
        %7898 = vmatprep.subr.bf16.mxu0 %v6178
        %7899 = vmatpush1.bf16.msra.mxu0 %v6177
        %7900 = vmatprep.subr.bf16.mxu0 %v6182
        %7901 = vmatpush1.bf16.msra.mxu0 %v6181
        %7902 = vmatprep.mubr.bf16.mxu0 %v2180
        %7903 = vmatmul.mubr.bf16.gmra.mrb[0].mxu0 %v2179
        %v7904 = vpop.f32.mrb[0].mxu0
        %v7905 = vadd.f32 %v7864, %v7904
        %v7906 = vpop.f32.mrb[0].mxu0
        %v7907 = vadd.f32 %v7866, %v7906
        %v7908 = vpop.f32.mrb[0].mxu0
        %v7909 = vpop.f32.mrb[0].mxu0
        %7910 = vdwg.mxu0
        %7911 = vmatprep.subr.bf16.mxu0 %v6186
        %7912 = vmatpush1.bf16.msra.mxu0 %v6185
        %7913 = vmatprep.subr.bf16.mxu0 %v6190
        %7914 = vmatpush1.bf16.msra.mxu0 %v6189
        %7915 = vmatprep.subr.bf16.mxu0 %v6194
        %7916 = vmatpush1.bf16.msra.mxu0 %v6193
        %7917 = vmatprep.subr.bf16.mxu0 %v6198
        %7918 = vmatpush1.bf16.msra.mxu0 %v6197
        %7919 = vmatprep.subr.bf16.mxu0 %v6202
        %7920 = vmatpush1.bf16.msra.mxu0 %v6201
        %7921 = vmatprep.subr.bf16.mxu0 %v6206
        %7922 = vmatpush1.bf16.msra.mxu0 %v6205
        %7923 = vmatprep.subr.bf16.mxu0 %v6210
        %7924 = vmatpush1.bf16.msra.mxu0 %v6209
        %7925 = vmatprep.subr.bf16.mxu0 %v6214
        %7926 = vmatpush1.bf16.msra.mxu0 %v6213
        %7927 = vmatprep.subr.bf16.mxu0 %v6218
        %7928 = vmatpush1.bf16.msra.mxu0 %v6217
        %7929 = vmatprep.subr.bf16.mxu0 %v6222
        %7930 = vmatpush1.bf16.msra.mxu0 %v6221
        %7931 = vmatprep.subr.bf16.mxu0 %v6226
        %7932 = vmatpush1.bf16.msra.mxu0 %v6225
        %7933 = vmatprep.subr.bf16.mxu0 %v6230
        %7934 = vmatpush1.bf16.msra.mxu0 %v6229
        %7935 = vmatprep.subr.bf16.mxu0 %v6234
        %7936 = vmatpush1.bf16.msra.mxu0 %v6233
        %7937 = vmatprep.subr.bf16.mxu0 %v6238
        %7938 = vmatpush1.bf16.msra.mxu0 %v6237
        %7939 = vmatprep.subr.bf16.mxu0 %v6242
        %7940 = vmatpush1.bf16.msra.mxu0 %v6241
        %7941 = vmatprep.subr.bf16.mxu0 %v6246
        %7942 = vmatpush1.bf16.msra.mxu0 %v6245
        %7943 = vmatprep.mubr.bf16.mxu0 %v2182
        %7944 = vmatmul.mubr.bf16.gmra.mrb[0].mxu0 %v2181
        %v7945 = vpop.f32.mrb[0].mxu0
        %v7946 = vadd.f32 %v7905, %v7945
        %v7947 = vpop.f32.mrb[0].mxu0
        %v7948 = vadd.f32 %v7907, %v7947
        %v7949 = vpop.f32.mrb[0].mxu0
        %v7950 = vpop.f32.mrb[0].mxu0
        %7951 = vdwg.mxu0
        %7952 = vmatprep.subr.bf16.mxu0 %v6250
        %7953 = vmatpush1.bf16.msra.mxu0 %v6249
        %7954 = vmatprep.subr.bf16.mxu0 %v6254
        %7955 = vmatpush1.bf16.msra.mxu0 %v6253
        %7956 = vmatprep.subr.bf16.mxu0 %v6258
        %7957 = vmatpush1.bf16.msra.mxu0 %v6257
        %7958 = vmatprep.subr.bf16.mxu0 %v6262
        %7959 = vmatpush1.bf16.msra.mxu0 %v6261
        %7960 = vmatprep.subr.bf16.mxu0 %v6266
        %7961 = vmatpush1.bf16.msra.mxu0 %v6265
        %7962 = vmatprep.subr.bf16.mxu0 %v6270
        %7963 = vmatpush1.bf16.msra.mxu0 %v6269
        %7964 = vmatprep.subr.bf16.mxu0 %v6274
        %7965 = vmatpush1.bf16.msra.mxu0 %v6273
        %7966 = vmatprep.subr.bf16.mxu0 %v6278
        %7967 = vmatpush1.bf16.msra.mxu0 %v6277
        %7968 = vmatprep.subr.bf16.mxu0 %v6282
        %7969 = vmatpush1.bf16.msra.mxu0 %v6281
        %7970 = vmatprep.subr.bf16.mxu0 %v6286
        %7971 = vmatpush1.bf16.msra.mxu0 %v6285
        %7972 = vmatprep.subr.bf16.mxu0 %v6290
        %7973 = vmatpush1.bf16.msra.mxu0 %v6289
        %7974 = vmatprep.subr.bf16.mxu0 %v6294
        %7975 = vmatpush1.bf16.msra.mxu0 %v6293
        %7976 = vmatprep.subr.bf16.mxu0 %v6298
        %7977 = vmatpush1.bf16.msra.mxu0 %v6297
        %7978 = vmatprep.subr.bf16.mxu0 %v6302
        %7979 = vmatpush1.bf16.msra.mxu0 %v6301
        %7980 = vmatprep.subr.bf16.mxu0 %v6306
        %7981 = vmatpush1.bf16.msra.mxu0 %v6305
        %7982 = vmatprep.subr.bf16.mxu0 %v6310
        %7983 = vmatpush1.bf16.msra.mxu0 %v6309
        %7984 = vmatprep.mubr.bf16.mxu0 %v2184
        %7985 = vmatmul.mubr.bf16.gmra.mrb[0].mxu0 %v2183
        %v7986 = vpop.f32.mrb[0].mxu0
        %v7987 = vadd.f32 %v7946, %v7986
        %v7988 = vpop.f32.mrb[0].mxu0
        %v7989 = vadd.f32 %v7948, %v7988
        %v7990 = vpop.f32.mrb[0].mxu0
        %v7991 = vpop.f32.mrb[0].mxu0
        %7992 = vdwg.mxu0
        %7993 = vmatprep.subr.bf16.mxu0 %v5292
        %7994 = vmatpush1.bf16.msra.mxu0 %v5291
        %7995 = vmatprep.subr.bf16.mxu0 %v5296
        %7996 = vmatpush1.bf16.msra.mxu0 %v5295
        %7997 = vmatprep.subr.bf16.mxu0 %v5300
        %7998 = vmatpush1.bf16.msra.mxu0 %v5299
        %7999 = vmatprep.subr.bf16.mxu0 %v5304
        %8000 = vmatpush1.bf16.msra.mxu0 %v5303
        %8001 = vmatprep.subr.bf16.mxu0 %v5308
        %8002 = vmatpush1.bf16.msra.mxu0 %v5307
        %8003 = vmatprep.subr.bf16.mxu0 %v5312
        %8004 = vmatpush1.bf16.msra.mxu0 %v5311
        %8005 = vmatprep.subr.bf16.mxu0 %v5316
        %8006 = vmatpush1.bf16.msra.mxu0 %v5315
        %8007 = vmatprep.subr.bf16.mxu0 %v5320
        %8008 = vmatpush1.bf16.msra.mxu0 %v5319
        %8009 = vmatprep.subr.bf16.mxu0 %v5324
        %8010 = vmatpush1.bf16.msra.mxu0 %v5323
        %8011 = vmatprep.subr.bf16.mxu0 %v5328
        %8012 = vmatpush1.bf16.msra.mxu0 %v5327
        %8013 = vmatprep.subr.bf16.mxu0 %v5332
        %8014 = vmatpush1.bf16.msra.mxu0 %v5331
        %8015 = vmatprep.subr.bf16.mxu0 %v5336
        %8016 = vmatpush1.bf16.msra.mxu0 %v5335
        %8017 = vmatprep.subr.bf16.mxu0 %v5340
        %8018 = vmatpush1.bf16.msra.mxu0 %v5339
        %8019 = vmatprep.subr.bf16.mxu0 %v5344
        %8020 = vmatpush1.bf16.msra.mxu0 %v5343
        %8021 = vmatprep.subr.bf16.mxu0 %v5348
        %8022 = vmatpush1.bf16.msra.mxu0 %v5347
        %8023 = vmatprep.subr.bf16.mxu0 %v5352
        %8024 = vmatpush1.bf16.msra.mxu0 %v5351
        %8025 = vmatprep.mubr.bf16.mxu0 %v2154
        %8026 = vmatmul.mubr.bf16.gmra.mrb[0].mxu0 %v2153
        %v8027 = vpop.f32.mrb[0].mxu0
        %v8028 = vadd.f32 %v1951, %v8027
        %v8029 = vpop.f32.mrb[0].mxu0
        %v8030 = vadd.f32 %v1955, %v8029
        %v8031 = vpop.f32.mrb[0].mxu0
        %v8032 = vpop.f32.mrb[0].mxu0
        %8033 = vdwg.mxu0
        %8034 = vmatprep.subr.bf16.mxu0 %v5356
        %8035 = vmatpush1.bf16.msra.mxu0 %v5355
        %8036 = vmatprep.subr.bf16.mxu0 %v5360
        %8037 = vmatpush1.bf16.msra.mxu0 %v5359
        %8038 = vmatprep.subr.bf16.mxu0 %v5364
        %8039 = vmatpush1.bf16.msra.mxu0 %v5363
        %8040 = vmatprep.subr.bf16.mxu0 %v5368
        %8041 = vmatpush1.bf16.msra.mxu0 %v5367
        %8042 = vmatprep.subr.bf16.mxu0 %v5372
        %8043 = vmatpush1.bf16.msra.mxu0 %v5371
        %8044 = vmatprep.subr.bf16.mxu0 %v5376
        %8045 = vmatpush1.bf16.msra.mxu0 %v5375
        %8046 = vmatprep.subr.bf16.mxu0 %v5380
        %8047 = vmatpush1.bf16.msra.mxu0 %v5379
        %8048 = vmatprep.subr.bf16.mxu0 %v5384
        %8049 = vmatpush1.bf16.msra.mxu0 %v5383
        %8050 = vmatprep.subr.bf16.mxu0 %v5388
        %8051 = vmatpush1.bf16.msra.mxu0 %v5387
        %8052 = vmatprep.subr.bf16.mxu0 %v5392
        %8053 = vmatpush1.bf16.msra.mxu0 %v5391
        %8054 = vmatprep.subr.bf16.mxu0 %v5396
        %8055 = vmatpush1.bf16.msra.mxu0 %v5395
        %8056 = vmatprep.subr.bf16.mxu0 %v5400
        %8057 = vmatpush1.bf16.msra.mxu0 %v5399
        %8058 = vmatprep.subr.bf16.mxu0 %v5404
        %8059 = vmatpush1.bf16.msra.mxu0 %v5403
        %8060 = vmatprep.subr.bf16.mxu0 %v5408
        %8061 = vmatpush1.bf16.msra.mxu0 %v5407
        %8062 = vmatprep.subr.bf16.mxu0 %v5412
        %8063 = vmatpush1.bf16.msra.mxu0 %v5411
        %8064 = vmatprep.subr.bf16.mxu0 %v5416
        %8065 = vmatpush1.bf16.msra.mxu0 %v5415
        %8066 = vmatprep.mubr.bf16.mxu0 %v2156
        %8067 = vmatmul.mubr.bf16.gmra.mrb[0].mxu0 %v2155
        %v8068 = vpop.f32.mrb[0].mxu0
        %v8069 = vadd.f32 %v8028, %v8068
        %v8070 = vpop.f32.mrb[0].mxu0
        %v8071 = vadd.f32 %v8030, %v8070
        %v8072 = vpop.f32.mrb[0].mxu0
        %v8073 = vpop.f32.mrb[0].mxu0
        %8074 = vdwg.mxu0
        %8075 = vmatprep.subr.bf16.mxu0 %v5420
        %8076 = vmatpush1.bf16.msra.mxu0 %v5419
        %8077 = vmatprep.subr.bf16.mxu0 %v5424
        %8078 = vmatpush1.bf16.msra.mxu0 %v5423
        %8079 = vmatprep.subr.bf16.mxu0 %v5428
        %8080 = vmatpush1.bf16.msra.mxu0 %v5427
        %8081 = vmatprep.subr.bf16.mxu0 %v5432
        %8082 = vmatpush1.bf16.msra.mxu0 %v5431
        %8083 = vmatprep.subr.bf16.mxu0 %v5436
        %8084 = vmatpush1.bf16.msra.mxu0 %v5435
        %8085 = vmatprep.subr.bf16.mxu0 %v5440
        %8086 = vmatpush1.bf16.msra.mxu0 %v5439
        %8087 = vmatprep.subr.bf16.mxu0 %v5444
        %8088 = vmatpush1.bf16.msra.mxu0 %v5443
        %8089 = vmatprep.subr.bf16.mxu0 %v5448
        %8090 = vmatpush1.bf16.msra.mxu0 %v5447
        %8091 = vmatprep.subr.bf16.mxu0 %v5452
        %8092 = vmatpush1.bf16.msra.mxu0 %v5451
        %8093 = vmatprep.subr.bf16.mxu0 %v5456
        %8094 = vmatpush1.bf16.msra.mxu0 %v5455
        %8095 = vmatprep.subr.bf16.mxu0 %v5460
        %8096 = vmatpush1.bf16.msra.mxu0 %v5459
        %8097 = vmatprep.subr.bf16.mxu0 %v5464
        %8098 = vmatpush1.bf16.msra.mxu0 %v5463
        %8099 = vmatprep.subr.bf16.mxu0 %v5468
        %8100 = vmatpush1.bf16.msra.mxu0 %v5467
        %8101 = vmatprep.subr.bf16.mxu0 %v5472
        %8102 = vmatpush1.bf16.msra.mxu0 %v5471
        %8103 = vmatprep.subr.bf16.mxu0 %v5476
        %8104 = vmatpush1.bf16.msra.mxu0 %v5475
        %8105 = vmatprep.subr.bf16.mxu0 %v5480
        %8106 = vmatpush1.bf16.msra.mxu0 %v5479
        %8107 = vmatprep.mubr.bf16.mxu0 %v2158
        %8108 = vmatmul.mubr.bf16.gmra.mrb[0].mxu0 %v2157
        %v8109 = vpop.f32.mrb[0].mxu0
        %v8110 = vadd.f32 %v8069, %v8109
        %v8111 = vpop.f32.mrb[0].mxu0
        %v8112 = vadd.f32 %v8071, %v8111
        %v8113 = vpop.f32.mrb[0].mxu0
        %v8114 = vpop.f32.mrb[0].mxu0
        %8115 = vdwg.mxu0
        %8116 = vmatprep.subr.bf16.mxu0 %v5484
        %8117 = vmatpush1.bf16.msra.mxu0 %v5483
        %8118 = vmatprep.subr.bf16.mxu0 %v5488
        %8119 = vmatpush1.bf16.msra.mxu0 %v5487
        %8120 = vmatprep.subr.bf16.mxu0 %v5492
        %8121 = vmatpush1.bf16.msra.mxu0 %v5491
        %8122 = vmatprep.subr.bf16.mxu0 %v5496
        %8123 = vmatpush1.bf16.msra.mxu0 %v5495
        %8124 = vmatprep.subr.bf16.mxu0 %v5500
        %8125 = vmatpush1.bf16.msra.mxu0 %v5499
        %8126 = vmatprep.subr.bf16.mxu0 %v5504
        %8127 = vmatpush1.bf16.msra.mxu0 %v5503
        %8128 = vmatprep.subr.bf16.mxu0 %v5508
        %8129 = vmatpush1.bf16.msra.mxu0 %v5507
        %8130 = vmatprep.subr.bf16.mxu0 %v5512
        %8131 = vmatpush1.bf16.msra.mxu0 %v5511
        %8132 = vmatprep.subr.bf16.mxu0 %v5516
        %8133 = vmatpush1.bf16.msra.mxu0 %v5515
        %8134 = vmatprep.subr.bf16.mxu0 %v5520
        %8135 = vmatpush1.bf16.msra.mxu0 %v5519
        %8136 = vmatprep.subr.bf16.mxu0 %v5524
        %8137 = vmatpush1.bf16.msra.mxu0 %v5523
        %8138 = vmatprep.subr.bf16.mxu0 %v5528
        %8139 = vmatpush1.bf16.msra.mxu0 %v5527
        %8140 = vmatprep.subr.bf16.mxu0 %v5532
        %8141 = vmatpush1.bf16.msra.mxu0 %v5531
        %8142 = vmatprep.subr.bf16.mxu0 %v5536
        %8143 = vmatpush1.bf16.msra.mxu0 %v5535
        %8144 = vmatprep.subr.bf16.mxu0 %v5540
        %8145 = vmatpush1.bf16.msra.mxu0 %v5539
        %8146 = vmatprep.subr.bf16.mxu0 %v5544
        %8147 = vmatpush1.bf16.msra.mxu0 %v5543
        %8148 = vmatprep.mubr.bf16.mxu0 %v2160
        %8149 = vmatmul.mubr.bf16.gmra.mrb[0].mxu0 %v2159
        %v8150 = vpop.f32.mrb[0].mxu0
        %v8151 = vadd.f32 %v8110, %v8150
        %v8152 = vpop.f32.mrb[0].mxu0
        %v8153 = vadd.f32 %v8112, %v8152
        %v8154 = vpop.f32.mrb[0].mxu0
        %v8155 = vpop.f32.mrb[0].mxu0
        %8156 = vdwg.mxu0
        %8157 = vmatprep.subr.bf16.mxu0 %v5548
        %8158 = vmatpush1.bf16.msra.mxu0 %v5547
        %8159 = vmatprep.subr.bf16.mxu0 %v5552
        %8160 = vmatpush1.bf16.msra.mxu0 %v5551
        %8161 = vmatprep.subr.bf16.mxu0 %v5556
        %8162 = vmatpush1.bf16.msra.mxu0 %v5555
        %8163 = vmatprep.subr.bf16.mxu0 %v5560
        %8164 = vmatpush1.bf16.msra.mxu0 %v5559
        %8165 = vmatprep.subr.bf16.mxu0 %v5564
        %8166 = vmatpush1.bf16.msra.mxu0 %v5563
        %8167 = vmatprep.subr.bf16.mxu0 %v5568
        %8168 = vmatpush1.bf16.msra.mxu0 %v5567
        %8169 = vmatprep.subr.bf16.mxu0 %v5572
        %8170 = vmatpush1.bf16.msra.mxu0 %v5571
        %8171 = vmatprep.subr.bf16.mxu0 %v5576
        %8172 = vmatpush1.bf16.msra.mxu0 %v5575
        %8173 = vmatprep.subr.bf16.mxu0 %v5580
        %8174 = vmatpush1.bf16.msra.mxu0 %v5579
        %8175 = vmatprep.subr.bf16.mxu0 %v5584
        %8176 = vmatpush1.bf16.msra.mxu0 %v5583
        %8177 = vmatprep.subr.bf16.mxu0 %v5588
        %8178 = vmatpush1.bf16.msra.mxu0 %v5587
        %8179 = vmatprep.subr.bf16.mxu0 %v5592
        %8180 = vmatpush1.bf16.msra.mxu0 %v5591
        %8181 = vmatprep.subr.bf16.mxu0 %v5596
        %8182 = vmatpush1.bf16.msra.mxu0 %v5595
        %8183 = vmatprep.subr.bf16.mxu0 %v5600
        %8184 = vmatpush1.bf16.msra.mxu0 %v5599
        %8185 = vmatprep.subr.bf16.mxu0 %v5604
        %8186 = vmatpush1.bf16.msra.mxu0 %v5603
        %8187 = vmatprep.subr.bf16.mxu0 %v5608
        %8188 = vmatpush1.bf16.msra.mxu0 %v5607
        %8189 = vmatprep.mubr.bf16.mxu0 %v2162
        %8190 = vmatmul.mubr.bf16.gmra.mrb[0].mxu0 %v2161
        %v8191 = vpop.f32.mrb[0].mxu0
        %v8192 = vadd.f32 %v8151, %v8191
        %v8193 = vpop.f32.mrb[0].mxu0
        %v8194 = vadd.f32 %v8153, %v8193
        %v8195 = vpop.f32.mrb[0].mxu0
        %v8196 = vpop.f32.mrb[0].mxu0
        %8197 = vdwg.mxu0
        %8198 = vmatprep.subr.bf16.mxu0 %v5612
        %8199 = vmatpush1.bf16.msra.mxu0 %v5611
        %8200 = vmatprep.subr.bf16.mxu0 %v5616
        %8201 = vmatpush1.bf16.msra.mxu0 %v5615
        %8202 = vmatprep.subr.bf16.mxu0 %v5620
        %8203 = vmatpush1.bf16.msra.mxu0 %v5619
        %8204 = vmatprep.subr.bf16.mxu0 %v5624
        %8205 = vmatpush1.bf16.msra.mxu0 %v5623
        %8206 = vmatprep.subr.bf16.mxu0 %v5628
        %8207 = vmatpush1.bf16.msra.mxu0 %v5627
        %8208 = vmatprep.subr.bf16.mxu0 %v5632
        %8209 = vmatpush1.bf16.msra.mxu0 %v5631
        %8210 = vmatprep.subr.bf16.mxu0 %v5636
        %8211 = vmatpush1.bf16.msra.mxu0 %v5635
        %8212 = vmatprep.subr.bf16.mxu0 %v5640
        %8213 = vmatpush1.bf16.msra.mxu0 %v5639
        %8214 = vmatprep.subr.bf16.mxu0 %v5644
        %8215 = vmatpush1.bf16.msra.mxu0 %v5643
        %8216 = vmatprep.subr.bf16.mxu0 %v5648
        %8217 = vmatpush1.bf16.msra.mxu0 %v5647
        %8218 = vmatprep.subr.bf16.mxu0 %v5652
        %8219 = vmatpush1.bf16.msra.mxu0 %v5651
        %8220 = vmatprep.subr.bf16.mxu0 %v5656
        %8221 = vmatpush1.bf16.msra.mxu0 %v5655
        %8222 = vmatprep.subr.bf16.mxu0 %v5660
        %8223 = vmatpush1.bf16.msra.mxu0 %v5659
        %8224 = vmatprep.subr.bf16.mxu0 %v5664
        %8225 = vmatpush1.bf16.msra.mxu0 %v5663
        %8226 = vmatprep.subr.bf16.mxu0 %v5668
        %8227 = vmatpush1.bf16.msra.mxu0 %v5667
        %8228 = vmatprep.subr.bf16.mxu0 %v5672
        %8229 = vmatpush1.bf16.msra.mxu0 %v5671
        %8230 = vmatprep.mubr.bf16.mxu0 %v2164
        %8231 = vmatmul.mubr.bf16.gmra.mrb[0].mxu0 %v2163
        %v8232 = vpop.f32.mrb[0].mxu0
        %v8233 = vadd.f32 %v8192, %v8232
        %v8234 = vpop.f32.mrb[0].mxu0
        %v8235 = vadd.f32 %v8194, %v8234
        %v8236 = vpop.f32.mrb[0].mxu0
        %v8237 = vpop.f32.mrb[0].mxu0
        %8238 = vdwg.mxu0
        %8239 = vmatprep.subr.bf16.mxu0 %v5676
        %8240 = vmatpush1.bf16.msra.mxu0 %v5675
        %8241 = vmatprep.subr.bf16.mxu0 %v5680
        %8242 = vmatpush1.bf16.msra.mxu0 %v5679
        %8243 = vmatprep.subr.bf16.mxu0 %v5684
        %8244 = vmatpush1.bf16.msra.mxu0 %v5683
        %8245 = vmatprep.subr.bf16.mxu0 %v5688
        %8246 = vmatpush1.bf16.msra.mxu0 %v5687
        %8247 = vmatprep.subr.bf16.mxu0 %v5692
        %8248 = vmatpush1.bf16.msra.mxu0 %v5691
        %8249 = vmatprep.subr.bf16.mxu0 %v5696
        %8250 = vmatpush1.bf16.msra.mxu0 %v5695
        %8251 = vmatprep.subr.bf16.mxu0 %v5700
        %8252 = vmatpush1.bf16.msra.mxu0 %v5699
        %8253 = vmatprep.subr.bf16.mxu0 %v5704
        %8254 = vmatpush1.bf16.msra.mxu0 %v5703
        %8255 = vmatprep.subr.bf16.mxu0 %v5708
        %8256 = vmatpush1.bf16.msra.mxu0 %v5707
        %8257 = vmatprep.subr.bf16.mxu0 %v5712
        %8258 = vmatpush1.bf16.msra.mxu0 %v5711
        %8259 = vmatprep.subr.bf16.mxu0 %v5716
        %8260 = vmatpush1.bf16.msra.mxu0 %v5715
        %8261 = vmatprep.subr.bf16.mxu0 %v5720
        %8262 = vmatpush1.bf16.msra.mxu0 %v5719
        %8263 = vmatprep.subr.bf16.mxu0 %v5724
        %8264 = vmatpush1.bf16.msra.mxu0 %v5723
        %8265 = vmatprep.subr.bf16.mxu0 %v5728
        %8266 = vmatpush1.bf16.msra.mxu0 %v5727
        %8267 = vmatprep.subr.bf16.mxu0 %v5732
        %8268 = vmatpush1.bf16.msra.mxu0 %v5731
        %8269 = vmatprep.subr.bf16.mxu0 %v5736
        %8270 = vmatpush1.bf16.msra.mxu0 %v5735
        %8271 = vmatprep.mubr.bf16.mxu0 %v2166
        %8272 = vmatmul.mubr.bf16.gmra.mrb[0].mxu0 %v2165
        %v8273 = vpop.f32.mrb[0].mxu0
        %v8274 = vadd.f32 %v8233, %v8273
        %v8275 = vpop.f32.mrb[0].mxu0
        %v8276 = vadd.f32 %v8235, %v8275
        %v8277 = vpop.f32.mrb[0].mxu0
        %v8278 = vpop.f32.mrb[0].mxu0
        %8279 = vdwg.mxu0
        %8280 = vmatprep.subr.bf16.mxu0 %v5740
        %8281 = vmatpush1.bf16.msra.mxu0 %v5739
        %8282 = vmatprep.subr.bf16.mxu0 %v5744
        %8283 = vmatpush1.bf16.msra.mxu0 %v5743
        %8284 = vmatprep.subr.bf16.mxu0 %v5748
        %8285 = vmatpush1.bf16.msra.mxu0 %v5747
        %8286 = vmatprep.subr.bf16.mxu0 %v5752
        %8287 = vmatpush1.bf16.msra.mxu0 %v5751
        %8288 = vmatprep.subr.bf16.mxu0 %v5756
        %8289 = vmatpush1.bf16.msra.mxu0 %v5755
        %8290 = vmatprep.subr.bf16.mxu0 %v5760
        %8291 = vmatpush1.bf16.msra.mxu0 %v5759
        %8292 = vmatprep.subr.bf16.mxu0 %v5764
        %8293 = vmatpush1.bf16.msra.mxu0 %v5763
        %8294 = vmatprep.subr.bf16.mxu0 %v5768
        %8295 = vmatpush1.bf16.msra.mxu0 %v5767
        %8296 = vmatprep.subr.bf16.mxu0 %v5772
        %8297 = vmatpush1.bf16.msra.mxu0 %v5771
        %8298 = vmatprep.subr.bf16.mxu0 %v5776
        %8299 = vmatpush1.bf16.msra.mxu0 %v5775
        %8300 = vmatprep.subr.bf16.mxu0 %v5780
        %8301 = vmatpush1.bf16.msra.mxu0 %v5779
        %8302 = vmatprep.subr.bf16.mxu0 %v5784
        %8303 = vmatpush1.bf16.msra.mxu0 %v5783
        %8304 = vmatprep.subr.bf16.mxu0 %v5788
        %8305 = vmatpush1.bf16.msra.mxu0 %v5787
        %8306 = vmatprep.subr.bf16.mxu0 %v5792
        %8307 = vmatpush1.bf16.msra.mxu0 %v5791
        %8308 = vmatprep.subr.bf16.mxu0 %v5796
        %8309 = vmatpush1.bf16.msra.mxu0 %v5795
        %8310 = vmatprep.subr.bf16.mxu0 %v5800
        %8311 = vmatpush1.bf16.msra.mxu0 %v5799
        %8312 = vmatprep.mubr.bf16.mxu0 %v2168
        %8313 = vmatmul.mubr.bf16.gmra.mrb[0].mxu0 %v2167
        %v8314 = vpop.f32.mrb[0].mxu0
        %v8315 = vadd.f32 %v8274, %v8314
        %v8316 = vpop.f32.mrb[0].mxu0
        %v8317 = vadd.f32 %v8276, %v8316
        %v8318 = vpop.f32.mrb[0].mxu0
        %v8319 = vpop.f32.mrb[0].mxu0
        %8320 = vdwg.mxu0
        %8321 = vmatprep.subr.bf16.mxu0 %v5804
        %8322 = vmatpush1.bf16.msra.mxu0 %v5803
        %8323 = vmatprep.subr.bf16.mxu0 %v5808
        %8324 = vmatpush1.bf16.msra.mxu0 %v5807
        %8325 = vmatprep.subr.bf16.mxu0 %v5812
        %8326 = vmatpush1.bf16.msra.mxu0 %v5811
        %8327 = vmatprep.subr.bf16.mxu0 %v5816
        %8328 = vmatpush1.bf16.msra.mxu0 %v5815
        %8329 = vmatprep.subr.bf16.mxu0 %v5820
        %8330 = vmatpush1.bf16.msra.mxu0 %v5819
        %8331 = vmatprep.subr.bf16.mxu0 %v5824
        %8332 = vmatpush1.bf16.msra.mxu0 %v5823
        %8333 = vmatprep.subr.bf16.mxu0 %v5828
        %8334 = vmatpush1.bf16.msra.mxu0 %v5827
        %8335 = vmatprep.subr.bf16.mxu0 %v5832
        %8336 = vmatpush1.bf16.msra.mxu0 %v5831
        %8337 = vmatprep.subr.bf16.mxu0 %v5836
        %8338 = vmatpush1.bf16.msra.mxu0 %v5835
        %8339 = vmatprep.subr.bf16.mxu0 %v5840
        %8340 = vmatpush1.bf16.msra.mxu0 %v5839
        %8341 = vmatprep.subr.bf16.mxu0 %v5844
        %8342 = vmatpush1.bf16.msra.mxu0 %v5843
        %8343 = vmatprep.subr.bf16.mxu0 %v5848
        %8344 = vmatpush1.bf16.msra.mxu0 %v5847
        %8345 = vmatprep.subr.bf16.mxu0 %v5852
        %8346 = vmatpush1.bf16.msra.mxu0 %v5851
        %8347 = vmatprep.subr.bf16.mxu0 %v5856
        %8348 = vmatpush1.bf16.msra.mxu0 %v5855
        %8349 = vmatprep.subr.bf16.mxu0 %v5860
        %8350 = vmatpush1.bf16.msra.mxu0 %v5859
        %8351 = vmatprep.subr.bf16.mxu0 %v5864
        %8352 = vmatpush1.bf16.msra.mxu0 %v5863
        %8353 = vmatprep.mubr.bf16.mxu0 %v2170
        %8354 = vmatmul.mubr.bf16.gmra.mrb[0].mxu0 %v2169
        %v8355 = vpop.f32.mrb[0].mxu0
        %v8356 = vadd.f32 %v8315, %v8355
        %v8357 = vpop.f32.mrb[0].mxu0
        %v8358 = vadd.f32 %v8317, %v8357
        %v8359 = vpop.f32.mrb[0].mxu0
        %v8360 = vpop.f32.mrb[0].mxu0
        %8361 = vdwg.mxu0
        %8362 = vmatprep.subr.bf16.mxu0 %v5868
        %8363 = vmatpush1.bf16.msra.mxu0 %v5867
        %8364 = vmatprep.subr.bf16.mxu0 %v5872
        %8365 = vmatpush1.bf16.msra.mxu0 %v5871
        %8366 = vmatprep.subr.bf16.mxu0 %v5876
        %8367 = vmatpush1.bf16.msra.mxu0 %v5875
        %8368 = vmatprep.subr.bf16.mxu0 %v5880
        %8369 = vmatpush1.bf16.msra.mxu0 %v5879
        %8370 = vmatprep.subr.bf16.mxu0 %v5884
        %8371 = vmatpush1.bf16.msra.mxu0 %v5883
        %8372 = vmatprep.subr.bf16.mxu0 %v5888
        %8373 = vmatpush1.bf16.msra.mxu0 %v5887
        %8374 = vmatprep.subr.bf16.mxu0 %v5892
        %8375 = vmatpush1.bf16.msra.mxu0 %v5891
        %8376 = vmatprep.subr.bf16.mxu0 %v5896
        %8377 = vmatpush1.bf16.msra.mxu0 %v5895
        %8378 = vmatprep.subr.bf16.mxu0 %v5900
        %8379 = vmatpush1.bf16.msra.mxu0 %v5899
        %8380 = vmatprep.subr.bf16.mxu0 %v5904
        %8381 = vmatpush1.bf16.msra.mxu0 %v5903
        %8382 = vmatprep.subr.bf16.mxu0 %v5908
        %8383 = vmatpush1.bf16.msra.mxu0 %v5907
        %8384 = vmatprep.subr.bf16.mxu0 %v5912
        %8385 = vmatpush1.bf16.msra.mxu0 %v5911
        %8386 = vmatprep.subr.bf16.mxu0 %v5916
        %8387 = vmatpush1.bf16.msra.mxu0 %v5915
        %8388 = vmatprep.subr.bf16.mxu0 %v5920
        %8389 = vmatpush1.bf16.msra.mxu0 %v5919
        %8390 = vmatprep.subr.bf16.mxu0 %v5924
        %8391 = vmatpush1.bf16.msra.mxu0 %v5923
        %8392 = vmatprep.subr.bf16.mxu0 %v5928
        %8393 = vmatpush1.bf16.msra.mxu0 %v5927
        %8394 = vmatprep.mubr.bf16.mxu0 %v2172
        %8395 = vmatmul.mubr.bf16.gmra.mrb[0].mxu0 %v2171
        %v8396 = vpop.f32.mrb[0].mxu0
        %v8397 = vadd.f32 %v8356, %v8396
        %v8398 = vpop.f32.mrb[0].mxu0
        %v8399 = vadd.f32 %v8358, %v8398
        %v8400 = vpop.f32.mrb[0].mxu0
        %v8401 = vpop.f32.mrb[0].mxu0
        %8402 = vdwg.mxu0
        %8403 = vmatprep.subr.bf16.mxu0 %v5932
        %8404 = vmatpush1.bf16.msra.mxu0 %v5931
        %8405 = vmatprep.subr.bf16.mxu0 %v5936
        %8406 = vmatpush1.bf16.msra.mxu0 %v5935
        %8407 = vmatprep.subr.bf16.mxu0 %v5940
        %8408 = vmatpush1.bf16.msra.mxu0 %v5939
        %8409 = vmatprep.subr.bf16.mxu0 %v5944
        %8410 = vmatpush1.bf16.msra.mxu0 %v5943
        %8411 = vmatprep.subr.bf16.mxu0 %v5948
        %8412 = vmatpush1.bf16.msra.mxu0 %v5947
        %8413 = vmatprep.subr.bf16.mxu0 %v5952
        %8414 = vmatpush1.bf16.msra.mxu0 %v5951
        %8415 = vmatprep.subr.bf16.mxu0 %v5956
        %8416 = vmatpush1.bf16.msra.mxu0 %v5955
        %8417 = vmatprep.subr.bf16.mxu0 %v5960
        %8418 = vmatpush1.bf16.msra.mxu0 %v5959
        %8419 = vmatprep.subr.bf16.mxu0 %v5964
        %8420 = vmatpush1.bf16.msra.mxu0 %v5963
        %8421 = vmatprep.subr.bf16.mxu0 %v5968
        %8422 = vmatpush1.bf16.msra.mxu0 %v5967
        %8423 = vmatprep.subr.bf16.mxu0 %v5972
        %8424 = vmatpush1.bf16.msra.mxu0 %v5971
        %8425 = vmatprep.subr.bf16.mxu0 %v5976
        %8426 = vmatpush1.bf16.msra.mxu0 %v5975
        %8427 = vmatprep.subr.bf16.mxu0 %v5980
        %8428 = vmatpush1.bf16.msra.mxu0 %v5979
        %8429 = vmatprep.subr.bf16.mxu0 %v5984
        %8430 = vmatpush1.bf16.msra.mxu0 %v5983
        %8431 = vmatprep.subr.bf16.mxu0 %v5988
        %8432 = vmatpush1.bf16.msra.mxu0 %v5987
        %8433 = vmatprep.subr.bf16.mxu0 %v5992
        %8434 = vmatpush1.bf16.msra.mxu0 %v5991
        %8435 = vmatprep.mubr.bf16.mxu0 %v2174
        %8436 = vmatmul.mubr.bf16.gmra.mrb[0].mxu0 %v2173
        %v8437 = vpop.f32.mrb[0].mxu0
        %v8438 = vadd.f32 %v8397, %v8437
        %v8439 = vpop.f32.mrb[0].mxu0
        %v8440 = vadd.f32 %v8399, %v8439
        %v8441 = vpop.f32.mrb[0].mxu0
        %v8442 = vpop.f32.mrb[0].mxu0
        %8443 = vdwg.mxu0
        %8444 = vmatprep.subr.bf16.mxu0 %v5996
        %8445 = vmatpush1.bf16.msra.mxu0 %v5995
        %8446 = vmatprep.subr.bf16.mxu0 %v6000
        %8447 = vmatpush1.bf16.msra.mxu0 %v5999
        %8448 = vmatprep.subr.bf16.mxu0 %v6004
        %8449 = vmatpush1.bf16.msra.mxu0 %v6003
        %8450 = vmatprep.subr.bf16.mxu0 %v6008
        %8451 = vmatpush1.bf16.msra.mxu0 %v6007
        %8452 = vmatprep.subr.bf16.mxu0 %v6012
        %8453 = vmatpush1.bf16.msra.mxu0 %v6011
        %8454 = vmatprep.subr.bf16.mxu0 %v6016
        %8455 = vmatpush1.bf16.msra.mxu0 %v6015
        %8456 = vmatprep.subr.bf16.mxu0 %v6020
        %8457 = vmatpush1.bf16.msra.mxu0 %v6019
        %8458 = vmatprep.subr.bf16.mxu0 %v6024
        %8459 = vmatpush1.bf16.msra.mxu0 %v6023
        %8460 = vmatprep.subr.bf16.mxu0 %v6028
        %8461 = vmatpush1.bf16.msra.mxu0 %v6027
        %8462 = vmatprep.subr.bf16.mxu0 %v6032
        %8463 = vmatpush1.bf16.msra.mxu0 %v6031
        %8464 = vmatprep.subr.bf16.mxu0 %v6036
        %8465 = vmatpush1.bf16.msra.mxu0 %v6035
        %8466 = vmatprep.subr.bf16.mxu0 %v6040
        %8467 = vmatpush1.bf16.msra.mxu0 %v6039
        %8468 = vmatprep.subr.bf16.mxu0 %v6044
        %8469 = vmatpush1.bf16.msra.mxu0 %v6043
        %8470 = vmatprep.subr.bf16.mxu0 %v6048
        %8471 = vmatpush1.bf16.msra.mxu0 %v6047
        %8472 = vmatprep.subr.bf16.mxu0 %v6052
        %8473 = vmatpush1.bf16.msra.mxu0 %v6051
        %8474 = vmatprep.subr.bf16.mxu0 %v6056
        %8475 = vmatpush1.bf16.msra.mxu0 %v6055
        %8476 = vmatprep.mubr.bf16.mxu0 %v2176
        %8477 = vmatmul.mubr.bf16.gmra.mrb[0].mxu0 %v2175
        %v8478 = vpop.f32.mrb[0].mxu0
        %v8479 = vadd.f32 %v8438, %v8478
        %v8480 = vpop.f32.mrb[0].mxu0
        %v8481 = vadd.f32 %v8440, %v8480
        %v8482 = vpop.f32.mrb[0].mxu0
        %v8483 = vpop.f32.mrb[0].mxu0
        %8484 = vdwg.mxu0
        %8485 = vmatprep.subr.bf16.mxu0 %v6060
        %8486 = vmatpush1.bf16.msra.mxu0 %v6059
        %8487 = vmatprep.subr.bf16.mxu0 %v6064
        %8488 = vmatpush1.bf16.msra.mxu0 %v6063
        %8489 = vmatprep.subr.bf16.mxu0 %v6068
        %8490 = vmatpush1.bf16.msra.mxu0 %v6067
        %8491 = vmatprep.subr.bf16.mxu0 %v6072
        %8492 = vmatpush1.bf16.msra.mxu0 %v6071
        %8493 = vmatprep.subr.bf16.mxu0 %v6076
        %8494 = vmatpush1.bf16.msra.mxu0 %v6075
        %8495 = vmatprep.subr.bf16.mxu0 %v6080
        %8496 = vmatpush1.bf16.msra.mxu0 %v6079
        %8497 = vmatprep.subr.bf16.mxu0 %v6084
        %8498 = vmatpush1.bf16.msra.mxu0 %v6083
        %8499 = vmatprep.subr.bf16.mxu0 %v6088
        %8500 = vmatpush1.bf16.msra.mxu0 %v6087
        %8501 = vmatprep.subr.bf16.mxu0 %v6092
        %8502 = vmatpush1.bf16.msra.mxu0 %v6091
        %8503 = vmatprep.subr.bf16.mxu0 %v6096
        %8504 = vmatpush1.bf16.msra.mxu0 %v6095
        %8505 = vmatprep.subr.bf16.mxu0 %v6100
        %8506 = vmatpush1.bf16.msra.mxu0 %v6099
        %8507 = vmatprep.subr.bf16.mxu0 %v6104
        %8508 = vmatpush1.bf16.msra.mxu0 %v6103
        %8509 = vmatprep.subr.bf16.mxu0 %v6108
        %8510 = vmatpush1.bf16.msra.mxu0 %v6107
        %8511 = vmatprep.subr.bf16.mxu0 %v6112
        %8512 = vmatpush1.bf16.msra.mxu0 %v6111
        %8513 = vmatprep.subr.bf16.mxu0 %v6116
        %8514 = vmatpush1.bf16.msra.mxu0 %v6115
        %8515 = vmatprep.subr.bf16.mxu0 %v6120
        %8516 = vmatpush1.bf16.msra.mxu0 %v6119
        %8517 = vmatprep.mubr.bf16.mxu0 %v2178
        %8518 = vmatmul.mubr.bf16.gmra.mrb[0].mxu0 %v2177
        %v8519 = vpop.f32.mrb[0].mxu0
        %v8520 = vadd.f32 %v8479, %v8519
        %v8521 = vpop.f32.mrb[0].mxu0
        %v8522 = vadd.f32 %v8481, %v8521
        %v8523 = vpop.f32.mrb[0].mxu0
        %v8524 = vpop.f32.mrb[0].mxu0
        %8525 = vdwg.mxu0
        %8526 = vmatprep.subr.bf16.mxu0 %v6124
        %8527 = vmatpush1.bf16.msra.mxu0 %v6123
        %8528 = vmatprep.subr.bf16.mxu0 %v6128
        %8529 = vmatpush1.bf16.msra.mxu0 %v6127
        %8530 = vmatprep.subr.bf16.mxu0 %v6132
        %8531 = vmatpush1.bf16.msra.mxu0 %v6131
        %8532 = vmatprep.subr.bf16.mxu0 %v6136
        %8533 = vmatpush1.bf16.msra.mxu0 %v6135
        %8534 = vmatprep.subr.bf16.mxu0 %v6140
        %8535 = vmatpush1.bf16.msra.mxu0 %v6139
        %8536 = vmatprep.subr.bf16.mxu0 %v6144
        %8537 = vmatpush1.bf16.msra.mxu0 %v6143
        %8538 = vmatprep.subr.bf16.mxu0 %v6148
        %8539 = vmatpush1.bf16.msra.mxu0 %v6147
        %8540 = vmatprep.subr.bf16.mxu0 %v6152
        %8541 = vmatpush1.bf16.msra.mxu0 %v6151
        %8542 = vmatprep.subr.bf16.mxu0 %v6156
        %8543 = vmatpush1.bf16.msra.mxu0 %v6155
        %8544 = vmatprep.subr.bf16.mxu0 %v6160
        %8545 = vmatpush1.bf16.msra.mxu0 %v6159
        %8546 = vmatprep.subr.bf16.mxu0 %v6164
        %8547 = vmatpush1.bf16.msra.mxu0 %v6163
        %8548 = vmatprep.subr.bf16.mxu0 %v6168
        %8549 = vmatpush1.bf16.msra.mxu0 %v6167
        %8550 = vmatprep.subr.bf16.mxu0 %v6172
        %8551 = vmatpush1.bf16.msra.mxu0 %v6171
        %8552 = vmatprep.subr.bf16.mxu0 %v6176
        %8553 = vmatpush1.bf16.msra.mxu0 %v6175
        %8554 = vmatprep.subr.bf16.mxu0 %v6180
        %8555 = vmatpush1.bf16.msra.mxu0 %v6179
        %8556 = vmatprep.subr.bf16.mxu0 %v6184
        %8557 = vmatpush1.bf16.msra.mxu0 %v6183
        %8558 = vmatprep.mubr.bf16.mxu0 %v2180
        %8559 = vmatmul.mubr.bf16.gmra.mrb[0].mxu0 %v2179
        %v8560 = vpop.f32.mrb[0].mxu0
        %v8561 = vadd.f32 %v8520, %v8560
        %v8562 = vpop.f32.mrb[0].mxu0
        %v8563 = vadd.f32 %v8522, %v8562
        %v8564 = vpop.f32.mrb[0].mxu0
        %v8565 = vpop.f32.mrb[0].mxu0
        %8566 = vdwg.mxu0
        %8567 = vmatprep.subr.bf16.mxu0 %v6188
        %8568 = vmatpush1.bf16.msra.mxu0 %v6187
        %8569 = vmatprep.subr.bf16.mxu0 %v6192
        %8570 = vmatpush1.bf16.msra.mxu0 %v6191
        %8571 = vmatprep.subr.bf16.mxu0 %v6196
        %8572 = vmatpush1.bf16.msra.mxu0 %v6195
        %8573 = vmatprep.subr.bf16.mxu0 %v6200
        %8574 = vmatpush1.bf16.msra.mxu0 %v6199
        %8575 = vmatprep.subr.bf16.mxu0 %v6204
        %8576 = vmatpush1.bf16.msra.mxu0 %v6203
        %8577 = vmatprep.subr.bf16.mxu0 %v6208
        %8578 = vmatpush1.bf16.msra.mxu0 %v6207
        %8579 = vmatprep.subr.bf16.mxu0 %v6212
        %8580 = vmatpush1.bf16.msra.mxu0 %v6211
        %8581 = vmatprep.subr.bf16.mxu0 %v6216
        %8582 = vmatpush1.bf16.msra.mxu0 %v6215
        %8583 = vmatprep.subr.bf16.mxu0 %v6220
        %8584 = vmatpush1.bf16.msra.mxu0 %v6219
        %8585 = vmatprep.subr.bf16.mxu0 %v6224
        %8586 = vmatpush1.bf16.msra.mxu0 %v6223
        %8587 = vmatprep.subr.bf16.mxu0 %v6228
        %8588 = vmatpush1.bf16.msra.mxu0 %v6227
        %8589 = vmatprep.subr.bf16.mxu0 %v6232
        %8590 = vmatpush1.bf16.msra.mxu0 %v6231
        %8591 = vmatprep.subr.bf16.mxu0 %v6236
        %8592 = vmatpush1.bf16.msra.mxu0 %v6235
        %8593 = vmatprep.subr.bf16.mxu0 %v6240
        %8594 = vmatpush1.bf16.msra.mxu0 %v6239
        %8595 = vmatprep.subr.bf16.mxu0 %v6244
        %8596 = vmatpush1.bf16.msra.mxu0 %v6243
        %8597 = vmatprep.subr.bf16.mxu0 %v6248
        %8598 = vmatpush1.bf16.msra.mxu0 %v6247
        %8599 = vmatprep.mubr.bf16.mxu0 %v2182
        %8600 = vmatmul.mubr.bf16.gmra.mrb[0].mxu0 %v2181
        %v8601 = vpop.f32.mrb[0].mxu0
        %v8602 = vadd.f32 %v8561, %v8601
        %v8603 = vpop.f32.mrb[0].mxu0
        %v8604 = vadd.f32 %v8563, %v8603
        %v8605 = vpop.f32.mrb[0].mxu0
        %v8606 = vpop.f32.mrb[0].mxu0
        %8607 = vdwg.mxu0
        %8608 = vmatprep.subr.bf16.mxu0 %v6252
        %8609 = vmatpush1.bf16.msra.mxu0 %v6251
        %8610 = vmatprep.subr.bf16.mxu0 %v6256
        %8611 = vmatpush1.bf16.msra.mxu0 %v6255
        %8612 = vmatprep.subr.bf16.mxu0 %v6260
        %8613 = vmatpush1.bf16.msra.mxu0 %v6259
        %8614 = vmatprep.subr.bf16.mxu0 %v6264
        %8615 = vmatpush1.bf16.msra.mxu0 %v6263
        %8616 = vmatprep.subr.bf16.mxu0 %v6268
        %8617 = vmatpush1.bf16.msra.mxu0 %v6267
        %8618 = vmatprep.subr.bf16.mxu0 %v6272
        %8619 = vmatpush1.bf16.msra.mxu0 %v6271
        %8620 = vmatprep.subr.bf16.mxu0 %v6276
        %8621 = vmatpush1.bf16.msra.mxu0 %v6275
        %8622 = vmatprep.subr.bf16.mxu0 %v6280
        %8623 = vmatpush1.bf16.msra.mxu0 %v6279
        %8624 = vmatprep.subr.bf16.mxu0 %v6284
        %8625 = vmatpush1.bf16.msra.mxu0 %v6283
        %8626 = vmatprep.subr.bf16.mxu0 %v6288
        %8627 = vmatpush1.bf16.msra.mxu0 %v6287
        %8628 = vmatprep.subr.bf16.mxu0 %v6292
        %8629 = vmatpush1.bf16.msra.mxu0 %v6291
        %8630 = vmatprep.subr.bf16.mxu0 %v6296
        %8631 = vmatpush1.bf16.msra.mxu0 %v6295
        %8632 = vmatprep.subr.bf16.mxu0 %v6300
        %8633 = vmatpush1.bf16.msra.mxu0 %v6299
        %8634 = vmatprep.subr.bf16.mxu0 %v6304
        %8635 = vmatpush1.bf16.msra.mxu0 %v6303
        %8636 = vmatprep.subr.bf16.mxu0 %v6308
        %8637 = vmatpush1.bf16.msra.mxu0 %v6307
        %8638 = vmatprep.subr.bf16.mxu0 %v6312
        %8639 = vmatpush1.bf16.msra.mxu0 %v6311
        %8640 = vmatprep.mubr.bf16.mxu0 %v2184
        %8641 = vmatmul.mubr.bf16.gmra.mrb[0].mxu0 %v2183
        %v8642 = vpop.f32.mrb[0].mxu0
        %v8643 = vadd.f32 %v8602, %v8642
        %v8644 = vpop.f32.mrb[0].mxu0
        %v8645 = vadd.f32 %v8604, %v8644
        %v8646 = vpop.f32.mrb[0].mxu0
        %v8647 = vpop.f32.mrb[0].mxu0
        %8648 = vdwg.mxu0
        %p8649 = scmp.lt.s32.totalorder %s24, 5
        %v8650 = vmax.f32 %v7987, 0.0
        %v8651 = vmax.f32 %v7989, 0.0
        %v8652 = vmax.f32 %v8643, 0.0
        %v8653 = vmax.f32 %v8645, 0.0
        %s8654 = scalar_select %p8649, 1, 0
        %v8655 = vstv %s8654
        %vm8656 = vcmp.eq.s32.totalorder %v8655, 1
        %v8657 = vsel %vm8656, %v8650, %v7987
        %v8658 = vsel %vm8656, %v8651, %v7989
        %v8659 = vsel %vm8656, %v8652, %v8643
        %v8660 = vsel %vm8656, %v8653, %v8645
        %v8665 = vcombine.low %v8657, %v8658
        %v8666 = vcombine.low %v8659, %v8660
        %v8668 = vunpack.c.l.s4 1983009808
        %v8669 = vunpack.c.0.s8 %v8668
        %v8670 = vlaneseq
        %v8671 = vshrl.u32 %v8670, 7
        %v8672 = vsub.s32 %v8669, %v8671
        %v8673 = vrot.slane %v8665, %v8672
        %v8675 = vunpack.c.l.s4 1983009808
        %v8676 = vunpack.c.0.s8 %v8675
        %v8677 = vlaneseq
        %v8678 = vshrl.u32 %v8677, 7
        %v8679 = vsub.s32 %v8676, %v8678
        %v8680 = vrot.slane %v8666, %v8679
        %v8681 = vcombine.low %v8673, %v8680
        %8683 = vst [vmem:[%s260] sm:$0xff] %v8681
        %s8684 = smul.u32 4, %s25
        %p8685 = scmp.lt.s32.totalorder %s24, 5
        %s8686 = scalar_select %p8685, %s24, 5
        %p8687 = scmp.lt.s32.totalorder %s8684, 7
        %s8688 = scalar_select %p8687, %s8684, 7
        %s8689 = smul.addr %s8686, 8
        %s8690 = sadd.s32 %s8688, %s8689
        %s8691 = smul.addr %s8690, 2
        %s8692 = scalar_lea.vmem %s3, %s8691
        // Predicated region
        $region41: #{downstream_forward.2} parent=31 // pred_check
          %p8693 = pneg %p129
        $region42: #{downstream_forward.2} parent=31 // pred_check_branch
          %8695 = sbr.rel (%p8693) target = $region44
        $region43: #{downstream_forward.2} parent=31 // pred_region
          %s8696 = smul.u32 4, %s25
        $region44: #{downstream_forward.2} parent=31 // pred_fallthru
          _
      $region32: #{downstream_forward.2} parent=5 // pred_fallthru
        _
      %p8697 = scmp.le.s32.totalorder 2, %s15
      // Predicated region
      $region45: #{downstream_forward.2} parent=5 // pred_check
        %p8698 = pneg %p8697
      $region46: #{downstream_forward.2} parent=5 // pred_check_branch
        %8700 = sbr.rel (%p8698) target = $region48
      $region47: #{downstream_forward.2} parent=5 // pred_region
        %s8701 = ssub.s32 %s15, 2
        // Predicated region
        $region49: #{downstream_forward.2} parent=47 // pred_check
          %p8702 = pneg %p135
        $region50: #{downstream_forward.2} parent=47 // pred_check_branch
          %8704 = sbr.rel (%p8702) target = $region52
        $region51: #{downstream_forward.2} parent=47 // pred_region
          %s8705 = smul.u32 4, %s27
          %p8706 = scmp.lt.s32.totalorder %s26, 5
          %s8707 = scalar_select %p8706, %s26, 5
          %p8708 = scmp.lt.s32.totalorder %s8705, 7
          %s8709 = scalar_select %p8708, %s8705, 7
          %s8710 = smul.addr %s8707, 8
          %s8711 = sadd.s32 %s8709, %s8710
          %s8712 = smul.addr %s8711, 2
          %s8713 = scalar_lea.vmem %s3, %s8712
        $region52: #{downstream_forward.2} parent=47 // pred_fallthru
          _
      $region48: #{downstream_forward.2} parent=5 // pred_fallthru
        _
    $region6: #{downstream_forward.2} parent=1 // loop_footer
      %s19 = sadd.s32 1, %s15
    $region7: #{downstream_forward.2} parent=1 // loop_footer_branch
      %14 = sbr.rel target = $region3
    $region8: #{downstream_forward.2} parent=1 // loop_exit
      _
    %8714 = vsyncpa [#allocation3], 1
    %s8715 = scalar_lea.sflag [#allocation3], 1
    %8716 = vsyncpa %s8715, 1
    %8717 = vsyncpa [#allocation5], 1
    %s8718 = scalar_lea.sflag [#allocation5], 1
    %8719 = vsyncpa %s8718, 1

</llo_original>
